<compile_context>
chip_gen: v7x
topology: tpu7x:2x2x1
jax: 0.10.0
libtpu: 0.0.40
codegen_flags: <defaults>
</compile_context>

<pallas_src>
import numpy as np
import jax
import jax.numpy as jnp
from jax import lax
from jax.experimental import pallas as pl
from jax.experimental.pallas import tpu as pltpu


MAX_TILE_ROWS = 256  # frames per signal per grid step (sublane-friendly cap)


# ----------------------------------------------------------------------------
# Deterministic parameter / buffer construction (mirrors the PyTorch __init__).
# ----------------------------------------------------------------------------
def hann_window(win_length: int) -> np.ndarray:
    # torch.hann_window default is periodic=True
    n = np.arange(win_length, dtype=np.float64)
    return (0.5 * (1.0 - np.cos(2.0 * np.pi * n / win_length))).astype(np.float32)


def a_weighting_db(frequencies: np.ndarray, min_db: float = -80.0) -> np.ndarray:
    # librosa.A_weighting re-implemented (no librosa dependency).
    f_sq = np.asanyarray(frequencies, dtype=np.float64) ** 2.0
    const = np.array([12194.217, 20.598997, 107.65265, 737.86223]) ** 2.0
    weights = 2.0 + 20.0 * (
        np.log10(const[0])
        + 2 * np.log10(f_sq)
        - np.log10(f_sq + const[0])
        - np.log10(f_sq + const[1])
        - 0.5 * np.log10(f_sq + const[2])
        - 0.5 * np.log10(f_sq + const[3])
    )
    return np.maximum(min_db, weights)


def compute_mag_scale(n_fft: int, sampling_rate: int) -> np.ndarray:
    # librosa.fft_frequencies
    frequencies = np.linspace(0.0, sampling_rate / 2.0, n_fft // 2 + 1)
    frequencies = np.where(frequencies > 1e-10, frequencies, -10.0)
    db_scale = a_weighting_db(frequencies).reshape(1, -1)
    mag_scale = np.sqrt(np.power(10.0, db_scale / 10.0)).astype(np.float32)
    return mag_scale  # (1, n_fft//2 + 1)


def padded_window(n_fft: int, win_length: int) -> np.ndarray:
    # torch.stft zero-pads the window to n_fft, centered.
    win = hann_window(win_length)
    left = (n_fft - win_length) // 2
    win_full = np.zeros((n_fft,), dtype=np.float32)
    win_full[left:left + win_length] = win
    return win_full


def windowed_dft_basis(n_fft: int, win_full: np.ndarray) -> np.ndarray:
    """Window-folded [cos | sin] basis for bins k = 0 .. n_fft//2 - 1 (no Nyquist).

    Returns (n_fft, 2*F) float32 with F = n_fft//2 (lane-dense multiple of 128).
    """
    n_freq = n_fft // 2
    n = np.arange(n_fft, dtype=np.float64)[:, None]
    k = np.arange(n_freq, dtype=np.float64)[None, :]
    angle = 2.0 * np.pi * n * k / n_fft
    cos_w = (win_full[:, None] * np.cos(angle)).astype(np.float32)
    sin_w = (win_full[:, None] * np.sin(angle)).astype(np.float32)
    return np.concatenate([cos_w, sin_w], axis=1)  # (n_fft, 2*F)


# ----------------------------------------------------------------------------
# Tiling helpers
# ----------------------------------------------------------------------------
def pick_tile_rows(n_rows: int, max_tile: int = MAX_TILE_ROWS) -> int:
    """Balanced tile height: multiple of 8, <= max_tile, minimal dead rows."""
    num_tiles = max(1, -(-n_rows // max_tile))      # cdiv
    per_tile = -(-n_rows // num_tiles)               # cdiv
    return max(8, ((per_tile + 7) // 8) * 8)


def _vmem_limit_bytes(n_fft: int, tile_rows: int) -> int:
    f = n_fft // 2
    basis = 2 * (n_fft * 2 * f * 2)                  # bf16, budget x2 buffers
    frames = 2 * 2 * tile_rows * n_fft * 2           # two bf16 inputs, double-buffered
    accs = 3 * tile_rows * f * 4                     # f32 accumulators
    total = basis + frames + accs + (8 << 20)        # + compiler scratch margin
    return int(min(max(total, 32 << 20), 64 << 20))


# ----------------------------------------------------------------------------
# Pallas kernel: two bf16 MXU DFT matmuls (x, y) -> clipped powers -> partial
# sums accumulated in f32 VMEM scratch, scalar reduction in the epilogue (SMEM).
# ----------------------------------------------------------------------------
def _stft_loss_kernel(xf_ref, yf_ref, basis_ref, scale2_ref, out_ref,
                      d2_acc, ysq_acc, labs_acc):
    i = pl.program_id(0)

    @pl.when(i == 0)
    def _init():
        d2_acc[...] = jnp.zeros_like(d2_acc)
        ysq_acc[...] = jnp.zeros_like(ysq_acc)
        labs_acc[...] = jnp.zeros_like(labs_acc)

    f = scale2_ref.shape[-1]                  # n_fft // 2 (multiple of 128)
    basis = basis_ref[...]                    # (n_fft, 2F) bf16, VMEM-resident

    # bf16 MXU matmuls with f32 accumulation.
    prod_x = jnp.dot(xf_ref[...], basis, preferred_element_type=jnp.float32)
    prod_y = jnp.dot(yf_ref[...], basis, preferred_element_type=jnp.float32)

    rex, imx = prod_x[:, :f], prod_x[:, f:]
    rey, imy = prod_y[:, :f], prod_y[:, f:]
    # torch: clamp(re^2 + im^2, 1e-7, 1000) before sqrt
    px = jnp.clip(rex * rex + imx * imx, 1e-7, 1000.0)
    py = jnp.clip(rey * rey + imy * imy, 1e-7, 1000.0)

    scale2 = scale2_ref[...]                  # (1, F) A-weighting power scale
    cross = jnp.sqrt(px * py)                 # sqrt(px)*sqrt(py), one sqrt
    # (y_mag - x_mag)^2 == scale^2 * (px + py - 2*sqrt(px*py))
    d2_acc[...] += scale2 * (px + py - 2.0 * cross)
    # y_mag^2 == scale^2 * py (no sqrt needed)
    ysq_acc[...] += scale2 * py
    # |log(y_mag) - log(x_mag)| == 0.5*|log(py/px)|; the 0.5 is applied once
    # on the final scalar in the wrapper.
    labs_acc[...] += jnp.abs(jnp.log(py * pl.reciprocal(px, approx=True)))

    @pl.when(i == pl.num_programs(0) - 1)
    def _finalize():
        out_ref[0] = jnp.sum(d2_acc[...])
        out_ref[1] = jnp.sum(ysq_acc[...])
        out_ref[2] = jnp.sum(labs_acc[...])


def stft_loss_sums_pallas(xf, yf, basis, scale2, tile_rows):
    """Returns (3,) f32: [sum((y_mag-x_mag)^2), sum(y_mag^2), sum(|log(py/px)|)]."""
    n_rows, n_fft = xf.shape
    num_tiles = n_rows // tile_rows
    f = scale2.shape[-1]
    return pl.pallas_call(
        _stft_loss_kernel,
        out_shape=jax.ShapeDtypeStruct((3,), jnp.float32),
        grid=(num_tiles,),
        in_specs=[
            pl.BlockSpec((tile_rows, n_fft), lambda i: (i, 0)),       # x frames
            pl.BlockSpec((tile_rows, n_fft), lambda i: (i, 0)),       # y frames
            pl.BlockSpec(memory_space=pltpu.MemorySpace.VMEM),        # DFT basis
            pl.BlockSpec(memory_space=pltpu.MemorySpace.VMEM),        # scale^2
        ],
        out_specs=pl.BlockSpec(memory_space=pltpu.MemorySpace.SMEM),
        scratch_shapes=[pltpu.VMEM((tile_rows, f), jnp.float32)] * 3,
        compiler_params=pltpu.CompilerParams(
            dimension_semantics=("arbitrary",),
            vmem_limit_bytes=_vmem_limit_bytes(n_fft, tile_rows),
        ),
    )(xf, yf, basis, scale2)


# ----------------------------------------------------------------------------
# Wrapper-side pieces (reflect pad, frame gather, Nyquist bin)
# ----------------------------------------------------------------------------
def _strided_corr(x_pad, w, hop):
    """out[b, t] = sum_n x_pad[b, t*hop + n] * w[n]   (reads only the small signal)."""
    out = lax.conv_general_dilated(
        x_pad[:, None, :], w[None, None, :],
        window_strides=(hop,), padding="VALID",
        dimension_numbers=("NCH", "OIH", "NCH"))
    return out[:, 0, :]


class STFTLossPallas:
    def __init__(self, fft_size=1024, hop_length=120, win_length=600,
                 sampling_rate=16000, max_tile_rows=MAX_TILE_ROWS):
        self.fft_size = fft_size
        self.hop_length = hop_length
        self.win_length = win_length
        self.max_tile_rows = max_tile_rows

        win_full = padded_window(fft_size, win_length)
        f = fft_size // 2
        # bf16 basis: MXU-native and half the VMEM / DMA bytes.
        self.basis = jnp.asarray(windowed_dft_basis(fft_size, win_full),
                                 dtype=jnp.bfloat16)                     # (n_fft, 2F)

        full_scale = compute_mag_scale(fft_size, sampling_rate)          # (1, F+1)
        scale_main = full_scale[:, :f].astype(np.float32)                # (1, F)
        scale2_np = (scale_main * scale_main).astype(np.float32)
        self.scale2_main = jnp.asarray(scale2_np)                        # (1, F) f32
        self.scale2_sum = float(np.sum(scale2_np.astype(np.float64)))
        self.scale_nyq = float(full_scale[0, f])
        # Nyquist bin is real-only: cos(pi*n) = (-1)^n (window folded in).
        self.w_nyq = jnp.asarray(
            (win_full * np.cos(np.pi * np.arange(fft_size))).astype(np.float32))

    def __call__(self, x, y):
        B, T = x.shape
        n_fft, hop = self.fft_size, self.hop_length
        pad = n_fft // 2

        # torch.stft(center=True) reflect padding (stays in JAX).
        xp = jnp.pad(x, ((0, 0), (pad, pad)), mode="reflect")
        yp = jnp.pad(y, ((0, 0), (pad, pad)), mode="reflect")

        # Overlapped-frame gather, emitted directly in bf16.
        n_frames = 1 + T // hop
        idx = np.arange(n_frames)[:, None] * hop + np.arange(n_fft)[None, :]
        xf = xp.astype(jnp.bfloat16)[:, idx].reshape(B * n_frames, n_fft)
        yf = yp.astype(jnp.bfloat16)[:, idx].reshape(B * n_frames, n_fft)

        n_rows = B * n_frames
        tile_rows = pick_tile_rows(n_rows, self.max_tile_rows)
        n_pad = (-n_rows) % tile_rows
        if n_pad:
            xf = jnp.pad(xf, ((0, n_pad), (0, 0)))
            yf = jnp.pad(yf, ((0, n_pad), (0, 0)))

        sums = stft_loss_sums_pallas(xf, yf, self.basis, self.scale2_main, tile_rows)
        d2, ysq, labs = sums[0], sums[1], 0.5 * sums[2]

        if n_pad:
            # Zero-padded rows contribute exactly clamp_min * scale^2 per bin to
            # ||y_mag||^2 (and nothing to the other sums); remove that bias.
            ysq = ysq - float(n_pad) * 1e-7 * self.scale2_sum

        # Nyquist bin: strided correlation on the small padded signal (no
        # re-read of the framed arrays).
        nx = _strided_corr(xp, self.w_nyq, hop)
        ny = _strided_corr(yp, self.w_nyq, hop)
        pxn = jnp.clip(nx * nx, 1e-7, 1000.0)
        pyn = jnp.clip(ny * ny, 1e-7, 1000.0)
        s2 = self.scale_nyq * self.scale_nyq
        d2 = d2 + s2 * jnp.sum((jnp.sqrt(pyn) - jnp.sqrt(pxn)) ** 2)
        ysq = ysq + s2 * jnp.sum(pyn)
        labs = labs + 0.5 * jnp.sum(jnp.abs(jnp.log(pyn) - jnp.log(pxn)))

        n_total_elems = n_rows * (n_fft // 2 + 1)
        sc_loss = jnp.sqrt(d2) / jnp.sqrt(ysq)
        log_mag_loss = labs / n_total_elems
        return sc_loss, log_mag_loss


class MultiResolutionSTFTLossPallas:
    def __init__(self, fft_sizes=(1024, 2048, 512), hop_sizes=(120, 240, 50),
                 win_lengths=(600, 1200, 240), sampling_rate=16000):
        assert len(fft_sizes) == len(hop_sizes) == len(win_lengths)
        self.stft_losses = [
            STFTLossPallas(fs, ss, wl, sampling_rate=sampling_rate)
            for fs, ss, wl in zip(fft_sizes, hop_sizes, win_lengths)
        ]

    def __call__(self, x, y):
        sc_loss = 0.0
        mag_loss = 0.0
        for f in self.stft_losses:
            sc_l, mag_l = f(x, y)
            sc_loss = sc_loss + sc_l
            mag_loss = mag_loss + mag_l
        n = len(self.stft_losses)
        return sc_loss / n, mag_loss / n


# ----------------------------------------------------------------------------
# Pure-JAX reference (rFFT based) for a sanity check.
# ----------------------------------------------------------------------------
def reference_multi_resolution_loss(x, y, configs, sampling_rate=16000):
    sc_total, lm_total = 0.0, 0.0
    for fft_size, hop, win_length in configs:
        win_full = jnp.asarray(padded_window(fft_size, win_length))
        scale = jnp.asarray(compute_mag_scale(fft_size, sampling_rate))  # (1, F+1)

        def mag(sig, fft_size=fft_size, hop=hop, win_full=win_full, scale=scale):
            pad = fft_size // 2
            sp = jnp.pad(sig, ((0, 0), (pad, pad)), mode="reflect")
            n_frames = 1 + (sig.shape[1] + 2 * pad - fft_size) // hop
            idx = np.arange(n_frames)[:, None] * hop + np.arange(fft_size)[None, :]
            fr = sp[:, idx] * win_full[None, None, :]
            spec = jnp.fft.rfft(fr, axis=-1)
            p = jnp.clip(spec.real ** 2 + spec.imag ** 2, 1e-7, 1000.0)
            return jnp.sqrt(p) * scale

        xm, ym = mag(x), mag(y)
        sc_total = sc_total + jnp.sqrt(jnp.sum((ym - xm) ** 2)) / jnp.sqrt(jnp.sum(ym ** 2))
        lm_total = lm_total + jnp.mean(jnp.abs(jnp.log(ym) - jnp.log(xm)))
    n = len(configs)
    return sc_total / n, lm_total / n


if __name__ == "__main__":
    key = jax.random.PRNGKey(0)
    kx, ky = jax.random.split(key)
    B, T = 2, 4096  # T >= n_fft/2 + 1 for the largest resolution's reflect pad
    x = 0.5 * jax.random.normal(kx, (B, T), dtype=jnp.float32)
    y = 0.5 * jax.random.normal(ky, (B, T), dtype=jnp.float32)

    configs = ((1024, 120, 600), (2048, 240, 1200), (512, 50, 240))
    loss_mod = MultiResolutionSTFTLossPallas(
        fft_sizes=tuple(c[0] for c in configs),
        hop_sizes=tuple(c[1] for c in configs),
        win_lengths=tuple(c[2] for c in configs),
        sampling_rate=16000,
    )

    sc_loss, log_mag_loss = loss_mod(x, y)
    jax.block_until_ready((sc_loss, log_mag_loss))

    sc_ref, lm_ref = reference_multi_resolution_loss(x, y, configs, 16000)
    jax.block_until_ready((sc_ref, lm_ref))

    assert np.allclose(float(sc_loss), float(sc_ref), rtol=5e-2, atol=5e-3), \
        (float(sc_loss), float(sc_ref))
    assert np.allclose(float(log_mag_loss), float(lm_ref), rtol=5e-2, atol=5e-3), \
        (float(log_mag_loss), float(lm_ref))

    print("KERNEL_OK")
</pallas_src>

<mosaic_0001>
module attributes {stable_mosaic.version = 11 : i64} {
  func.func @_stft_loss_kernel(%arg0: i32, %arg1: memref<72x1024xbf16, #tpu.memory_space<vmem>>, %arg2: memref<72x1024xbf16, #tpu.memory_space<vmem>>, %arg3: memref<1024x1024xbf16, #tpu.memory_space<vmem>>, %arg4: memref<1x512xf32, #tpu.memory_space<vmem>>, %arg5: memref<3xf32, #tpu.memory_space<smem>>, %arg6: memref<72x512xf32, #tpu.memory_space<vmem>>, %arg7: memref<72x512xf32, #tpu.memory_space<vmem>>, %arg8: memref<72x512xf32, #tpu.memory_space<vmem>>) attributes {dimension_semantics = [#tpu.dimension_semantics<arbitrary>], iteration_bounds = array<i64: 1>, scalar_prefetch = 0 : i64, scratch_operands = 3 : i64, tpu.core_type = #tpu.core_type<tc>, window_params = [{transform_indices = @transform_0, window_bounds = array<i64: 72, 1024>}, {transform_indices = @transform_1, window_bounds = array<i64: 72, 1024>}, {pipeline_mode = #tpu.pipeline_mode<synchronous>, transform_indices = @transform_2, window_bounds = array<i64: 1024, 1024>}, {pipeline_mode = #tpu.pipeline_mode<synchronous>, transform_indices = @transform_3, window_bounds = array<i64: 1, 512>}, {transform_indices = @transform_4, window_bounds = array<i64: 3>}]} {
    %c0_i32 = arith.constant 0 : i32
    %0 = arith.cmpi eq, %arg0, %c0_i32 : i32
    %1 = arith.extui %0 : i1 to i32
    %c0_i32_0 = arith.constant 0 : i32
    %2 = arith.cmpi ne, %1, %c0_i32_0 : i32
    scf.if %2 {
      %cst_28 = arith.constant 0.000000e+00 : f32
      %53 = vector.broadcast %cst_28 : f32 to vector<72x512xf32>
      %c0_29 = arith.constant 0 : index
      %c0_30 = arith.constant 0 : index
      %54 = vector.load %arg6[%c0_29, %c0_30] : memref<72x512xf32, #tpu.memory_space<vmem>>, vector<72x512xf32>
      tpu.vector_store %arg6[%c0_29, %c0_30], %53 {strides = array<i32>} : memref<72x512xf32, #tpu.memory_space<vmem>>, vector<72x512xf32>,
      %cst_31 = arith.constant 0.000000e+00 : f32
      %55 = vector.broadcast %cst_31 : f32 to vector<72x512xf32>
      %c0_32 = arith.constant 0 : index
      %c0_33 = arith.constant 0 : index
      %56 = vector.load %arg7[%c0_32, %c0_33] : memref<72x512xf32, #tpu.memory_space<vmem>>, vector<72x512xf32>
      tpu.vector_store %arg7[%c0_32, %c0_33], %55 {strides = array<i32>} : memref<72x512xf32, #tpu.memory_space<vmem>>, vector<72x512xf32>,
      %cst_34 = arith.constant 0.000000e+00 : f32
      %57 = vector.broadcast %cst_34 : f32 to vector<72x512xf32>
      %c0_35 = arith.constant 0 : index
      %c0_36 = arith.constant 0 : index
      %58 = vector.load %arg8[%c0_35, %c0_36] : memref<72x512xf32, #tpu.memory_space<vmem>>, vector<72x512xf32>
      tpu.vector_store %arg8[%c0_35, %c0_36], %57 {strides = array<i32>} : memref<72x512xf32, #tpu.memory_space<vmem>>, vector<72x512xf32>,
    } else {
    }
    %c0 = arith.constant 0 : index
    %c0_1 = arith.constant 0 : index
    %3 = vector.load %arg3[%c0, %c0_1] : memref<1024x1024xbf16, #tpu.memory_space<vmem>>, vector<1024x1024xbf16>
    %c0_2 = arith.constant 0 : index
    %c0_3 = arith.constant 0 : index
    %4 = vector.load %arg1[%c0_2, %c0_3] : memref<72x1024xbf16, #tpu.memory_space<vmem>>, vector<72x1024xbf16>
    %cst = arith.constant dense<0.000000e+00> : vector<72x1024xf32>
    %5 = tpu.matmul %4, %3, %cst {dimension_numbers = #tpu.dot_dimension_numbers<[1], [0], [0], [1], [0, 0, 1, 1], [], []>} : vector<72x1024xbf16>, vector<1024x1024xbf16>, vector<72x1024xf32> -> vector<72x1024xf32>
    %c0_4 = arith.constant 0 : index
    %c0_5 = arith.constant 0 : index
    %6 = vector.load %arg2[%c0_4, %c0_5] : memref<72x1024xbf16, #tpu.memory_space<vmem>>, vector<72x1024xbf16>
    %cst_6 = arith.constant dense<0.000000e+00> : vector<72x1024xf32>
    %7 = tpu.matmul %6, %3, %cst_6 {dimension_numbers = #tpu.dot_dimension_numbers<[1], [0], [0], [1], [0, 0, 1, 1], [], []>} : vector<72x1024xbf16>, vector<1024x1024xbf16>, vector<72x1024xf32> -> vector<72x1024xf32>
    %8 = vector.extract_strided_slice %5 {offsets = [0, 0], sizes = [72, 512], strides = [1, 1]} : vector<72x1024xf32> to vector<72x512xf32>
    %9 = vector.extract_strided_slice %5 {offsets = [0, 512], sizes = [72, 512], strides = [1, 1]} : vector<72x1024xf32> to vector<72x512xf32>
    %10 = vector.extract_strided_slice %7 {offsets = [0, 0], sizes = [72, 512], strides = [1, 1]} : vector<72x1024xf32> to vector<72x512xf32>
    %11 = vector.extract_strided_slice %7 {offsets = [0, 512], sizes = [72, 512], strides = [1, 1]} : vector<72x1024xf32> to vector<72x512xf32>
    %12 = arith.mulf %8, %8 : vector<72x512xf32>
    %13 = arith.mulf %9, %9 : vector<72x512xf32>
    %14 = arith.addf %12, %13 : vector<72x512xf32>
    %cst_7 = arith.constant 1.000000e-07 : f32
    %cst_8 = arith.constant 1.000000e+03 : f32
    %15 = vector.broadcast %cst_7 : f32 to vector<72x512xf32>
    %16 = arith.maximumf %15, %14 : vector<72x512xf32>
    %17 = vector.broadcast %cst_8 : f32 to vector<72x512xf32>
    %18 = arith.minimumf %17, %16 : vector<72x512xf32>
    %19 = arith.mulf %10, %10 : vector<72x512xf32>
    %20 = arith.mulf %11, %11 : vector<72x512xf32>
    %21 = arith.addf %19, %20 : vector<72x512xf32>
    %cst_9 = arith.constant 1.000000e-07 : f32
    %cst_10 = arith.constant 1.000000e+03 : f32
    %22 = vector.broadcast %cst_9 : f32 to vector<72x512xf32>
    %23 = arith.maximumf %22, %21 : vector<72x512xf32>
    %24 = vector.broadcast %cst_10 : f32 to vector<72x512xf32>
    %25 = arith.minimumf %24, %23 : vector<72x512xf32>
    %c0_11 = arith.constant 0 : index
    %c0_12 = arith.constant 0 : index
    %26 = vector.load %arg4[%c0_11, %c0_12] : memref<1x512xf32, #tpu.memory_space<vmem>>, vector<1x512xf32>
    %27 = arith.mulf %18, %25 : vector<72x512xf32>
    %28 = math.sqrt %27 : vector<72x512xf32>
    %c0_13 = arith.constant 0 : index
    %c0_14 = arith.constant 0 : index
    %29 = vector.load %arg6[%c0_13, %c0_14] : memref<72x512xf32, #tpu.memory_space<vmem>>, vector<72x512xf32>
    %30 = arith.addf %18, %25 : vector<72x512xf32>
    %cst_15 = arith.constant 2.000000e+00 : f32
    %31 = vector.broadcast %cst_15 : f32 to vector<72x512xf32>
    %32 = arith.mulf %31, %28 : vector<72x512xf32>
    %33 = arith.subf %30, %32 : vector<72x512xf32>
    %34 = vector.broadcast %26 : vector<1x512xf32> to vector<72x512xf32>
    %35 = arith.mulf %34, %33 : vector<72x512xf32>
    %36 = arith.addf %29, %35 : vector<72x512xf32>
    %c0_16 = arith.constant 0 : index
    %c0_17 = arith.constant 0 : index
    %37 = vector.load %arg6[%c0_16, %c0_17] : memref<72x512xf32, #tpu.memory_space<vmem>>, vector<72x512xf32>
    tpu.vector_store %arg6[%c0_16, %c0_17], %36 {strides = array<i32>} : memref<72x512xf32, #tpu.memory_space<vmem>>, vector<72x512xf32>,
    %c0_18 = arith.constant 0 : index
    %c0_19 = arith.constant 0 : index
    %38 = vector.load %arg7[%c0_18, %c0_19] : memref<72x512xf32, #tpu.memory_space<vmem>>, vector<72x512xf32>
    %39 = vector.broadcast %26 : vector<1x512xf32> to vector<72x512xf32>
    %40 = arith.mulf %39, %25 : vector<72x512xf32>
    %41 = arith.addf %38, %40 : vector<72x512xf32>
    %c0_20 = arith.constant 0 : index
    %c0_21 = arith.constant 0 : index
    %42 = vector.load %arg7[%c0_20, %c0_21] : memref<72x512xf32, #tpu.memory_space<vmem>>, vector<72x512xf32>
    tpu.vector_store %arg7[%c0_20, %c0_21], %41 {strides = array<i32>} : memref<72x512xf32, #tpu.memory_space<vmem>>, vector<72x512xf32>,
    %c0_22 = arith.constant 0 : index
    %c0_23 = arith.constant 0 : index
    %43 = vector.load %arg8[%c0_22, %c0_23] : memref<72x512xf32, #tpu.memory_space<vmem>>, vector<72x512xf32>
    %44 = tpu.reciprocal %18 {approx = true} : vector<72x512xf32> -> vector<72x512xf32>
    %45 = arith.mulf %25, %44 : vector<72x512xf32>
    %46 = math.log %45 : vector<72x512xf32>
    %47 = math.absf %46 : vector<72x512xf32>
    %48 = arith.addf %43, %47 : vector<72x512xf32>
    %c0_24 = arith.constant 0 : index
    %c0_25 = arith.constant 0 : index
    %49 = vector.load %arg8[%c0_24, %c0_25] : memref<72x512xf32, #tpu.memory_space<vmem>>, vector<72x512xf32>
    tpu.vector_store %arg8[%c0_24, %c0_25], %48 {strides = array<i32>} : memref<72x512xf32, #tpu.memory_space<vmem>>, vector<72x512xf32>,
    %c0_i32_26 = arith.constant 0 : i32
    %50 = arith.cmpi eq, %arg0, %c0_i32_26 : i32
    %51 = arith.extui %50 : i1 to i32
    %c0_i32_27 = arith.constant 0 : i32
    %52 = arith.cmpi ne, %51, %c0_i32_27 : i32
    scf.if %52 {
      %c0_28 = arith.constant 0 : index
      %c0_29 = arith.constant 0 : index
      %53 = vector.load %arg6[%c0_28, %c0_29] : memref<72x512xf32, #tpu.memory_space<vmem>>, vector<72x512xf32>
      %54 = vector.shape_cast %53 : vector<72x512xf32> to vector<1x72x512xf32>
      %cst_30 = arith.constant dense<0.000000e+00> : vector<1xf32>
      %55 = vector.multi_reduction <add>, %54, %cst_30 [1, 2] : vector<1x72x512xf32> to vector<1xf32>
      %56 = vector.shape_cast %55 : vector<1xf32> to vector<1x1x1xf32>
      %57 = vector.extract %56[0, 0, 0] : f32 from vector<1x1x1xf32>
      %c0_31 = arith.constant 0 : index
      %58 = memref.load %arg5[%c0_31] : memref<3xf32, #tpu.memory_space<smem>>
      memref.store %57, %arg5[%c0_31] : memref<3xf32, #tpu.memory_space<smem>>
      %c0_32 = arith.constant 0 : index
      %c0_33 = arith.constant 0 : index
      %59 = vector.load %arg7[%c0_32, %c0_33] : memref<72x512xf32, #tpu.memory_space<vmem>>, vector<72x512xf32>
      %60 = vector.shape_cast %59 : vector<72x512xf32> to vector<1x72x512xf32>
      %cst_34 = arith.constant dense<0.000000e+00> : vector<1xf32>
      %61 = vector.multi_reduction <add>, %60, %cst_34 [1, 2] : vector<1x72x512xf32> to vector<1xf32>
      %62 = vector.shape_cast %61 : vector<1xf32> to vector<1x1x1xf32>
      %63 = vector.extract %62[0, 0, 0] : f32 from vector<1x1x1xf32>
      %c1 = arith.constant 1 : index
      %64 = memref.load %arg5[%c1] : memref<3xf32, #tpu.memory_space<smem>>
      memref.store %63, %arg5[%c1] : memref<3xf32, #tpu.memory_space<smem>>
      %c0_35 = arith.constant 0 : index
      %c0_36 = arith.constant 0 : index
      %65 = vector.load %arg8[%c0_35, %c0_36] : memref<72x512xf32, #tpu.memory_space<vmem>>, vector<72x512xf32>
      %66 = vector.shape_cast %65 : vector<72x512xf32> to vector<1x72x512xf32>
      %cst_37 = arith.constant dense<0.000000e+00> : vector<1xf32>
      %67 = vector.multi_reduction <add>, %66, %cst_37 [1, 2] : vector<1x72x512xf32> to vector<1xf32>
      %68 = vector.shape_cast %67 : vector<1xf32> to vector<1x1x1xf32>
      %69 = vector.extract %68[0, 0, 0] : f32 from vector<1x1x1xf32>
      %c2 = arith.constant 2 : index
      %70 = memref.load %arg5[%c2] : memref<3xf32, #tpu.memory_space<smem>>
      memref.store %69, %arg5[%c2] : memref<3xf32, #tpu.memory_space<smem>>
    } else {
    }
    return
  }
  func.func @transform_0(%arg0: i32) -> (i32, i32) {
    %c0_i32 = arith.constant 0 : i32
    %c0_i32_0 = arith.constant 0 : i32
    return %arg0, %c0_i32 : i32, i32
  }
  func.func @transform_1(%arg0: i32) -> (i32, i32) {
    %c0_i32 = arith.constant 0 : i32
    %c0_i32_0 = arith.constant 0 : i32
    return %arg0, %c0_i32 : i32, i32
  }
  func.func @transform_2(%arg0: i32) -> (i32, i32) {
    %c0_i32 = arith.constant 0 : i32
    %c0_i32_0 = arith.constant 0 : i32
    %c0_i32_1 = arith.constant 0 : i32
    return %c0_i32, %c0_i32_0 : i32, i32
  }
  func.func @transform_3(%arg0: i32) -> (i32, i32) {
    %c0_i32 = arith.constant 0 : i32
    %c0_i32_0 = arith.constant 0 : i32
    %c0_i32_1 = arith.constant 0 : i32
    return %c0_i32, %c0_i32_0 : i32, i32
  }
  func.func @transform_4(%arg0: i32) -> i32 {
    %c0_i32 = arith.constant 0 : i32
    %c0_i32_0 = arith.constant 0 : i32
    return %c0_i32 : i32
  }
}

</mosaic_0001>

<llo_original>
// kernel: tpu_custom_call.1
$region0: #{tpu_custom_call.1}
  #allocation0 [shape = 'u32[]', space=smem, size = 0x4, offset = 0x4, fixed_abs, tag = 'smem constant byte address 0x4 - core index']
  #allocation1 [shape = 'u32[144,128]{1,0:T(1,128)}', space=vmem, size = 0x12000, scoped, tag = 'internal scratch']
  #allocation2 [shape = 'f32[72,512]{1,0:T(8,128)}', space=vmem, size = 0x24000, scoped, tag = 'scratch operand']
  #allocation3 [shape = 'f32[72,512]{1,0:T(8,128)}', space=vmem, size = 0x24000, scoped, tag = 'scratch operand']
  #allocation4 [shape = 'f32[72,512]{1,0:T(8,128)}', space=vmem, size = 0x24000, scoped, tag = 'scratch operand']
  %s0 = inlined_call_operand.hbm [shape: bf16[72,1024], index: 0, kind: input, shape index: {}]
  %s1 = inlined_call_operand.hbm [shape: bf16[72,1024], index: 1, kind: input, shape index: {}]
  %s2 = inlined_call_operand.hbm [shape: bf16[1024,1024], index: 2, kind: input, shape index: {}]
  %s3 = inlined_call_operand.hbm [shape: f32[1,512], index: 3, kind: input, shape index: {}]
  %s4 = inlined_call_operand.hbm [shape: f32[3], index: 4, kind: output, shape index: {}]
  %s5 = sld [smem:[#allocation0]]
  $region50: #{tpu_custom_call.1} parent=0
    _
  %s7 = ssub.s32 1, %s5
  %s8 = scalar_select 0, %s7, %s5
  $region1: #{tpu_custom_call.1} parent=0
    #allocation5 [shape = 'u8[147456]{0}', space=vmem, size = 0x24000, scoped, tag = 'input window, operand 0, single buffered']
    #allocation6 [shape = 's32[1]{0}', space=sflag, size = 0x4, scoped, tag = 'scoped memory for tpu_custom_call.1']
    #allocation7 [shape = 's32[1]{0}', space=sflag, size = 0x4, scoped, tag = 'scoped memory for tpu_custom_call.1']
    #allocation8 [shape = 'u8[147456]{0}', space=vmem, size = 0x24000, scoped, tag = 'input window, operand 1, single buffered']
    #allocation9 [shape = 's32[1]{0}', space=sflag, size = 0x4, scoped, tag = 'scoped memory for tpu_custom_call.1']
    #allocation10 [shape = 'u8[2097152]{0}', space=vmem, size = 0x200000, scoped, tag = 'input window, operand 2, single buffered']
    #allocation11 [shape = 'u8[2048]{0}', space=vmem, size = 0x800, scoped, tag = 'input window, operand 3, single buffered']
    #allocation12 [shape = 's32[1]{0}', space=sflag, size = 0x4, scoped, tag = 'scoped memory for tpu_custom_call.1']
    #allocation13 [shape = 'u8[512]{0}', space=smem, size = 0x200, scoped, tag = 'output window, operand 0, single buffered']
    %9 = vsyncpa [#allocation6], 0
    %10 = vsyncpa [#allocation9], 0
    %11 = vsyncpa [#allocation12], 0
    %12 = vsyncpa [#allocation7], 0
    // Predicated region
    $region2: #{tpu_custom_call.1} parent=1 // pred_check
      _
    $region3: #{tpu_custom_call.1} parent=1 // pred_check_branch
      %14 = sbr.rel (0) target = $region5
    $region4: #{tpu_custom_call.1} parent=1 // pred_region
      %s16 = ssub.s32 4608, 4608
      %17 = vsyncadd [#allocation6], %s16
      %s18 = sshll.u32 [#allocation5], 4
      %s19 = int_to_ptr.vmem [resolvable:$true] %s18
      %24 = dma.hbm_to_vmem [thread:$0]  %s0, 4608, %s19, [#allocation6], 512, 512, 32
    $region5: #{tpu_custom_call.1} parent=1 // pred_fallthru
      _
    // Predicated region
    $region6: #{tpu_custom_call.1} parent=1 // pred_check
      _
    $region7: #{tpu_custom_call.1} parent=1 // pred_check_branch
      %26 = sbr.rel (0) target = $region9
    $region8: #{tpu_custom_call.1} parent=1 // pred_region
      %s28 = ssub.s32 4608, 4608
      %29 = vsyncadd [#allocation9], %s28
      %s30 = sshll.u32 [#allocation8], 4
      %s31 = int_to_ptr.vmem [resolvable:$true] %s30
      %36 = dma.hbm_to_vmem [thread:$0]  %s1, 4608, %s31, [#allocation9], 512, 512, 32
    $region9: #{tpu_custom_call.1} parent=1 // pred_fallthru
      _
    // Predicated region
    $region10: #{tpu_custom_call.1} parent=1 // pred_check
      _
    $region11: #{tpu_custom_call.1} parent=1 // pred_check_branch
      %38 = sbr.rel (0) target = $region13
    $region12: #{tpu_custom_call.1} parent=1 // pred_region
      %s40 = ssub.s32 65536, 65536
      %41 = vsyncadd [#allocation9], %s40
      %s42 = sshll.u32 [#allocation10], 4
      %s43 = int_to_ptr.vmem [resolvable:$true] %s42
      %48 = dma.hbm_to_vmem [thread:$0]  %s2, 65536, %s43, [#allocation9], 512, 512, 32
    $region13: #{tpu_custom_call.1} parent=1 // pred_fallthru
      _
    // Predicated region
    $region14: #{tpu_custom_call.1} parent=1 // pred_check
      _
    $region15: #{tpu_custom_call.1} parent=1 // pred_check_branch
      %50 = sbr.rel (0) target = $region17
    $region16: #{tpu_custom_call.1} parent=1 // pred_region
      %s52 = ssub.s32 64, 64
      %53 = vsyncadd [#allocation12], %s52
      %s55 = sshll.u32 [#allocation11], 4
      %s56 = int_to_ptr.vmem [resolvable:$true] %s55
      %58 = dma.hbm_to_vmem [thread:$0]  %s3, 64, %s56, [#allocation12]
    $region17: #{tpu_custom_call.1} parent=1 // pred_fallthru
      _
    // Predicated region
    $region18: #{tpu_custom_call.1} parent=1 // pred_check
      _
    $region19: #{tpu_custom_call.1} parent=1 // pred_check_branch
      %60 = sbr.rel (0) target = $region21
    $region20: #{tpu_custom_call.1} parent=1 // pred_region
      %61 = dma.done [#allocation6], 4608
    $region21: #{tpu_custom_call.1} parent=1 // pred_fallthru
      _
    // Predicated region
    $region22: #{tpu_custom_call.1} parent=1 // pred_check
      _
    $region23: #{tpu_custom_call.1} parent=1 // pred_check_branch
      %63 = sbr.rel (0) target = $region25
    $region24: #{tpu_custom_call.1} parent=1 // pred_region
      %64 = dma.done [#allocation9], 4608
    $region25: #{tpu_custom_call.1} parent=1 // pred_fallthru
      _
    // Predicated region
    $region26: #{tpu_custom_call.1} parent=1 // pred_check
      _
    $region27: #{tpu_custom_call.1} parent=1 // pred_check_branch
      %66 = sbr.rel (0) target = $region29
    $region28: #{tpu_custom_call.1} parent=1 // pred_region
      %67 = dma.done [#allocation9], 65536
    $region29: #{tpu_custom_call.1} parent=1 // pred_fallthru
      _
    // Predicated region
    $region30: #{tpu_custom_call.1} parent=1 // pred_check
      _
    $region31: #{tpu_custom_call.1} parent=1 // pred_check_branch
      %69 = sbr.rel (0) target = $region33
    $region32: #{tpu_custom_call.1} parent=1 // pred_region
      %70 = dma.done [#allocation12], 64
    $region33: #{tpu_custom_call.1} parent=1 // pred_fallthru
      _
    %p71 = scmp.eq.s32.totalorder 0, 0
    // Predicated region
    $region34: #{tpu_custom_call.1} parent=1 // pred_check
      %p72 = pneg %p71
    $region35: #{tpu_custom_call.1} parent=1 // pred_check_branch
      %74 = sbr.rel (%p72) target = $region37
    $region36: #{tpu_custom_call.1} parent=1 // pred_region
      %75 = vst [vmem:[#allocation2] sm:$0xff] 0.0
      %76 = vst [vmem:[#allocation2 + $0x8] sm:$0xff] 0.0
      %77 = vst [vmem:[#allocation2 + $0x10] sm:$0xff] 0.0
      %78 = vst [vmem:[#allocation2 + $0x18] sm:$0xff] 0.0
      %79 = vst [vmem:[#allocation2 + $0x20] sm:$0xff] 0.0
      %80 = vst [vmem:[#allocation2 + $0x28] sm:$0xff] 0.0
      %81 = vst [vmem:[#allocation2 + $0x30] sm:$0xff] 0.0
      %82 = vst [vmem:[#allocation2 + $0x38] sm:$0xff] 0.0
      %83 = vst [vmem:[#allocation2 + $0x40] sm:$0xff] 0.0
      %84 = vst [vmem:[#allocation2 + $0x48] sm:$0xff] 0.0
      %85 = vst [vmem:[#allocation2 + $0x50] sm:$0xff] 0.0
      %86 = vst [vmem:[#allocation2 + $0x58] sm:$0xff] 0.0
      %87 = vst [vmem:[#allocation2 + $0x60] sm:$0xff] 0.0
      %88 = vst [vmem:[#allocation2 + $0x68] sm:$0xff] 0.0
      %89 = vst [vmem:[#allocation2 + $0x70] sm:$0xff] 0.0
      %90 = vst [vmem:[#allocation2 + $0x78] sm:$0xff] 0.0
      %91 = vst [vmem:[#allocation2 + $0x80] sm:$0xff] 0.0
      %92 = vst [vmem:[#allocation2 + $0x88] sm:$0xff] 0.0
      %93 = vst [vmem:[#allocation2 + $0x90] sm:$0xff] 0.0
      %94 = vst [vmem:[#allocation2 + $0x98] sm:$0xff] 0.0
      %95 = vst [vmem:[#allocation2 + $0xa0] sm:$0xff] 0.0
      %96 = vst [vmem:[#allocation2 + $0xa8] sm:$0xff] 0.0
      %97 = vst [vmem:[#allocation2 + $0xb0] sm:$0xff] 0.0
      %98 = vst [vmem:[#allocation2 + $0xb8] sm:$0xff] 0.0
      %99 = vst [vmem:[#allocation2 + $0xc0] sm:$0xff] 0.0
      %100 = vst [vmem:[#allocation2 + $0xc8] sm:$0xff] 0.0
      %101 = vst [vmem:[#allocation2 + $0xd0] sm:$0xff] 0.0
      %102 = vst [vmem:[#allocation2 + $0xd8] sm:$0xff] 0.0
      %103 = vst [vmem:[#allocation2 + $0xe0] sm:$0xff] 0.0
      %104 = vst [vmem:[#allocation2 + $0xe8] sm:$0xff] 0.0
      %105 = vst [vmem:[#allocation2 + $0xf0] sm:$0xff] 0.0
      %106 = vst [vmem:[#allocation2 + $0xf8] sm:$0xff] 0.0
      %107 = vst [vmem:[#allocation2 + $0x100] sm:$0xff] 0.0
      %108 = vst [vmem:[#allocation2 + $0x108] sm:$0xff] 0.0
      %109 = vst [vmem:[#allocation2 + $0x110] sm:$0xff] 0.0
      %110 = vst [vmem:[#allocation2 + $0x118] sm:$0xff] 0.0
      %111 = vst [vmem:[#allocation3] sm:$0xff] 0.0
      %112 = vst [vmem:[#allocation3 + $0x8] sm:$0xff] 0.0
      %113 = vst [vmem:[#allocation3 + $0x10] sm:$0xff] 0.0
      %114 = vst [vmem:[#allocation3 + $0x18] sm:$0xff] 0.0
      %115 = vst [vmem:[#allocation3 + $0x20] sm:$0xff] 0.0
      %116 = vst [vmem:[#allocation3 + $0x28] sm:$0xff] 0.0
      %117 = vst [vmem:[#allocation3 + $0x30] sm:$0xff] 0.0
      %118 = vst [vmem:[#allocation3 + $0x38] sm:$0xff] 0.0
      %119 = vst [vmem:[#allocation3 + $0x40] sm:$0xff] 0.0
      %120 = vst [vmem:[#allocation3 + $0x48] sm:$0xff] 0.0
      %121 = vst [vmem:[#allocation3 + $0x50] sm:$0xff] 0.0
      %122 = vst [vmem:[#allocation3 + $0x58] sm:$0xff] 0.0
      %123 = vst [vmem:[#allocation3 + $0x60] sm:$0xff] 0.0
      %124 = vst [vmem:[#allocation3 + $0x68] sm:$0xff] 0.0
      %125 = vst [vmem:[#allocation3 + $0x70] sm:$0xff] 0.0
      %126 = vst [vmem:[#allocation3 + $0x78] sm:$0xff] 0.0
      %127 = vst [vmem:[#allocation3 + $0x80] sm:$0xff] 0.0
      %128 = vst [vmem:[#allocation3 + $0x88] sm:$0xff] 0.0
      %129 = vst [vmem:[#allocation3 + $0x90] sm:$0xff] 0.0
      %130 = vst [vmem:[#allocation3 + $0x98] sm:$0xff] 0.0
      %131 = vst [vmem:[#allocation3 + $0xa0] sm:$0xff] 0.0
      %132 = vst [vmem:[#allocation3 + $0xa8] sm:$0xff] 0.0
      %133 = vst [vmem:[#allocation3 + $0xb0] sm:$0xff] 0.0
      %134 = vst [vmem:[#allocation3 + $0xb8] sm:$0xff] 0.0
      %135 = vst [vmem:[#allocation3 + $0xc0] sm:$0xff] 0.0
      %136 = vst [vmem:[#allocation3 + $0xc8] sm:$0xff] 0.0
      %137 = vst [vmem:[#allocation3 + $0xd0] sm:$0xff] 0.0
      %138 = vst [vmem:[#allocation3 + $0xd8] sm:$0xff] 0.0
      %139 = vst [vmem:[#allocation3 + $0xe0] sm:$0xff] 0.0
      %140 = vst [vmem:[#allocation3 + $0xe8] sm:$0xff] 0.0
      %141 = vst [vmem:[#allocation3 + $0xf0] sm:$0xff] 0.0
      %142 = vst [vmem:[#allocation3 + $0xf8] sm:$0xff] 0.0
      %143 = vst [vmem:[#allocation3 + $0x100] sm:$0xff] 0.0
      %144 = vst [vmem:[#allocation3 + $0x108] sm:$0xff] 0.0
      %145 = vst [vmem:[#allocation3 + $0x110] sm:$0xff] 0.0
      %146 = vst [vmem:[#allocation3 + $0x118] sm:$0xff] 0.0
      %147 = vst [vmem:[#allocation4] sm:$0xff] 0.0
      %148 = vst [vmem:[#allocation4 + $0x8] sm:$0xff] 0.0
      %149 = vst [vmem:[#allocation4 + $0x10] sm:$0xff] 0.0
      %150 = vst [vmem:[#allocation4 + $0x18] sm:$0xff] 0.0
      %151 = vst [vmem:[#allocation4 + $0x20] sm:$0xff] 0.0
      %152 = vst [vmem:[#allocation4 + $0x28] sm:$0xff] 0.0
      %153 = vst [vmem:[#allocation4 + $0x30] sm:$0xff] 0.0
      %154 = vst [vmem:[#allocation4 + $0x38] sm:$0xff] 0.0
      %155 = vst [vmem:[#allocation4 + $0x40] sm:$0xff] 0.0
      %156 = vst [vmem:[#allocation4 + $0x48] sm:$0xff] 0.0
      %157 = vst [vmem:[#allocation4 + $0x50] sm:$0xff] 0.0
      %158 = vst [vmem:[#allocation4 + $0x58] sm:$0xff] 0.0
      %159 = vst [vmem:[#allocation4 + $0x60] sm:$0xff] 0.0
      %160 = vst [vmem:[#allocation4 + $0x68] sm:$0xff] 0.0
      %161 = vst [vmem:[#allocation4 + $0x70] sm:$0xff] 0.0
      %162 = vst [vmem:[#allocation4 + $0x78] sm:$0xff] 0.0
      %163 = vst [vmem:[#allocation4 + $0x80] sm:$0xff] 0.0
      %164 = vst [vmem:[#allocation4 + $0x88] sm:$0xff] 0.0
      %165 = vst [vmem:[#allocation4 + $0x90] sm:$0xff] 0.0
      %166 = vst [vmem:[#allocation4 + $0x98] sm:$0xff] 0.0
      %167 = vst [vmem:[#allocation4 + $0xa0] sm:$0xff] 0.0
      %168 = vst [vmem:[#allocation4 + $0xa8] sm:$0xff] 0.0
      %169 = vst [vmem:[#allocation4 + $0xb0] sm:$0xff] 0.0
      %170 = vst [vmem:[#allocation4 + $0xb8] sm:$0xff] 0.0
      %171 = vst [vmem:[#allocation4 + $0xc0] sm:$0xff] 0.0
      %172 = vst [vmem:[#allocation4 + $0xc8] sm:$0xff] 0.0
      %173 = vst [vmem:[#allocation4 + $0xd0] sm:$0xff] 0.0
      %174 = vst [vmem:[#allocation4 + $0xd8] sm:$0xff] 0.0
      %175 = vst [vmem:[#allocation4 + $0xe0] sm:$0xff] 0.0
      %176 = vst [vmem:[#allocation4 + $0xe8] sm:$0xff] 0.0
      %177 = vst [vmem:[#allocation4 + $0xf0] sm:$0xff] 0.0
      %178 = vst [vmem:[#allocation4 + $0xf8] sm:$0xff] 0.0
      %179 = vst [vmem:[#allocation4 + $0x100] sm:$0xff] 0.0
      %180 = vst [vmem:[#allocation4 + $0x108] sm:$0xff] 0.0
      %181 = vst [vmem:[#allocation4 + $0x110] sm:$0xff] 0.0
      %182 = vst [vmem:[#allocation4 + $0x118] sm:$0xff] 0.0
    $region37: #{tpu_custom_call.1} parent=1 // pred_fallthru
      _
    %v183 = vld [vmem:[#allocation10] sm:$0xff]
    %v184 = vld [vmem:[#allocation10 + $0x8] sm:$0xff]
    %v185 = vld [vmem:[#allocation10 + $0x10] sm:$0xff]
    %v186 = vld [vmem:[#allocation10 + $0x18] sm:$0xff]
    %v187 = vld [vmem:[#allocation10 + $0x20] sm:$0xff]
    %v188 = vld [vmem:[#allocation10 + $0x28] sm:$0xff]
    %v189 = vld [vmem:[#allocation10 + $0x30] sm:$0xff]
    %v190 = vld [vmem:[#allocation10 + $0x38] sm:$0xff]
    %v191 = vld [vmem:[#allocation10 + $0x40] sm:$0xff]
    %v192 = vld [vmem:[#allocation10 + $0x48] sm:$0xff]
    %v193 = vld [vmem:[#allocation10 + $0x50] sm:$0xff]
    %v194 = vld [vmem:[#allocation10 + $0x58] sm:$0xff]
    %v195 = vld [vmem:[#allocation10 + $0x60] sm:$0xff]
    %v196 = vld [vmem:[#allocation10 + $0x68] sm:$0xff]
    %v197 = vld [vmem:[#allocation10 + $0x70] sm:$0xff]
    %v198 = vld [vmem:[#allocation10 + $0x78] sm:$0xff]
    %v199 = vld [vmem:[#allocation10 + $0x80] sm:$0xff]
    %v200 = vld [vmem:[#allocation10 + $0x88] sm:$0xff]
    %v201 = vld [vmem:[#allocation10 + $0x90] sm:$0xff]
    %v202 = vld [vmem:[#allocation10 + $0x98] sm:$0xff]
    %v203 = vld [vmem:[#allocation10 + $0xa0] sm:$0xff]
    %v204 = vld [vmem:[#allocation10 + $0xa8] sm:$0xff]
    %v205 = vld [vmem:[#allocation10 + $0xb0] sm:$0xff]
    %v206 = vld [vmem:[#allocation10 + $0xb8] sm:$0xff]
    %v207 = vld [vmem:[#allocation10 + $0xc0] sm:$0xff]
    %v208 = vld [vmem:[#allocation10 + $0xc8] sm:$0xff]
    %v209 = vld [vmem:[#allocation10 + $0xd0] sm:$0xff]
    %v210 = vld [vmem:[#allocation10 + $0xd8] sm:$0xff]
    %v211 = vld [vmem:[#allocation10 + $0xe0] sm:$0xff]
    %v212 = vld [vmem:[#allocation10 + $0xe8] sm:$0xff]
    %v213 = vld [vmem:[#allocation10 + $0xf0] sm:$0xff]
    %v214 = vld [vmem:[#allocation10 + $0xf8] sm:$0xff]
    %v215 = vld [vmem:[#allocation10 + $0x100] sm:$0xff]
    %v216 = vld [vmem:[#allocation10 + $0x108] sm:$0xff]
    %v217 = vld [vmem:[#allocation10 + $0x110] sm:$0xff]
    %v218 = vld [vmem:[#allocation10 + $0x118] sm:$0xff]
    %v219 = vld [vmem:[#allocation10 + $0x120] sm:$0xff]
    %v220 = vld [vmem:[#allocation10 + $0x128] sm:$0xff]
    %v221 = vld [vmem:[#allocation10 + $0x130] sm:$0xff]
    %v222 = vld [vmem:[#allocation10 + $0x138] sm:$0xff]
    %v223 = vld [vmem:[#allocation10 + $0x140] sm:$0xff]
    %v224 = vld [vmem:[#allocation10 + $0x148] sm:$0xff]
    %v225 = vld [vmem:[#allocation10 + $0x150] sm:$0xff]
    %v226 = vld [vmem:[#allocation10 + $0x158] sm:$0xff]
    %v227 = vld [vmem:[#allocation10 + $0x160] sm:$0xff]
    %v228 = vld [vmem:[#allocation10 + $0x168] sm:$0xff]
    %v229 = vld [vmem:[#allocation10 + $0x170] sm:$0xff]
    %v230 = vld [vmem:[#allocation10 + $0x178] sm:$0xff]
    %v231 = vld [vmem:[#allocation10 + $0x180] sm:$0xff]
    %v232 = vld [vmem:[#allocation10 + $0x188] sm:$0xff]
    %v233 = vld [vmem:[#allocation10 + $0x190] sm:$0xff]
    %v234 = vld [vmem:[#allocation10 + $0x198] sm:$0xff]
    %v235 = vld [vmem:[#allocation10 + $0x1a0] sm:$0xff]
    %v236 = vld [vmem:[#allocation10 + $0x1a8] sm:$0xff]
    %v237 = vld [vmem:[#allocation10 + $0x1b0] sm:$0xff]
    %v238 = vld [vmem:[#allocation10 + $0x1b8] sm:$0xff]
    %v239 = vld [vmem:[#allocation10 + $0x1c0] sm:$0xff]
    %v240 = vld [vmem:[#allocation10 + $0x1c8] sm:$0xff]
    %v241 = vld [vmem:[#allocation10 + $0x1d0] sm:$0xff]
    %v242 = vld [vmem:[#allocation10 + $0x1d8] sm:$0xff]
    %v243 = vld [vmem:[#allocation10 + $0x1e0] sm:$0xff]
    %v244 = vld [vmem:[#allocation10 + $0x1e8] sm:$0xff]
    %v245 = vld [vmem:[#allocation10 + $0x1f0] sm:$0xff]
    %v246 = vld [vmem:[#allocation10 + $0x1f8] sm:$0xff]
    %v247 = vld [vmem:[#allocation10 + $0x200] sm:$0xff]
    %v248 = vld [vmem:[#allocation10 + $0x208] sm:$0xff]
    %v249 = vld [vmem:[#allocation10 + $0x210] sm:$0xff]
    %v250 = vld [vmem:[#allocation10 + $0x218] sm:$0xff]
    %v251 = vld [vmem:[#allocation10 + $0x220] sm:$0xff]
    %v252 = vld [vmem:[#allocation10 + $0x228] sm:$0xff]
    %v253 = vld [vmem:[#allocation10 + $0x230] sm:$0xff]
    %v254 = vld [vmem:[#allocation10 + $0x238] sm:$0xff]
    %v255 = vld [vmem:[#allocation10 + $0x240] sm:$0xff]
    %v256 = vld [vmem:[#allocation10 + $0x248] sm:$0xff]
    %v257 = vld [vmem:[#allocation10 + $0x250] sm:$0xff]
    %v258 = vld [vmem:[#allocation10 + $0x258] sm:$0xff]
    %v259 = vld [vmem:[#allocation10 + $0x260] sm:$0xff]
    %v260 = vld [vmem:[#allocation10 + $0x268] sm:$0xff]
    %v261 = vld [vmem:[#allocation10 + $0x270] sm:$0xff]
    %v262 = vld [vmem:[#allocation10 + $0x278] sm:$0xff]
    %v263 = vld [vmem:[#allocation10 + $0x280] sm:$0xff]
    %v264 = vld [vmem:[#allocation10 + $0x288] sm:$0xff]
    %v265 = vld [vmem:[#allocation10 + $0x290] sm:$0xff]
    %v266 = vld [vmem:[#allocation10 + $0x298] sm:$0xff]
    %v267 = vld [vmem:[#allocation10 + $0x2a0] sm:$0xff]
    %v268 = vld [vmem:[#allocation10 + $0x2a8] sm:$0xff]
    %v269 = vld [vmem:[#allocation10 + $0x2b0] sm:$0xff]
    %v270 = vld [vmem:[#allocation10 + $0x2b8] sm:$0xff]
    %v271 = vld [vmem:[#allocation10 + $0x2c0] sm:$0xff]
    %v272 = vld [vmem:[#allocation10 + $0x2c8] sm:$0xff]
    %v273 = vld [vmem:[#allocation10 + $0x2d0] sm:$0xff]
    %v274 = vld [vmem:[#allocation10 + $0x2d8] sm:$0xff]
    %v275 = vld [vmem:[#allocation10 + $0x2e0] sm:$0xff]
    %v276 = vld [vmem:[#allocation10 + $0x2e8] sm:$0xff]
    %v277 = vld [vmem:[#allocation10 + $0x2f0] sm:$0xff]
    %v278 = vld [vmem:[#allocation10 + $0x2f8] sm:$0xff]
    %v279 = vld [vmem:[#allocation10 + $0x300] sm:$0xff]
    %v280 = vld [vmem:[#allocation10 + $0x308] sm:$0xff]
    %v281 = vld [vmem:[#allocation10 + $0x310] sm:$0xff]
    %v282 = vld [vmem:[#allocation10 + $0x318] sm:$0xff]
    %v283 = vld [vmem:[#allocation10 + $0x320] sm:$0xff]
    %v284 = vld [vmem:[#allocation10 + $0x328] sm:$0xff]
    %v285 = vld [vmem:[#allocation10 + $0x330] sm:$0xff]
    %v286 = vld [vmem:[#allocation10 + $0x338] sm:$0xff]
    %v287 = vld [vmem:[#allocation10 + $0x340] sm:$0xff]
    %v288 = vld [vmem:[#allocation10 + $0x348] sm:$0xff]
    %v289 = vld [vmem:[#allocation10 + $0x350] sm:$0xff]
    %v290 = vld [vmem:[#allocation10 + $0x358] sm:$0xff]
    %v291 = vld [vmem:[#allocation10 + $0x360] sm:$0xff]
    %v292 = vld [vmem:[#allocation10 + $0x368] sm:$0xff]
    %v293 = vld [vmem:[#allocation10 + $0x370] sm:$0xff]
    %v294 = vld [vmem:[#allocation10 + $0x378] sm:$0xff]
    %v295 = vld [vmem:[#allocation10 + $0x380] sm:$0xff]
    %v296 = vld [vmem:[#allocation10 + $0x388] sm:$0xff]
    %v297 = vld [vmem:[#allocation10 + $0x390] sm:$0xff]
    %v298 = vld [vmem:[#allocation10 + $0x398] sm:$0xff]
    %v299 = vld [vmem:[#allocation10 + $0x3a0] sm:$0xff]
    %v300 = vld [vmem:[#allocation10 + $0x3a8] sm:$0xff]
    %v301 = vld [vmem:[#allocation10 + $0x3b0] sm:$0xff]
    %v302 = vld [vmem:[#allocation10 + $0x3b8] sm:$0xff]
    %v303 = vld [vmem:[#allocation10 + $0x3c0] sm:$0xff]
    %v304 = vld [vmem:[#allocation10 + $0x3c8] sm:$0xff]
    %v305 = vld [vmem:[#allocation10 + $0x3d0] sm:$0xff]
    %v306 = vld [vmem:[#allocation10 + $0x3d8] sm:$0xff]
    %v307 = vld [vmem:[#allocation10 + $0x3e0] sm:$0xff]
    %v308 = vld [vmem:[#allocation10 + $0x3e8] sm:$0xff]
    %v309 = vld [vmem:[#allocation10 + $0x3f0] sm:$0xff]
    %v310 = vld [vmem:[#allocation10 + $0x3f8] sm:$0xff]
    %v311 = vld [vmem:[#allocation10 + $0x400] sm:$0xff]
    %v312 = vld [vmem:[#allocation10 + $0x408] sm:$0xff]
    %v313 = vld [vmem:[#allocation10 + $0x410] sm:$0xff]
    %v314 = vld [vmem:[#allocation10 + $0x418] sm:$0xff]
    %v315 = vld [vmem:[#allocation10 + $0x420] sm:$0xff]
    %v316 = vld [vmem:[#allocation10 + $0x428] sm:$0xff]
    %v317 = vld [vmem:[#allocation10 + $0x430] sm:$0xff]
    %v318 = vld [vmem:[#allocation10 + $0x438] sm:$0xff]
    %v319 = vld [vmem:[#allocation10 + $0x440] sm:$0xff]
    %v320 = vld [vmem:[#allocation10 + $0x448] sm:$0xff]
    %v321 = vld [vmem:[#allocation10 + $0x450] sm:$0xff]
    %v322 = vld [vmem:[#allocation10 + $0x458] sm:$0xff]
    %v323 = vld [vmem:[#allocation10 + $0x460] sm:$0xff]
    %v324 = vld [vmem:[#allocation10 + $0x468] sm:$0xff]
    %v325 = vld [vmem:[#allocation10 + $0x470] sm:$0xff]
    %v326 = vld [vmem:[#allocation10 + $0x478] sm:$0xff]
    %v327 = vld [vmem:[#allocation10 + $0x480] sm:$0xff]
    %v328 = vld [vmem:[#allocation10 + $0x488] sm:$0xff]
    %v329 = vld [vmem:[#allocation10 + $0x490] sm:$0xff]
    %v330 = vld [vmem:[#allocation10 + $0x498] sm:$0xff]
    %v331 = vld [vmem:[#allocation10 + $0x4a0] sm:$0xff]
    %v332 = vld [vmem:[#allocation10 + $0x4a8] sm:$0xff]
    %v333 = vld [vmem:[#allocation10 + $0x4b0] sm:$0xff]
    %v334 = vld [vmem:[#allocation10 + $0x4b8] sm:$0xff]
    %v335 = vld [vmem:[#allocation10 + $0x4c0] sm:$0xff]
    %v336 = vld [vmem:[#allocation10 + $0x4c8] sm:$0xff]
    %v337 = vld [vmem:[#allocation10 + $0x4d0] sm:$0xff]
    %v338 = vld [vmem:[#allocation10 + $0x4d8] sm:$0xff]
    %v339 = vld [vmem:[#allocation10 + $0x4e0] sm:$0xff]
    %v340 = vld [vmem:[#allocation10 + $0x4e8] sm:$0xff]
    %v341 = vld [vmem:[#allocation10 + $0x4f0] sm:$0xff]
    %v342 = vld [vmem:[#allocation10 + $0x4f8] sm:$0xff]
    %v343 = vld [vmem:[#allocation10 + $0x500] sm:$0xff]
    %v344 = vld [vmem:[#allocation10 + $0x508] sm:$0xff]
    %v345 = vld [vmem:[#allocation10 + $0x510] sm:$0xff]
    %v346 = vld [vmem:[#allocation10 + $0x518] sm:$0xff]
    %v347 = vld [vmem:[#allocation10 + $0x520] sm:$0xff]
    %v348 = vld [vmem:[#allocation10 + $0x528] sm:$0xff]
    %v349 = vld [vmem:[#allocation10 + $0x530] sm:$0xff]
    %v350 = vld [vmem:[#allocation10 + $0x538] sm:$0xff]
    %v351 = vld [vmem:[#allocation10 + $0x540] sm:$0xff]
    %v352 = vld [vmem:[#allocation10 + $0x548] sm:$0xff]
    %v353 = vld [vmem:[#allocation10 + $0x550] sm:$0xff]
    %v354 = vld [vmem:[#allocation10 + $0x558] sm:$0xff]
    %v355 = vld [vmem:[#allocation10 + $0x560] sm:$0xff]
    %v356 = vld [vmem:[#allocation10 + $0x568] sm:$0xff]
    %v357 = vld [vmem:[#allocation10 + $0x570] sm:$0xff]
    %v358 = vld [vmem:[#allocation10 + $0x578] sm:$0xff]
    %v359 = vld [vmem:[#allocation10 + $0x580] sm:$0xff]
    %v360 = vld [vmem:[#allocation10 + $0x588] sm:$0xff]
    %v361 = vld [vmem:[#allocation10 + $0x590] sm:$0xff]
    %v362 = vld [vmem:[#allocation10 + $0x598] sm:$0xff]
    %v363 = vld [vmem:[#allocation10 + $0x5a0] sm:$0xff]
    %v364 = vld [vmem:[#allocation10 + $0x5a8] sm:$0xff]
    %v365 = vld [vmem:[#allocation10 + $0x5b0] sm:$0xff]
    %v366 = vld [vmem:[#allocation10 + $0x5b8] sm:$0xff]
    %v367 = vld [vmem:[#allocation10 + $0x5c0] sm:$0xff]
    %v368 = vld [vmem:[#allocation10 + $0x5c8] sm:$0xff]
    %v369 = vld [vmem:[#allocation10 + $0x5d0] sm:$0xff]
    %v370 = vld [vmem:[#allocation10 + $0x5d8] sm:$0xff]
    %v371 = vld [vmem:[#allocation10 + $0x5e0] sm:$0xff]
    %v372 = vld [vmem:[#allocation10 + $0x5e8] sm:$0xff]
    %v373 = vld [vmem:[#allocation10 + $0x5f0] sm:$0xff]
    %v374 = vld [vmem:[#allocation10 + $0x5f8] sm:$0xff]
    %v375 = vld [vmem:[#allocation10 + $0x600] sm:$0xff]
    %v376 = vld [vmem:[#allocation10 + $0x608] sm:$0xff]
    %v377 = vld [vmem:[#allocation10 + $0x610] sm:$0xff]
    %v378 = vld [vmem:[#allocation10 + $0x618] sm:$0xff]
    %v379 = vld [vmem:[#allocation10 + $0x620] sm:$0xff]
    %v380 = vld [vmem:[#allocation10 + $0x628] sm:$0xff]
    %v381 = vld [vmem:[#allocation10 + $0x630] sm:$0xff]
    %v382 = vld [vmem:[#allocation10 + $0x638] sm:$0xff]
    %v383 = vld [vmem:[#allocation10 + $0x640] sm:$0xff]
    %v384 = vld [vmem:[#allocation10 + $0x648] sm:$0xff]
    %v385 = vld [vmem:[#allocation10 + $0x650] sm:$0xff]
    %v386 = vld [vmem:[#allocation10 + $0x658] sm:$0xff]
    %v387 = vld [vmem:[#allocation10 + $0x660] sm:$0xff]
    %v388 = vld [vmem:[#allocation10 + $0x668] sm:$0xff]
    %v389 = vld [vmem:[#allocation10 + $0x670] sm:$0xff]
    %v390 = vld [vmem:[#allocation10 + $0x678] sm:$0xff]
    %v391 = vld [vmem:[#allocation10 + $0x680] sm:$0xff]
    %v392 = vld [vmem:[#allocation10 + $0x688] sm:$0xff]
    %v393 = vld [vmem:[#allocation10 + $0x690] sm:$0xff]
    %v394 = vld [vmem:[#allocation10 + $0x698] sm:$0xff]
    %v395 = vld [vmem:[#allocation10 + $0x6a0] sm:$0xff]
    %v396 = vld [vmem:[#allocation10 + $0x6a8] sm:$0xff]
    %v397 = vld [vmem:[#allocation10 + $0x6b0] sm:$0xff]
    %v398 = vld [vmem:[#allocation10 + $0x6b8] sm:$0xff]
    %v399 = vld [vmem:[#allocation10 + $0x6c0] sm:$0xff]
    %v400 = vld [vmem:[#allocation10 + $0x6c8] sm:$0xff]
    %v401 = vld [vmem:[#allocation10 + $0x6d0] sm:$0xff]
    %v402 = vld [vmem:[#allocation10 + $0x6d8] sm:$0xff]
    %v403 = vld [vmem:[#allocation10 + $0x6e0] sm:$0xff]
    %v404 = vld [vmem:[#allocation10 + $0x6e8] sm:$0xff]
    %v405 = vld [vmem:[#allocation10 + $0x6f0] sm:$0xff]
    %v406 = vld [vmem:[#allocation10 + $0x6f8] sm:$0xff]
    %v407 = vld [vmem:[#allocation10 + $0x700] sm:$0xff]
    %v408 = vld [vmem:[#allocation10 + $0x708] sm:$0xff]
    %v409 = vld [vmem:[#allocation10 + $0x710] sm:$0xff]
    %v410 = vld [vmem:[#allocation10 + $0x718] sm:$0xff]
    %v411 = vld [vmem:[#allocation10 + $0x720] sm:$0xff]
    %v412 = vld [vmem:[#allocation10 + $0x728] sm:$0xff]
    %v413 = vld [vmem:[#allocation10 + $0x730] sm:$0xff]
    %v414 = vld [vmem:[#allocation10 + $0x738] sm:$0xff]
    %v415 = vld [vmem:[#allocation10 + $0x740] sm:$0xff]
    %v416 = vld [vmem:[#allocation10 + $0x748] sm:$0xff]
    %v417 = vld [vmem:[#allocation10 + $0x750] sm:$0xff]
    %v418 = vld [vmem:[#allocation10 + $0x758] sm:$0xff]
    %v419 = vld [vmem:[#allocation10 + $0x760] sm:$0xff]
    %v420 = vld [vmem:[#allocation10 + $0x768] sm:$0xff]
    %v421 = vld [vmem:[#allocation10 + $0x770] sm:$0xff]
    %v422 = vld [vmem:[#allocation10 + $0x778] sm:$0xff]
    %v423 = vld [vmem:[#allocation10 + $0x780] sm:$0xff]
    %v424 = vld [vmem:[#allocation10 + $0x788] sm:$0xff]
    %v425 = vld [vmem:[#allocation10 + $0x790] sm:$0xff]
    %v426 = vld [vmem:[#allocation10 + $0x798] sm:$0xff]
    %v427 = vld [vmem:[#allocation10 + $0x7a0] sm:$0xff]
    %v428 = vld [vmem:[#allocation10 + $0x7a8] sm:$0xff]
    %v429 = vld [vmem:[#allocation10 + $0x7b0] sm:$0xff]
    %v430 = vld [vmem:[#allocation10 + $0x7b8] sm:$0xff]
    %v431 = vld [vmem:[#allocation10 + $0x7c0] sm:$0xff]
    %v432 = vld [vmem:[#allocation10 + $0x7c8] sm:$0xff]
    %v433 = vld [vmem:[#allocation10 + $0x7d0] sm:$0xff]
    %v434 = vld [vmem:[#allocation10 + $0x7d8] sm:$0xff]
    %v435 = vld [vmem:[#allocation10 + $0x7e0] sm:$0xff]
    %v436 = vld [vmem:[#allocation10 + $0x7e8] sm:$0xff]
    %v437 = vld [vmem:[#allocation10 + $0x7f0] sm:$0xff]
    %v438 = vld [vmem:[#allocation10 + $0x7f8] sm:$0xff]
    %v439 = vld [vmem:[#allocation10 + $0x800] sm:$0xff]
    %v440 = vld [vmem:[#allocation10 + $0x808] sm:$0xff]
    %v441 = vld [vmem:[#allocation10 + $0x810] sm:$0xff]
    %v442 = vld [vmem:[#allocation10 + $0x818] sm:$0xff]
    %v443 = vld [vmem:[#allocation10 + $0x820] sm:$0xff]
    %v444 = vld [vmem:[#allocation10 + $0x828] sm:$0xff]
    %v445 = vld [vmem:[#allocation10 + $0x830] sm:$0xff]
    %v446 = vld [vmem:[#allocation10 + $0x838] sm:$0xff]
    %v447 = vld [vmem:[#allocation10 + $0x840] sm:$0xff]
    %v448 = vld [vmem:[#allocation10 + $0x848] sm:$0xff]
    %v449 = vld [vmem:[#allocation10 + $0x850] sm:$0xff]
    %v450 = vld [vmem:[#allocation10 + $0x858] sm:$0xff]
    %v451 = vld [vmem:[#allocation10 + $0x860] sm:$0xff]
    %v452 = vld [vmem:[#allocation10 + $0x868] sm:$0xff]
    %v453 = vld [vmem:[#allocation10 + $0x870] sm:$0xff]
    %v454 = vld [vmem:[#allocation10 + $0x878] sm:$0xff]
    %v455 = vld [vmem:[#allocation10 + $0x880] sm:$0xff]
    %v456 = vld [vmem:[#allocation10 + $0x888] sm:$0xff]
    %v457 = vld [vmem:[#allocation10 + $0x890] sm:$0xff]
    %v458 = vld [vmem:[#allocation10 + $0x898] sm:$0xff]
    %v459 = vld [vmem:[#allocation10 + $0x8a0] sm:$0xff]
    %v460 = vld [vmem:[#allocation10 + $0x8a8] sm:$0xff]
    %v461 = vld [vmem:[#allocation10 + $0x8b0] sm:$0xff]
    %v462 = vld [vmem:[#allocation10 + $0x8b8] sm:$0xff]
    %v463 = vld [vmem:[#allocation10 + $0x8c0] sm:$0xff]
    %v464 = vld [vmem:[#allocation10 + $0x8c8] sm:$0xff]
    %v465 = vld [vmem:[#allocation10 + $0x8d0] sm:$0xff]
    %v466 = vld [vmem:[#allocation10 + $0x8d8] sm:$0xff]
    %v467 = vld [vmem:[#allocation10 + $0x8e0] sm:$0xff]
    %v468 = vld [vmem:[#allocation10 + $0x8e8] sm:$0xff]
    %v469 = vld [vmem:[#allocation10 + $0x8f0] sm:$0xff]
    %v470 = vld [vmem:[#allocation10 + $0x8f8] sm:$0xff]
    %v471 = vld [vmem:[#allocation10 + $0x900] sm:$0xff]
    %v472 = vld [vmem:[#allocation10 + $0x908] sm:$0xff]
    %v473 = vld [vmem:[#allocation10 + $0x910] sm:$0xff]
    %v474 = vld [vmem:[#allocation10 + $0x918] sm:$0xff]
    %v475 = vld [vmem:[#allocation10 + $0x920] sm:$0xff]
    %v476 = vld [vmem:[#allocation10 + $0x928] sm:$0xff]
    %v477 = vld [vmem:[#allocation10 + $0x930] sm:$0xff]
    %v478 = vld [vmem:[#allocation10 + $0x938] sm:$0xff]
    %v479 = vld [vmem:[#allocation10 + $0x940] sm:$0xff]
    %v480 = vld [vmem:[#allocation10 + $0x948] sm:$0xff]
    %v481 = vld [vmem:[#allocation10 + $0x950] sm:$0xff]
    %v482 = vld [vmem:[#allocation10 + $0x958] sm:$0xff]
    %v483 = vld [vmem:[#allocation10 + $0x960] sm:$0xff]
    %v484 = vld [vmem:[#allocation10 + $0x968] sm:$0xff]
    %v485 = vld [vmem:[#allocation10 + $0x970] sm:$0xff]
    %v486 = vld [vmem:[#allocation10 + $0x978] sm:$0xff]
    %v487 = vld [vmem:[#allocation10 + $0x980] sm:$0xff]
    %v488 = vld [vmem:[#allocation10 + $0x988] sm:$0xff]
    %v489 = vld [vmem:[#allocation10 + $0x990] sm:$0xff]
    %v490 = vld [vmem:[#allocation10 + $0x998] sm:$0xff]
    %v491 = vld [vmem:[#allocation10 + $0x9a0] sm:$0xff]
    %v492 = vld [vmem:[#allocation10 + $0x9a8] sm:$0xff]
    %v493 = vld [vmem:[#allocation10 + $0x9b0] sm:$0xff]
    %v494 = vld [vmem:[#allocation10 + $0x9b8] sm:$0xff]
    %v495 = vld [vmem:[#allocation10 + $0x9c0] sm:$0xff]
    %v496 = vld [vmem:[#allocation10 + $0x9c8] sm:$0xff]
    %v497 = vld [vmem:[#allocation10 + $0x9d0] sm:$0xff]
    %v498 = vld [vmem:[#allocation10 + $0x9d8] sm:$0xff]
    %v499 = vld [vmem:[#allocation10 + $0x9e0] sm:$0xff]
    %v500 = vld [vmem:[#allocation10 + $0x9e8] sm:$0xff]
    %v501 = vld [vmem:[#allocation10 + $0x9f0] sm:$0xff]
    %v502 = vld [vmem:[#allocation10 + $0x9f8] sm:$0xff]
    %v503 = vld [vmem:[#allocation10 + $0xa00] sm:$0xff]
    %v504 = vld [vmem:[#allocation10 + $0xa08] sm:$0xff]
    %v505 = vld [vmem:[#allocation10 + $0xa10] sm:$0xff]
    %v506 = vld [vmem:[#allocation10 + $0xa18] sm:$0xff]
    %v507 = vld [vmem:[#allocation10 + $0xa20] sm:$0xff]
    %v508 = vld [vmem:[#allocation10 + $0xa28] sm:$0xff]
    %v509 = vld [vmem:[#allocation10 + $0xa30] sm:$0xff]
    %v510 = vld [vmem:[#allocation10 + $0xa38] sm:$0xff]
    %v511 = vld [vmem:[#allocation10 + $0xa40] sm:$0xff]
    %v512 = vld [vmem:[#allocation10 + $0xa48] sm:$0xff]
    %v513 = vld [vmem:[#allocation10 + $0xa50] sm:$0xff]
    %v514 = vld [vmem:[#allocation10 + $0xa58] sm:$0xff]
    %v515 = vld [vmem:[#allocation10 + $0xa60] sm:$0xff]
    %v516 = vld [vmem:[#allocation10 + $0xa68] sm:$0xff]
    %v517 = vld [vmem:[#allocation10 + $0xa70] sm:$0xff]
    %v518 = vld [vmem:[#allocation10 + $0xa78] sm:$0xff]
    %v519 = vld [vmem:[#allocation10 + $0xa80] sm:$0xff]
    %v520 = vld [vmem:[#allocation10 + $0xa88] sm:$0xff]
    %v521 = vld [vmem:[#allocation10 + $0xa90] sm:$0xff]
    %v522 = vld [vmem:[#allocation10 + $0xa98] sm:$0xff]
    %v523 = vld [vmem:[#allocation10 + $0xaa0] sm:$0xff]
    %v524 = vld [vmem:[#allocation10 + $0xaa8] sm:$0xff]
    %v525 = vld [vmem:[#allocation10 + $0xab0] sm:$0xff]
    %v526 = vld [vmem:[#allocation10 + $0xab8] sm:$0xff]
    %v527 = vld [vmem:[#allocation10 + $0xac0] sm:$0xff]
    %v528 = vld [vmem:[#allocation10 + $0xac8] sm:$0xff]
    %v529 = vld [vmem:[#allocation10 + $0xad0] sm:$0xff]
    %v530 = vld [vmem:[#allocation10 + $0xad8] sm:$0xff]
    %v531 = vld [vmem:[#allocation10 + $0xae0] sm:$0xff]
    %v532 = vld [vmem:[#allocation10 + $0xae8] sm:$0xff]
    %v533 = vld [vmem:[#allocation10 + $0xaf0] sm:$0xff]
    %v534 = vld [vmem:[#allocation10 + $0xaf8] sm:$0xff]
    %v535 = vld [vmem:[#allocation10 + $0xb00] sm:$0xff]
    %v536 = vld [vmem:[#allocation10 + $0xb08] sm:$0xff]
    %v537 = vld [vmem:[#allocation10 + $0xb10] sm:$0xff]
    %v538 = vld [vmem:[#allocation10 + $0xb18] sm:$0xff]
    %v539 = vld [vmem:[#allocation10 + $0xb20] sm:$0xff]
    %v540 = vld [vmem:[#allocation10 + $0xb28] sm:$0xff]
    %v541 = vld [vmem:[#allocation10 + $0xb30] sm:$0xff]
    %v542 = vld [vmem:[#allocation10 + $0xb38] sm:$0xff]
    %v543 = vld [vmem:[#allocation10 + $0xb40] sm:$0xff]
    %v544 = vld [vmem:[#allocation10 + $0xb48] sm:$0xff]
    %v545 = vld [vmem:[#allocation10 + $0xb50] sm:$0xff]
    %v546 = vld [vmem:[#allocation10 + $0xb58] sm:$0xff]
    %v547 = vld [vmem:[#allocation10 + $0xb60] sm:$0xff]
    %v548 = vld [vmem:[#allocation10 + $0xb68] sm:$0xff]
    %v549 = vld [vmem:[#allocation10 + $0xb70] sm:$0xff]
    %v550 = vld [vmem:[#allocation10 + $0xb78] sm:$0xff]
    %v551 = vld [vmem:[#allocation10 + $0xb80] sm:$0xff]
    %v552 = vld [vmem:[#allocation10 + $0xb88] sm:$0xff]
    %v553 = vld [vmem:[#allocation10 + $0xb90] sm:$0xff]
    %v554 = vld [vmem:[#allocation10 + $0xb98] sm:$0xff]
    %v555 = vld [vmem:[#allocation10 + $0xba0] sm:$0xff]
    %v556 = vld [vmem:[#allocation10 + $0xba8] sm:$0xff]
    %v557 = vld [vmem:[#allocation10 + $0xbb0] sm:$0xff]
    %v558 = vld [vmem:[#allocation10 + $0xbb8] sm:$0xff]
    %v559 = vld [vmem:[#allocation10 + $0xbc0] sm:$0xff]
    %v560 = vld [vmem:[#allocation10 + $0xbc8] sm:$0xff]
    %v561 = vld [vmem:[#allocation10 + $0xbd0] sm:$0xff]
    %v562 = vld [vmem:[#allocation10 + $0xbd8] sm:$0xff]
    %v563 = vld [vmem:[#allocation10 + $0xbe0] sm:$0xff]
    %v564 = vld [vmem:[#allocation10 + $0xbe8] sm:$0xff]
    %v565 = vld [vmem:[#allocation10 + $0xbf0] sm:$0xff]
    %v566 = vld [vmem:[#allocation10 + $0xbf8] sm:$0xff]
    %v567 = vld [vmem:[#allocation10 + $0xc00] sm:$0xff]
    %v568 = vld [vmem:[#allocation10 + $0xc08] sm:$0xff]
    %v569 = vld [vmem:[#allocation10 + $0xc10] sm:$0xff]
    %v570 = vld [vmem:[#allocation10 + $0xc18] sm:$0xff]
    %v571 = vld [vmem:[#allocation10 + $0xc20] sm:$0xff]
    %v572 = vld [vmem:[#allocation10 + $0xc28] sm:$0xff]
    %v573 = vld [vmem:[#allocation10 + $0xc30] sm:$0xff]
    %v574 = vld [vmem:[#allocation10 + $0xc38] sm:$0xff]
    %v575 = vld [vmem:[#allocation10 + $0xc40] sm:$0xff]
    %v576 = vld [vmem:[#allocation10 + $0xc48] sm:$0xff]
    %v577 = vld [vmem:[#allocation10 + $0xc50] sm:$0xff]
    %v578 = vld [vmem:[#allocation10 + $0xc58] sm:$0xff]
    %v579 = vld [vmem:[#allocation10 + $0xc60] sm:$0xff]
    %v580 = vld [vmem:[#allocation10 + $0xc68] sm:$0xff]
    %v581 = vld [vmem:[#allocation10 + $0xc70] sm:$0xff]
    %v582 = vld [vmem:[#allocation10 + $0xc78] sm:$0xff]
    %v583 = vld [vmem:[#allocation10 + $0xc80] sm:$0xff]
    %v584 = vld [vmem:[#allocation10 + $0xc88] sm:$0xff]
    %v585 = vld [vmem:[#allocation10 + $0xc90] sm:$0xff]
    %v586 = vld [vmem:[#allocation10 + $0xc98] sm:$0xff]
    %v587 = vld [vmem:[#allocation10 + $0xca0] sm:$0xff]
    %v588 = vld [vmem:[#allocation10 + $0xca8] sm:$0xff]
    %v589 = vld [vmem:[#allocation10 + $0xcb0] sm:$0xff]
    %v590 = vld [vmem:[#allocation10 + $0xcb8] sm:$0xff]
    %v591 = vld [vmem:[#allocation10 + $0xcc0] sm:$0xff]
    %v592 = vld [vmem:[#allocation10 + $0xcc8] sm:$0xff]
    %v593 = vld [vmem:[#allocation10 + $0xcd0] sm:$0xff]
    %v594 = vld [vmem:[#allocation10 + $0xcd8] sm:$0xff]
    %v595 = vld [vmem:[#allocation10 + $0xce0] sm:$0xff]
    %v596 = vld [vmem:[#allocation10 + $0xce8] sm:$0xff]
    %v597 = vld [vmem:[#allocation10 + $0xcf0] sm:$0xff]
    %v598 = vld [vmem:[#allocation10 + $0xcf8] sm:$0xff]
    %v599 = vld [vmem:[#allocation10 + $0xd00] sm:$0xff]
    %v600 = vld [vmem:[#allocation10 + $0xd08] sm:$0xff]
    %v601 = vld [vmem:[#allocation10 + $0xd10] sm:$0xff]
    %v602 = vld [vmem:[#allocation10 + $0xd18] sm:$0xff]
    %v603 = vld [vmem:[#allocation10 + $0xd20] sm:$0xff]
    %v604 = vld [vmem:[#allocation10 + $0xd28] sm:$0xff]
    %v605 = vld [vmem:[#allocation10 + $0xd30] sm:$0xff]
    %v606 = vld [vmem:[#allocation10 + $0xd38] sm:$0xff]
    %v607 = vld [vmem:[#allocation10 + $0xd40] sm:$0xff]
    %v608 = vld [vmem:[#allocation10 + $0xd48] sm:$0xff]
    %v609 = vld [vmem:[#allocation10 + $0xd50] sm:$0xff]
    %v610 = vld [vmem:[#allocation10 + $0xd58] sm:$0xff]
    %v611 = vld [vmem:[#allocation10 + $0xd60] sm:$0xff]
    %v612 = vld [vmem:[#allocation10 + $0xd68] sm:$0xff]
    %v613 = vld [vmem:[#allocation10 + $0xd70] sm:$0xff]
    %v614 = vld [vmem:[#allocation10 + $0xd78] sm:$0xff]
    %v615 = vld [vmem:[#allocation10 + $0xd80] sm:$0xff]
    %v616 = vld [vmem:[#allocation10 + $0xd88] sm:$0xff]
    %v617 = vld [vmem:[#allocation10 + $0xd90] sm:$0xff]
    %v618 = vld [vmem:[#allocation10 + $0xd98] sm:$0xff]
    %v619 = vld [vmem:[#allocation10 + $0xda0] sm:$0xff]
    %v620 = vld [vmem:[#allocation10 + $0xda8] sm:$0xff]
    %v621 = vld [vmem:[#allocation10 + $0xdb0] sm:$0xff]
    %v622 = vld [vmem:[#allocation10 + $0xdb8] sm:$0xff]
    %v623 = vld [vmem:[#allocation10 + $0xdc0] sm:$0xff]
    %v624 = vld [vmem:[#allocation10 + $0xdc8] sm:$0xff]
    %v625 = vld [vmem:[#allocation10 + $0xdd0] sm:$0xff]
    %v626 = vld [vmem:[#allocation10 + $0xdd8] sm:$0xff]
    %v627 = vld [vmem:[#allocation10 + $0xde0] sm:$0xff]
    %v628 = vld [vmem:[#allocation10 + $0xde8] sm:$0xff]
    %v629 = vld [vmem:[#allocation10 + $0xdf0] sm:$0xff]
    %v630 = vld [vmem:[#allocation10 + $0xdf8] sm:$0xff]
    %v631 = vld [vmem:[#allocation10 + $0xe00] sm:$0xff]
    %v632 = vld [vmem:[#allocation10 + $0xe08] sm:$0xff]
    %v633 = vld [vmem:[#allocation10 + $0xe10] sm:$0xff]
    %v634 = vld [vmem:[#allocation10 + $0xe18] sm:$0xff]
    %v635 = vld [vmem:[#allocation10 + $0xe20] sm:$0xff]
    %v636 = vld [vmem:[#allocation10 + $0xe28] sm:$0xff]
    %v637 = vld [vmem:[#allocation10 + $0xe30] sm:$0xff]
    %v638 = vld [vmem:[#allocation10 + $0xe38] sm:$0xff]
    %v639 = vld [vmem:[#allocation10 + $0xe40] sm:$0xff]
    %v640 = vld [vmem:[#allocation10 + $0xe48] sm:$0xff]
    %v641 = vld [vmem:[#allocation10 + $0xe50] sm:$0xff]
    %v642 = vld [vmem:[#allocation10 + $0xe58] sm:$0xff]
    %v643 = vld [vmem:[#allocation10 + $0xe60] sm:$0xff]
    %v644 = vld [vmem:[#allocation10 + $0xe68] sm:$0xff]
    %v645 = vld [vmem:[#allocation10 + $0xe70] sm:$0xff]
    %v646 = vld [vmem:[#allocation10 + $0xe78] sm:$0xff]
    %v647 = vld [vmem:[#allocation10 + $0xe80] sm:$0xff]
    %v648 = vld [vmem:[#allocation10 + $0xe88] sm:$0xff]
    %v649 = vld [vmem:[#allocation10 + $0xe90] sm:$0xff]
    %v650 = vld [vmem:[#allocation10 + $0xe98] sm:$0xff]
    %v651 = vld [vmem:[#allocation10 + $0xea0] sm:$0xff]
    %v652 = vld [vmem:[#allocation10 + $0xea8] sm:$0xff]
    %v653 = vld [vmem:[#allocation10 + $0xeb0] sm:$0xff]
    %v654 = vld [vmem:[#allocation10 + $0xeb8] sm:$0xff]
    %v655 = vld [vmem:[#allocation10 + $0xec0] sm:$0xff]
    %v656 = vld [vmem:[#allocation10 + $0xec8] sm:$0xff]
    %v657 = vld [vmem:[#allocation10 + $0xed0] sm:$0xff]
    %v658 = vld [vmem:[#allocation10 + $0xed8] sm:$0xff]
    %v659 = vld [vmem:[#allocation10 + $0xee0] sm:$0xff]
    %v660 = vld [vmem:[#allocation10 + $0xee8] sm:$0xff]
    %v661 = vld [vmem:[#allocation10 + $0xef0] sm:$0xff]
    %v662 = vld [vmem:[#allocation10 + $0xef8] sm:$0xff]
    %v663 = vld [vmem:[#allocation10 + $0xf00] sm:$0xff]
    %v664 = vld [vmem:[#allocation10 + $0xf08] sm:$0xff]
    %v665 = vld [vmem:[#allocation10 + $0xf10] sm:$0xff]
    %v666 = vld [vmem:[#allocation10 + $0xf18] sm:$0xff]
    %v667 = vld [vmem:[#allocation10 + $0xf20] sm:$0xff]
    %v668 = vld [vmem:[#allocation10 + $0xf28] sm:$0xff]
    %v669 = vld [vmem:[#allocation10 + $0xf30] sm:$0xff]
    %v670 = vld [vmem:[#allocation10 + $0xf38] sm:$0xff]
    %v671 = vld [vmem:[#allocation10 + $0xf40] sm:$0xff]
    %v672 = vld [vmem:[#allocation10 + $0xf48] sm:$0xff]
    %v673 = vld [vmem:[#allocation10 + $0xf50] sm:$0xff]
    %v674 = vld [vmem:[#allocation10 + $0xf58] sm:$0xff]
    %v675 = vld [vmem:[#allocation10 + $0xf60] sm:$0xff]
    %v676 = vld [vmem:[#allocation10 + $0xf68] sm:$0xff]
    %v677 = vld [vmem:[#allocation10 + $0xf70] sm:$0xff]
    %v678 = vld [vmem:[#allocation10 + $0xf78] sm:$0xff]
    %v679 = vld [vmem:[#allocation10 + $0xf80] sm:$0xff]
    %v680 = vld [vmem:[#allocation10 + $0xf88] sm:$0xff]
    %v681 = vld [vmem:[#allocation10 + $0xf90] sm:$0xff]
    %v682 = vld [vmem:[#allocation10 + $0xf98] sm:$0xff]
    %v683 = vld [vmem:[#allocation10 + $0xfa0] sm:$0xff]
    %v684 = vld [vmem:[#allocation10 + $0xfa8] sm:$0xff]
    %v685 = vld [vmem:[#allocation10 + $0xfb0] sm:$0xff]
    %v686 = vld [vmem:[#allocation10 + $0xfb8] sm:$0xff]
    %v687 = vld [vmem:[#allocation10 + $0xfc0] sm:$0xff]
    %v688 = vld [vmem:[#allocation10 + $0xfc8] sm:$0xff]
    %v689 = vld [vmem:[#allocation10 + $0xfd0] sm:$0xff]
    %v690 = vld [vmem:[#allocation10 + $0xfd8] sm:$0xff]
    %v691 = vld [vmem:[#allocation10 + $0xfe0] sm:$0xff]
    %v692 = vld [vmem:[#allocation10 + $0xfe8] sm:$0xff]
    %v693 = vld [vmem:[#allocation10 + $0xff0] sm:$0xff]
    %v694 = vld [vmem:[#allocation10 + $0xff8] sm:$0xff]
    %v695 = vld [vmem:[#allocation5] sm:$0xff]
    %v696 = vld [vmem:[#allocation5 + $0x8] sm:$0xff]
    %v697 = vld [vmem:[#allocation5 + $0x10] sm:$0xff]
    %v698 = vld [vmem:[#allocation5 + $0x18] sm:$0xff]
    %v699 = vld [vmem:[#allocation5 + $0x20] sm:$0xff]
    %v700 = vld [vmem:[#allocation5 + $0x28] sm:$0xff]
    %v701 = vld [vmem:[#allocation5 + $0x30] sm:$0xff]
    %v702 = vld [vmem:[#allocation5 + $0x38] sm:$0xff]
    %v703 = vld [vmem:[#allocation5 + $0x40] sm:$0xff]
    %v704 = vld [vmem:[#allocation5 + $0x48] sm:$0xff]
    %v705 = vld [vmem:[#allocation5 + $0x50] sm:$0xff]
    %v706 = vld [vmem:[#allocation5 + $0x58] sm:$0xff]
    %v707 = vld [vmem:[#allocation5 + $0x60] sm:$0xff]
    %v708 = vld [vmem:[#allocation5 + $0x68] sm:$0xff]
    %v709 = vld [vmem:[#allocation5 + $0x70] sm:$0xff]
    %v710 = vld [vmem:[#allocation5 + $0x78] sm:$0xff]
    %v711 = vld [vmem:[#allocation5 + $0x80] sm:$0xff]
    %v712 = vld [vmem:[#allocation5 + $0x88] sm:$0xff]
    %v713 = vld [vmem:[#allocation5 + $0x90] sm:$0xff]
    %v714 = vld [vmem:[#allocation5 + $0x98] sm:$0xff]
    %v715 = vld [vmem:[#allocation5 + $0xa0] sm:$0xff]
    %v716 = vld [vmem:[#allocation5 + $0xa8] sm:$0xff]
    %v717 = vld [vmem:[#allocation5 + $0xb0] sm:$0xff]
    %v718 = vld [vmem:[#allocation5 + $0xb8] sm:$0xff]
    %v719 = vld [vmem:[#allocation5 + $0xc0] sm:$0xff]
    %v720 = vld [vmem:[#allocation5 + $0xc8] sm:$0xff]
    %v721 = vld [vmem:[#allocation5 + $0xd0] sm:$0xff]
    %v722 = vld [vmem:[#allocation5 + $0xd8] sm:$0xff]
    %v723 = vld [vmem:[#allocation5 + $0xe0] sm:$0xff]
    %v724 = vld [vmem:[#allocation5 + $0xe8] sm:$0xff]
    %v725 = vld [vmem:[#allocation5 + $0xf0] sm:$0xff]
    %v726 = vld [vmem:[#allocation5 + $0xf8] sm:$0xff]
    %v727 = vld [vmem:[#allocation5 + $0x100] sm:$0xff]
    %v728 = vld [vmem:[#allocation5 + $0x108] sm:$0xff]
    %v729 = vld [vmem:[#allocation5 + $0x110] sm:$0xff]
    %v730 = vld [vmem:[#allocation5 + $0x118] sm:$0xff]
    %v767 = vunpack.c.l.b16 %v695
    %v768 = vunpack.c.h.b16 %v695
    %v769 = vunpack.c.l.b16 %v696
    %v770 = vunpack.c.h.b16 %v696
    %v771 = vunpack.c.l.b16 %v697
    %v772 = vunpack.c.h.b16 %v697
    %v773 = vunpack.c.l.b16 %v698
    %v774 = vunpack.c.h.b16 %v698
    %v775 = vunpack.c.l.b16 %v699
    %v776 = vunpack.c.h.b16 %v699
    %v777 = vunpack.c.l.b16 %v700
    %v778 = vunpack.c.h.b16 %v700
    %v779 = vunpack.c.l.b16 %v701
    %v780 = vunpack.c.h.b16 %v701
    %v781 = vunpack.c.l.b16 %v702
    %v782 = vunpack.c.h.b16 %v702
    %v783 = vunpack.c.l.b16 %v703
    %v784 = vunpack.c.h.b16 %v703
    %v785 = vunpack.c.l.b16 %v704
    %v786 = vunpack.c.h.b16 %v704
    %v787 = vunpack.c.l.b16 %v705
    %v788 = vunpack.c.h.b16 %v705
    %v789 = vunpack.c.l.b16 %v706
    %v790 = vunpack.c.h.b16 %v706
    %v791 = vunpack.c.l.b16 %v707
    %v792 = vunpack.c.h.b16 %v707
    %v793 = vunpack.c.l.b16 %v708
    %v794 = vunpack.c.h.b16 %v708
    %v795 = vunpack.c.l.b16 %v709
    %v796 = vunpack.c.h.b16 %v709
    %v797 = vunpack.c.l.b16 %v710
    %v798 = vunpack.c.h.b16 %v710
    %v799 = vunpack.c.l.b16 %v711
    %v800 = vunpack.c.h.b16 %v711
    %v801 = vunpack.c.l.b16 %v712
    %v802 = vunpack.c.h.b16 %v712
    %v803 = vunpack.c.l.b16 %v713
    %v804 = vunpack.c.h.b16 %v713
    %v805 = vunpack.c.l.b16 %v714
    %v806 = vunpack.c.h.b16 %v714
    %v807 = vunpack.c.l.b16 %v715
    %v808 = vunpack.c.h.b16 %v715
    %v809 = vunpack.c.l.b16 %v716
    %v810 = vunpack.c.h.b16 %v716
    %v811 = vunpack.c.l.b16 %v717
    %v812 = vunpack.c.h.b16 %v717
    %v813 = vunpack.c.l.b16 %v718
    %v814 = vunpack.c.h.b16 %v718
    %v815 = vunpack.c.l.b16 %v719
    %v816 = vunpack.c.h.b16 %v719
    %v817 = vunpack.c.l.b16 %v720
    %v818 = vunpack.c.h.b16 %v720
    %v819 = vunpack.c.l.b16 %v721
    %v820 = vunpack.c.h.b16 %v721
    %v821 = vunpack.c.l.b16 %v722
    %v822 = vunpack.c.h.b16 %v722
    %v823 = vunpack.c.l.b16 %v723
    %v824 = vunpack.c.h.b16 %v723
    %v825 = vunpack.c.l.b16 %v724
    %v826 = vunpack.c.h.b16 %v724
    %v827 = vunpack.c.l.b16 %v725
    %v828 = vunpack.c.h.b16 %v725
    %v829 = vunpack.c.l.b16 %v726
    %v830 = vunpack.c.h.b16 %v726
    %v831 = vunpack.c.l.b16 %v727
    %v832 = vunpack.c.h.b16 %v727
    %v833 = vunpack.c.l.b16 %v728
    %v834 = vunpack.c.h.b16 %v728
    %v835 = vunpack.c.l.b16 %v729
    %v836 = vunpack.c.h.b16 %v729
    %v837 = vunpack.c.l.b16 %v730
    %v838 = vunpack.c.h.b16 %v730
    %v839 = vpack.c.b16 %v775, %v767
    %v840 = vpack.c.b16 %v776, %v768
    %v841 = vpack.c.b16 %v777, %v769
    %v842 = vpack.c.b16 %v778, %v770
    %v843 = vpack.c.b16 %v779, %v771
    %v844 = vpack.c.b16 %v780, %v772
    %v845 = vpack.c.b16 %v781, %v773
    %v846 = vpack.c.b16 %v782, %v774
    %v847 = vpack.c.b16 %v791, %v783
    %v848 = vpack.c.b16 %v792, %v784
    %v849 = vpack.c.b16 %v793, %v785
    %v850 = vpack.c.b16 %v794, %v786
    %v851 = vpack.c.b16 %v795, %v787
    %v852 = vpack.c.b16 %v796, %v788
    %v853 = vpack.c.b16 %v797, %v789
    %v854 = vpack.c.b16 %v798, %v790
    %v855 = vpack.c.b16 %v807, %v799
    %v856 = vpack.c.b16 %v808, %v800
    %v857 = vpack.c.b16 %v809, %v801
    %v858 = vpack.c.b16 %v810, %v802
    %v859 = vpack.c.b16 %v811, %v803
    %v860 = vpack.c.b16 %v812, %v804
    %v861 = vpack.c.b16 %v813, %v805
    %v862 = vpack.c.b16 %v814, %v806
    %v863 = vpack.c.b16 %v823, %v815
    %v864 = vpack.c.b16 %v824, %v816
    %v865 = vpack.c.b16 %v825, %v817
    %v866 = vpack.c.b16 %v826, %v818
    %v867 = vpack.c.b16 %v827, %v819
    %v868 = vpack.c.b16 %v828, %v820
    %v869 = vpack.c.b16 %v829, %v821
    %v870 = vpack.c.b16 %v830, %v822
    %v871 = vpack.c.b16 %v831, %v831
    %v872 = vpack.c.b16 %v832, %v832
    %v873 = vpack.c.b16 %v833, %v833
    %v874 = vpack.c.b16 %v834, %v834
    %v875 = vpack.c.b16 %v835, %v835
    %v876 = vpack.c.b16 %v836, %v836
    %v877 = vpack.c.b16 %v837, %v837
    %v878 = vpack.c.b16 %v838, %v838
    %v1431 = vunpack.c.l.b16 %v183
    %v1432 = vunpack.c.h.b16 %v183
    %v1433 = vunpack.c.l.b16 %v184
    %v1434 = vunpack.c.h.b16 %v184
    %v1435 = vunpack.c.l.b16 %v185
    %v1436 = vunpack.c.h.b16 %v185
    %v1437 = vunpack.c.l.b16 %v186
    %v1438 = vunpack.c.h.b16 %v186
    %v1439 = vunpack.c.l.b16 %v187
    %v1440 = vunpack.c.h.b16 %v187
    %v1441 = vunpack.c.l.b16 %v188
    %v1442 = vunpack.c.h.b16 %v188
    %v1443 = vunpack.c.l.b16 %v189
    %v1444 = vunpack.c.h.b16 %v189
    %v1445 = vunpack.c.l.b16 %v190
    %v1446 = vunpack.c.h.b16 %v190
    %v1447 = vunpack.c.l.b16 %v191
    %v1448 = vunpack.c.h.b16 %v191
    %v1449 = vunpack.c.l.b16 %v192
    %v1450 = vunpack.c.h.b16 %v192
    %v1451 = vunpack.c.l.b16 %v193
    %v1452 = vunpack.c.h.b16 %v193
    %v1453 = vunpack.c.l.b16 %v194
    %v1454 = vunpack.c.h.b16 %v194
    %v1455 = vunpack.c.l.b16 %v195
    %v1456 = vunpack.c.h.b16 %v195
    %v1457 = vunpack.c.l.b16 %v196
    %v1458 = vunpack.c.h.b16 %v196
    %v1459 = vunpack.c.l.b16 %v197
    %v1460 = vunpack.c.h.b16 %v197
    %v1461 = vunpack.c.l.b16 %v198
    %v1462 = vunpack.c.h.b16 %v198
    %v1463 = vunpack.c.l.b16 %v199
    %v1464 = vunpack.c.h.b16 %v199
    %v1465 = vunpack.c.l.b16 %v200
    %v1466 = vunpack.c.h.b16 %v200
    %v1467 = vunpack.c.l.b16 %v201
    %v1468 = vunpack.c.h.b16 %v201
    %v1469 = vunpack.c.l.b16 %v202
    %v1470 = vunpack.c.h.b16 %v202
    %v1471 = vunpack.c.l.b16 %v203
    %v1472 = vunpack.c.h.b16 %v203
    %v1473 = vunpack.c.l.b16 %v204
    %v1474 = vunpack.c.h.b16 %v204
    %v1475 = vunpack.c.l.b16 %v205
    %v1476 = vunpack.c.h.b16 %v205
    %v1477 = vunpack.c.l.b16 %v206
    %v1478 = vunpack.c.h.b16 %v206
    %v1479 = vunpack.c.l.b16 %v207
    %v1480 = vunpack.c.h.b16 %v207
    %v1481 = vunpack.c.l.b16 %v208
    %v1482 = vunpack.c.h.b16 %v208
    %v1483 = vunpack.c.l.b16 %v209
    %v1484 = vunpack.c.h.b16 %v209
    %v1485 = vunpack.c.l.b16 %v210
    %v1486 = vunpack.c.h.b16 %v210
    %v1487 = vunpack.c.l.b16 %v211
    %v1488 = vunpack.c.h.b16 %v211
    %v1489 = vunpack.c.l.b16 %v212
    %v1490 = vunpack.c.h.b16 %v212
    %v1491 = vunpack.c.l.b16 %v213
    %v1492 = vunpack.c.h.b16 %v213
    %v1493 = vunpack.c.l.b16 %v214
    %v1494 = vunpack.c.h.b16 %v214
    %v1495 = vunpack.c.l.b16 %v215
    %v1496 = vunpack.c.h.b16 %v215
    %v1497 = vunpack.c.l.b16 %v216
    %v1498 = vunpack.c.h.b16 %v216
    %v1499 = vunpack.c.l.b16 %v217
    %v1500 = vunpack.c.h.b16 %v217
    %v1501 = vunpack.c.l.b16 %v218
    %v1502 = vunpack.c.h.b16 %v218
    %v1503 = vunpack.c.l.b16 %v219
    %v1504 = vunpack.c.h.b16 %v219
    %v1505 = vunpack.c.l.b16 %v220
    %v1506 = vunpack.c.h.b16 %v220
    %v1507 = vunpack.c.l.b16 %v221
    %v1508 = vunpack.c.h.b16 %v221
    %v1509 = vunpack.c.l.b16 %v222
    %v1510 = vunpack.c.h.b16 %v222
    %v1511 = vunpack.c.l.b16 %v223
    %v1512 = vunpack.c.h.b16 %v223
    %v1513 = vunpack.c.l.b16 %v224
    %v1514 = vunpack.c.h.b16 %v224
    %v1515 = vunpack.c.l.b16 %v225
    %v1516 = vunpack.c.h.b16 %v225
    %v1517 = vunpack.c.l.b16 %v226
    %v1518 = vunpack.c.h.b16 %v226
    %v1519 = vunpack.c.l.b16 %v227
    %v1520 = vunpack.c.h.b16 %v227
    %v1521 = vunpack.c.l.b16 %v228
    %v1522 = vunpack.c.h.b16 %v228
    %v1523 = vunpack.c.l.b16 %v229
    %v1524 = vunpack.c.h.b16 %v229
    %v1525 = vunpack.c.l.b16 %v230
    %v1526 = vunpack.c.h.b16 %v230
    %v1527 = vunpack.c.l.b16 %v231
    %v1528 = vunpack.c.h.b16 %v231
    %v1529 = vunpack.c.l.b16 %v232
    %v1530 = vunpack.c.h.b16 %v232
    %v1531 = vunpack.c.l.b16 %v233
    %v1532 = vunpack.c.h.b16 %v233
    %v1533 = vunpack.c.l.b16 %v234
    %v1534 = vunpack.c.h.b16 %v234
    %v1535 = vunpack.c.l.b16 %v235
    %v1536 = vunpack.c.h.b16 %v235
    %v1537 = vunpack.c.l.b16 %v236
    %v1538 = vunpack.c.h.b16 %v236
    %v1539 = vunpack.c.l.b16 %v237
    %v1540 = vunpack.c.h.b16 %v237
    %v1541 = vunpack.c.l.b16 %v238
    %v1542 = vunpack.c.h.b16 %v238
    %v1543 = vunpack.c.l.b16 %v239
    %v1544 = vunpack.c.h.b16 %v239
    %v1545 = vunpack.c.l.b16 %v240
    %v1546 = vunpack.c.h.b16 %v240
    %v1547 = vunpack.c.l.b16 %v241
    %v1548 = vunpack.c.h.b16 %v241
    %v1549 = vunpack.c.l.b16 %v242
    %v1550 = vunpack.c.h.b16 %v242
    %v1551 = vunpack.c.l.b16 %v243
    %v1552 = vunpack.c.h.b16 %v243
    %v1553 = vunpack.c.l.b16 %v244
    %v1554 = vunpack.c.h.b16 %v244
    %v1555 = vunpack.c.l.b16 %v245
    %v1556 = vunpack.c.h.b16 %v245
    %v1557 = vunpack.c.l.b16 %v246
    %v1558 = vunpack.c.h.b16 %v246
    %v1559 = vunpack.c.l.b16 %v247
    %v1560 = vunpack.c.h.b16 %v247
    %v1561 = vunpack.c.l.b16 %v248
    %v1562 = vunpack.c.h.b16 %v248
    %v1563 = vunpack.c.l.b16 %v249
    %v1564 = vunpack.c.h.b16 %v249
    %v1565 = vunpack.c.l.b16 %v250
    %v1566 = vunpack.c.h.b16 %v250
    %v1567 = vunpack.c.l.b16 %v251
    %v1568 = vunpack.c.h.b16 %v251
    %v1569 = vunpack.c.l.b16 %v252
    %v1570 = vunpack.c.h.b16 %v252
    %v1571 = vunpack.c.l.b16 %v253
    %v1572 = vunpack.c.h.b16 %v253
    %v1573 = vunpack.c.l.b16 %v254
    %v1574 = vunpack.c.h.b16 %v254
    %v1575 = vunpack.c.l.b16 %v255
    %v1576 = vunpack.c.h.b16 %v255
    %v1577 = vunpack.c.l.b16 %v256
    %v1578 = vunpack.c.h.b16 %v256
    %v1579 = vunpack.c.l.b16 %v257
    %v1580 = vunpack.c.h.b16 %v257
    %v1581 = vunpack.c.l.b16 %v258
    %v1582 = vunpack.c.h.b16 %v258
    %v1583 = vunpack.c.l.b16 %v259
    %v1584 = vunpack.c.h.b16 %v259
    %v1585 = vunpack.c.l.b16 %v260
    %v1586 = vunpack.c.h.b16 %v260
    %v1587 = vunpack.c.l.b16 %v261
    %v1588 = vunpack.c.h.b16 %v261
    %v1589 = vunpack.c.l.b16 %v262
    %v1590 = vunpack.c.h.b16 %v262
    %v1591 = vunpack.c.l.b16 %v263
    %v1592 = vunpack.c.h.b16 %v263
    %v1593 = vunpack.c.l.b16 %v264
    %v1594 = vunpack.c.h.b16 %v264
    %v1595 = vunpack.c.l.b16 %v265
    %v1596 = vunpack.c.h.b16 %v265
    %v1597 = vunpack.c.l.b16 %v266
    %v1598 = vunpack.c.h.b16 %v266
    %v1599 = vunpack.c.l.b16 %v267
    %v1600 = vunpack.c.h.b16 %v267
    %v1601 = vunpack.c.l.b16 %v268
    %v1602 = vunpack.c.h.b16 %v268
    %v1603 = vunpack.c.l.b16 %v269
    %v1604 = vunpack.c.h.b16 %v269
    %v1605 = vunpack.c.l.b16 %v270
    %v1606 = vunpack.c.h.b16 %v270
    %v1607 = vunpack.c.l.b16 %v271
    %v1608 = vunpack.c.h.b16 %v271
    %v1609 = vunpack.c.l.b16 %v272
    %v1610 = vunpack.c.h.b16 %v272
    %v1611 = vunpack.c.l.b16 %v273
    %v1612 = vunpack.c.h.b16 %v273
    %v1613 = vunpack.c.l.b16 %v274
    %v1614 = vunpack.c.h.b16 %v274
    %v1615 = vunpack.c.l.b16 %v275
    %v1616 = vunpack.c.h.b16 %v275
    %v1617 = vunpack.c.l.b16 %v276
    %v1618 = vunpack.c.h.b16 %v276
    %v1619 = vunpack.c.l.b16 %v277
    %v1620 = vunpack.c.h.b16 %v277
    %v1621 = vunpack.c.l.b16 %v278
    %v1622 = vunpack.c.h.b16 %v278
    %v1623 = vunpack.c.l.b16 %v279
    %v1624 = vunpack.c.h.b16 %v279
    %v1625 = vunpack.c.l.b16 %v280
    %v1626 = vunpack.c.h.b16 %v280
    %v1627 = vunpack.c.l.b16 %v281
    %v1628 = vunpack.c.h.b16 %v281
    %v1629 = vunpack.c.l.b16 %v282
    %v1630 = vunpack.c.h.b16 %v282
    %v1631 = vunpack.c.l.b16 %v283
    %v1632 = vunpack.c.h.b16 %v283
    %v1633 = vunpack.c.l.b16 %v284
    %v1634 = vunpack.c.h.b16 %v284
    %v1635 = vunpack.c.l.b16 %v285
    %v1636 = vunpack.c.h.b16 %v285
    %v1637 = vunpack.c.l.b16 %v286
    %v1638 = vunpack.c.h.b16 %v286
    %v1639 = vunpack.c.l.b16 %v287
    %v1640 = vunpack.c.h.b16 %v287
    %v1641 = vunpack.c.l.b16 %v288
    %v1642 = vunpack.c.h.b16 %v288
    %v1643 = vunpack.c.l.b16 %v289
    %v1644 = vunpack.c.h.b16 %v289
    %v1645 = vunpack.c.l.b16 %v290
    %v1646 = vunpack.c.h.b16 %v290
    %v1647 = vunpack.c.l.b16 %v291
    %v1648 = vunpack.c.h.b16 %v291
    %v1649 = vunpack.c.l.b16 %v292
    %v1650 = vunpack.c.h.b16 %v292
    %v1651 = vunpack.c.l.b16 %v293
    %v1652 = vunpack.c.h.b16 %v293
    %v1653 = vunpack.c.l.b16 %v294
    %v1654 = vunpack.c.h.b16 %v294
    %v1655 = vunpack.c.l.b16 %v295
    %v1656 = vunpack.c.h.b16 %v295
    %v1657 = vunpack.c.l.b16 %v296
    %v1658 = vunpack.c.h.b16 %v296
    %v1659 = vunpack.c.l.b16 %v297
    %v1660 = vunpack.c.h.b16 %v297
    %v1661 = vunpack.c.l.b16 %v298
    %v1662 = vunpack.c.h.b16 %v298
    %v1663 = vunpack.c.l.b16 %v299
    %v1664 = vunpack.c.h.b16 %v299
    %v1665 = vunpack.c.l.b16 %v300
    %v1666 = vunpack.c.h.b16 %v300
    %v1667 = vunpack.c.l.b16 %v301
    %v1668 = vunpack.c.h.b16 %v301
    %v1669 = vunpack.c.l.b16 %v302
    %v1670 = vunpack.c.h.b16 %v302
    %v1671 = vunpack.c.l.b16 %v303
    %v1672 = vunpack.c.h.b16 %v303
    %v1673 = vunpack.c.l.b16 %v304
    %v1674 = vunpack.c.h.b16 %v304
    %v1675 = vunpack.c.l.b16 %v305
    %v1676 = vunpack.c.h.b16 %v305
    %v1677 = vunpack.c.l.b16 %v306
    %v1678 = vunpack.c.h.b16 %v306
    %v1679 = vunpack.c.l.b16 %v307
    %v1680 = vunpack.c.h.b16 %v307
    %v1681 = vunpack.c.l.b16 %v308
    %v1682 = vunpack.c.h.b16 %v308
    %v1683 = vunpack.c.l.b16 %v309
    %v1684 = vunpack.c.h.b16 %v309
    %v1685 = vunpack.c.l.b16 %v310
    %v1686 = vunpack.c.h.b16 %v310
    %v1687 = vunpack.c.l.b16 %v311
    %v1688 = vunpack.c.h.b16 %v311
    %v1689 = vunpack.c.l.b16 %v312
    %v1690 = vunpack.c.h.b16 %v312
    %v1691 = vunpack.c.l.b16 %v313
    %v1692 = vunpack.c.h.b16 %v313
    %v1693 = vunpack.c.l.b16 %v314
    %v1694 = vunpack.c.h.b16 %v314
    %v1695 = vunpack.c.l.b16 %v315
    %v1696 = vunpack.c.h.b16 %v315
    %v1697 = vunpack.c.l.b16 %v316
    %v1698 = vunpack.c.h.b16 %v316
    %v1699 = vunpack.c.l.b16 %v317
    %v1700 = vunpack.c.h.b16 %v317
    %v1701 = vunpack.c.l.b16 %v318
    %v1702 = vunpack.c.h.b16 %v318
    %v1703 = vunpack.c.l.b16 %v319
    %v1704 = vunpack.c.h.b16 %v319
    %v1705 = vunpack.c.l.b16 %v320
    %v1706 = vunpack.c.h.b16 %v320
    %v1707 = vunpack.c.l.b16 %v321
    %v1708 = vunpack.c.h.b16 %v321
    %v1709 = vunpack.c.l.b16 %v322
    %v1710 = vunpack.c.h.b16 %v322
    %v1711 = vunpack.c.l.b16 %v323
    %v1712 = vunpack.c.h.b16 %v323
    %v1713 = vunpack.c.l.b16 %v324
    %v1714 = vunpack.c.h.b16 %v324
    %v1715 = vunpack.c.l.b16 %v325
    %v1716 = vunpack.c.h.b16 %v325
    %v1717 = vunpack.c.l.b16 %v326
    %v1718 = vunpack.c.h.b16 %v326
    %v1719 = vunpack.c.l.b16 %v327
    %v1720 = vunpack.c.h.b16 %v327
    %v1721 = vunpack.c.l.b16 %v328
    %v1722 = vunpack.c.h.b16 %v328
    %v1723 = vunpack.c.l.b16 %v329
    %v1724 = vunpack.c.h.b16 %v329
    %v1725 = vunpack.c.l.b16 %v330
    %v1726 = vunpack.c.h.b16 %v330
    %v1727 = vunpack.c.l.b16 %v331
    %v1728 = vunpack.c.h.b16 %v331
    %v1729 = vunpack.c.l.b16 %v332
    %v1730 = vunpack.c.h.b16 %v332
    %v1731 = vunpack.c.l.b16 %v333
    %v1732 = vunpack.c.h.b16 %v333
    %v1733 = vunpack.c.l.b16 %v334
    %v1734 = vunpack.c.h.b16 %v334
    %v1735 = vunpack.c.l.b16 %v335
    %v1736 = vunpack.c.h.b16 %v335
    %v1737 = vunpack.c.l.b16 %v336
    %v1738 = vunpack.c.h.b16 %v336
    %v1739 = vunpack.c.l.b16 %v337
    %v1740 = vunpack.c.h.b16 %v337
    %v1741 = vunpack.c.l.b16 %v338
    %v1742 = vunpack.c.h.b16 %v338
    %v1743 = vunpack.c.l.b16 %v339
    %v1744 = vunpack.c.h.b16 %v339
    %v1745 = vunpack.c.l.b16 %v340
    %v1746 = vunpack.c.h.b16 %v340
    %v1747 = vunpack.c.l.b16 %v341
    %v1748 = vunpack.c.h.b16 %v341
    %v1749 = vunpack.c.l.b16 %v342
    %v1750 = vunpack.c.h.b16 %v342
    %v1751 = vunpack.c.l.b16 %v343
    %v1752 = vunpack.c.h.b16 %v343
    %v1753 = vunpack.c.l.b16 %v344
    %v1754 = vunpack.c.h.b16 %v344
    %v1755 = vunpack.c.l.b16 %v345
    %v1756 = vunpack.c.h.b16 %v345
    %v1757 = vunpack.c.l.b16 %v346
    %v1758 = vunpack.c.h.b16 %v346
    %v1759 = vunpack.c.l.b16 %v347
    %v1760 = vunpack.c.h.b16 %v347
    %v1761 = vunpack.c.l.b16 %v348
    %v1762 = vunpack.c.h.b16 %v348
    %v1763 = vunpack.c.l.b16 %v349
    %v1764 = vunpack.c.h.b16 %v349
    %v1765 = vunpack.c.l.b16 %v350
    %v1766 = vunpack.c.h.b16 %v350
    %v1767 = vunpack.c.l.b16 %v351
    %v1768 = vunpack.c.h.b16 %v351
    %v1769 = vunpack.c.l.b16 %v352
    %v1770 = vunpack.c.h.b16 %v352
    %v1771 = vunpack.c.l.b16 %v353
    %v1772 = vunpack.c.h.b16 %v353
    %v1773 = vunpack.c.l.b16 %v354
    %v1774 = vunpack.c.h.b16 %v354
    %v1775 = vunpack.c.l.b16 %v355
    %v1776 = vunpack.c.h.b16 %v355
    %v1777 = vunpack.c.l.b16 %v356
    %v1778 = vunpack.c.h.b16 %v356
    %v1779 = vunpack.c.l.b16 %v357
    %v1780 = vunpack.c.h.b16 %v357
    %v1781 = vunpack.c.l.b16 %v358
    %v1782 = vunpack.c.h.b16 %v358
    %v1783 = vunpack.c.l.b16 %v359
    %v1784 = vunpack.c.h.b16 %v359
    %v1785 = vunpack.c.l.b16 %v360
    %v1786 = vunpack.c.h.b16 %v360
    %v1787 = vunpack.c.l.b16 %v361
    %v1788 = vunpack.c.h.b16 %v361
    %v1789 = vunpack.c.l.b16 %v362
    %v1790 = vunpack.c.h.b16 %v362
    %v1791 = vunpack.c.l.b16 %v363
    %v1792 = vunpack.c.h.b16 %v363
    %v1793 = vunpack.c.l.b16 %v364
    %v1794 = vunpack.c.h.b16 %v364
    %v1795 = vunpack.c.l.b16 %v365
    %v1796 = vunpack.c.h.b16 %v365
    %v1797 = vunpack.c.l.b16 %v366
    %v1798 = vunpack.c.h.b16 %v366
    %v1799 = vunpack.c.l.b16 %v367
    %v1800 = vunpack.c.h.b16 %v367
    %v1801 = vunpack.c.l.b16 %v368
    %v1802 = vunpack.c.h.b16 %v368
    %v1803 = vunpack.c.l.b16 %v369
    %v1804 = vunpack.c.h.b16 %v369
    %v1805 = vunpack.c.l.b16 %v370
    %v1806 = vunpack.c.h.b16 %v370
    %v1807 = vunpack.c.l.b16 %v371
    %v1808 = vunpack.c.h.b16 %v371
    %v1809 = vunpack.c.l.b16 %v372
    %v1810 = vunpack.c.h.b16 %v372
    %v1811 = vunpack.c.l.b16 %v373
    %v1812 = vunpack.c.h.b16 %v373
    %v1813 = vunpack.c.l.b16 %v374
    %v1814 = vunpack.c.h.b16 %v374
    %v1815 = vunpack.c.l.b16 %v375
    %v1816 = vunpack.c.h.b16 %v375
    %v1817 = vunpack.c.l.b16 %v376
    %v1818 = vunpack.c.h.b16 %v376
    %v1819 = vunpack.c.l.b16 %v377
    %v1820 = vunpack.c.h.b16 %v377
    %v1821 = vunpack.c.l.b16 %v378
    %v1822 = vunpack.c.h.b16 %v378
    %v1823 = vunpack.c.l.b16 %v379
    %v1824 = vunpack.c.h.b16 %v379
    %v1825 = vunpack.c.l.b16 %v380
    %v1826 = vunpack.c.h.b16 %v380
    %v1827 = vunpack.c.l.b16 %v381
    %v1828 = vunpack.c.h.b16 %v381
    %v1829 = vunpack.c.l.b16 %v382
    %v1830 = vunpack.c.h.b16 %v382
    %v1831 = vunpack.c.l.b16 %v383
    %v1832 = vunpack.c.h.b16 %v383
    %v1833 = vunpack.c.l.b16 %v384
    %v1834 = vunpack.c.h.b16 %v384
    %v1835 = vunpack.c.l.b16 %v385
    %v1836 = vunpack.c.h.b16 %v385
    %v1837 = vunpack.c.l.b16 %v386
    %v1838 = vunpack.c.h.b16 %v386
    %v1839 = vunpack.c.l.b16 %v387
    %v1840 = vunpack.c.h.b16 %v387
    %v1841 = vunpack.c.l.b16 %v388
    %v1842 = vunpack.c.h.b16 %v388
    %v1843 = vunpack.c.l.b16 %v389
    %v1844 = vunpack.c.h.b16 %v389
    %v1845 = vunpack.c.l.b16 %v390
    %v1846 = vunpack.c.h.b16 %v390
    %v1847 = vunpack.c.l.b16 %v391
    %v1848 = vunpack.c.h.b16 %v391
    %v1849 = vunpack.c.l.b16 %v392
    %v1850 = vunpack.c.h.b16 %v392
    %v1851 = vunpack.c.l.b16 %v393
    %v1852 = vunpack.c.h.b16 %v393
    %v1853 = vunpack.c.l.b16 %v394
    %v1854 = vunpack.c.h.b16 %v394
    %v1855 = vunpack.c.l.b16 %v395
    %v1856 = vunpack.c.h.b16 %v395
    %v1857 = vunpack.c.l.b16 %v396
    %v1858 = vunpack.c.h.b16 %v396
    %v1859 = vunpack.c.l.b16 %v397
    %v1860 = vunpack.c.h.b16 %v397
    %v1861 = vunpack.c.l.b16 %v398
    %v1862 = vunpack.c.h.b16 %v398
    %v1863 = vunpack.c.l.b16 %v399
    %v1864 = vunpack.c.h.b16 %v399
    %v1865 = vunpack.c.l.b16 %v400
    %v1866 = vunpack.c.h.b16 %v400
    %v1867 = vunpack.c.l.b16 %v401
    %v1868 = vunpack.c.h.b16 %v401
    %v1869 = vunpack.c.l.b16 %v402
    %v1870 = vunpack.c.h.b16 %v402
    %v1871 = vunpack.c.l.b16 %v403
    %v1872 = vunpack.c.h.b16 %v403
    %v1873 = vunpack.c.l.b16 %v404
    %v1874 = vunpack.c.h.b16 %v404
    %v1875 = vunpack.c.l.b16 %v405
    %v1876 = vunpack.c.h.b16 %v405
    %v1877 = vunpack.c.l.b16 %v406
    %v1878 = vunpack.c.h.b16 %v406
    %v1879 = vunpack.c.l.b16 %v407
    %v1880 = vunpack.c.h.b16 %v407
    %v1881 = vunpack.c.l.b16 %v408
    %v1882 = vunpack.c.h.b16 %v408
    %v1883 = vunpack.c.l.b16 %v409
    %v1884 = vunpack.c.h.b16 %v409
    %v1885 = vunpack.c.l.b16 %v410
    %v1886 = vunpack.c.h.b16 %v410
    %v1887 = vunpack.c.l.b16 %v411
    %v1888 = vunpack.c.h.b16 %v411
    %v1889 = vunpack.c.l.b16 %v412
    %v1890 = vunpack.c.h.b16 %v412
    %v1891 = vunpack.c.l.b16 %v413
    %v1892 = vunpack.c.h.b16 %v413
    %v1893 = vunpack.c.l.b16 %v414
    %v1894 = vunpack.c.h.b16 %v414
    %v1895 = vunpack.c.l.b16 %v415
    %v1896 = vunpack.c.h.b16 %v415
    %v1897 = vunpack.c.l.b16 %v416
    %v1898 = vunpack.c.h.b16 %v416
    %v1899 = vunpack.c.l.b16 %v417
    %v1900 = vunpack.c.h.b16 %v417
    %v1901 = vunpack.c.l.b16 %v418
    %v1902 = vunpack.c.h.b16 %v418
    %v1903 = vunpack.c.l.b16 %v419
    %v1904 = vunpack.c.h.b16 %v419
    %v1905 = vunpack.c.l.b16 %v420
    %v1906 = vunpack.c.h.b16 %v420
    %v1907 = vunpack.c.l.b16 %v421
    %v1908 = vunpack.c.h.b16 %v421
    %v1909 = vunpack.c.l.b16 %v422
    %v1910 = vunpack.c.h.b16 %v422
    %v1911 = vunpack.c.l.b16 %v423
    %v1912 = vunpack.c.h.b16 %v423
    %v1913 = vunpack.c.l.b16 %v424
    %v1914 = vunpack.c.h.b16 %v424
    %v1915 = vunpack.c.l.b16 %v425
    %v1916 = vunpack.c.h.b16 %v425
    %v1917 = vunpack.c.l.b16 %v426
    %v1918 = vunpack.c.h.b16 %v426
    %v1919 = vunpack.c.l.b16 %v427
    %v1920 = vunpack.c.h.b16 %v427
    %v1921 = vunpack.c.l.b16 %v428
    %v1922 = vunpack.c.h.b16 %v428
    %v1923 = vunpack.c.l.b16 %v429
    %v1924 = vunpack.c.h.b16 %v429
    %v1925 = vunpack.c.l.b16 %v430
    %v1926 = vunpack.c.h.b16 %v430
    %v1927 = vunpack.c.l.b16 %v431
    %v1928 = vunpack.c.h.b16 %v431
    %v1929 = vunpack.c.l.b16 %v432
    %v1930 = vunpack.c.h.b16 %v432
    %v1931 = vunpack.c.l.b16 %v433
    %v1932 = vunpack.c.h.b16 %v433
    %v1933 = vunpack.c.l.b16 %v434
    %v1934 = vunpack.c.h.b16 %v434
    %v1935 = vunpack.c.l.b16 %v435
    %v1936 = vunpack.c.h.b16 %v435
    %v1937 = vunpack.c.l.b16 %v436
    %v1938 = vunpack.c.h.b16 %v436
    %v1939 = vunpack.c.l.b16 %v437
    %v1940 = vunpack.c.h.b16 %v437
    %v1941 = vunpack.c.l.b16 %v438
    %v1942 = vunpack.c.h.b16 %v438
    %v1943 = vunpack.c.l.b16 %v439
    %v1944 = vunpack.c.h.b16 %v439
    %v1945 = vunpack.c.l.b16 %v440
    %v1946 = vunpack.c.h.b16 %v440
    %v1947 = vunpack.c.l.b16 %v441
    %v1948 = vunpack.c.h.b16 %v441
    %v1949 = vunpack.c.l.b16 %v442
    %v1950 = vunpack.c.h.b16 %v442
    %v1951 = vunpack.c.l.b16 %v443
    %v1952 = vunpack.c.h.b16 %v443
    %v1953 = vunpack.c.l.b16 %v444
    %v1954 = vunpack.c.h.b16 %v444
    %v1955 = vunpack.c.l.b16 %v445
    %v1956 = vunpack.c.h.b16 %v445
    %v1957 = vunpack.c.l.b16 %v446
    %v1958 = vunpack.c.h.b16 %v446
    %v1959 = vunpack.c.l.b16 %v447
    %v1960 = vunpack.c.h.b16 %v447
    %v1961 = vunpack.c.l.b16 %v448
    %v1962 = vunpack.c.h.b16 %v448
    %v1963 = vunpack.c.l.b16 %v449
    %v1964 = vunpack.c.h.b16 %v449
    %v1965 = vunpack.c.l.b16 %v450
    %v1966 = vunpack.c.h.b16 %v450
    %v1967 = vunpack.c.l.b16 %v451
    %v1968 = vunpack.c.h.b16 %v451
    %v1969 = vunpack.c.l.b16 %v452
    %v1970 = vunpack.c.h.b16 %v452
    %v1971 = vunpack.c.l.b16 %v453
    %v1972 = vunpack.c.h.b16 %v453
    %v1973 = vunpack.c.l.b16 %v454
    %v1974 = vunpack.c.h.b16 %v454
    %v1975 = vunpack.c.l.b16 %v455
    %v1976 = vunpack.c.h.b16 %v455
    %v1977 = vunpack.c.l.b16 %v456
    %v1978 = vunpack.c.h.b16 %v456
    %v1979 = vunpack.c.l.b16 %v457
    %v1980 = vunpack.c.h.b16 %v457
    %v1981 = vunpack.c.l.b16 %v458
    %v1982 = vunpack.c.h.b16 %v458
    %v1983 = vunpack.c.l.b16 %v459
    %v1984 = vunpack.c.h.b16 %v459
    %v1985 = vunpack.c.l.b16 %v460
    %v1986 = vunpack.c.h.b16 %v460
    %v1987 = vunpack.c.l.b16 %v461
    %v1988 = vunpack.c.h.b16 %v461
    %v1989 = vunpack.c.l.b16 %v462
    %v1990 = vunpack.c.h.b16 %v462
    %v1991 = vunpack.c.l.b16 %v463
    %v1992 = vunpack.c.h.b16 %v463
    %v1993 = vunpack.c.l.b16 %v464
    %v1994 = vunpack.c.h.b16 %v464
    %v1995 = vunpack.c.l.b16 %v465
    %v1996 = vunpack.c.h.b16 %v465
    %v1997 = vunpack.c.l.b16 %v466
    %v1998 = vunpack.c.h.b16 %v466
    %v1999 = vunpack.c.l.b16 %v467
    %v2000 = vunpack.c.h.b16 %v467
    %v2001 = vunpack.c.l.b16 %v468
    %v2002 = vunpack.c.h.b16 %v468
    %v2003 = vunpack.c.l.b16 %v469
    %v2004 = vunpack.c.h.b16 %v469
    %v2005 = vunpack.c.l.b16 %v470
    %v2006 = vunpack.c.h.b16 %v470
    %v2007 = vunpack.c.l.b16 %v471
    %v2008 = vunpack.c.h.b16 %v471
    %v2009 = vunpack.c.l.b16 %v472
    %v2010 = vunpack.c.h.b16 %v472
    %v2011 = vunpack.c.l.b16 %v473
    %v2012 = vunpack.c.h.b16 %v473
    %v2013 = vunpack.c.l.b16 %v474
    %v2014 = vunpack.c.h.b16 %v474
    %v2015 = vunpack.c.l.b16 %v475
    %v2016 = vunpack.c.h.b16 %v475
    %v2017 = vunpack.c.l.b16 %v476
    %v2018 = vunpack.c.h.b16 %v476
    %v2019 = vunpack.c.l.b16 %v477
    %v2020 = vunpack.c.h.b16 %v477
    %v2021 = vunpack.c.l.b16 %v478
    %v2022 = vunpack.c.h.b16 %v478
    %v2023 = vunpack.c.l.b16 %v479
    %v2024 = vunpack.c.h.b16 %v479
    %v2025 = vunpack.c.l.b16 %v480
    %v2026 = vunpack.c.h.b16 %v480
    %v2027 = vunpack.c.l.b16 %v481
    %v2028 = vunpack.c.h.b16 %v481
    %v2029 = vunpack.c.l.b16 %v482
    %v2030 = vunpack.c.h.b16 %v482
    %v2031 = vunpack.c.l.b16 %v483
    %v2032 = vunpack.c.h.b16 %v483
    %v2033 = vunpack.c.l.b16 %v484
    %v2034 = vunpack.c.h.b16 %v484
    %v2035 = vunpack.c.l.b16 %v485
    %v2036 = vunpack.c.h.b16 %v485
    %v2037 = vunpack.c.l.b16 %v486
    %v2038 = vunpack.c.h.b16 %v486
    %v2039 = vunpack.c.l.b16 %v487
    %v2040 = vunpack.c.h.b16 %v487
    %v2041 = vunpack.c.l.b16 %v488
    %v2042 = vunpack.c.h.b16 %v488
    %v2043 = vunpack.c.l.b16 %v489
    %v2044 = vunpack.c.h.b16 %v489
    %v2045 = vunpack.c.l.b16 %v490
    %v2046 = vunpack.c.h.b16 %v490
    %v2047 = vunpack.c.l.b16 %v491
    %v2048 = vunpack.c.h.b16 %v491
    %v2049 = vunpack.c.l.b16 %v492
    %v2050 = vunpack.c.h.b16 %v492
    %v2051 = vunpack.c.l.b16 %v493
    %v2052 = vunpack.c.h.b16 %v493
    %v2053 = vunpack.c.l.b16 %v494
    %v2054 = vunpack.c.h.b16 %v494
    %v2055 = vunpack.c.l.b16 %v495
    %v2056 = vunpack.c.h.b16 %v495
    %v2057 = vunpack.c.l.b16 %v496
    %v2058 = vunpack.c.h.b16 %v496
    %v2059 = vunpack.c.l.b16 %v497
    %v2060 = vunpack.c.h.b16 %v497
    %v2061 = vunpack.c.l.b16 %v498
    %v2062 = vunpack.c.h.b16 %v498
    %v2063 = vunpack.c.l.b16 %v499
    %v2064 = vunpack.c.h.b16 %v499
    %v2065 = vunpack.c.l.b16 %v500
    %v2066 = vunpack.c.h.b16 %v500
    %v2067 = vunpack.c.l.b16 %v501
    %v2068 = vunpack.c.h.b16 %v501
    %v2069 = vunpack.c.l.b16 %v502
    %v2070 = vunpack.c.h.b16 %v502
    %v2071 = vunpack.c.l.b16 %v503
    %v2072 = vunpack.c.h.b16 %v503
    %v2073 = vunpack.c.l.b16 %v504
    %v2074 = vunpack.c.h.b16 %v504
    %v2075 = vunpack.c.l.b16 %v505
    %v2076 = vunpack.c.h.b16 %v505
    %v2077 = vunpack.c.l.b16 %v506
    %v2078 = vunpack.c.h.b16 %v506
    %v2079 = vunpack.c.l.b16 %v507
    %v2080 = vunpack.c.h.b16 %v507
    %v2081 = vunpack.c.l.b16 %v508
    %v2082 = vunpack.c.h.b16 %v508
    %v2083 = vunpack.c.l.b16 %v509
    %v2084 = vunpack.c.h.b16 %v509
    %v2085 = vunpack.c.l.b16 %v510
    %v2086 = vunpack.c.h.b16 %v510
    %v2087 = vunpack.c.l.b16 %v511
    %v2088 = vunpack.c.h.b16 %v511
    %v2089 = vunpack.c.l.b16 %v512
    %v2090 = vunpack.c.h.b16 %v512
    %v2091 = vunpack.c.l.b16 %v513
    %v2092 = vunpack.c.h.b16 %v513
    %v2093 = vunpack.c.l.b16 %v514
    %v2094 = vunpack.c.h.b16 %v514
    %v2095 = vunpack.c.l.b16 %v515
    %v2096 = vunpack.c.h.b16 %v515
    %v2097 = vunpack.c.l.b16 %v516
    %v2098 = vunpack.c.h.b16 %v516
    %v2099 = vunpack.c.l.b16 %v517
    %v2100 = vunpack.c.h.b16 %v517
    %v2101 = vunpack.c.l.b16 %v518
    %v2102 = vunpack.c.h.b16 %v518
    %v2103 = vunpack.c.l.b16 %v519
    %v2104 = vunpack.c.h.b16 %v519
    %v2105 = vunpack.c.l.b16 %v520
    %v2106 = vunpack.c.h.b16 %v520
    %v2107 = vunpack.c.l.b16 %v521
    %v2108 = vunpack.c.h.b16 %v521
    %v2109 = vunpack.c.l.b16 %v522
    %v2110 = vunpack.c.h.b16 %v522
    %v2111 = vunpack.c.l.b16 %v523
    %v2112 = vunpack.c.h.b16 %v523
    %v2113 = vunpack.c.l.b16 %v524
    %v2114 = vunpack.c.h.b16 %v524
    %v2115 = vunpack.c.l.b16 %v525
    %v2116 = vunpack.c.h.b16 %v525
    %v2117 = vunpack.c.l.b16 %v526
    %v2118 = vunpack.c.h.b16 %v526
    %v2119 = vunpack.c.l.b16 %v527
    %v2120 = vunpack.c.h.b16 %v527
    %v2121 = vunpack.c.l.b16 %v528
    %v2122 = vunpack.c.h.b16 %v528
    %v2123 = vunpack.c.l.b16 %v529
    %v2124 = vunpack.c.h.b16 %v529
    %v2125 = vunpack.c.l.b16 %v530
    %v2126 = vunpack.c.h.b16 %v530
    %v2127 = vunpack.c.l.b16 %v531
    %v2128 = vunpack.c.h.b16 %v531
    %v2129 = vunpack.c.l.b16 %v532
    %v2130 = vunpack.c.h.b16 %v532
    %v2131 = vunpack.c.l.b16 %v533
    %v2132 = vunpack.c.h.b16 %v533
    %v2133 = vunpack.c.l.b16 %v534
    %v2134 = vunpack.c.h.b16 %v534
    %v2135 = vunpack.c.l.b16 %v535
    %v2136 = vunpack.c.h.b16 %v535
    %v2137 = vunpack.c.l.b16 %v536
    %v2138 = vunpack.c.h.b16 %v536
    %v2139 = vunpack.c.l.b16 %v537
    %v2140 = vunpack.c.h.b16 %v537
    %v2141 = vunpack.c.l.b16 %v538
    %v2142 = vunpack.c.h.b16 %v538
    %v2143 = vunpack.c.l.b16 %v539
    %v2144 = vunpack.c.h.b16 %v539
    %v2145 = vunpack.c.l.b16 %v540
    %v2146 = vunpack.c.h.b16 %v540
    %v2147 = vunpack.c.l.b16 %v541
    %v2148 = vunpack.c.h.b16 %v541
    %v2149 = vunpack.c.l.b16 %v542
    %v2150 = vunpack.c.h.b16 %v542
    %v2151 = vunpack.c.l.b16 %v543
    %v2152 = vunpack.c.h.b16 %v543
    %v2153 = vunpack.c.l.b16 %v544
    %v2154 = vunpack.c.h.b16 %v544
    %v2155 = vunpack.c.l.b16 %v545
    %v2156 = vunpack.c.h.b16 %v545
    %v2157 = vunpack.c.l.b16 %v546
    %v2158 = vunpack.c.h.b16 %v546
    %v2159 = vunpack.c.l.b16 %v547
    %v2160 = vunpack.c.h.b16 %v547
    %v2161 = vunpack.c.l.b16 %v548
    %v2162 = vunpack.c.h.b16 %v548
    %v2163 = vunpack.c.l.b16 %v549
    %v2164 = vunpack.c.h.b16 %v549
    %v2165 = vunpack.c.l.b16 %v550
    %v2166 = vunpack.c.h.b16 %v550
    %v2167 = vunpack.c.l.b16 %v551
    %v2168 = vunpack.c.h.b16 %v551
    %v2169 = vunpack.c.l.b16 %v552
    %v2170 = vunpack.c.h.b16 %v552
    %v2171 = vunpack.c.l.b16 %v553
    %v2172 = vunpack.c.h.b16 %v553
    %v2173 = vunpack.c.l.b16 %v554
    %v2174 = vunpack.c.h.b16 %v554
    %v2175 = vunpack.c.l.b16 %v555
    %v2176 = vunpack.c.h.b16 %v555
    %v2177 = vunpack.c.l.b16 %v556
    %v2178 = vunpack.c.h.b16 %v556
    %v2179 = vunpack.c.l.b16 %v557
    %v2180 = vunpack.c.h.b16 %v557
    %v2181 = vunpack.c.l.b16 %v558
    %v2182 = vunpack.c.h.b16 %v558
    %v2183 = vunpack.c.l.b16 %v559
    %v2184 = vunpack.c.h.b16 %v559
    %v2185 = vunpack.c.l.b16 %v560
    %v2186 = vunpack.c.h.b16 %v560
    %v2187 = vunpack.c.l.b16 %v561
    %v2188 = vunpack.c.h.b16 %v561
    %v2189 = vunpack.c.l.b16 %v562
    %v2190 = vunpack.c.h.b16 %v562
    %v2191 = vunpack.c.l.b16 %v563
    %v2192 = vunpack.c.h.b16 %v563
    %v2193 = vunpack.c.l.b16 %v564
    %v2194 = vunpack.c.h.b16 %v564
    %v2195 = vunpack.c.l.b16 %v565
    %v2196 = vunpack.c.h.b16 %v565
    %v2197 = vunpack.c.l.b16 %v566
    %v2198 = vunpack.c.h.b16 %v566
    %v2199 = vunpack.c.l.b16 %v567
    %v2200 = vunpack.c.h.b16 %v567
    %v2201 = vunpack.c.l.b16 %v568
    %v2202 = vunpack.c.h.b16 %v568
    %v2203 = vunpack.c.l.b16 %v569
    %v2204 = vunpack.c.h.b16 %v569
    %v2205 = vunpack.c.l.b16 %v570
    %v2206 = vunpack.c.h.b16 %v570
    %v2207 = vunpack.c.l.b16 %v571
    %v2208 = vunpack.c.h.b16 %v571
    %v2209 = vunpack.c.l.b16 %v572
    %v2210 = vunpack.c.h.b16 %v572
    %v2211 = vunpack.c.l.b16 %v573
    %v2212 = vunpack.c.h.b16 %v573
    %v2213 = vunpack.c.l.b16 %v574
    %v2214 = vunpack.c.h.b16 %v574
    %v2215 = vunpack.c.l.b16 %v575
    %v2216 = vunpack.c.h.b16 %v575
    %v2217 = vunpack.c.l.b16 %v576
    %v2218 = vunpack.c.h.b16 %v576
    %v2219 = vunpack.c.l.b16 %v577
    %v2220 = vunpack.c.h.b16 %v577
    %v2221 = vunpack.c.l.b16 %v578
    %v2222 = vunpack.c.h.b16 %v578
    %v2223 = vunpack.c.l.b16 %v579
    %v2224 = vunpack.c.h.b16 %v579
    %v2225 = vunpack.c.l.b16 %v580
    %v2226 = vunpack.c.h.b16 %v580
    %v2227 = vunpack.c.l.b16 %v581
    %v2228 = vunpack.c.h.b16 %v581
    %v2229 = vunpack.c.l.b16 %v582
    %v2230 = vunpack.c.h.b16 %v582
    %v2231 = vunpack.c.l.b16 %v583
    %v2232 = vunpack.c.h.b16 %v583
    %v2233 = vunpack.c.l.b16 %v584
    %v2234 = vunpack.c.h.b16 %v584
    %v2235 = vunpack.c.l.b16 %v585
    %v2236 = vunpack.c.h.b16 %v585
    %v2237 = vunpack.c.l.b16 %v586
    %v2238 = vunpack.c.h.b16 %v586
    %v2239 = vunpack.c.l.b16 %v587
    %v2240 = vunpack.c.h.b16 %v587
    %v2241 = vunpack.c.l.b16 %v588
    %v2242 = vunpack.c.h.b16 %v588
    %v2243 = vunpack.c.l.b16 %v589
    %v2244 = vunpack.c.h.b16 %v589
    %v2245 = vunpack.c.l.b16 %v590
    %v2246 = vunpack.c.h.b16 %v590
    %v2247 = vunpack.c.l.b16 %v591
    %v2248 = vunpack.c.h.b16 %v591
    %v2249 = vunpack.c.l.b16 %v592
    %v2250 = vunpack.c.h.b16 %v592
    %v2251 = vunpack.c.l.b16 %v593
    %v2252 = vunpack.c.h.b16 %v593
    %v2253 = vunpack.c.l.b16 %v594
    %v2254 = vunpack.c.h.b16 %v594
    %v2255 = vunpack.c.l.b16 %v595
    %v2256 = vunpack.c.h.b16 %v595
    %v2257 = vunpack.c.l.b16 %v596
    %v2258 = vunpack.c.h.b16 %v596
    %v2259 = vunpack.c.l.b16 %v597
    %v2260 = vunpack.c.h.b16 %v597
    %v2261 = vunpack.c.l.b16 %v598
    %v2262 = vunpack.c.h.b16 %v598
    %v2263 = vunpack.c.l.b16 %v599
    %v2264 = vunpack.c.h.b16 %v599
    %v2265 = vunpack.c.l.b16 %v600
    %v2266 = vunpack.c.h.b16 %v600
    %v2267 = vunpack.c.l.b16 %v601
    %v2268 = vunpack.c.h.b16 %v601
    %v2269 = vunpack.c.l.b16 %v602
    %v2270 = vunpack.c.h.b16 %v602
    %v2271 = vunpack.c.l.b16 %v603
    %v2272 = vunpack.c.h.b16 %v603
    %v2273 = vunpack.c.l.b16 %v604
    %v2274 = vunpack.c.h.b16 %v604
    %v2275 = vunpack.c.l.b16 %v605
    %v2276 = vunpack.c.h.b16 %v605
    %v2277 = vunpack.c.l.b16 %v606
    %v2278 = vunpack.c.h.b16 %v606
    %v2279 = vunpack.c.l.b16 %v607
    %v2280 = vunpack.c.h.b16 %v607
    %v2281 = vunpack.c.l.b16 %v608
    %v2282 = vunpack.c.h.b16 %v608
    %v2283 = vunpack.c.l.b16 %v609
    %v2284 = vunpack.c.h.b16 %v609
    %v2285 = vunpack.c.l.b16 %v610
    %v2286 = vunpack.c.h.b16 %v610
    %v2287 = vunpack.c.l.b16 %v611
    %v2288 = vunpack.c.h.b16 %v611
    %v2289 = vunpack.c.l.b16 %v612
    %v2290 = vunpack.c.h.b16 %v612
    %v2291 = vunpack.c.l.b16 %v613
    %v2292 = vunpack.c.h.b16 %v613
    %v2293 = vunpack.c.l.b16 %v614
    %v2294 = vunpack.c.h.b16 %v614
    %v2295 = vunpack.c.l.b16 %v615
    %v2296 = vunpack.c.h.b16 %v615
    %v2297 = vunpack.c.l.b16 %v616
    %v2298 = vunpack.c.h.b16 %v616
    %v2299 = vunpack.c.l.b16 %v617
    %v2300 = vunpack.c.h.b16 %v617
    %v2301 = vunpack.c.l.b16 %v618
    %v2302 = vunpack.c.h.b16 %v618
    %v2303 = vunpack.c.l.b16 %v619
    %v2304 = vunpack.c.h.b16 %v619
    %v2305 = vunpack.c.l.b16 %v620
    %v2306 = vunpack.c.h.b16 %v620
    %v2307 = vunpack.c.l.b16 %v621
    %v2308 = vunpack.c.h.b16 %v621
    %v2309 = vunpack.c.l.b16 %v622
    %v2310 = vunpack.c.h.b16 %v622
    %v2311 = vunpack.c.l.b16 %v623
    %v2312 = vunpack.c.h.b16 %v623
    %v2313 = vunpack.c.l.b16 %v624
    %v2314 = vunpack.c.h.b16 %v624
    %v2315 = vunpack.c.l.b16 %v625
    %v2316 = vunpack.c.h.b16 %v625
    %v2317 = vunpack.c.l.b16 %v626
    %v2318 = vunpack.c.h.b16 %v626
    %v2319 = vunpack.c.l.b16 %v627
    %v2320 = vunpack.c.h.b16 %v627
    %v2321 = vunpack.c.l.b16 %v628
    %v2322 = vunpack.c.h.b16 %v628
    %v2323 = vunpack.c.l.b16 %v629
    %v2324 = vunpack.c.h.b16 %v629
    %v2325 = vunpack.c.l.b16 %v630
    %v2326 = vunpack.c.h.b16 %v630
    %v2327 = vunpack.c.l.b16 %v631
    %v2328 = vunpack.c.h.b16 %v631
    %v2329 = vunpack.c.l.b16 %v632
    %v2330 = vunpack.c.h.b16 %v632
    %v2331 = vunpack.c.l.b16 %v633
    %v2332 = vunpack.c.h.b16 %v633
    %v2333 = vunpack.c.l.b16 %v634
    %v2334 = vunpack.c.h.b16 %v634
    %v2335 = vunpack.c.l.b16 %v635
    %v2336 = vunpack.c.h.b16 %v635
    %v2337 = vunpack.c.l.b16 %v636
    %v2338 = vunpack.c.h.b16 %v636
    %v2339 = vunpack.c.l.b16 %v637
    %v2340 = vunpack.c.h.b16 %v637
    %v2341 = vunpack.c.l.b16 %v638
    %v2342 = vunpack.c.h.b16 %v638
    %v2343 = vunpack.c.l.b16 %v639
    %v2344 = vunpack.c.h.b16 %v639
    %v2345 = vunpack.c.l.b16 %v640
    %v2346 = vunpack.c.h.b16 %v640
    %v2347 = vunpack.c.l.b16 %v641
    %v2348 = vunpack.c.h.b16 %v641
    %v2349 = vunpack.c.l.b16 %v642
    %v2350 = vunpack.c.h.b16 %v642
    %v2351 = vunpack.c.l.b16 %v643
    %v2352 = vunpack.c.h.b16 %v643
    %v2353 = vunpack.c.l.b16 %v644
    %v2354 = vunpack.c.h.b16 %v644
    %v2355 = vunpack.c.l.b16 %v645
    %v2356 = vunpack.c.h.b16 %v645
    %v2357 = vunpack.c.l.b16 %v646
    %v2358 = vunpack.c.h.b16 %v646
    %v2359 = vunpack.c.l.b16 %v647
    %v2360 = vunpack.c.h.b16 %v647
    %v2361 = vunpack.c.l.b16 %v648
    %v2362 = vunpack.c.h.b16 %v648
    %v2363 = vunpack.c.l.b16 %v649
    %v2364 = vunpack.c.h.b16 %v649
    %v2365 = vunpack.c.l.b16 %v650
    %v2366 = vunpack.c.h.b16 %v650
    %v2367 = vunpack.c.l.b16 %v651
    %v2368 = vunpack.c.h.b16 %v651
    %v2369 = vunpack.c.l.b16 %v652
    %v2370 = vunpack.c.h.b16 %v652
    %v2371 = vunpack.c.l.b16 %v653
    %v2372 = vunpack.c.h.b16 %v653
    %v2373 = vunpack.c.l.b16 %v654
    %v2374 = vunpack.c.h.b16 %v654
    %v2375 = vunpack.c.l.b16 %v655
    %v2376 = vunpack.c.h.b16 %v655
    %v2377 = vunpack.c.l.b16 %v656
    %v2378 = vunpack.c.h.b16 %v656
    %v2379 = vunpack.c.l.b16 %v657
    %v2380 = vunpack.c.h.b16 %v657
    %v2381 = vunpack.c.l.b16 %v658
    %v2382 = vunpack.c.h.b16 %v658
    %v2383 = vunpack.c.l.b16 %v659
    %v2384 = vunpack.c.h.b16 %v659
    %v2385 = vunpack.c.l.b16 %v660
    %v2386 = vunpack.c.h.b16 %v660
    %v2387 = vunpack.c.l.b16 %v661
    %v2388 = vunpack.c.h.b16 %v661
    %v2389 = vunpack.c.l.b16 %v662
    %v2390 = vunpack.c.h.b16 %v662
    %v2391 = vunpack.c.l.b16 %v663
    %v2392 = vunpack.c.h.b16 %v663
    %v2393 = vunpack.c.l.b16 %v664
    %v2394 = vunpack.c.h.b16 %v664
    %v2395 = vunpack.c.l.b16 %v665
    %v2396 = vunpack.c.h.b16 %v665
    %v2397 = vunpack.c.l.b16 %v666
    %v2398 = vunpack.c.h.b16 %v666
    %v2399 = vunpack.c.l.b16 %v667
    %v2400 = vunpack.c.h.b16 %v667
    %v2401 = vunpack.c.l.b16 %v668
    %v2402 = vunpack.c.h.b16 %v668
    %v2403 = vunpack.c.l.b16 %v669
    %v2404 = vunpack.c.h.b16 %v669
    %v2405 = vunpack.c.l.b16 %v670
    %v2406 = vunpack.c.h.b16 %v670
    %v2407 = vunpack.c.l.b16 %v671
    %v2408 = vunpack.c.h.b16 %v671
    %v2409 = vunpack.c.l.b16 %v672
    %v2410 = vunpack.c.h.b16 %v672
    %v2411 = vunpack.c.l.b16 %v673
    %v2412 = vunpack.c.h.b16 %v673
    %v2413 = vunpack.c.l.b16 %v674
    %v2414 = vunpack.c.h.b16 %v674
    %v2415 = vunpack.c.l.b16 %v675
    %v2416 = vunpack.c.h.b16 %v675
    %v2417 = vunpack.c.l.b16 %v676
    %v2418 = vunpack.c.h.b16 %v676
    %v2419 = vunpack.c.l.b16 %v677
    %v2420 = vunpack.c.h.b16 %v677
    %v2421 = vunpack.c.l.b16 %v678
    %v2422 = vunpack.c.h.b16 %v678
    %v2423 = vunpack.c.l.b16 %v679
    %v2424 = vunpack.c.h.b16 %v679
    %v2425 = vunpack.c.l.b16 %v680
    %v2426 = vunpack.c.h.b16 %v680
    %v2427 = vunpack.c.l.b16 %v681
    %v2428 = vunpack.c.h.b16 %v681
    %v2429 = vunpack.c.l.b16 %v682
    %v2430 = vunpack.c.h.b16 %v682
    %v2431 = vunpack.c.l.b16 %v683
    %v2432 = vunpack.c.h.b16 %v683
    %v2433 = vunpack.c.l.b16 %v684
    %v2434 = vunpack.c.h.b16 %v684
    %v2435 = vunpack.c.l.b16 %v685
    %v2436 = vunpack.c.h.b16 %v685
    %v2437 = vunpack.c.l.b16 %v686
    %v2438 = vunpack.c.h.b16 %v686
    %v2439 = vunpack.c.l.b16 %v687
    %v2440 = vunpack.c.h.b16 %v687
    %v2441 = vunpack.c.l.b16 %v688
    %v2442 = vunpack.c.h.b16 %v688
    %v2443 = vunpack.c.l.b16 %v689
    %v2444 = vunpack.c.h.b16 %v689
    %v2445 = vunpack.c.l.b16 %v690
    %v2446 = vunpack.c.h.b16 %v690
    %v2447 = vunpack.c.l.b16 %v691
    %v2448 = vunpack.c.h.b16 %v691
    %v2449 = vunpack.c.l.b16 %v692
    %v2450 = vunpack.c.h.b16 %v692
    %v2451 = vunpack.c.l.b16 %v693
    %v2452 = vunpack.c.h.b16 %v693
    %v2453 = vunpack.c.l.b16 %v694
    %v2454 = vunpack.c.h.b16 %v694
    %v2455 = vpack.c.b16 %v1439, %v1431
    %v2456 = vpack.c.b16 %v1440, %v1432
    %v2457 = vpack.c.b16 %v1441, %v1433
    %v2458 = vpack.c.b16 %v1442, %v1434
    %v2459 = vpack.c.b16 %v1443, %v1435
    %v2460 = vpack.c.b16 %v1444, %v1436
    %v2461 = vpack.c.b16 %v1445, %v1437
    %v2462 = vpack.c.b16 %v1446, %v1438
    %v2463 = vpack.c.b16 %v1455, %v1447
    %v2464 = vpack.c.b16 %v1456, %v1448
    %v2465 = vpack.c.b16 %v1457, %v1449
    %v2466 = vpack.c.b16 %v1458, %v1450
    %v2467 = vpack.c.b16 %v1459, %v1451
    %v2468 = vpack.c.b16 %v1460, %v1452
    %v2469 = vpack.c.b16 %v1461, %v1453
    %v2470 = vpack.c.b16 %v1462, %v1454
    %v2471 = vpack.c.b16 %v1471, %v1463
    %v2472 = vpack.c.b16 %v1472, %v1464
    %v2473 = vpack.c.b16 %v1473, %v1465
    %v2474 = vpack.c.b16 %v1474, %v1466
    %v2475 = vpack.c.b16 %v1475, %v1467
    %v2476 = vpack.c.b16 %v1476, %v1468
    %v2477 = vpack.c.b16 %v1477, %v1469
    %v2478 = vpack.c.b16 %v1478, %v1470
    %v2479 = vpack.c.b16 %v1487, %v1479
    %v2480 = vpack.c.b16 %v1488, %v1480
    %v2481 = vpack.c.b16 %v1489, %v1481
    %v2482 = vpack.c.b16 %v1490, %v1482
    %v2483 = vpack.c.b16 %v1491, %v1483
    %v2484 = vpack.c.b16 %v1492, %v1484
    %v2485 = vpack.c.b16 %v1493, %v1485
    %v2486 = vpack.c.b16 %v1494, %v1486
    %v2487 = vpack.c.b16 %v1503, %v1495
    %v2488 = vpack.c.b16 %v1504, %v1496
    %v2489 = vpack.c.b16 %v1505, %v1497
    %v2490 = vpack.c.b16 %v1506, %v1498
    %v2491 = vpack.c.b16 %v1507, %v1499
    %v2492 = vpack.c.b16 %v1508, %v1500
    %v2493 = vpack.c.b16 %v1509, %v1501
    %v2494 = vpack.c.b16 %v1510, %v1502
    %v2495 = vpack.c.b16 %v1519, %v1511
    %v2496 = vpack.c.b16 %v1520, %v1512
    %v2497 = vpack.c.b16 %v1521, %v1513
    %v2498 = vpack.c.b16 %v1522, %v1514
    %v2499 = vpack.c.b16 %v1523, %v1515
    %v2500 = vpack.c.b16 %v1524, %v1516
    %v2501 = vpack.c.b16 %v1525, %v1517
    %v2502 = vpack.c.b16 %v1526, %v1518
    %v2503 = vpack.c.b16 %v1535, %v1527
    %v2504 = vpack.c.b16 %v1536, %v1528
    %v2505 = vpack.c.b16 %v1537, %v1529
    %v2506 = vpack.c.b16 %v1538, %v1530
    %v2507 = vpack.c.b16 %v1539, %v1531
    %v2508 = vpack.c.b16 %v1540, %v1532
    %v2509 = vpack.c.b16 %v1541, %v1533
    %v2510 = vpack.c.b16 %v1542, %v1534
    %v2511 = vpack.c.b16 %v1551, %v1543
    %v2512 = vpack.c.b16 %v1552, %v1544
    %v2513 = vpack.c.b16 %v1553, %v1545
    %v2514 = vpack.c.b16 %v1554, %v1546
    %v2515 = vpack.c.b16 %v1555, %v1547
    %v2516 = vpack.c.b16 %v1556, %v1548
    %v2517 = vpack.c.b16 %v1557, %v1549
    %v2518 = vpack.c.b16 %v1558, %v1550
    %v2519 = vpack.c.b16 %v1567, %v1559
    %v2520 = vpack.c.b16 %v1568, %v1560
    %v2521 = vpack.c.b16 %v1569, %v1561
    %v2522 = vpack.c.b16 %v1570, %v1562
    %v2523 = vpack.c.b16 %v1571, %v1563
    %v2524 = vpack.c.b16 %v1572, %v1564
    %v2525 = vpack.c.b16 %v1573, %v1565
    %v2526 = vpack.c.b16 %v1574, %v1566
    %v2527 = vpack.c.b16 %v1583, %v1575
    %v2528 = vpack.c.b16 %v1584, %v1576
    %v2529 = vpack.c.b16 %v1585, %v1577
    %v2530 = vpack.c.b16 %v1586, %v1578
    %v2531 = vpack.c.b16 %v1587, %v1579
    %v2532 = vpack.c.b16 %v1588, %v1580
    %v2533 = vpack.c.b16 %v1589, %v1581
    %v2534 = vpack.c.b16 %v1590, %v1582
    %v2535 = vpack.c.b16 %v1599, %v1591
    %v2536 = vpack.c.b16 %v1600, %v1592
    %v2537 = vpack.c.b16 %v1601, %v1593
    %v2538 = vpack.c.b16 %v1602, %v1594
    %v2539 = vpack.c.b16 %v1603, %v1595
    %v2540 = vpack.c.b16 %v1604, %v1596
    %v2541 = vpack.c.b16 %v1605, %v1597
    %v2542 = vpack.c.b16 %v1606, %v1598
    %v2543 = vpack.c.b16 %v1615, %v1607
    %v2544 = vpack.c.b16 %v1616, %v1608
    %v2545 = vpack.c.b16 %v1617, %v1609
    %v2546 = vpack.c.b16 %v1618, %v1610
    %v2547 = vpack.c.b16 %v1619, %v1611
    %v2548 = vpack.c.b16 %v1620, %v1612
    %v2549 = vpack.c.b16 %v1621, %v1613
    %v2550 = vpack.c.b16 %v1622, %v1614
    %v2551 = vpack.c.b16 %v1631, %v1623
    %v2552 = vpack.c.b16 %v1632, %v1624
    %v2553 = vpack.c.b16 %v1633, %v1625
    %v2554 = vpack.c.b16 %v1634, %v1626
    %v2555 = vpack.c.b16 %v1635, %v1627
    %v2556 = vpack.c.b16 %v1636, %v1628
    %v2557 = vpack.c.b16 %v1637, %v1629
    %v2558 = vpack.c.b16 %v1638, %v1630
    %v2559 = vpack.c.b16 %v1647, %v1639
    %v2560 = vpack.c.b16 %v1648, %v1640
    %v2561 = vpack.c.b16 %v1649, %v1641
    %v2562 = vpack.c.b16 %v1650, %v1642
    %v2563 = vpack.c.b16 %v1651, %v1643
    %v2564 = vpack.c.b16 %v1652, %v1644
    %v2565 = vpack.c.b16 %v1653, %v1645
    %v2566 = vpack.c.b16 %v1654, %v1646
    %v2567 = vpack.c.b16 %v1663, %v1655
    %v2568 = vpack.c.b16 %v1664, %v1656
    %v2569 = vpack.c.b16 %v1665, %v1657
    %v2570 = vpack.c.b16 %v1666, %v1658
    %v2571 = vpack.c.b16 %v1667, %v1659
    %v2572 = vpack.c.b16 %v1668, %v1660
    %v2573 = vpack.c.b16 %v1669, %v1661
    %v2574 = vpack.c.b16 %v1670, %v1662
    %v2575 = vpack.c.b16 %v1679, %v1671
    %v2576 = vpack.c.b16 %v1680, %v1672
    %v2577 = vpack.c.b16 %v1681, %v1673
    %v2578 = vpack.c.b16 %v1682, %v1674
    %v2579 = vpack.c.b16 %v1683, %v1675
    %v2580 = vpack.c.b16 %v1684, %v1676
    %v2581 = vpack.c.b16 %v1685, %v1677
    %v2582 = vpack.c.b16 %v1686, %v1678
    %v2583 = vpack.c.b16 %v1695, %v1687
    %v2584 = vpack.c.b16 %v1696, %v1688
    %v2585 = vpack.c.b16 %v1697, %v1689
    %v2586 = vpack.c.b16 %v1698, %v1690
    %v2587 = vpack.c.b16 %v1699, %v1691
    %v2588 = vpack.c.b16 %v1700, %v1692
    %v2589 = vpack.c.b16 %v1701, %v1693
    %v2590 = vpack.c.b16 %v1702, %v1694
    %v2591 = vpack.c.b16 %v1711, %v1703
    %v2592 = vpack.c.b16 %v1712, %v1704
    %v2593 = vpack.c.b16 %v1713, %v1705
    %v2594 = vpack.c.b16 %v1714, %v1706
    %v2595 = vpack.c.b16 %v1715, %v1707
    %v2596 = vpack.c.b16 %v1716, %v1708
    %v2597 = vpack.c.b16 %v1717, %v1709
    %v2598 = vpack.c.b16 %v1718, %v1710
    %v2599 = vpack.c.b16 %v1727, %v1719
    %v2600 = vpack.c.b16 %v1728, %v1720
    %v2601 = vpack.c.b16 %v1729, %v1721
    %v2602 = vpack.c.b16 %v1730, %v1722
    %v2603 = vpack.c.b16 %v1731, %v1723
    %v2604 = vpack.c.b16 %v1732, %v1724
    %v2605 = vpack.c.b16 %v1733, %v1725
    %v2606 = vpack.c.b16 %v1734, %v1726
    %v2607 = vpack.c.b16 %v1743, %v1735
    %v2608 = vpack.c.b16 %v1744, %v1736
    %v2609 = vpack.c.b16 %v1745, %v1737
    %v2610 = vpack.c.b16 %v1746, %v1738
    %v2611 = vpack.c.b16 %v1747, %v1739
    %v2612 = vpack.c.b16 %v1748, %v1740
    %v2613 = vpack.c.b16 %v1749, %v1741
    %v2614 = vpack.c.b16 %v1750, %v1742
    %v2615 = vpack.c.b16 %v1759, %v1751
    %v2616 = vpack.c.b16 %v1760, %v1752
    %v2617 = vpack.c.b16 %v1761, %v1753
    %v2618 = vpack.c.b16 %v1762, %v1754
    %v2619 = vpack.c.b16 %v1763, %v1755
    %v2620 = vpack.c.b16 %v1764, %v1756
    %v2621 = vpack.c.b16 %v1765, %v1757
    %v2622 = vpack.c.b16 %v1766, %v1758
    %v2623 = vpack.c.b16 %v1775, %v1767
    %v2624 = vpack.c.b16 %v1776, %v1768
    %v2625 = vpack.c.b16 %v1777, %v1769
    %v2626 = vpack.c.b16 %v1778, %v1770
    %v2627 = vpack.c.b16 %v1779, %v1771
    %v2628 = vpack.c.b16 %v1780, %v1772
    %v2629 = vpack.c.b16 %v1781, %v1773
    %v2630 = vpack.c.b16 %v1782, %v1774
    %v2631 = vpack.c.b16 %v1791, %v1783
    %v2632 = vpack.c.b16 %v1792, %v1784
    %v2633 = vpack.c.b16 %v1793, %v1785
    %v2634 = vpack.c.b16 %v1794, %v1786
    %v2635 = vpack.c.b16 %v1795, %v1787
    %v2636 = vpack.c.b16 %v1796, %v1788
    %v2637 = vpack.c.b16 %v1797, %v1789
    %v2638 = vpack.c.b16 %v1798, %v1790
    %v2639 = vpack.c.b16 %v1807, %v1799
    %v2640 = vpack.c.b16 %v1808, %v1800
    %v2641 = vpack.c.b16 %v1809, %v1801
    %v2642 = vpack.c.b16 %v1810, %v1802
    %v2643 = vpack.c.b16 %v1811, %v1803
    %v2644 = vpack.c.b16 %v1812, %v1804
    %v2645 = vpack.c.b16 %v1813, %v1805
    %v2646 = vpack.c.b16 %v1814, %v1806
    %v2647 = vpack.c.b16 %v1823, %v1815
    %v2648 = vpack.c.b16 %v1824, %v1816
    %v2649 = vpack.c.b16 %v1825, %v1817
    %v2650 = vpack.c.b16 %v1826, %v1818
    %v2651 = vpack.c.b16 %v1827, %v1819
    %v2652 = vpack.c.b16 %v1828, %v1820
    %v2653 = vpack.c.b16 %v1829, %v1821
    %v2654 = vpack.c.b16 %v1830, %v1822
    %v2655 = vpack.c.b16 %v1839, %v1831
    %v2656 = vpack.c.b16 %v1840, %v1832
    %v2657 = vpack.c.b16 %v1841, %v1833
    %v2658 = vpack.c.b16 %v1842, %v1834
    %v2659 = vpack.c.b16 %v1843, %v1835
    %v2660 = vpack.c.b16 %v1844, %v1836
    %v2661 = vpack.c.b16 %v1845, %v1837
    %v2662 = vpack.c.b16 %v1846, %v1838
    %v2663 = vpack.c.b16 %v1855, %v1847
    %v2664 = vpack.c.b16 %v1856, %v1848
    %v2665 = vpack.c.b16 %v1857, %v1849
    %v2666 = vpack.c.b16 %v1858, %v1850
    %v2667 = vpack.c.b16 %v1859, %v1851
    %v2668 = vpack.c.b16 %v1860, %v1852
    %v2669 = vpack.c.b16 %v1861, %v1853
    %v2670 = vpack.c.b16 %v1862, %v1854
    %v2671 = vpack.c.b16 %v1871, %v1863
    %v2672 = vpack.c.b16 %v1872, %v1864
    %v2673 = vpack.c.b16 %v1873, %v1865
    %v2674 = vpack.c.b16 %v1874, %v1866
    %v2675 = vpack.c.b16 %v1875, %v1867
    %v2676 = vpack.c.b16 %v1876, %v1868
    %v2677 = vpack.c.b16 %v1877, %v1869
    %v2678 = vpack.c.b16 %v1878, %v1870
    %v2679 = vpack.c.b16 %v1887, %v1879
    %v2680 = vpack.c.b16 %v1888, %v1880
    %v2681 = vpack.c.b16 %v1889, %v1881
    %v2682 = vpack.c.b16 %v1890, %v1882
    %v2683 = vpack.c.b16 %v1891, %v1883
    %v2684 = vpack.c.b16 %v1892, %v1884
    %v2685 = vpack.c.b16 %v1893, %v1885
    %v2686 = vpack.c.b16 %v1894, %v1886
    %v2687 = vpack.c.b16 %v1903, %v1895
    %v2688 = vpack.c.b16 %v1904, %v1896
    %v2689 = vpack.c.b16 %v1905, %v1897
    %v2690 = vpack.c.b16 %v1906, %v1898
    %v2691 = vpack.c.b16 %v1907, %v1899
    %v2692 = vpack.c.b16 %v1908, %v1900
    %v2693 = vpack.c.b16 %v1909, %v1901
    %v2694 = vpack.c.b16 %v1910, %v1902
    %v2695 = vpack.c.b16 %v1919, %v1911
    %v2696 = vpack.c.b16 %v1920, %v1912
    %v2697 = vpack.c.b16 %v1921, %v1913
    %v2698 = vpack.c.b16 %v1922, %v1914
    %v2699 = vpack.c.b16 %v1923, %v1915
    %v2700 = vpack.c.b16 %v1924, %v1916
    %v2701 = vpack.c.b16 %v1925, %v1917
    %v2702 = vpack.c.b16 %v1926, %v1918
    %v2703 = vpack.c.b16 %v1935, %v1927
    %v2704 = vpack.c.b16 %v1936, %v1928
    %v2705 = vpack.c.b16 %v1937, %v1929
    %v2706 = vpack.c.b16 %v1938, %v1930
    %v2707 = vpack.c.b16 %v1939, %v1931
    %v2708 = vpack.c.b16 %v1940, %v1932
    %v2709 = vpack.c.b16 %v1941, %v1933
    %v2710 = vpack.c.b16 %v1942, %v1934
    %v2711 = vpack.c.b16 %v1951, %v1943
    %v2712 = vpack.c.b16 %v1952, %v1944
    %v2713 = vpack.c.b16 %v1953, %v1945
    %v2714 = vpack.c.b16 %v1954, %v1946
    %v2715 = vpack.c.b16 %v1955, %v1947
    %v2716 = vpack.c.b16 %v1956, %v1948
    %v2717 = vpack.c.b16 %v1957, %v1949
    %v2718 = vpack.c.b16 %v1958, %v1950
    %v2719 = vpack.c.b16 %v1967, %v1959
    %v2720 = vpack.c.b16 %v1968, %v1960
    %v2721 = vpack.c.b16 %v1969, %v1961
    %v2722 = vpack.c.b16 %v1970, %v1962
    %v2723 = vpack.c.b16 %v1971, %v1963
    %v2724 = vpack.c.b16 %v1972, %v1964
    %v2725 = vpack.c.b16 %v1973, %v1965
    %v2726 = vpack.c.b16 %v1974, %v1966
    %v2727 = vpack.c.b16 %v1983, %v1975
    %v2728 = vpack.c.b16 %v1984, %v1976
    %v2729 = vpack.c.b16 %v1985, %v1977
    %v2730 = vpack.c.b16 %v1986, %v1978
    %v2731 = vpack.c.b16 %v1987, %v1979
    %v2732 = vpack.c.b16 %v1988, %v1980
    %v2733 = vpack.c.b16 %v1989, %v1981
    %v2734 = vpack.c.b16 %v1990, %v1982
    %v2735 = vpack.c.b16 %v1999, %v1991
    %v2736 = vpack.c.b16 %v2000, %v1992
    %v2737 = vpack.c.b16 %v2001, %v1993
    %v2738 = vpack.c.b16 %v2002, %v1994
    %v2739 = vpack.c.b16 %v2003, %v1995
    %v2740 = vpack.c.b16 %v2004, %v1996
    %v2741 = vpack.c.b16 %v2005, %v1997
    %v2742 = vpack.c.b16 %v2006, %v1998
    %v2743 = vpack.c.b16 %v2015, %v2007
    %v2744 = vpack.c.b16 %v2016, %v2008
    %v2745 = vpack.c.b16 %v2017, %v2009
    %v2746 = vpack.c.b16 %v2018, %v2010
    %v2747 = vpack.c.b16 %v2019, %v2011
    %v2748 = vpack.c.b16 %v2020, %v2012
    %v2749 = vpack.c.b16 %v2021, %v2013
    %v2750 = vpack.c.b16 %v2022, %v2014
    %v2751 = vpack.c.b16 %v2031, %v2023
    %v2752 = vpack.c.b16 %v2032, %v2024
    %v2753 = vpack.c.b16 %v2033, %v2025
    %v2754 = vpack.c.b16 %v2034, %v2026
    %v2755 = vpack.c.b16 %v2035, %v2027
    %v2756 = vpack.c.b16 %v2036, %v2028
    %v2757 = vpack.c.b16 %v2037, %v2029
    %v2758 = vpack.c.b16 %v2038, %v2030
    %v2759 = vpack.c.b16 %v2047, %v2039
    %v2760 = vpack.c.b16 %v2048, %v2040
    %v2761 = vpack.c.b16 %v2049, %v2041
    %v2762 = vpack.c.b16 %v2050, %v2042
    %v2763 = vpack.c.b16 %v2051, %v2043
    %v2764 = vpack.c.b16 %v2052, %v2044
    %v2765 = vpack.c.b16 %v2053, %v2045
    %v2766 = vpack.c.b16 %v2054, %v2046
    %v2767 = vpack.c.b16 %v2063, %v2055
    %v2768 = vpack.c.b16 %v2064, %v2056
    %v2769 = vpack.c.b16 %v2065, %v2057
    %v2770 = vpack.c.b16 %v2066, %v2058
    %v2771 = vpack.c.b16 %v2067, %v2059
    %v2772 = vpack.c.b16 %v2068, %v2060
    %v2773 = vpack.c.b16 %v2069, %v2061
    %v2774 = vpack.c.b16 %v2070, %v2062
    %v2775 = vpack.c.b16 %v2079, %v2071
    %v2776 = vpack.c.b16 %v2080, %v2072
    %v2777 = vpack.c.b16 %v2081, %v2073
    %v2778 = vpack.c.b16 %v2082, %v2074
    %v2779 = vpack.c.b16 %v2083, %v2075
    %v2780 = vpack.c.b16 %v2084, %v2076
    %v2781 = vpack.c.b16 %v2085, %v2077
    %v2782 = vpack.c.b16 %v2086, %v2078
    %v2783 = vpack.c.b16 %v2095, %v2087
    %v2784 = vpack.c.b16 %v2096, %v2088
    %v2785 = vpack.c.b16 %v2097, %v2089
    %v2786 = vpack.c.b16 %v2098, %v2090
    %v2787 = vpack.c.b16 %v2099, %v2091
    %v2788 = vpack.c.b16 %v2100, %v2092
    %v2789 = vpack.c.b16 %v2101, %v2093
    %v2790 = vpack.c.b16 %v2102, %v2094
    %v2791 = vpack.c.b16 %v2111, %v2103
    %v2792 = vpack.c.b16 %v2112, %v2104
    %v2793 = vpack.c.b16 %v2113, %v2105
    %v2794 = vpack.c.b16 %v2114, %v2106
    %v2795 = vpack.c.b16 %v2115, %v2107
    %v2796 = vpack.c.b16 %v2116, %v2108
    %v2797 = vpack.c.b16 %v2117, %v2109
    %v2798 = vpack.c.b16 %v2118, %v2110
    %v2799 = vpack.c.b16 %v2127, %v2119
    %v2800 = vpack.c.b16 %v2128, %v2120
    %v2801 = vpack.c.b16 %v2129, %v2121
    %v2802 = vpack.c.b16 %v2130, %v2122
    %v2803 = vpack.c.b16 %v2131, %v2123
    %v2804 = vpack.c.b16 %v2132, %v2124
    %v2805 = vpack.c.b16 %v2133, %v2125
    %v2806 = vpack.c.b16 %v2134, %v2126
    %v2807 = vpack.c.b16 %v2143, %v2135
    %v2808 = vpack.c.b16 %v2144, %v2136
    %v2809 = vpack.c.b16 %v2145, %v2137
    %v2810 = vpack.c.b16 %v2146, %v2138
    %v2811 = vpack.c.b16 %v2147, %v2139
    %v2812 = vpack.c.b16 %v2148, %v2140
    %v2813 = vpack.c.b16 %v2149, %v2141
    %v2814 = vpack.c.b16 %v2150, %v2142
    %v2815 = vpack.c.b16 %v2159, %v2151
    %v2816 = vpack.c.b16 %v2160, %v2152
    %v2817 = vpack.c.b16 %v2161, %v2153
    %v2818 = vpack.c.b16 %v2162, %v2154
    %v2819 = vpack.c.b16 %v2163, %v2155
    %v2820 = vpack.c.b16 %v2164, %v2156
    %v2821 = vpack.c.b16 %v2165, %v2157
    %v2822 = vpack.c.b16 %v2166, %v2158
    %v2823 = vpack.c.b16 %v2175, %v2167
    %v2824 = vpack.c.b16 %v2176, %v2168
    %v2825 = vpack.c.b16 %v2177, %v2169
    %v2826 = vpack.c.b16 %v2178, %v2170
    %v2827 = vpack.c.b16 %v2179, %v2171
    %v2828 = vpack.c.b16 %v2180, %v2172
    %v2829 = vpack.c.b16 %v2181, %v2173
    %v2830 = vpack.c.b16 %v2182, %v2174
    %v2831 = vpack.c.b16 %v2191, %v2183
    %v2832 = vpack.c.b16 %v2192, %v2184
    %v2833 = vpack.c.b16 %v2193, %v2185
    %v2834 = vpack.c.b16 %v2194, %v2186
    %v2835 = vpack.c.b16 %v2195, %v2187
    %v2836 = vpack.c.b16 %v2196, %v2188
    %v2837 = vpack.c.b16 %v2197, %v2189
    %v2838 = vpack.c.b16 %v2198, %v2190
    %v2839 = vpack.c.b16 %v2207, %v2199
    %v2840 = vpack.c.b16 %v2208, %v2200
    %v2841 = vpack.c.b16 %v2209, %v2201
    %v2842 = vpack.c.b16 %v2210, %v2202
    %v2843 = vpack.c.b16 %v2211, %v2203
    %v2844 = vpack.c.b16 %v2212, %v2204
    %v2845 = vpack.c.b16 %v2213, %v2205
    %v2846 = vpack.c.b16 %v2214, %v2206
    %v2847 = vpack.c.b16 %v2223, %v2215
    %v2848 = vpack.c.b16 %v2224, %v2216
    %v2849 = vpack.c.b16 %v2225, %v2217
    %v2850 = vpack.c.b16 %v2226, %v2218
    %v2851 = vpack.c.b16 %v2227, %v2219
    %v2852 = vpack.c.b16 %v2228, %v2220
    %v2853 = vpack.c.b16 %v2229, %v2221
    %v2854 = vpack.c.b16 %v2230, %v2222
    %v2855 = vpack.c.b16 %v2239, %v2231
    %v2856 = vpack.c.b16 %v2240, %v2232
    %v2857 = vpack.c.b16 %v2241, %v2233
    %v2858 = vpack.c.b16 %v2242, %v2234
    %v2859 = vpack.c.b16 %v2243, %v2235
    %v2860 = vpack.c.b16 %v2244, %v2236
    %v2861 = vpack.c.b16 %v2245, %v2237
    %v2862 = vpack.c.b16 %v2246, %v2238
    %v2863 = vpack.c.b16 %v2255, %v2247
    %v2864 = vpack.c.b16 %v2256, %v2248
    %v2865 = vpack.c.b16 %v2257, %v2249
    %v2866 = vpack.c.b16 %v2258, %v2250
    %v2867 = vpack.c.b16 %v2259, %v2251
    %v2868 = vpack.c.b16 %v2260, %v2252
    %v2869 = vpack.c.b16 %v2261, %v2253
    %v2870 = vpack.c.b16 %v2262, %v2254
    %v2871 = vpack.c.b16 %v2271, %v2263
    %v2872 = vpack.c.b16 %v2272, %v2264
    %v2873 = vpack.c.b16 %v2273, %v2265
    %v2874 = vpack.c.b16 %v2274, %v2266
    %v2875 = vpack.c.b16 %v2275, %v2267
    %v2876 = vpack.c.b16 %v2276, %v2268
    %v2877 = vpack.c.b16 %v2277, %v2269
    %v2878 = vpack.c.b16 %v2278, %v2270
    %v2879 = vpack.c.b16 %v2287, %v2279
    %v2880 = vpack.c.b16 %v2288, %v2280
    %v2881 = vpack.c.b16 %v2289, %v2281
    %v2882 = vpack.c.b16 %v2290, %v2282
    %v2883 = vpack.c.b16 %v2291, %v2283
    %v2884 = vpack.c.b16 %v2292, %v2284
    %v2885 = vpack.c.b16 %v2293, %v2285
    %v2886 = vpack.c.b16 %v2294, %v2286
    %v2887 = vpack.c.b16 %v2303, %v2295
    %v2888 = vpack.c.b16 %v2304, %v2296
    %v2889 = vpack.c.b16 %v2305, %v2297
    %v2890 = vpack.c.b16 %v2306, %v2298
    %v2891 = vpack.c.b16 %v2307, %v2299
    %v2892 = vpack.c.b16 %v2308, %v2300
    %v2893 = vpack.c.b16 %v2309, %v2301
    %v2894 = vpack.c.b16 %v2310, %v2302
    %v2895 = vpack.c.b16 %v2319, %v2311
    %v2896 = vpack.c.b16 %v2320, %v2312
    %v2897 = vpack.c.b16 %v2321, %v2313
    %v2898 = vpack.c.b16 %v2322, %v2314
    %v2899 = vpack.c.b16 %v2323, %v2315
    %v2900 = vpack.c.b16 %v2324, %v2316
    %v2901 = vpack.c.b16 %v2325, %v2317
    %v2902 = vpack.c.b16 %v2326, %v2318
    %v2903 = vpack.c.b16 %v2335, %v2327
    %v2904 = vpack.c.b16 %v2336, %v2328
    %v2905 = vpack.c.b16 %v2337, %v2329
    %v2906 = vpack.c.b16 %v2338, %v2330
    %v2907 = vpack.c.b16 %v2339, %v2331
    %v2908 = vpack.c.b16 %v2340, %v2332
    %v2909 = vpack.c.b16 %v2341, %v2333
    %v2910 = vpack.c.b16 %v2342, %v2334
    %v2911 = vpack.c.b16 %v2351, %v2343
    %v2912 = vpack.c.b16 %v2352, %v2344
    %v2913 = vpack.c.b16 %v2353, %v2345
    %v2914 = vpack.c.b16 %v2354, %v2346
    %v2915 = vpack.c.b16 %v2355, %v2347
    %v2916 = vpack.c.b16 %v2356, %v2348
    %v2917 = vpack.c.b16 %v2357, %v2349
    %v2918 = vpack.c.b16 %v2358, %v2350
    %v2919 = vpack.c.b16 %v2367, %v2359
    %v2920 = vpack.c.b16 %v2368, %v2360
    %v2921 = vpack.c.b16 %v2369, %v2361
    %v2922 = vpack.c.b16 %v2370, %v2362
    %v2923 = vpack.c.b16 %v2371, %v2363
    %v2924 = vpack.c.b16 %v2372, %v2364
    %v2925 = vpack.c.b16 %v2373, %v2365
    %v2926 = vpack.c.b16 %v2374, %v2366
    %v2927 = vpack.c.b16 %v2383, %v2375
    %v2928 = vpack.c.b16 %v2384, %v2376
    %v2929 = vpack.c.b16 %v2385, %v2377
    %v2930 = vpack.c.b16 %v2386, %v2378
    %v2931 = vpack.c.b16 %v2387, %v2379
    %v2932 = vpack.c.b16 %v2388, %v2380
    %v2933 = vpack.c.b16 %v2389, %v2381
    %v2934 = vpack.c.b16 %v2390, %v2382
    %v2935 = vpack.c.b16 %v2399, %v2391
    %v2936 = vpack.c.b16 %v2400, %v2392
    %v2937 = vpack.c.b16 %v2401, %v2393
    %v2938 = vpack.c.b16 %v2402, %v2394
    %v2939 = vpack.c.b16 %v2403, %v2395
    %v2940 = vpack.c.b16 %v2404, %v2396
    %v2941 = vpack.c.b16 %v2405, %v2397
    %v2942 = vpack.c.b16 %v2406, %v2398
    %v2943 = vpack.c.b16 %v2415, %v2407
    %v2944 = vpack.c.b16 %v2416, %v2408
    %v2945 = vpack.c.b16 %v2417, %v2409
    %v2946 = vpack.c.b16 %v2418, %v2410
    %v2947 = vpack.c.b16 %v2419, %v2411
    %v2948 = vpack.c.b16 %v2420, %v2412
    %v2949 = vpack.c.b16 %v2421, %v2413
    %v2950 = vpack.c.b16 %v2422, %v2414
    %v2951 = vpack.c.b16 %v2431, %v2423
    %v2952 = vpack.c.b16 %v2432, %v2424
    %v2953 = vpack.c.b16 %v2433, %v2425
    %v2954 = vpack.c.b16 %v2434, %v2426
    %v2955 = vpack.c.b16 %v2435, %v2427
    %v2956 = vpack.c.b16 %v2436, %v2428
    %v2957 = vpack.c.b16 %v2437, %v2429
    %v2958 = vpack.c.b16 %v2438, %v2430
    %v2959 = vpack.c.b16 %v2447, %v2439
    %v2960 = vpack.c.b16 %v2448, %v2440
    %v2961 = vpack.c.b16 %v2449, %v2441
    %v2962 = vpack.c.b16 %v2450, %v2442
    %v2963 = vpack.c.b16 %v2451, %v2443
    %v2964 = vpack.c.b16 %v2452, %v2444
    %v2965 = vpack.c.b16 %v2453, %v2445
    %v2966 = vpack.c.b16 %v2454, %v2446
    %3479 = vmatprep.subr.bf16.mxu0 %v2456
    %3480 = vmatpush1.bf16.msra.mxu0 %v2455
    %3481 = vmatprep.subr.bf16.mxu0 %v2464
    %3482 = vmatpush1.bf16.msra.mxu0 %v2463
    %3483 = vmatprep.subr.bf16.mxu0 %v2472
    %3484 = vmatpush1.bf16.msra.mxu0 %v2471
    %3485 = vmatprep.subr.bf16.mxu0 %v2480
    %3486 = vmatpush1.bf16.msra.mxu0 %v2479
    %3487 = vmatprep.subr.bf16.mxu0 %v2488
    %3488 = vmatpush1.bf16.msra.mxu0 %v2487
    %3489 = vmatprep.subr.bf16.mxu0 %v2496
    %3490 = vmatpush1.bf16.msra.mxu0 %v2495
    %3491 = vmatprep.subr.bf16.mxu0 %v2504
    %3492 = vmatpush1.bf16.msra.mxu0 %v2503
    %3493 = vmatprep.subr.bf16.mxu0 %v2512
    %3494 = vmatpush1.bf16.msra.mxu0 %v2511
    %3495 = vmatprep.subr.bf16.mxu0 %v2520
    %3496 = vmatpush1.bf16.msra.mxu0 %v2519
    %3497 = vmatprep.subr.bf16.mxu0 %v2528
    %3498 = vmatpush1.bf16.msra.mxu0 %v2527
    %3499 = vmatprep.subr.bf16.mxu0 %v2536
    %3500 = vmatpush1.bf16.msra.mxu0 %v2535
    %3501 = vmatprep.subr.bf16.mxu0 %v2544
    %3502 = vmatpush1.bf16.msra.mxu0 %v2543
    %3503 = vmatprep.subr.bf16.mxu0 %v2552
    %3504 = vmatpush1.bf16.msra.mxu0 %v2551
    %3505 = vmatprep.subr.bf16.mxu0 %v2560
    %3506 = vmatpush1.bf16.msra.mxu0 %v2559
    %3507 = vmatprep.subr.bf16.mxu0 %v2568
    %3508 = vmatpush1.bf16.msra.mxu0 %v2567
    %3509 = vmatprep.subr.bf16.mxu0 %v2576
    %3510 = vmatpush1.bf16.msra.mxu0 %v2575
    %3511 = vmatprep.mubr.bf16.mxu0 %v840
    %3512 = vmatmul.mubr.bf16.gmra.mrb[0].mxu0 %v839
    %v3513 = vpop.f32.mrb[0].mxu0
    %v3514 = vadd.f32 0.0, %v3513
    %v3515 = vpop.f32.mrb[0].mxu0
    %v3516 = vadd.f32 0.0, %v3515
    %v3517 = vpop.f32.mrb[0].mxu0
    %v3518 = vadd.f32 0.0, %v3517
    %v3519 = vpop.f32.mrb[0].mxu0
    %v3520 = vadd.f32 0.0, %v3519
    %3521 = vmatprep.mubr.bf16.mxu0 %v848
    %3522 = vmatmul.mubr.bf16.gmra.mrb[0].mxu0 %v847
    %v3523 = vpop.f32.mrb[0].mxu0
    %v3524 = vadd.f32 0.0, %v3523
    %v3525 = vpop.f32.mrb[0].mxu0
    %v3526 = vadd.f32 0.0, %v3525
    %v3527 = vpop.f32.mrb[0].mxu0
    %v3528 = vadd.f32 0.0, %v3527
    %v3529 = vpop.f32.mrb[0].mxu0
    %v3530 = vadd.f32 0.0, %v3529
    %3531 = vmatprep.mubr.bf16.mxu0 %v856
    %3532 = vmatmul.mubr.bf16.gmra.mrb[0].mxu0 %v855
    %v3533 = vpop.f32.mrb[0].mxu0
    %v3534 = vadd.f32 0.0, %v3533
    %v3535 = vpop.f32.mrb[0].mxu0
    %v3536 = vadd.f32 0.0, %v3535
    %v3537 = vpop.f32.mrb[0].mxu0
    %v3538 = vadd.f32 0.0, %v3537
    %v3539 = vpop.f32.mrb[0].mxu0
    %v3540 = vadd.f32 0.0, %v3539
    %3541 = vmatprep.mubr.bf16.mxu0 %v864
    %3542 = vmatmul.mubr.bf16.gmra.mrb[0].mxu0 %v863
    %v3543 = vpop.f32.mrb[0].mxu0
    %v3544 = vadd.f32 0.0, %v3543
    %v3545 = vpop.f32.mrb[0].mxu0
    %v3546 = vadd.f32 0.0, %v3545
    %v3547 = vpop.f32.mrb[0].mxu0
    %v3548 = vadd.f32 0.0, %v3547
    %v3549 = vpop.f32.mrb[0].mxu0
    %v3550 = vadd.f32 0.0, %v3549
    %3551 = vmatprep.mubr.bf16.mxu0 %v872
    %3552 = vmatmul.mubr.bf16.gmra.mrb[0].mxu0 %v871
    %v3553 = vpop.f32.mrb[0].mxu0
    %v3554 = vadd.f32 0.0, %v3553
    %v3555 = vpop.f32.mrb[0].mxu0
    %v3556 = vadd.f32 0.0, %v3555
    %v3557 = vpop.f32.mrb[0].mxu0
    %v3558 = vpop.f32.mrb[0].mxu0
    %3559 = vdwg.mxu0
    %3560 = vmatprep.subr.bf16.mxu0 %v2584
    %3561 = vmatpush1.bf16.msra.mxu0 %v2583
    %3562 = vmatprep.subr.bf16.mxu0 %v2592
    %3563 = vmatpush1.bf16.msra.mxu0 %v2591
    %3564 = vmatprep.subr.bf16.mxu0 %v2600
    %3565 = vmatpush1.bf16.msra.mxu0 %v2599
    %3566 = vmatprep.subr.bf16.mxu0 %v2608
    %3567 = vmatpush1.bf16.msra.mxu0 %v2607
    %3568 = vmatprep.subr.bf16.mxu0 %v2616
    %3569 = vmatpush1.bf16.msra.mxu0 %v2615
    %3570 = vmatprep.subr.bf16.mxu0 %v2624
    %3571 = vmatpush1.bf16.msra.mxu0 %v2623
    %3572 = vmatprep.subr.bf16.mxu0 %v2632
    %3573 = vmatpush1.bf16.msra.mxu0 %v2631
    %3574 = vmatprep.subr.bf16.mxu0 %v2640
    %3575 = vmatpush1.bf16.msra.mxu0 %v2639
    %3576 = vmatprep.subr.bf16.mxu0 %v2648
    %3577 = vmatpush1.bf16.msra.mxu0 %v2647
    %3578 = vmatprep.subr.bf16.mxu0 %v2656
    %3579 = vmatpush1.bf16.msra.mxu0 %v2655
    %3580 = vmatprep.subr.bf16.mxu0 %v2664
    %3581 = vmatpush1.bf16.msra.mxu0 %v2663
    %3582 = vmatprep.subr.bf16.mxu0 %v2672
    %3583 = vmatpush1.bf16.msra.mxu0 %v2671
    %3584 = vmatprep.subr.bf16.mxu0 %v2680
    %3585 = vmatpush1.bf16.msra.mxu0 %v2679
    %3586 = vmatprep.subr.bf16.mxu0 %v2688
    %3587 = vmatpush1.bf16.msra.mxu0 %v2687
    %3588 = vmatprep.subr.bf16.mxu0 %v2696
    %3589 = vmatpush1.bf16.msra.mxu0 %v2695
    %3590 = vmatprep.subr.bf16.mxu0 %v2704
    %3591 = vmatpush1.bf16.msra.mxu0 %v2703
    %3592 = vmatprep.mubr.bf16.mxu0 %v842
    %3593 = vmatmul.mubr.bf16.gmra.mrb[0].mxu0 %v841
    %v3594 = vpop.f32.mrb[0].mxu0
    %v3595 = vadd.f32 %v3514, %v3594
    %v3596 = vpop.f32.mrb[0].mxu0
    %v3597 = vadd.f32 %v3516, %v3596
    %v3598 = vpop.f32.mrb[0].mxu0
    %v3599 = vadd.f32 %v3518, %v3598
    %v3600 = vpop.f32.mrb[0].mxu0
    %v3601 = vadd.f32 %v3520, %v3600
    %3602 = vmatprep.mubr.bf16.mxu0 %v850
    %3603 = vmatmul.mubr.bf16.gmra.mrb[0].mxu0 %v849
    %v3604 = vpop.f32.mrb[0].mxu0
    %v3605 = vadd.f32 %v3524, %v3604
    %v3606 = vpop.f32.mrb[0].mxu0
    %v3607 = vadd.f32 %v3526, %v3606
    %v3608 = vpop.f32.mrb[0].mxu0
    %v3609 = vadd.f32 %v3528, %v3608
    %v3610 = vpop.f32.mrb[0].mxu0
    %v3611 = vadd.f32 %v3530, %v3610
    %3612 = vmatprep.mubr.bf16.mxu0 %v858
    %3613 = vmatmul.mubr.bf16.gmra.mrb[0].mxu0 %v857
    %v3614 = vpop.f32.mrb[0].mxu0
    %v3615 = vadd.f32 %v3534, %v3614
    %v3616 = vpop.f32.mrb[0].mxu0
    %v3617 = vadd.f32 %v3536, %v3616
    %v3618 = vpop.f32.mrb[0].mxu0
    %v3619 = vadd.f32 %v3538, %v3618
    %v3620 = vpop.f32.mrb[0].mxu0
    %v3621 = vadd.f32 %v3540, %v3620
    %3622 = vmatprep.mubr.bf16.mxu0 %v866
    %3623 = vmatmul.mubr.bf16.gmra.mrb[0].mxu0 %v865
    %v3624 = vpop.f32.mrb[0].mxu0
    %v3625 = vadd.f32 %v3544, %v3624
    %v3626 = vpop.f32.mrb[0].mxu0
    %v3627 = vadd.f32 %v3546, %v3626
    %v3628 = vpop.f32.mrb[0].mxu0
    %v3629 = vadd.f32 %v3548, %v3628
    %v3630 = vpop.f32.mrb[0].mxu0
    %v3631 = vadd.f32 %v3550, %v3630
    %3632 = vmatprep.mubr.bf16.mxu0 %v874
    %3633 = vmatmul.mubr.bf16.gmra.mrb[0].mxu0 %v873
    %v3634 = vpop.f32.mrb[0].mxu0
    %v3635 = vadd.f32 %v3554, %v3634
    %v3636 = vpop.f32.mrb[0].mxu0
    %v3637 = vadd.f32 %v3556, %v3636
    %v3638 = vpop.f32.mrb[0].mxu0
    %v3639 = vpop.f32.mrb[0].mxu0
    %3640 = vdwg.mxu0
    %3641 = vmatprep.subr.bf16.mxu0 %v2712
    %3642 = vmatpush1.bf16.msra.mxu0 %v2711
    %3643 = vmatprep.subr.bf16.mxu0 %v2720
    %3644 = vmatpush1.bf16.msra.mxu0 %v2719
    %3645 = vmatprep.subr.bf16.mxu0 %v2728
    %3646 = vmatpush1.bf16.msra.mxu0 %v2727
    %3647 = vmatprep.subr.bf16.mxu0 %v2736
    %3648 = vmatpush1.bf16.msra.mxu0 %v2735
    %3649 = vmatprep.subr.bf16.mxu0 %v2744
    %3650 = vmatpush1.bf16.msra.mxu0 %v2743
    %3651 = vmatprep.subr.bf16.mxu0 %v2752
    %3652 = vmatpush1.bf16.msra.mxu0 %v2751
    %3653 = vmatprep.subr.bf16.mxu0 %v2760
    %3654 = vmatpush1.bf16.msra.mxu0 %v2759
    %3655 = vmatprep.subr.bf16.mxu0 %v2768
    %3656 = vmatpush1.bf16.msra.mxu0 %v2767
    %3657 = vmatprep.subr.bf16.mxu0 %v2776
    %3658 = vmatpush1.bf16.msra.mxu0 %v2775
    %3659 = vmatprep.subr.bf16.mxu0 %v2784
    %3660 = vmatpush1.bf16.msra.mxu0 %v2783
    %3661 = vmatprep.subr.bf16.mxu0 %v2792
    %3662 = vmatpush1.bf16.msra.mxu0 %v2791
    %3663 = vmatprep.subr.bf16.mxu0 %v2800
    %3664 = vmatpush1.bf16.msra.mxu0 %v2799
    %3665 = vmatprep.subr.bf16.mxu0 %v2808
    %3666 = vmatpush1.bf16.msra.mxu0 %v2807
    %3667 = vmatprep.subr.bf16.mxu0 %v2816
    %3668 = vmatpush1.bf16.msra.mxu0 %v2815
    %3669 = vmatprep.subr.bf16.mxu0 %v2824
    %3670 = vmatpush1.bf16.msra.mxu0 %v2823
    %3671 = vmatprep.subr.bf16.mxu0 %v2832
    %3672 = vmatpush1.bf16.msra.mxu0 %v2831
    %3673 = vmatprep.mubr.bf16.mxu0 %v844
    %3674 = vmatmul.mubr.bf16.gmra.mrb[0].mxu0 %v843
    %v3675 = vpop.f32.mrb[0].mxu0
    %v3676 = vadd.f32 %v3595, %v3675
    %v3677 = vpop.f32.mrb[0].mxu0
    %v3678 = vadd.f32 %v3597, %v3677
    %v3679 = vpop.f32.mrb[0].mxu0
    %v3680 = vadd.f32 %v3599, %v3679
    %v3681 = vpop.f32.mrb[0].mxu0
    %v3682 = vadd.f32 %v3601, %v3681
    %3683 = vmatprep.mubr.bf16.mxu0 %v852
    %3684 = vmatmul.mubr.bf16.gmra.mrb[0].mxu0 %v851
    %v3685 = vpop.f32.mrb[0].mxu0
    %v3686 = vadd.f32 %v3605, %v3685
    %v3687 = vpop.f32.mrb[0].mxu0
    %v3688 = vadd.f32 %v3607, %v3687
    %v3689 = vpop.f32.mrb[0].mxu0
    %v3690 = vadd.f32 %v3609, %v3689
    %v3691 = vpop.f32.mrb[0].mxu0
    %v3692 = vadd.f32 %v3611, %v3691
    %3693 = vmatprep.mubr.bf16.mxu0 %v860
    %3694 = vmatmul.mubr.bf16.gmra.mrb[0].mxu0 %v859
    %v3695 = vpop.f32.mrb[0].mxu0
    %v3696 = vadd.f32 %v3615, %v3695
    %v3697 = vpop.f32.mrb[0].mxu0
    %v3698 = vadd.f32 %v3617, %v3697
    %v3699 = vpop.f32.mrb[0].mxu0
    %v3700 = vadd.f32 %v3619, %v3699
    %v3701 = vpop.f32.mrb[0].mxu0
    %v3702 = vadd.f32 %v3621, %v3701
    %3703 = vmatprep.mubr.bf16.mxu0 %v868
    %3704 = vmatmul.mubr.bf16.gmra.mrb[0].mxu0 %v867
    %v3705 = vpop.f32.mrb[0].mxu0
    %v3706 = vadd.f32 %v3625, %v3705
    %v3707 = vpop.f32.mrb[0].mxu0
    %v3708 = vadd.f32 %v3627, %v3707
    %v3709 = vpop.f32.mrb[0].mxu0
    %v3710 = vadd.f32 %v3629, %v3709
    %v3711 = vpop.f32.mrb[0].mxu0
    %v3712 = vadd.f32 %v3631, %v3711
    %3713 = vmatprep.mubr.bf16.mxu0 %v876
    %3714 = vmatmul.mubr.bf16.gmra.mrb[0].mxu0 %v875
    %v3715 = vpop.f32.mrb[0].mxu0
    %v3716 = vadd.f32 %v3635, %v3715
    %v3717 = vpop.f32.mrb[0].mxu0
    %v3718 = vadd.f32 %v3637, %v3717
    %v3719 = vpop.f32.mrb[0].mxu0
    %v3720 = vpop.f32.mrb[0].mxu0
    %3721 = vdwg.mxu0
    %3722 = vmatprep.subr.bf16.mxu0 %v2840
    %3723 = vmatpush1.bf16.msra.mxu0 %v2839
    %3724 = vmatprep.subr.bf16.mxu0 %v2848
    %3725 = vmatpush1.bf16.msra.mxu0 %v2847
    %3726 = vmatprep.subr.bf16.mxu0 %v2856
    %3727 = vmatpush1.bf16.msra.mxu0 %v2855
    %3728 = vmatprep.subr.bf16.mxu0 %v2864
    %3729 = vmatpush1.bf16.msra.mxu0 %v2863
    %3730 = vmatprep.subr.bf16.mxu0 %v2872
    %3731 = vmatpush1.bf16.msra.mxu0 %v2871
    %3732 = vmatprep.subr.bf16.mxu0 %v2880
    %3733 = vmatpush1.bf16.msra.mxu0 %v2879
    %3734 = vmatprep.subr.bf16.mxu0 %v2888
    %3735 = vmatpush1.bf16.msra.mxu0 %v2887
    %3736 = vmatprep.subr.bf16.mxu0 %v2896
    %3737 = vmatpush1.bf16.msra.mxu0 %v2895
    %3738 = vmatprep.subr.bf16.mxu0 %v2904
    %3739 = vmatpush1.bf16.msra.mxu0 %v2903
    %3740 = vmatprep.subr.bf16.mxu0 %v2912
    %3741 = vmatpush1.bf16.msra.mxu0 %v2911
    %3742 = vmatprep.subr.bf16.mxu0 %v2920
    %3743 = vmatpush1.bf16.msra.mxu0 %v2919
    %3744 = vmatprep.subr.bf16.mxu0 %v2928
    %3745 = vmatpush1.bf16.msra.mxu0 %v2927
    %3746 = vmatprep.subr.bf16.mxu0 %v2936
    %3747 = vmatpush1.bf16.msra.mxu0 %v2935
    %3748 = vmatprep.subr.bf16.mxu0 %v2944
    %3749 = vmatpush1.bf16.msra.mxu0 %v2943
    %3750 = vmatprep.subr.bf16.mxu0 %v2952
    %3751 = vmatpush1.bf16.msra.mxu0 %v2951
    %3752 = vmatprep.subr.bf16.mxu0 %v2960
    %3753 = vmatpush1.bf16.msra.mxu0 %v2959
    %3754 = vmatprep.mubr.bf16.mxu0 %v846
    %3755 = vmatmul.mubr.bf16.gmra.mrb[0].mxu0 %v845
    %v3756 = vpop.f32.mrb[0].mxu0
    %v3757 = vadd.f32 %v3676, %v3756
    %v3758 = vpop.f32.mrb[0].mxu0
    %v3759 = vadd.f32 %v3678, %v3758
    %v3760 = vpop.f32.mrb[0].mxu0
    %v3761 = vadd.f32 %v3680, %v3760
    %v3762 = vpop.f32.mrb[0].mxu0
    %v3763 = vadd.f32 %v3682, %v3762
    %3764 = vmatprep.mubr.bf16.mxu0 %v854
    %3765 = vmatmul.mubr.bf16.gmra.mrb[0].mxu0 %v853
    %v3766 = vpop.f32.mrb[0].mxu0
    %v3767 = vadd.f32 %v3686, %v3766
    %v3768 = vpop.f32.mrb[0].mxu0
    %v3769 = vadd.f32 %v3688, %v3768
    %v3770 = vpop.f32.mrb[0].mxu0
    %v3771 = vadd.f32 %v3690, %v3770
    %v3772 = vpop.f32.mrb[0].mxu0
    %v3773 = vadd.f32 %v3692, %v3772
    %3774 = vmatprep.mubr.bf16.mxu0 %v862
    %3775 = vmatmul.mubr.bf16.gmra.mrb[0].mxu0 %v861
    %v3776 = vpop.f32.mrb[0].mxu0
    %v3777 = vadd.f32 %v3696, %v3776
    %v3778 = vpop.f32.mrb[0].mxu0
    %v3779 = vadd.f32 %v3698, %v3778
    %v3780 = vpop.f32.mrb[0].mxu0
    %v3781 = vadd.f32 %v3700, %v3780
    %v3782 = vpop.f32.mrb[0].mxu0
    %v3783 = vadd.f32 %v3702, %v3782
    %3784 = vmatprep.mubr.bf16.mxu0 %v870
    %3785 = vmatmul.mubr.bf16.gmra.mrb[0].mxu0 %v869
    %v3786 = vpop.f32.mrb[0].mxu0
    %v3787 = vadd.f32 %v3706, %v3786
    %v3788 = vpop.f32.mrb[0].mxu0
    %v3789 = vadd.f32 %v3708, %v3788
    %v3790 = vpop.f32.mrb[0].mxu0
    %v3791 = vadd.f32 %v3710, %v3790
    %v3792 = vpop.f32.mrb[0].mxu0
    %v3793 = vadd.f32 %v3712, %v3792
    %3794 = vmatprep.mubr.bf16.mxu0 %v878
    %3795 = vmatmul.mubr.bf16.gmra.mrb[0].mxu0 %v877
    %v3796 = vpop.f32.mrb[0].mxu0
    %v3797 = vadd.f32 %v3716, %v3796
    %v3798 = vpop.f32.mrb[0].mxu0
    %v3799 = vadd.f32 %v3718, %v3798
    %v3800 = vpop.f32.mrb[0].mxu0
    %v3801 = vpop.f32.mrb[0].mxu0
    %3802 = vdwg.mxu0
    %3803 = vmatprep.subr.bf16.mxu0 %v2458
    %3804 = vmatpush1.bf16.msra.mxu0 %v2457
    %3805 = vmatprep.subr.bf16.mxu0 %v2466
    %3806 = vmatpush1.bf16.msra.mxu0 %v2465
    %3807 = vmatprep.subr.bf16.mxu0 %v2474
    %3808 = vmatpush1.bf16.msra.mxu0 %v2473
    %3809 = vmatprep.subr.bf16.mxu0 %v2482
    %3810 = vmatpush1.bf16.msra.mxu0 %v2481
    %3811 = vmatprep.subr.bf16.mxu0 %v2490
    %3812 = vmatpush1.bf16.msra.mxu0 %v2489
    %3813 = vmatprep.subr.bf16.mxu0 %v2498
    %3814 = vmatpush1.bf16.msra.mxu0 %v2497
    %3815 = vmatprep.subr.bf16.mxu0 %v2506
    %3816 = vmatpush1.bf16.msra.mxu0 %v2505
    %3817 = vmatprep.subr.bf16.mxu0 %v2514
    %3818 = vmatpush1.bf16.msra.mxu0 %v2513
    %3819 = vmatprep.subr.bf16.mxu0 %v2522
    %3820 = vmatpush1.bf16.msra.mxu0 %v2521
    %3821 = vmatprep.subr.bf16.mxu0 %v2530
    %3822 = vmatpush1.bf16.msra.mxu0 %v2529
    %3823 = vmatprep.subr.bf16.mxu0 %v2538
    %3824 = vmatpush1.bf16.msra.mxu0 %v2537
    %3825 = vmatprep.subr.bf16.mxu0 %v2546
    %3826 = vmatpush1.bf16.msra.mxu0 %v2545
    %3827 = vmatprep.subr.bf16.mxu0 %v2554
    %3828 = vmatpush1.bf16.msra.mxu0 %v2553
    %3829 = vmatprep.subr.bf16.mxu0 %v2562
    %3830 = vmatpush1.bf16.msra.mxu0 %v2561
    %3831 = vmatprep.subr.bf16.mxu0 %v2570
    %3832 = vmatpush1.bf16.msra.mxu0 %v2569
    %3833 = vmatprep.subr.bf16.mxu0 %v2578
    %3834 = vmatpush1.bf16.msra.mxu0 %v2577
    %3835 = vmatprep.mubr.bf16.mxu0 %v840
    %3836 = vmatmul.mubr.bf16.gmra.mrb[0].mxu0 %v839
    %v3837 = vpop.f32.mrb[0].mxu0
    %v3838 = vadd.f32 0.0, %v3837
    %v3839 = vpop.f32.mrb[0].mxu0
    %v3840 = vadd.f32 0.0, %v3839
    %v3841 = vpop.f32.mrb[0].mxu0
    %v3842 = vadd.f32 0.0, %v3841
    %v3843 = vpop.f32.mrb[0].mxu0
    %v3844 = vadd.f32 0.0, %v3843
    %3845 = vmatprep.mubr.bf16.mxu0 %v848
    %3846 = vmatmul.mubr.bf16.gmra.mrb[0].mxu0 %v847
    %v3847 = vpop.f32.mrb[0].mxu0
    %v3848 = vadd.f32 0.0, %v3847
    %v3849 = vpop.f32.mrb[0].mxu0
    %v3850 = vadd.f32 0.0, %v3849
    %v3851 = vpop.f32.mrb[0].mxu0
    %v3852 = vadd.f32 0.0, %v3851
    %v3853 = vpop.f32.mrb[0].mxu0
    %v3854 = vadd.f32 0.0, %v3853
    %3855 = vmatprep.mubr.bf16.mxu0 %v856
    %3856 = vmatmul.mubr.bf16.gmra.mrb[0].mxu0 %v855
    %v3857 = vpop.f32.mrb[0].mxu0
    %v3858 = vadd.f32 0.0, %v3857
    %v3859 = vpop.f32.mrb[0].mxu0
    %v3860 = vadd.f32 0.0, %v3859
    %v3861 = vpop.f32.mrb[0].mxu0
    %v3862 = vadd.f32 0.0, %v3861
    %v3863 = vpop.f32.mrb[0].mxu0
    %v3864 = vadd.f32 0.0, %v3863
    %3865 = vmatprep.mubr.bf16.mxu0 %v864
    %3866 = vmatmul.mubr.bf16.gmra.mrb[0].mxu0 %v863
    %v3867 = vpop.f32.mrb[0].mxu0
    %v3868 = vadd.f32 0.0, %v3867
    %v3869 = vpop.f32.mrb[0].mxu0
    %v3870 = vadd.f32 0.0, %v3869
    %v3871 = vpop.f32.mrb[0].mxu0
    %v3872 = vadd.f32 0.0, %v3871
    %v3873 = vpop.f32.mrb[0].mxu0
    %v3874 = vadd.f32 0.0, %v3873
    %3875 = vmatprep.mubr.bf16.mxu0 %v872
    %3876 = vmatmul.mubr.bf16.gmra.mrb[0].mxu0 %v871
    %v3877 = vpop.f32.mrb[0].mxu0
    %v3878 = vadd.f32 0.0, %v3877
    %v3879 = vpop.f32.mrb[0].mxu0
    %v3880 = vadd.f32 0.0, %v3879
    %v3881 = vpop.f32.mrb[0].mxu0
    %v3882 = vpop.f32.mrb[0].mxu0
    %3883 = vdwg.mxu0
    %3884 = vmatprep.subr.bf16.mxu0 %v2586
    %3885 = vmatpush1.bf16.msra.mxu0 %v2585
    %3886 = vmatprep.subr.bf16.mxu0 %v2594
    %3887 = vmatpush1.bf16.msra.mxu0 %v2593
    %3888 = vmatprep.subr.bf16.mxu0 %v2602
    %3889 = vmatpush1.bf16.msra.mxu0 %v2601
    %3890 = vmatprep.subr.bf16.mxu0 %v2610
    %3891 = vmatpush1.bf16.msra.mxu0 %v2609
    %3892 = vmatprep.subr.bf16.mxu0 %v2618
    %3893 = vmatpush1.bf16.msra.mxu0 %v2617
    %3894 = vmatprep.subr.bf16.mxu0 %v2626
    %3895 = vmatpush1.bf16.msra.mxu0 %v2625
    %3896 = vmatprep.subr.bf16.mxu0 %v2634
    %3897 = vmatpush1.bf16.msra.mxu0 %v2633
    %3898 = vmatprep.subr.bf16.mxu0 %v2642
    %3899 = vmatpush1.bf16.msra.mxu0 %v2641
    %3900 = vmatprep.subr.bf16.mxu0 %v2650
    %3901 = vmatpush1.bf16.msra.mxu0 %v2649
    %3902 = vmatprep.subr.bf16.mxu0 %v2658
    %3903 = vmatpush1.bf16.msra.mxu0 %v2657
    %3904 = vmatprep.subr.bf16.mxu0 %v2666
    %3905 = vmatpush1.bf16.msra.mxu0 %v2665
    %3906 = vmatprep.subr.bf16.mxu0 %v2674
    %3907 = vmatpush1.bf16.msra.mxu0 %v2673
    %3908 = vmatprep.subr.bf16.mxu0 %v2682
    %3909 = vmatpush1.bf16.msra.mxu0 %v2681
    %3910 = vmatprep.subr.bf16.mxu0 %v2690
    %3911 = vmatpush1.bf16.msra.mxu0 %v2689
    %3912 = vmatprep.subr.bf16.mxu0 %v2698
    %3913 = vmatpush1.bf16.msra.mxu0 %v2697
    %3914 = vmatprep.subr.bf16.mxu0 %v2706
    %3915 = vmatpush1.bf16.msra.mxu0 %v2705
    %3916 = vmatprep.mubr.bf16.mxu0 %v842
    %3917 = vmatmul.mubr.bf16.gmra.mrb[0].mxu0 %v841
    %v3918 = vpop.f32.mrb[0].mxu0
    %v3919 = vadd.f32 %v3838, %v3918
    %v3920 = vpop.f32.mrb[0].mxu0
    %v3921 = vadd.f32 %v3840, %v3920
    %v3922 = vpop.f32.mrb[0].mxu0
    %v3923 = vadd.f32 %v3842, %v3922
    %v3924 = vpop.f32.mrb[0].mxu0
    %v3925 = vadd.f32 %v3844, %v3924
    %3926 = vmatprep.mubr.bf16.mxu0 %v850
    %3927 = vmatmul.mubr.bf16.gmra.mrb[0].mxu0 %v849
    %v3928 = vpop.f32.mrb[0].mxu0
    %v3929 = vadd.f32 %v3848, %v3928
    %v3930 = vpop.f32.mrb[0].mxu0
    %v3931 = vadd.f32 %v3850, %v3930
    %v3932 = vpop.f32.mrb[0].mxu0
    %v3933 = vadd.f32 %v3852, %v3932
    %v3934 = vpop.f32.mrb[0].mxu0
    %v3935 = vadd.f32 %v3854, %v3934
    %3936 = vmatprep.mubr.bf16.mxu0 %v858
    %3937 = vmatmul.mubr.bf16.gmra.mrb[0].mxu0 %v857
    %v3938 = vpop.f32.mrb[0].mxu0
    %v3939 = vadd.f32 %v3858, %v3938
    %v3940 = vpop.f32.mrb[0].mxu0
    %v3941 = vadd.f32 %v3860, %v3940
    %v3942 = vpop.f32.mrb[0].mxu0
    %v3943 = vadd.f32 %v3862, %v3942
    %v3944 = vpop.f32.mrb[0].mxu0
    %v3945 = vadd.f32 %v3864, %v3944
    %3946 = vmatprep.mubr.bf16.mxu0 %v866
    %3947 = vmatmul.mubr.bf16.gmra.mrb[0].mxu0 %v865
    %v3948 = vpop.f32.mrb[0].mxu0
    %v3949 = vadd.f32 %v3868, %v3948
    %v3950 = vpop.f32.mrb[0].mxu0
    %v3951 = vadd.f32 %v3870, %v3950
    %v3952 = vpop.f32.mrb[0].mxu0
    %v3953 = vadd.f32 %v3872, %v3952
    %v3954 = vpop.f32.mrb[0].mxu0
    %v3955 = vadd.f32 %v3874, %v3954
    %3956 = vmatprep.mubr.bf16.mxu0 %v874
    %3957 = vmatmul.mubr.bf16.gmra.mrb[0].mxu0 %v873
    %v3958 = vpop.f32.mrb[0].mxu0
    %v3959 = vadd.f32 %v3878, %v3958
    %v3960 = vpop.f32.mrb[0].mxu0
    %v3961 = vadd.f32 %v3880, %v3960
    %v3962 = vpop.f32.mrb[0].mxu0
    %v3963 = vpop.f32.mrb[0].mxu0
    %3964 = vdwg.mxu0
    %3965 = vmatprep.subr.bf16.mxu0 %v2714
    %3966 = vmatpush1.bf16.msra.mxu0 %v2713
    %3967 = vmatprep.subr.bf16.mxu0 %v2722
    %3968 = vmatpush1.bf16.msra.mxu0 %v2721
    %3969 = vmatprep.subr.bf16.mxu0 %v2730
    %3970 = vmatpush1.bf16.msra.mxu0 %v2729
    %3971 = vmatprep.subr.bf16.mxu0 %v2738
    %3972 = vmatpush1.bf16.msra.mxu0 %v2737
    %3973 = vmatprep.subr.bf16.mxu0 %v2746
    %3974 = vmatpush1.bf16.msra.mxu0 %v2745
    %3975 = vmatprep.subr.bf16.mxu0 %v2754
    %3976 = vmatpush1.bf16.msra.mxu0 %v2753
    %3977 = vmatprep.subr.bf16.mxu0 %v2762
    %3978 = vmatpush1.bf16.msra.mxu0 %v2761
    %3979 = vmatprep.subr.bf16.mxu0 %v2770
    %3980 = vmatpush1.bf16.msra.mxu0 %v2769
    %3981 = vmatprep.subr.bf16.mxu0 %v2778
    %3982 = vmatpush1.bf16.msra.mxu0 %v2777
    %3983 = vmatprep.subr.bf16.mxu0 %v2786
    %3984 = vmatpush1.bf16.msra.mxu0 %v2785
    %3985 = vmatprep.subr.bf16.mxu0 %v2794
    %3986 = vmatpush1.bf16.msra.mxu0 %v2793
    %3987 = vmatprep.subr.bf16.mxu0 %v2802
    %3988 = vmatpush1.bf16.msra.mxu0 %v2801
    %3989 = vmatprep.subr.bf16.mxu0 %v2810
    %3990 = vmatpush1.bf16.msra.mxu0 %v2809
    %3991 = vmatprep.subr.bf16.mxu0 %v2818
    %3992 = vmatpush1.bf16.msra.mxu0 %v2817
    %3993 = vmatprep.subr.bf16.mxu0 %v2826
    %3994 = vmatpush1.bf16.msra.mxu0 %v2825
    %3995 = vmatprep.subr.bf16.mxu0 %v2834
    %3996 = vmatpush1.bf16.msra.mxu0 %v2833
    %3997 = vmatprep.mubr.bf16.mxu0 %v844
    %3998 = vmatmul.mubr.bf16.gmra.mrb[0].mxu0 %v843
    %v3999 = vpop.f32.mrb[0].mxu0
    %v4000 = vadd.f32 %v3919, %v3999
    %v4001 = vpop.f32.mrb[0].mxu0
    %v4002 = vadd.f32 %v3921, %v4001
    %v4003 = vpop.f32.mrb[0].mxu0
    %v4004 = vadd.f32 %v3923, %v4003
    %v4005 = vpop.f32.mrb[0].mxu0
    %v4006 = vadd.f32 %v3925, %v4005
    %4007 = vmatprep.mubr.bf16.mxu0 %v852
    %4008 = vmatmul.mubr.bf16.gmra.mrb[0].mxu0 %v851
    %v4009 = vpop.f32.mrb[0].mxu0
    %v4010 = vadd.f32 %v3929, %v4009
    %v4011 = vpop.f32.mrb[0].mxu0
    %v4012 = vadd.f32 %v3931, %v4011
    %v4013 = vpop.f32.mrb[0].mxu0
    %v4014 = vadd.f32 %v3933, %v4013
    %v4015 = vpop.f32.mrb[0].mxu0
    %v4016 = vadd.f32 %v3935, %v4015
    %4017 = vmatprep.mubr.bf16.mxu0 %v860
    %4018 = vmatmul.mubr.bf16.gmra.mrb[0].mxu0 %v859
    %v4019 = vpop.f32.mrb[0].mxu0
    %v4020 = vadd.f32 %v3939, %v4019
    %v4021 = vpop.f32.mrb[0].mxu0
    %v4022 = vadd.f32 %v3941, %v4021
    %v4023 = vpop.f32.mrb[0].mxu0
    %v4024 = vadd.f32 %v3943, %v4023
    %v4025 = vpop.f32.mrb[0].mxu0
    %v4026 = vadd.f32 %v3945, %v4025
    %4027 = vmatprep.mubr.bf16.mxu0 %v868
    %4028 = vmatmul.mubr.bf16.gmra.mrb[0].mxu0 %v867
    %v4029 = vpop.f32.mrb[0].mxu0
    %v4030 = vadd.f32 %v3949, %v4029
    %v4031 = vpop.f32.mrb[0].mxu0
    %v4032 = vadd.f32 %v3951, %v4031
    %v4033 = vpop.f32.mrb[0].mxu0
    %v4034 = vadd.f32 %v3953, %v4033
    %v4035 = vpop.f32.mrb[0].mxu0
    %v4036 = vadd.f32 %v3955, %v4035
    %4037 = vmatprep.mubr.bf16.mxu0 %v876
    %4038 = vmatmul.mubr.bf16.gmra.mrb[0].mxu0 %v875
    %v4039 = vpop.f32.mrb[0].mxu0
    %v4040 = vadd.f32 %v3959, %v4039
    %v4041 = vpop.f32.mrb[0].mxu0
    %v4042 = vadd.f32 %v3961, %v4041
    %v4043 = vpop.f32.mrb[0].mxu0
    %v4044 = vpop.f32.mrb[0].mxu0
    %4045 = vdwg.mxu0
    %4046 = vmatprep.subr.bf16.mxu0 %v2842
    %4047 = vmatpush1.bf16.msra.mxu0 %v2841
    %4048 = vmatprep.subr.bf16.mxu0 %v2850
    %4049 = vmatpush1.bf16.msra.mxu0 %v2849
    %4050 = vmatprep.subr.bf16.mxu0 %v2858
    %4051 = vmatpush1.bf16.msra.mxu0 %v2857
    %4052 = vmatprep.subr.bf16.mxu0 %v2866
    %4053 = vmatpush1.bf16.msra.mxu0 %v2865
    %4054 = vmatprep.subr.bf16.mxu0 %v2874
    %4055 = vmatpush1.bf16.msra.mxu0 %v2873
    %4056 = vmatprep.subr.bf16.mxu0 %v2882
    %4057 = vmatpush1.bf16.msra.mxu0 %v2881
    %4058 = vmatprep.subr.bf16.mxu0 %v2890
    %4059 = vmatpush1.bf16.msra.mxu0 %v2889
    %4060 = vmatprep.subr.bf16.mxu0 %v2898
    %4061 = vmatpush1.bf16.msra.mxu0 %v2897
    %4062 = vmatprep.subr.bf16.mxu0 %v2906
    %4063 = vmatpush1.bf16.msra.mxu0 %v2905
    %4064 = vmatprep.subr.bf16.mxu0 %v2914
    %4065 = vmatpush1.bf16.msra.mxu0 %v2913
    %4066 = vmatprep.subr.bf16.mxu0 %v2922
    %4067 = vmatpush1.bf16.msra.mxu0 %v2921
    %4068 = vmatprep.subr.bf16.mxu0 %v2930
    %4069 = vmatpush1.bf16.msra.mxu0 %v2929
    %4070 = vmatprep.subr.bf16.mxu0 %v2938
    %4071 = vmatpush1.bf16.msra.mxu0 %v2937
    %4072 = vmatprep.subr.bf16.mxu0 %v2946
    %4073 = vmatpush1.bf16.msra.mxu0 %v2945
    %4074 = vmatprep.subr.bf16.mxu0 %v2954
    %4075 = vmatpush1.bf16.msra.mxu0 %v2953
    %4076 = vmatprep.subr.bf16.mxu0 %v2962
    %4077 = vmatpush1.bf16.msra.mxu0 %v2961
    %4078 = vmatprep.mubr.bf16.mxu0 %v846
    %4079 = vmatmul.mubr.bf16.gmra.mrb[0].mxu0 %v845
    %v4080 = vpop.f32.mrb[0].mxu0
    %v4081 = vadd.f32 %v4000, %v4080
    %v4082 = vpop.f32.mrb[0].mxu0
    %v4083 = vadd.f32 %v4002, %v4082
    %v4084 = vpop.f32.mrb[0].mxu0
    %v4085 = vadd.f32 %v4004, %v4084
    %v4086 = vpop.f32.mrb[0].mxu0
    %v4087 = vadd.f32 %v4006, %v4086
    %4088 = vmatprep.mubr.bf16.mxu0 %v854
    %4089 = vmatmul.mubr.bf16.gmra.mrb[0].mxu0 %v853
    %v4090 = vpop.f32.mrb[0].mxu0
    %v4091 = vadd.f32 %v4010, %v4090
    %v4092 = vpop.f32.mrb[0].mxu0
    %v4093 = vadd.f32 %v4012, %v4092
    %v4094 = vpop.f32.mrb[0].mxu0
    %v4095 = vadd.f32 %v4014, %v4094
    %v4096 = vpop.f32.mrb[0].mxu0
    %v4097 = vadd.f32 %v4016, %v4096
    %4098 = vmatprep.mubr.bf16.mxu0 %v862
    %4099 = vmatmul.mubr.bf16.gmra.mrb[0].mxu0 %v861
    %v4100 = vpop.f32.mrb[0].mxu0
    %v4101 = vadd.f32 %v4020, %v4100
    %v4102 = vpop.f32.mrb[0].mxu0
    %v4103 = vadd.f32 %v4022, %v4102
    %v4104 = vpop.f32.mrb[0].mxu0
    %v4105 = vadd.f32 %v4024, %v4104
    %v4106 = vpop.f32.mrb[0].mxu0
    %v4107 = vadd.f32 %v4026, %v4106
    %4108 = vmatprep.mubr.bf16.mxu0 %v870
    %4109 = vmatmul.mubr.bf16.gmra.mrb[0].mxu0 %v869
    %v4110 = vpop.f32.mrb[0].mxu0
    %v4111 = vadd.f32 %v4030, %v4110
    %v4112 = vpop.f32.mrb[0].mxu0
    %v4113 = vadd.f32 %v4032, %v4112
    %v4114 = vpop.f32.mrb[0].mxu0
    %v4115 = vadd.f32 %v4034, %v4114
    %v4116 = vpop.f32.mrb[0].mxu0
    %v4117 = vadd.f32 %v4036, %v4116
    %4118 = vmatprep.mubr.bf16.mxu0 %v878
    %4119 = vmatmul.mubr.bf16.gmra.mrb[0].mxu0 %v877
    %v4120 = vpop.f32.mrb[0].mxu0
    %v4121 = vadd.f32 %v4040, %v4120
    %v4122 = vpop.f32.mrb[0].mxu0
    %v4123 = vadd.f32 %v4042, %v4122
    %v4124 = vpop.f32.mrb[0].mxu0
    %v4125 = vpop.f32.mrb[0].mxu0
    %4126 = vdwg.mxu0
    %4127 = vmatprep.subr.bf16.mxu0 %v2460
    %4128 = vmatpush1.bf16.msra.mxu0 %v2459
    %4129 = vmatprep.subr.bf16.mxu0 %v2468
    %4130 = vmatpush1.bf16.msra.mxu0 %v2467
    %4131 = vmatprep.subr.bf16.mxu0 %v2476
    %4132 = vmatpush1.bf16.msra.mxu0 %v2475
    %4133 = vmatprep.subr.bf16.mxu0 %v2484
    %4134 = vmatpush1.bf16.msra.mxu0 %v2483
    %4135 = vmatprep.subr.bf16.mxu0 %v2492
    %4136 = vmatpush1.bf16.msra.mxu0 %v2491
    %4137 = vmatprep.subr.bf16.mxu0 %v2500
    %4138 = vmatpush1.bf16.msra.mxu0 %v2499
    %4139 = vmatprep.subr.bf16.mxu0 %v2508
    %4140 = vmatpush1.bf16.msra.mxu0 %v2507
    %4141 = vmatprep.subr.bf16.mxu0 %v2516
    %4142 = vmatpush1.bf16.msra.mxu0 %v2515
    %4143 = vmatprep.subr.bf16.mxu0 %v2524
    %4144 = vmatpush1.bf16.msra.mxu0 %v2523
    %4145 = vmatprep.subr.bf16.mxu0 %v2532
    %4146 = vmatpush1.bf16.msra.mxu0 %v2531
    %4147 = vmatprep.subr.bf16.mxu0 %v2540
    %4148 = vmatpush1.bf16.msra.mxu0 %v2539
    %4149 = vmatprep.subr.bf16.mxu0 %v2548
    %4150 = vmatpush1.bf16.msra.mxu0 %v2547
    %4151 = vmatprep.subr.bf16.mxu0 %v2556
    %4152 = vmatpush1.bf16.msra.mxu0 %v2555
    %4153 = vmatprep.subr.bf16.mxu0 %v2564
    %4154 = vmatpush1.bf16.msra.mxu0 %v2563
    %4155 = vmatprep.subr.bf16.mxu0 %v2572
    %4156 = vmatpush1.bf16.msra.mxu0 %v2571
    %4157 = vmatprep.subr.bf16.mxu0 %v2580
    %4158 = vmatpush1.bf16.msra.mxu0 %v2579
    %4159 = vmatprep.mubr.bf16.mxu0 %v840
    %4160 = vmatmul.mubr.bf16.gmra.mrb[0].mxu0 %v839
    %v4161 = vpop.f32.mrb[0].mxu0
    %v4162 = vadd.f32 0.0, %v4161
    %v4163 = vpop.f32.mrb[0].mxu0
    %v4164 = vadd.f32 0.0, %v4163
    %v4165 = vpop.f32.mrb[0].mxu0
    %v4166 = vadd.f32 0.0, %v4165
    %v4167 = vpop.f32.mrb[0].mxu0
    %v4168 = vadd.f32 0.0, %v4167
    %4169 = vmatprep.mubr.bf16.mxu0 %v848
    %4170 = vmatmul.mubr.bf16.gmra.mrb[0].mxu0 %v847
    %v4171 = vpop.f32.mrb[0].mxu0
    %v4172 = vadd.f32 0.0, %v4171
    %v4173 = vpop.f32.mrb[0].mxu0
    %v4174 = vadd.f32 0.0, %v4173
    %v4175 = vpop.f32.mrb[0].mxu0
    %v4176 = vadd.f32 0.0, %v4175
    %v4177 = vpop.f32.mrb[0].mxu0
    %v4178 = vadd.f32 0.0, %v4177
    %4179 = vmatprep.mubr.bf16.mxu0 %v856
    %4180 = vmatmul.mubr.bf16.gmra.mrb[0].mxu0 %v855
    %v4181 = vpop.f32.mrb[0].mxu0
    %v4182 = vadd.f32 0.0, %v4181
    %v4183 = vpop.f32.mrb[0].mxu0
    %v4184 = vadd.f32 0.0, %v4183
    %v4185 = vpop.f32.mrb[0].mxu0
    %v4186 = vadd.f32 0.0, %v4185
    %v4187 = vpop.f32.mrb[0].mxu0
    %v4188 = vadd.f32 0.0, %v4187
    %4189 = vmatprep.mubr.bf16.mxu0 %v864
    %4190 = vmatmul.mubr.bf16.gmra.mrb[0].mxu0 %v863
    %v4191 = vpop.f32.mrb[0].mxu0
    %v4192 = vadd.f32 0.0, %v4191
    %v4193 = vpop.f32.mrb[0].mxu0
    %v4194 = vadd.f32 0.0, %v4193
    %v4195 = vpop.f32.mrb[0].mxu0
    %v4196 = vadd.f32 0.0, %v4195
    %v4197 = vpop.f32.mrb[0].mxu0
    %v4198 = vadd.f32 0.0, %v4197
    %4199 = vmatprep.mubr.bf16.mxu0 %v872
    %4200 = vmatmul.mubr.bf16.gmra.mrb[0].mxu0 %v871
    %v4201 = vpop.f32.mrb[0].mxu0
    %v4202 = vadd.f32 0.0, %v4201
    %v4203 = vpop.f32.mrb[0].mxu0
    %v4204 = vadd.f32 0.0, %v4203
    %v4205 = vpop.f32.mrb[0].mxu0
    %v4206 = vpop.f32.mrb[0].mxu0
    %4207 = vdwg.mxu0
    %4208 = vmatprep.subr.bf16.mxu0 %v2588
    %4209 = vmatpush1.bf16.msra.mxu0 %v2587
    %4210 = vmatprep.subr.bf16.mxu0 %v2596
    %4211 = vmatpush1.bf16.msra.mxu0 %v2595
    %4212 = vmatprep.subr.bf16.mxu0 %v2604
    %4213 = vmatpush1.bf16.msra.mxu0 %v2603
    %4214 = vmatprep.subr.bf16.mxu0 %v2612
    %4215 = vmatpush1.bf16.msra.mxu0 %v2611
    %4216 = vmatprep.subr.bf16.mxu0 %v2620
    %4217 = vmatpush1.bf16.msra.mxu0 %v2619
    %4218 = vmatprep.subr.bf16.mxu0 %v2628
    %4219 = vmatpush1.bf16.msra.mxu0 %v2627
    %4220 = vmatprep.subr.bf16.mxu0 %v2636
    %4221 = vmatpush1.bf16.msra.mxu0 %v2635
    %4222 = vmatprep.subr.bf16.mxu0 %v2644
    %4223 = vmatpush1.bf16.msra.mxu0 %v2643
    %4224 = vmatprep.subr.bf16.mxu0 %v2652
    %4225 = vmatpush1.bf16.msra.mxu0 %v2651
    %4226 = vmatprep.subr.bf16.mxu0 %v2660
    %4227 = vmatpush1.bf16.msra.mxu0 %v2659
    %4228 = vmatprep.subr.bf16.mxu0 %v2668
    %4229 = vmatpush1.bf16.msra.mxu0 %v2667
    %4230 = vmatprep.subr.bf16.mxu0 %v2676
    %4231 = vmatpush1.bf16.msra.mxu0 %v2675
    %4232 = vmatprep.subr.bf16.mxu0 %v2684
    %4233 = vmatpush1.bf16.msra.mxu0 %v2683
    %4234 = vmatprep.subr.bf16.mxu0 %v2692
    %4235 = vmatpush1.bf16.msra.mxu0 %v2691
    %4236 = vmatprep.subr.bf16.mxu0 %v2700
    %4237 = vmatpush1.bf16.msra.mxu0 %v2699
    %4238 = vmatprep.subr.bf16.mxu0 %v2708
    %4239 = vmatpush1.bf16.msra.mxu0 %v2707
    %4240 = vmatprep.mubr.bf16.mxu0 %v842
    %4241 = vmatmul.mubr.bf16.gmra.mrb[0].mxu0 %v841
    %v4242 = vpop.f32.mrb[0].mxu0
    %v4243 = vadd.f32 %v4162, %v4242
    %v4244 = vpop.f32.mrb[0].mxu0
    %v4245 = vadd.f32 %v4164, %v4244
    %v4246 = vpop.f32.mrb[0].mxu0
    %v4247 = vadd.f32 %v4166, %v4246
    %v4248 = vpop.f32.mrb[0].mxu0
    %v4249 = vadd.f32 %v4168, %v4248
    %4250 = vmatprep.mubr.bf16.mxu0 %v850
    %4251 = vmatmul.mubr.bf16.gmra.mrb[0].mxu0 %v849
    %v4252 = vpop.f32.mrb[0].mxu0
    %v4253 = vadd.f32 %v4172, %v4252
    %v4254 = vpop.f32.mrb[0].mxu0
    %v4255 = vadd.f32 %v4174, %v4254
    %v4256 = vpop.f32.mrb[0].mxu0
    %v4257 = vadd.f32 %v4176, %v4256
    %v4258 = vpop.f32.mrb[0].mxu0
    %v4259 = vadd.f32 %v4178, %v4258
    %4260 = vmatprep.mubr.bf16.mxu0 %v858
    %4261 = vmatmul.mubr.bf16.gmra.mrb[0].mxu0 %v857
    %v4262 = vpop.f32.mrb[0].mxu0
    %v4263 = vadd.f32 %v4182, %v4262
    %v4264 = vpop.f32.mrb[0].mxu0
    %v4265 = vadd.f32 %v4184, %v4264
    %v4266 = vpop.f32.mrb[0].mxu0
    %v4267 = vadd.f32 %v4186, %v4266
    %v4268 = vpop.f32.mrb[0].mxu0
    %v4269 = vadd.f32 %v4188, %v4268
    %4270 = vmatprep.mubr.bf16.mxu0 %v866
    %4271 = vmatmul.mubr.bf16.gmra.mrb[0].mxu0 %v865
    %v4272 = vpop.f32.mrb[0].mxu0
    %v4273 = vadd.f32 %v4192, %v4272
    %v4274 = vpop.f32.mrb[0].mxu0
    %v4275 = vadd.f32 %v4194, %v4274
    %v4276 = vpop.f32.mrb[0].mxu0
    %v4277 = vadd.f32 %v4196, %v4276
    %v4278 = vpop.f32.mrb[0].mxu0
    %v4279 = vadd.f32 %v4198, %v4278
    %4280 = vmatprep.mubr.bf16.mxu0 %v874
    %4281 = vmatmul.mubr.bf16.gmra.mrb[0].mxu0 %v873
    %v4282 = vpop.f32.mrb[0].mxu0
    %v4283 = vadd.f32 %v4202, %v4282
    %v4284 = vpop.f32.mrb[0].mxu0
    %v4285 = vadd.f32 %v4204, %v4284
    %v4286 = vpop.f32.mrb[0].mxu0
    %v4287 = vpop.f32.mrb[0].mxu0
    %4288 = vdwg.mxu0
    %4289 = vmatprep.subr.bf16.mxu0 %v2716
    %4290 = vmatpush1.bf16.msra.mxu0 %v2715
    %4291 = vmatprep.subr.bf16.mxu0 %v2724
    %4292 = vmatpush1.bf16.msra.mxu0 %v2723
    %4293 = vmatprep.subr.bf16.mxu0 %v2732
    %4294 = vmatpush1.bf16.msra.mxu0 %v2731
    %4295 = vmatprep.subr.bf16.mxu0 %v2740
    %4296 = vmatpush1.bf16.msra.mxu0 %v2739
    %4297 = vmatprep.subr.bf16.mxu0 %v2748
    %4298 = vmatpush1.bf16.msra.mxu0 %v2747
    %4299 = vmatprep.subr.bf16.mxu0 %v2756
    %4300 = vmatpush1.bf16.msra.mxu0 %v2755
    %4301 = vmatprep.subr.bf16.mxu0 %v2764
    %4302 = vmatpush1.bf16.msra.mxu0 %v2763
    %4303 = vmatprep.subr.bf16.mxu0 %v2772
    %4304 = vmatpush1.bf16.msra.mxu0 %v2771
    %4305 = vmatprep.subr.bf16.mxu0 %v2780
    %4306 = vmatpush1.bf16.msra.mxu0 %v2779
    %4307 = vmatprep.subr.bf16.mxu0 %v2788
    %4308 = vmatpush1.bf16.msra.mxu0 %v2787
    %4309 = vmatprep.subr.bf16.mxu0 %v2796
    %4310 = vmatpush1.bf16.msra.mxu0 %v2795
    %4311 = vmatprep.subr.bf16.mxu0 %v2804
    %4312 = vmatpush1.bf16.msra.mxu0 %v2803
    %4313 = vmatprep.subr.bf16.mxu0 %v2812
    %4314 = vmatpush1.bf16.msra.mxu0 %v2811
    %4315 = vmatprep.subr.bf16.mxu0 %v2820
    %4316 = vmatpush1.bf16.msra.mxu0 %v2819
    %4317 = vmatprep.subr.bf16.mxu0 %v2828
    %4318 = vmatpush1.bf16.msra.mxu0 %v2827
    %4319 = vmatprep.subr.bf16.mxu0 %v2836
    %4320 = vmatpush1.bf16.msra.mxu0 %v2835
    %4321 = vmatprep.mubr.bf16.mxu0 %v844
    %4322 = vmatmul.mubr.bf16.gmra.mrb[0].mxu0 %v843
    %v4323 = vpop.f32.mrb[0].mxu0
    %v4324 = vadd.f32 %v4243, %v4323
    %v4325 = vpop.f32.mrb[0].mxu0
    %v4326 = vadd.f32 %v4245, %v4325
    %v4327 = vpop.f32.mrb[0].mxu0
    %v4328 = vadd.f32 %v4247, %v4327
    %v4329 = vpop.f32.mrb[0].mxu0
    %v4330 = vadd.f32 %v4249, %v4329
    %4331 = vmatprep.mubr.bf16.mxu0 %v852
    %4332 = vmatmul.mubr.bf16.gmra.mrb[0].mxu0 %v851
    %v4333 = vpop.f32.mrb[0].mxu0
    %v4334 = vadd.f32 %v4253, %v4333
    %v4335 = vpop.f32.mrb[0].mxu0
    %v4336 = vadd.f32 %v4255, %v4335
    %v4337 = vpop.f32.mrb[0].mxu0
    %v4338 = vadd.f32 %v4257, %v4337
    %v4339 = vpop.f32.mrb[0].mxu0
    %v4340 = vadd.f32 %v4259, %v4339
    %4341 = vmatprep.mubr.bf16.mxu0 %v860
    %4342 = vmatmul.mubr.bf16.gmra.mrb[0].mxu0 %v859
    %v4343 = vpop.f32.mrb[0].mxu0
    %v4344 = vadd.f32 %v4263, %v4343
    %v4345 = vpop.f32.mrb[0].mxu0
    %v4346 = vadd.f32 %v4265, %v4345
    %v4347 = vpop.f32.mrb[0].mxu0
    %v4348 = vadd.f32 %v4267, %v4347
    %v4349 = vpop.f32.mrb[0].mxu0
    %v4350 = vadd.f32 %v4269, %v4349
    %4351 = vmatprep.mubr.bf16.mxu0 %v868
    %4352 = vmatmul.mubr.bf16.gmra.mrb[0].mxu0 %v867
    %v4353 = vpop.f32.mrb[0].mxu0
    %v4354 = vadd.f32 %v4273, %v4353
    %v4355 = vpop.f32.mrb[0].mxu0
    %v4356 = vadd.f32 %v4275, %v4355
    %v4357 = vpop.f32.mrb[0].mxu0
    %v4358 = vadd.f32 %v4277, %v4357
    %v4359 = vpop.f32.mrb[0].mxu0
    %v4360 = vadd.f32 %v4279, %v4359
    %4361 = vmatprep.mubr.bf16.mxu0 %v876
    %4362 = vmatmul.mubr.bf16.gmra.mrb[0].mxu0 %v875
    %v4363 = vpop.f32.mrb[0].mxu0
    %v4364 = vadd.f32 %v4283, %v4363
    %v4365 = vpop.f32.mrb[0].mxu0
    %v4366 = vadd.f32 %v4285, %v4365
    %v4367 = vpop.f32.mrb[0].mxu0
    %v4368 = vpop.f32.mrb[0].mxu0
    %4369 = vdwg.mxu0
    %4370 = vmatprep.subr.bf16.mxu0 %v2844
    %4371 = vmatpush1.bf16.msra.mxu0 %v2843
    %4372 = vmatprep.subr.bf16.mxu0 %v2852
    %4373 = vmatpush1.bf16.msra.mxu0 %v2851
    %4374 = vmatprep.subr.bf16.mxu0 %v2860
    %4375 = vmatpush1.bf16.msra.mxu0 %v2859
    %4376 = vmatprep.subr.bf16.mxu0 %v2868
    %4377 = vmatpush1.bf16.msra.mxu0 %v2867
    %4378 = vmatprep.subr.bf16.mxu0 %v2876
    %4379 = vmatpush1.bf16.msra.mxu0 %v2875
    %4380 = vmatprep.subr.bf16.mxu0 %v2884
    %4381 = vmatpush1.bf16.msra.mxu0 %v2883
    %4382 = vmatprep.subr.bf16.mxu0 %v2892
    %4383 = vmatpush1.bf16.msra.mxu0 %v2891
    %4384 = vmatprep.subr.bf16.mxu0 %v2900
    %4385 = vmatpush1.bf16.msra.mxu0 %v2899
    %4386 = vmatprep.subr.bf16.mxu0 %v2908
    %4387 = vmatpush1.bf16.msra.mxu0 %v2907
    %4388 = vmatprep.subr.bf16.mxu0 %v2916
    %4389 = vmatpush1.bf16.msra.mxu0 %v2915
    %4390 = vmatprep.subr.bf16.mxu0 %v2924
    %4391 = vmatpush1.bf16.msra.mxu0 %v2923
    %4392 = vmatprep.subr.bf16.mxu0 %v2932
    %4393 = vmatpush1.bf16.msra.mxu0 %v2931
    %4394 = vmatprep.subr.bf16.mxu0 %v2940
    %4395 = vmatpush1.bf16.msra.mxu0 %v2939
    %4396 = vmatprep.subr.bf16.mxu0 %v2948
    %4397 = vmatpush1.bf16.msra.mxu0 %v2947
    %4398 = vmatprep.subr.bf16.mxu0 %v2956
    %4399 = vmatpush1.bf16.msra.mxu0 %v2955
    %4400 = vmatprep.subr.bf16.mxu0 %v2964
    %4401 = vmatpush1.bf16.msra.mxu0 %v2963
    %4402 = vmatprep.mubr.bf16.mxu0 %v846
    %4403 = vmatmul.mubr.bf16.gmra.mrb[0].mxu0 %v845
    %v4404 = vpop.f32.mrb[0].mxu0
    %v4405 = vadd.f32 %v4324, %v4404
    %v4406 = vpop.f32.mrb[0].mxu0
    %v4407 = vadd.f32 %v4326, %v4406
    %v4408 = vpop.f32.mrb[0].mxu0
    %v4409 = vadd.f32 %v4328, %v4408
    %v4410 = vpop.f32.mrb[0].mxu0
    %v4411 = vadd.f32 %v4330, %v4410
    %4412 = vmatprep.mubr.bf16.mxu0 %v854
    %4413 = vmatmul.mubr.bf16.gmra.mrb[0].mxu0 %v853
    %v4414 = vpop.f32.mrb[0].mxu0
    %v4415 = vadd.f32 %v4334, %v4414
    %v4416 = vpop.f32.mrb[0].mxu0
    %v4417 = vadd.f32 %v4336, %v4416
    %v4418 = vpop.f32.mrb[0].mxu0
    %v4419 = vadd.f32 %v4338, %v4418
    %v4420 = vpop.f32.mrb[0].mxu0
    %v4421 = vadd.f32 %v4340, %v4420
    %4422 = vmatprep.mubr.bf16.mxu0 %v862
    %4423 = vmatmul.mubr.bf16.gmra.mrb[0].mxu0 %v861
    %v4424 = vpop.f32.mrb[0].mxu0
    %v4425 = vadd.f32 %v4344, %v4424
    %v4426 = vpop.f32.mrb[0].mxu0
    %v4427 = vadd.f32 %v4346, %v4426
    %v4428 = vpop.f32.mrb[0].mxu0
    %v4429 = vadd.f32 %v4348, %v4428
    %v4430 = vpop.f32.mrb[0].mxu0
    %v4431 = vadd.f32 %v4350, %v4430
    %4432 = vmatprep.mubr.bf16.mxu0 %v870
    %4433 = vmatmul.mubr.bf16.gmra.mrb[0].mxu0 %v869
    %v4434 = vpop.f32.mrb[0].mxu0
    %v4435 = vadd.f32 %v4354, %v4434
    %v4436 = vpop.f32.mrb[0].mxu0
    %v4437 = vadd.f32 %v4356, %v4436
    %v4438 = vpop.f32.mrb[0].mxu0
    %v4439 = vadd.f32 %v4358, %v4438
    %v4440 = vpop.f32.mrb[0].mxu0
    %v4441 = vadd.f32 %v4360, %v4440
    %4442 = vmatprep.mubr.bf16.mxu0 %v878
    %4443 = vmatmul.mubr.bf16.gmra.mrb[0].mxu0 %v877
    %v4444 = vpop.f32.mrb[0].mxu0
    %v4445 = vadd.f32 %v4364, %v4444
    %v4446 = vpop.f32.mrb[0].mxu0
    %v4447 = vadd.f32 %v4366, %v4446
    %v4448 = vpop.f32.mrb[0].mxu0
    %v4449 = vpop.f32.mrb[0].mxu0
    %4450 = vdwg.mxu0
    %4451 = vmatprep.subr.bf16.mxu0 %v2462
    %4452 = vmatpush1.bf16.msra.mxu0 %v2461
    %4453 = vmatprep.subr.bf16.mxu0 %v2470
    %4454 = vmatpush1.bf16.msra.mxu0 %v2469
    %4455 = vmatprep.subr.bf16.mxu0 %v2478
    %4456 = vmatpush1.bf16.msra.mxu0 %v2477
    %4457 = vmatprep.subr.bf16.mxu0 %v2486
    %4458 = vmatpush1.bf16.msra.mxu0 %v2485
    %4459 = vmatprep.subr.bf16.mxu0 %v2494
    %4460 = vmatpush1.bf16.msra.mxu0 %v2493
    %4461 = vmatprep.subr.bf16.mxu0 %v2502
    %4462 = vmatpush1.bf16.msra.mxu0 %v2501
    %4463 = vmatprep.subr.bf16.mxu0 %v2510
    %4464 = vmatpush1.bf16.msra.mxu0 %v2509
    %4465 = vmatprep.subr.bf16.mxu0 %v2518
    %4466 = vmatpush1.bf16.msra.mxu0 %v2517
    %4467 = vmatprep.subr.bf16.mxu0 %v2526
    %4468 = vmatpush1.bf16.msra.mxu0 %v2525
    %4469 = vmatprep.subr.bf16.mxu0 %v2534
    %4470 = vmatpush1.bf16.msra.mxu0 %v2533
    %4471 = vmatprep.subr.bf16.mxu0 %v2542
    %4472 = vmatpush1.bf16.msra.mxu0 %v2541
    %4473 = vmatprep.subr.bf16.mxu0 %v2550
    %4474 = vmatpush1.bf16.msra.mxu0 %v2549
    %4475 = vmatprep.subr.bf16.mxu0 %v2558
    %4476 = vmatpush1.bf16.msra.mxu0 %v2557
    %4477 = vmatprep.subr.bf16.mxu0 %v2566
    %4478 = vmatpush1.bf16.msra.mxu0 %v2565
    %4479 = vmatprep.subr.bf16.mxu0 %v2574
    %4480 = vmatpush1.bf16.msra.mxu0 %v2573
    %4481 = vmatprep.subr.bf16.mxu0 %v2582
    %4482 = vmatpush1.bf16.msra.mxu0 %v2581
    %4483 = vmatprep.mubr.bf16.mxu0 %v840
    %4484 = vmatmul.mubr.bf16.gmra.mrb[0].mxu0 %v839
    %v4485 = vpop.f32.mrb[0].mxu0
    %v4486 = vadd.f32 0.0, %v4485
    %v4487 = vpop.f32.mrb[0].mxu0
    %v4488 = vadd.f32 0.0, %v4487
    %v4489 = vpop.f32.mrb[0].mxu0
    %v4490 = vadd.f32 0.0, %v4489
    %v4491 = vpop.f32.mrb[0].mxu0
    %v4492 = vadd.f32 0.0, %v4491
    %4493 = vmatprep.mubr.bf16.mxu0 %v848
    %4494 = vmatmul.mubr.bf16.gmra.mrb[0].mxu0 %v847
    %v4495 = vpop.f32.mrb[0].mxu0
    %v4496 = vadd.f32 0.0, %v4495
    %v4497 = vpop.f32.mrb[0].mxu0
    %v4498 = vadd.f32 0.0, %v4497
    %v4499 = vpop.f32.mrb[0].mxu0
    %v4500 = vadd.f32 0.0, %v4499
    %v4501 = vpop.f32.mrb[0].mxu0
    %v4502 = vadd.f32 0.0, %v4501
    %4503 = vmatprep.mubr.bf16.mxu0 %v856
    %4504 = vmatmul.mubr.bf16.gmra.mrb[0].mxu0 %v855
    %v4505 = vpop.f32.mrb[0].mxu0
    %v4506 = vadd.f32 0.0, %v4505
    %v4507 = vpop.f32.mrb[0].mxu0
    %v4508 = vadd.f32 0.0, %v4507
    %v4509 = vpop.f32.mrb[0].mxu0
    %v4510 = vadd.f32 0.0, %v4509
    %v4511 = vpop.f32.mrb[0].mxu0
    %v4512 = vadd.f32 0.0, %v4511
    %4513 = vmatprep.mubr.bf16.mxu0 %v864
    %4514 = vmatmul.mubr.bf16.gmra.mrb[0].mxu0 %v863
    %v4515 = vpop.f32.mrb[0].mxu0
    %v4516 = vadd.f32 0.0, %v4515
    %v4517 = vpop.f32.mrb[0].mxu0
    %v4518 = vadd.f32 0.0, %v4517
    %v4519 = vpop.f32.mrb[0].mxu0
    %v4520 = vadd.f32 0.0, %v4519
    %v4521 = vpop.f32.mrb[0].mxu0
    %v4522 = vadd.f32 0.0, %v4521
    %4523 = vmatprep.mubr.bf16.mxu0 %v872
    %4524 = vmatmul.mubr.bf16.gmra.mrb[0].mxu0 %v871
    %v4525 = vpop.f32.mrb[0].mxu0
    %v4526 = vadd.f32 0.0, %v4525
    %v4527 = vpop.f32.mrb[0].mxu0
    %v4528 = vadd.f32 0.0, %v4527
    %v4529 = vpop.f32.mrb[0].mxu0
    %v4530 = vpop.f32.mrb[0].mxu0
    %4531 = vdwg.mxu0
    %4532 = vmatprep.subr.bf16.mxu0 %v2590
    %4533 = vmatpush1.bf16.msra.mxu0 %v2589
    %4534 = vmatprep.subr.bf16.mxu0 %v2598
    %4535 = vmatpush1.bf16.msra.mxu0 %v2597
    %4536 = vmatprep.subr.bf16.mxu0 %v2606
    %4537 = vmatpush1.bf16.msra.mxu0 %v2605
    %4538 = vmatprep.subr.bf16.mxu0 %v2614
    %4539 = vmatpush1.bf16.msra.mxu0 %v2613
    %4540 = vmatprep.subr.bf16.mxu0 %v2622
    %4541 = vmatpush1.bf16.msra.mxu0 %v2621
    %4542 = vmatprep.subr.bf16.mxu0 %v2630
    %4543 = vmatpush1.bf16.msra.mxu0 %v2629
    %4544 = vmatprep.subr.bf16.mxu0 %v2638
    %4545 = vmatpush1.bf16.msra.mxu0 %v2637
    %4546 = vmatprep.subr.bf16.mxu0 %v2646
    %4547 = vmatpush1.bf16.msra.mxu0 %v2645
    %4548 = vmatprep.subr.bf16.mxu0 %v2654
    %4549 = vmatpush1.bf16.msra.mxu0 %v2653
    %4550 = vmatprep.subr.bf16.mxu0 %v2662
    %4551 = vmatpush1.bf16.msra.mxu0 %v2661
    %4552 = vmatprep.subr.bf16.mxu0 %v2670
    %4553 = vmatpush1.bf16.msra.mxu0 %v2669
    %4554 = vmatprep.subr.bf16.mxu0 %v2678
    %4555 = vmatpush1.bf16.msra.mxu0 %v2677
    %4556 = vmatprep.subr.bf16.mxu0 %v2686
    %4557 = vmatpush1.bf16.msra.mxu0 %v2685
    %4558 = vmatprep.subr.bf16.mxu0 %v2694
    %4559 = vmatpush1.bf16.msra.mxu0 %v2693
    %4560 = vmatprep.subr.bf16.mxu0 %v2702
    %4561 = vmatpush1.bf16.msra.mxu0 %v2701
    %4562 = vmatprep.subr.bf16.mxu0 %v2710
    %4563 = vmatpush1.bf16.msra.mxu0 %v2709
    %4564 = vmatprep.mubr.bf16.mxu0 %v842
    %4565 = vmatmul.mubr.bf16.gmra.mrb[0].mxu0 %v841
    %v4566 = vpop.f32.mrb[0].mxu0
    %v4567 = vadd.f32 %v4486, %v4566
    %v4568 = vpop.f32.mrb[0].mxu0
    %v4569 = vadd.f32 %v4488, %v4568
    %v4570 = vpop.f32.mrb[0].mxu0
    %v4571 = vadd.f32 %v4490, %v4570
    %v4572 = vpop.f32.mrb[0].mxu0
    %v4573 = vadd.f32 %v4492, %v4572
    %4574 = vmatprep.mubr.bf16.mxu0 %v850
    %4575 = vmatmul.mubr.bf16.gmra.mrb[0].mxu0 %v849
    %v4576 = vpop.f32.mrb[0].mxu0
    %v4577 = vadd.f32 %v4496, %v4576
    %v4578 = vpop.f32.mrb[0].mxu0
    %v4579 = vadd.f32 %v4498, %v4578
    %v4580 = vpop.f32.mrb[0].mxu0
    %v4581 = vadd.f32 %v4500, %v4580
    %v4582 = vpop.f32.mrb[0].mxu0
    %v4583 = vadd.f32 %v4502, %v4582
    %4584 = vmatprep.mubr.bf16.mxu0 %v858
    %4585 = vmatmul.mubr.bf16.gmra.mrb[0].mxu0 %v857
    %v4586 = vpop.f32.mrb[0].mxu0
    %v4587 = vadd.f32 %v4506, %v4586
    %v4588 = vpop.f32.mrb[0].mxu0
    %v4589 = vadd.f32 %v4508, %v4588
    %v4590 = vpop.f32.mrb[0].mxu0
    %v4591 = vadd.f32 %v4510, %v4590
    %v4592 = vpop.f32.mrb[0].mxu0
    %v4593 = vadd.f32 %v4512, %v4592
    %4594 = vmatprep.mubr.bf16.mxu0 %v866
    %4595 = vmatmul.mubr.bf16.gmra.mrb[0].mxu0 %v865
    %v4596 = vpop.f32.mrb[0].mxu0
    %v4597 = vadd.f32 %v4516, %v4596
    %v4598 = vpop.f32.mrb[0].mxu0
    %v4599 = vadd.f32 %v4518, %v4598
    %v4600 = vpop.f32.mrb[0].mxu0
    %v4601 = vadd.f32 %v4520, %v4600
    %v4602 = vpop.f32.mrb[0].mxu0
    %v4603 = vadd.f32 %v4522, %v4602
    %4604 = vmatprep.mubr.bf16.mxu0 %v874
    %4605 = vmatmul.mubr.bf16.gmra.mrb[0].mxu0 %v873
    %v4606 = vpop.f32.mrb[0].mxu0
    %v4607 = vadd.f32 %v4526, %v4606
    %v4608 = vpop.f32.mrb[0].mxu0
    %v4609 = vadd.f32 %v4528, %v4608
    %v4610 = vpop.f32.mrb[0].mxu0
    %v4611 = vpop.f32.mrb[0].mxu0
    %4612 = vdwg.mxu0
    %4613 = vmatprep.subr.bf16.mxu0 %v2718
    %4614 = vmatpush1.bf16.msra.mxu0 %v2717
    %4615 = vmatprep.subr.bf16.mxu0 %v2726
    %4616 = vmatpush1.bf16.msra.mxu0 %v2725
    %4617 = vmatprep.subr.bf16.mxu0 %v2734
    %4618 = vmatpush1.bf16.msra.mxu0 %v2733
    %4619 = vmatprep.subr.bf16.mxu0 %v2742
    %4620 = vmatpush1.bf16.msra.mxu0 %v2741
    %4621 = vmatprep.subr.bf16.mxu0 %v2750
    %4622 = vmatpush1.bf16.msra.mxu0 %v2749
    %4623 = vmatprep.subr.bf16.mxu0 %v2758
    %4624 = vmatpush1.bf16.msra.mxu0 %v2757
    %4625 = vmatprep.subr.bf16.mxu0 %v2766
    %4626 = vmatpush1.bf16.msra.mxu0 %v2765
    %4627 = vmatprep.subr.bf16.mxu0 %v2774
    %4628 = vmatpush1.bf16.msra.mxu0 %v2773
    %4629 = vmatprep.subr.bf16.mxu0 %v2782
    %4630 = vmatpush1.bf16.msra.mxu0 %v2781
    %4631 = vmatprep.subr.bf16.mxu0 %v2790
    %4632 = vmatpush1.bf16.msra.mxu0 %v2789
    %4633 = vmatprep.subr.bf16.mxu0 %v2798
    %4634 = vmatpush1.bf16.msra.mxu0 %v2797
    %4635 = vmatprep.subr.bf16.mxu0 %v2806
    %4636 = vmatpush1.bf16.msra.mxu0 %v2805
    %4637 = vmatprep.subr.bf16.mxu0 %v2814
    %4638 = vmatpush1.bf16.msra.mxu0 %v2813
    %4639 = vmatprep.subr.bf16.mxu0 %v2822
    %4640 = vmatpush1.bf16.msra.mxu0 %v2821
    %4641 = vmatprep.subr.bf16.mxu0 %v2830
    %4642 = vmatpush1.bf16.msra.mxu0 %v2829
    %4643 = vmatprep.subr.bf16.mxu0 %v2838
    %4644 = vmatpush1.bf16.msra.mxu0 %v2837
    %4645 = vmatprep.mubr.bf16.mxu0 %v844
    %4646 = vmatmul.mubr.bf16.gmra.mrb[0].mxu0 %v843
    %v4647 = vpop.f32.mrb[0].mxu0
    %v4648 = vadd.f32 %v4567, %v4647
    %v4649 = vpop.f32.mrb[0].mxu0
    %v4650 = vadd.f32 %v4569, %v4649
    %v4651 = vpop.f32.mrb[0].mxu0
    %v4652 = vadd.f32 %v4571, %v4651
    %v4653 = vpop.f32.mrb[0].mxu0
    %v4654 = vadd.f32 %v4573, %v4653
    %4655 = vmatprep.mubr.bf16.mxu0 %v852
    %4656 = vmatmul.mubr.bf16.gmra.mrb[0].mxu0 %v851
    %v4657 = vpop.f32.mrb[0].mxu0
    %v4658 = vadd.f32 %v4577, %v4657
    %v4659 = vpop.f32.mrb[0].mxu0
    %v4660 = vadd.f32 %v4579, %v4659
    %v4661 = vpop.f32.mrb[0].mxu0
    %v4662 = vadd.f32 %v4581, %v4661
    %v4663 = vpop.f32.mrb[0].mxu0
    %v4664 = vadd.f32 %v4583, %v4663
    %4665 = vmatprep.mubr.bf16.mxu0 %v860
    %4666 = vmatmul.mubr.bf16.gmra.mrb[0].mxu0 %v859
    %v4667 = vpop.f32.mrb[0].mxu0
    %v4668 = vadd.f32 %v4587, %v4667
    %v4669 = vpop.f32.mrb[0].mxu0
    %v4670 = vadd.f32 %v4589, %v4669
    %v4671 = vpop.f32.mrb[0].mxu0
    %v4672 = vadd.f32 %v4591, %v4671
    %v4673 = vpop.f32.mrb[0].mxu0
    %v4674 = vadd.f32 %v4593, %v4673
    %4675 = vmatprep.mubr.bf16.mxu0 %v868
    %4676 = vmatmul.mubr.bf16.gmra.mrb[0].mxu0 %v867
    %v4677 = vpop.f32.mrb[0].mxu0
    %v4678 = vadd.f32 %v4597, %v4677
    %v4679 = vpop.f32.mrb[0].mxu0
    %v4680 = vadd.f32 %v4599, %v4679
    %v4681 = vpop.f32.mrb[0].mxu0
    %v4682 = vadd.f32 %v4601, %v4681
    %v4683 = vpop.f32.mrb[0].mxu0
    %v4684 = vadd.f32 %v4603, %v4683
    %4685 = vmatprep.mubr.bf16.mxu0 %v876
    %4686 = vmatmul.mubr.bf16.gmra.mrb[0].mxu0 %v875
    %v4687 = vpop.f32.mrb[0].mxu0
    %v4688 = vadd.f32 %v4607, %v4687
    %v4689 = vpop.f32.mrb[0].mxu0
    %v4690 = vadd.f32 %v4609, %v4689
    %v4691 = vpop.f32.mrb[0].mxu0
    %v4692 = vpop.f32.mrb[0].mxu0
    %4693 = vdwg.mxu0
    %4694 = vmatprep.subr.bf16.mxu0 %v2846
    %4695 = vmatpush1.bf16.msra.mxu0 %v2845
    %4696 = vmatprep.subr.bf16.mxu0 %v2854
    %4697 = vmatpush1.bf16.msra.mxu0 %v2853
    %4698 = vmatprep.subr.bf16.mxu0 %v2862
    %4699 = vmatpush1.bf16.msra.mxu0 %v2861
    %4700 = vmatprep.subr.bf16.mxu0 %v2870
    %4701 = vmatpush1.bf16.msra.mxu0 %v2869
    %4702 = vmatprep.subr.bf16.mxu0 %v2878
    %4703 = vmatpush1.bf16.msra.mxu0 %v2877
    %4704 = vmatprep.subr.bf16.mxu0 %v2886
    %4705 = vmatpush1.bf16.msra.mxu0 %v2885
    %4706 = vmatprep.subr.bf16.mxu0 %v2894
    %4707 = vmatpush1.bf16.msra.mxu0 %v2893
    %4708 = vmatprep.subr.bf16.mxu0 %v2902
    %4709 = vmatpush1.bf16.msra.mxu0 %v2901
    %4710 = vmatprep.subr.bf16.mxu0 %v2910
    %4711 = vmatpush1.bf16.msra.mxu0 %v2909
    %4712 = vmatprep.subr.bf16.mxu0 %v2918
    %4713 = vmatpush1.bf16.msra.mxu0 %v2917
    %4714 = vmatprep.subr.bf16.mxu0 %v2926
    %4715 = vmatpush1.bf16.msra.mxu0 %v2925
    %4716 = vmatprep.subr.bf16.mxu0 %v2934
    %4717 = vmatpush1.bf16.msra.mxu0 %v2933
    %4718 = vmatprep.subr.bf16.mxu0 %v2942
    %4719 = vmatpush1.bf16.msra.mxu0 %v2941
    %4720 = vmatprep.subr.bf16.mxu0 %v2950
    %4721 = vmatpush1.bf16.msra.mxu0 %v2949
    %4722 = vmatprep.subr.bf16.mxu0 %v2958
    %4723 = vmatpush1.bf16.msra.mxu0 %v2957
    %4724 = vmatprep.subr.bf16.mxu0 %v2966
    %4725 = vmatpush1.bf16.msra.mxu0 %v2965
    %4726 = vmatprep.mubr.bf16.mxu0 %v846
    %4727 = vmatmul.mubr.bf16.gmra.mrb[0].mxu0 %v845
    %v4728 = vpop.f32.mrb[0].mxu0
    %v4729 = vadd.f32 %v4648, %v4728
    %v4730 = vpop.f32.mrb[0].mxu0
    %v4731 = vadd.f32 %v4650, %v4730
    %v4732 = vpop.f32.mrb[0].mxu0
    %v4733 = vadd.f32 %v4652, %v4732
    %v4734 = vpop.f32.mrb[0].mxu0
    %v4735 = vadd.f32 %v4654, %v4734
    %4736 = vmatprep.mubr.bf16.mxu0 %v854
    %4737 = vmatmul.mubr.bf16.gmra.mrb[0].mxu0 %v853
    %v4738 = vpop.f32.mrb[0].mxu0
    %v4739 = vadd.f32 %v4658, %v4738
    %v4740 = vpop.f32.mrb[0].mxu0
    %v4741 = vadd.f32 %v4660, %v4740
    %v4742 = vpop.f32.mrb[0].mxu0
    %v4743 = vadd.f32 %v4662, %v4742
    %v4744 = vpop.f32.mrb[0].mxu0
    %v4745 = vadd.f32 %v4664, %v4744
    %4746 = vmatprep.mubr.bf16.mxu0 %v862
    %4747 = vmatmul.mubr.bf16.gmra.mrb[0].mxu0 %v861
    %v4748 = vpop.f32.mrb[0].mxu0
    %v4749 = vadd.f32 %v4668, %v4748
    %v4750 = vpop.f32.mrb[0].mxu0
    %v4751 = vadd.f32 %v4670, %v4750
    %v4752 = vpop.f32.mrb[0].mxu0
    %v4753 = vadd.f32 %v4672, %v4752
    %v4754 = vpop.f32.mrb[0].mxu0
    %v4755 = vadd.f32 %v4674, %v4754
    %4756 = vmatprep.mubr.bf16.mxu0 %v870
    %4757 = vmatmul.mubr.bf16.gmra.mrb[0].mxu0 %v869
    %v4758 = vpop.f32.mrb[0].mxu0
    %v4759 = vadd.f32 %v4678, %v4758
    %v4760 = vpop.f32.mrb[0].mxu0
    %v4761 = vadd.f32 %v4680, %v4760
    %v4762 = vpop.f32.mrb[0].mxu0
    %v4763 = vadd.f32 %v4682, %v4762
    %v4764 = vpop.f32.mrb[0].mxu0
    %v4765 = vadd.f32 %v4684, %v4764
    %4766 = vmatprep.mubr.bf16.mxu0 %v878
    %4767 = vmatmul.mubr.bf16.gmra.mrb[0].mxu0 %v877
    %v4768 = vpop.f32.mrb[0].mxu0
    %v4769 = vadd.f32 %v4688, %v4768
    %v4770 = vpop.f32.mrb[0].mxu0
    %v4771 = vadd.f32 %v4690, %v4770
    %v4772 = vpop.f32.mrb[0].mxu0
    %v4773 = vpop.f32.mrb[0].mxu0
    %4774 = vdwg.mxu0
    %v4775 = vld [vmem:[#allocation8] sm:$0xff]
    %v4776 = vld [vmem:[#allocation8 + $0x8] sm:$0xff]
    %v4777 = vld [vmem:[#allocation8 + $0x10] sm:$0xff]
    %v4778 = vld [vmem:[#allocation8 + $0x18] sm:$0xff]
    %v4779 = vld [vmem:[#allocation8 + $0x20] sm:$0xff]
    %v4780 = vld [vmem:[#allocation8 + $0x28] sm:$0xff]
    %v4781 = vld [vmem:[#allocation8 + $0x30] sm:$0xff]
    %v4782 = vld [vmem:[#allocation8 + $0x38] sm:$0xff]
    %v4783 = vld [vmem:[#allocation8 + $0x40] sm:$0xff]
    %v4784 = vld [vmem:[#allocation8 + $0x48] sm:$0xff]
    %v4785 = vld [vmem:[#allocation8 + $0x50] sm:$0xff]
    %v4786 = vld [vmem:[#allocation8 + $0x58] sm:$0xff]
    %v4787 = vld [vmem:[#allocation8 + $0x60] sm:$0xff]
    %v4788 = vld [vmem:[#allocation8 + $0x68] sm:$0xff]
    %v4789 = vld [vmem:[#allocation8 + $0x70] sm:$0xff]
    %v4790 = vld [vmem:[#allocation8 + $0x78] sm:$0xff]
    %v4791 = vld [vmem:[#allocation8 + $0x80] sm:$0xff]
    %v4792 = vld [vmem:[#allocation8 + $0x88] sm:$0xff]
    %v4793 = vld [vmem:[#allocation8 + $0x90] sm:$0xff]
    %v4794 = vld [vmem:[#allocation8 + $0x98] sm:$0xff]
    %v4795 = vld [vmem:[#allocation8 + $0xa0] sm:$0xff]
    %v4796 = vld [vmem:[#allocation8 + $0xa8] sm:$0xff]
    %v4797 = vld [vmem:[#allocation8 + $0xb0] sm:$0xff]
    %v4798 = vld [vmem:[#allocation8 + $0xb8] sm:$0xff]
    %v4799 = vld [vmem:[#allocation8 + $0xc0] sm:$0xff]
    %v4800 = vld [vmem:[#allocation8 + $0xc8] sm:$0xff]
    %v4801 = vld [vmem:[#allocation8 + $0xd0] sm:$0xff]
    %v4802 = vld [vmem:[#allocation8 + $0xd8] sm:$0xff]
    %v4803 = vld [vmem:[#allocation8 + $0xe0] sm:$0xff]
    %v4804 = vld [vmem:[#allocation8 + $0xe8] sm:$0xff]
    %v4805 = vld [vmem:[#allocation8 + $0xf0] sm:$0xff]
    %v4806 = vld [vmem:[#allocation8 + $0xf8] sm:$0xff]
    %v4807 = vld [vmem:[#allocation8 + $0x100] sm:$0xff]
    %v4808 = vld [vmem:[#allocation8 + $0x108] sm:$0xff]
    %v4809 = vld [vmem:[#allocation8 + $0x110] sm:$0xff]
    %v4810 = vld [vmem:[#allocation8 + $0x118] sm:$0xff]
    %v4847 = vunpack.c.l.b16 %v4775
    %v4848 = vunpack.c.h.b16 %v4775
    %v4849 = vunpack.c.l.b16 %v4776
    %v4850 = vunpack.c.h.b16 %v4776
    %v4851 = vunpack.c.l.b16 %v4777
    %v4852 = vunpack.c.h.b16 %v4777
    %v4853 = vunpack.c.l.b16 %v4778
    %v4854 = vunpack.c.h.b16 %v4778
    %v4855 = vunpack.c.l.b16 %v4779
    %v4856 = vunpack.c.h.b16 %v4779
    %v4857 = vunpack.c.l.b16 %v4780
    %v4858 = vunpack.c.h.b16 %v4780
    %v4859 = vunpack.c.l.b16 %v4781
    %v4860 = vunpack.c.h.b16 %v4781
    %v4861 = vunpack.c.l.b16 %v4782
    %v4862 = vunpack.c.h.b16 %v4782
    %v4863 = vunpack.c.l.b16 %v4783
    %v4864 = vunpack.c.h.b16 %v4783
    %v4865 = vunpack.c.l.b16 %v4784
    %v4866 = vunpack.c.h.b16 %v4784
    %v4867 = vunpack.c.l.b16 %v4785
    %v4868 = vunpack.c.h.b16 %v4785
    %v4869 = vunpack.c.l.b16 %v4786
    %v4870 = vunpack.c.h.b16 %v4786
    %v4871 = vunpack.c.l.b16 %v4787
    %v4872 = vunpack.c.h.b16 %v4787
    %v4873 = vunpack.c.l.b16 %v4788
    %v4874 = vunpack.c.h.b16 %v4788
    %v4875 = vunpack.c.l.b16 %v4789
    %v4876 = vunpack.c.h.b16 %v4789
    %v4877 = vunpack.c.l.b16 %v4790
    %v4878 = vunpack.c.h.b16 %v4790
    %v4879 = vunpack.c.l.b16 %v4791
    %v4880 = vunpack.c.h.b16 %v4791
    %v4881 = vunpack.c.l.b16 %v4792
    %v4882 = vunpack.c.h.b16 %v4792
    %v4883 = vunpack.c.l.b16 %v4793
    %v4884 = vunpack.c.h.b16 %v4793
    %v4885 = vunpack.c.l.b16 %v4794
    %v4886 = vunpack.c.h.b16 %v4794
    %v4887 = vunpack.c.l.b16 %v4795
    %v4888 = vunpack.c.h.b16 %v4795
    %v4889 = vunpack.c.l.b16 %v4796
    %v4890 = vunpack.c.h.b16 %v4796
    %v4891 = vunpack.c.l.b16 %v4797
    %v4892 = vunpack.c.h.b16 %v4797
    %v4893 = vunpack.c.l.b16 %v4798
    %v4894 = vunpack.c.h.b16 %v4798
    %v4895 = vunpack.c.l.b16 %v4799
    %v4896 = vunpack.c.h.b16 %v4799
    %v4897 = vunpack.c.l.b16 %v4800
    %v4898 = vunpack.c.h.b16 %v4800
    %v4899 = vunpack.c.l.b16 %v4801
    %v4900 = vunpack.c.h.b16 %v4801
    %v4901 = vunpack.c.l.b16 %v4802
    %v4902 = vunpack.c.h.b16 %v4802
    %v4903 = vunpack.c.l.b16 %v4803
    %v4904 = vunpack.c.h.b16 %v4803
    %v4905 = vunpack.c.l.b16 %v4804
    %v4906 = vunpack.c.h.b16 %v4804
    %v4907 = vunpack.c.l.b16 %v4805
    %v4908 = vunpack.c.h.b16 %v4805
    %v4909 = vunpack.c.l.b16 %v4806
    %v4910 = vunpack.c.h.b16 %v4806
    %v4911 = vunpack.c.l.b16 %v4807
    %v4912 = vunpack.c.h.b16 %v4807
    %v4913 = vunpack.c.l.b16 %v4808
    %v4914 = vunpack.c.h.b16 %v4808
    %v4915 = vunpack.c.l.b16 %v4809
    %v4916 = vunpack.c.h.b16 %v4809
    %v4917 = vunpack.c.l.b16 %v4810
    %v4918 = vunpack.c.h.b16 %v4810
    %v4919 = vpack.c.b16 %v4855, %v4847
    %v4920 = vpack.c.b16 %v4856, %v4848
    %v4921 = vpack.c.b16 %v4857, %v4849
    %v4922 = vpack.c.b16 %v4858, %v4850
    %v4923 = vpack.c.b16 %v4859, %v4851
    %v4924 = vpack.c.b16 %v4860, %v4852
    %v4925 = vpack.c.b16 %v4861, %v4853
    %v4926 = vpack.c.b16 %v4862, %v4854
    %v4927 = vpack.c.b16 %v4871, %v4863
    %v4928 = vpack.c.b16 %v4872, %v4864
    %v4929 = vpack.c.b16 %v4873, %v4865
    %v4930 = vpack.c.b16 %v4874, %v4866
    %v4931 = vpack.c.b16 %v4875, %v4867
    %v4932 = vpack.c.b16 %v4876, %v4868
    %v4933 = vpack.c.b16 %v4877, %v4869
    %v4934 = vpack.c.b16 %v4878, %v4870
    %v4935 = vpack.c.b16 %v4887, %v4879
    %v4936 = vpack.c.b16 %v4888, %v4880
    %v4937 = vpack.c.b16 %v4889, %v4881
    %v4938 = vpack.c.b16 %v4890, %v4882
    %v4939 = vpack.c.b16 %v4891, %v4883
    %v4940 = vpack.c.b16 %v4892, %v4884
    %v4941 = vpack.c.b16 %v4893, %v4885
    %v4942 = vpack.c.b16 %v4894, %v4886
    %v4943 = vpack.c.b16 %v4903, %v4895
    %v4944 = vpack.c.b16 %v4904, %v4896
    %v4945 = vpack.c.b16 %v4905, %v4897
    %v4946 = vpack.c.b16 %v4906, %v4898
    %v4947 = vpack.c.b16 %v4907, %v4899
    %v4948 = vpack.c.b16 %v4908, %v4900
    %v4949 = vpack.c.b16 %v4909, %v4901
    %v4950 = vpack.c.b16 %v4910, %v4902
    %v4951 = vpack.c.b16 %v4911, %v4911
    %v4952 = vpack.c.b16 %v4912, %v4912
    %v4953 = vpack.c.b16 %v4913, %v4913
    %v4954 = vpack.c.b16 %v4914, %v4914
    %v4955 = vpack.c.b16 %v4915, %v4915
    %v4956 = vpack.c.b16 %v4916, %v4916
    %v4957 = vpack.c.b16 %v4917, %v4917
    %v4958 = vpack.c.b16 %v4918, %v4918
    %4999 = vmatprep.subr.bf16.mxu0 %v2456
    %5000 = vmatpush1.bf16.msra.mxu0 %v2455
    %5001 = vmatprep.subr.bf16.mxu0 %v2464
    %5002 = vmatpush1.bf16.msra.mxu0 %v2463
    %5003 = vmatprep.subr.bf16.mxu0 %v2472
    %5004 = vmatpush1.bf16.msra.mxu0 %v2471
    %5005 = vmatprep.subr.bf16.mxu0 %v2480
    %5006 = vmatpush1.bf16.msra.mxu0 %v2479
    %5007 = vmatprep.subr.bf16.mxu0 %v2488
    %5008 = vmatpush1.bf16.msra.mxu0 %v2487
    %5009 = vmatprep.subr.bf16.mxu0 %v2496
    %5010 = vmatpush1.bf16.msra.mxu0 %v2495
    %5011 = vmatprep.subr.bf16.mxu0 %v2504
    %5012 = vmatpush1.bf16.msra.mxu0 %v2503
    %5013 = vmatprep.subr.bf16.mxu0 %v2512
    %5014 = vmatpush1.bf16.msra.mxu0 %v2511
    %5015 = vmatprep.subr.bf16.mxu0 %v2520
    %5016 = vmatpush1.bf16.msra.mxu0 %v2519
    %5017 = vmatprep.subr.bf16.mxu0 %v2528
    %5018 = vmatpush1.bf16.msra.mxu0 %v2527
    %5019 = vmatprep.subr.bf16.mxu0 %v2536
    %5020 = vmatpush1.bf16.msra.mxu0 %v2535
    %5021 = vmatprep.subr.bf16.mxu0 %v2544
    %5022 = vmatpush1.bf16.msra.mxu0 %v2543
    %5023 = vmatprep.subr.bf16.mxu0 %v2552
    %5024 = vmatpush1.bf16.msra.mxu0 %v2551
    %5025 = vmatprep.subr.bf16.mxu0 %v2560
    %5026 = vmatpush1.bf16.msra.mxu0 %v2559
    %5027 = vmatprep.subr.bf16.mxu0 %v2568
    %5028 = vmatpush1.bf16.msra.mxu0 %v2567
    %5029 = vmatprep.subr.bf16.mxu0 %v2576
    %5030 = vmatpush1.bf16.msra.mxu0 %v2575
    %5031 = vmatprep.mubr.bf16.mxu0 %v4920
    %5032 = vmatmul.mubr.bf16.gmra.mrb[0].mxu0 %v4919
    %v5033 = vpop.f32.mrb[0].mxu0
    %v5034 = vadd.f32 0.0, %v5033
    %v5035 = vpop.f32.mrb[0].mxu0
    %v5036 = vadd.f32 0.0, %v5035
    %v5037 = vpop.f32.mrb[0].mxu0
    %v5038 = vadd.f32 0.0, %v5037
    %v5039 = vpop.f32.mrb[0].mxu0
    %v5040 = vadd.f32 0.0, %v5039
    %5041 = vmatprep.mubr.bf16.mxu0 %v4928
    %5042 = vmatmul.mubr.bf16.gmra.mrb[0].mxu0 %v4927
    %v5043 = vpop.f32.mrb[0].mxu0
    %v5044 = vadd.f32 0.0, %v5043
    %v5045 = vpop.f32.mrb[0].mxu0
    %v5046 = vadd.f32 0.0, %v5045
    %v5047 = vpop.f32.mrb[0].mxu0
    %v5048 = vadd.f32 0.0, %v5047
    %v5049 = vpop.f32.mrb[0].mxu0
    %v5050 = vadd.f32 0.0, %v5049
    %5051 = vmatprep.mubr.bf16.mxu0 %v4936
    %5052 = vmatmul.mubr.bf16.gmra.mrb[0].mxu0 %v4935
    %v5053 = vpop.f32.mrb[0].mxu0
    %v5054 = vadd.f32 0.0, %v5053
    %v5055 = vpop.f32.mrb[0].mxu0
    %v5056 = vadd.f32 0.0, %v5055
    %v5057 = vpop.f32.mrb[0].mxu0
    %v5058 = vadd.f32 0.0, %v5057
    %v5059 = vpop.f32.mrb[0].mxu0
    %v5060 = vadd.f32 0.0, %v5059
    %5061 = vmatprep.mubr.bf16.mxu0 %v4944
    %5062 = vmatmul.mubr.bf16.gmra.mrb[0].mxu0 %v4943
    %v5063 = vpop.f32.mrb[0].mxu0
    %v5064 = vadd.f32 0.0, %v5063
    %v5065 = vpop.f32.mrb[0].mxu0
    %v5066 = vadd.f32 0.0, %v5065
    %v5067 = vpop.f32.mrb[0].mxu0
    %v5068 = vadd.f32 0.0, %v5067
    %v5069 = vpop.f32.mrb[0].mxu0
    %v5070 = vadd.f32 0.0, %v5069
    %5071 = vmatprep.mubr.bf16.mxu0 %v4952
    %5072 = vmatmul.mubr.bf16.gmra.mrb[0].mxu0 %v4951
    %v5073 = vpop.f32.mrb[0].mxu0
    %v5074 = vadd.f32 0.0, %v5073
    %v5075 = vpop.f32.mrb[0].mxu0
    %v5076 = vadd.f32 0.0, %v5075
    %v5077 = vpop.f32.mrb[0].mxu0
    %v5078 = vpop.f32.mrb[0].mxu0
    %5079 = vdwg.mxu0
    %5080 = vmatprep.subr.bf16.mxu0 %v2584
    %5081 = vmatpush1.bf16.msra.mxu0 %v2583
    %5082 = vmatprep.subr.bf16.mxu0 %v2592
    %5083 = vmatpush1.bf16.msra.mxu0 %v2591
    %5084 = vmatprep.subr.bf16.mxu0 %v2600
    %5085 = vmatpush1.bf16.msra.mxu0 %v2599
    %5086 = vmatprep.subr.bf16.mxu0 %v2608
    %5087 = vmatpush1.bf16.msra.mxu0 %v2607
    %5088 = vmatprep.subr.bf16.mxu0 %v2616
    %5089 = vmatpush1.bf16.msra.mxu0 %v2615
    %5090 = vmatprep.subr.bf16.mxu0 %v2624
    %5091 = vmatpush1.bf16.msra.mxu0 %v2623
    %5092 = vmatprep.subr.bf16.mxu0 %v2632
    %5093 = vmatpush1.bf16.msra.mxu0 %v2631
    %5094 = vmatprep.subr.bf16.mxu0 %v2640
    %5095 = vmatpush1.bf16.msra.mxu0 %v2639
    %5096 = vmatprep.subr.bf16.mxu0 %v2648
    %5097 = vmatpush1.bf16.msra.mxu0 %v2647
    %5098 = vmatprep.subr.bf16.mxu0 %v2656
    %5099 = vmatpush1.bf16.msra.mxu0 %v2655
    %5100 = vmatprep.subr.bf16.mxu0 %v2664
    %5101 = vmatpush1.bf16.msra.mxu0 %v2663
    %5102 = vmatprep.subr.bf16.mxu0 %v2672
    %5103 = vmatpush1.bf16.msra.mxu0 %v2671
    %5104 = vmatprep.subr.bf16.mxu0 %v2680
    %5105 = vmatpush1.bf16.msra.mxu0 %v2679
    %5106 = vmatprep.subr.bf16.mxu0 %v2688
    %5107 = vmatpush1.bf16.msra.mxu0 %v2687
    %5108 = vmatprep.subr.bf16.mxu0 %v2696
    %5109 = vmatpush1.bf16.msra.mxu0 %v2695
    %5110 = vmatprep.subr.bf16.mxu0 %v2704
    %5111 = vmatpush1.bf16.msra.mxu0 %v2703
    %5112 = vmatprep.mubr.bf16.mxu0 %v4922
    %5113 = vmatmul.mubr.bf16.gmra.mrb[0].mxu0 %v4921
    %v5114 = vpop.f32.mrb[0].mxu0
    %v5115 = vadd.f32 %v5034, %v5114
    %v5116 = vpop.f32.mrb[0].mxu0
    %v5117 = vadd.f32 %v5036, %v5116
    %v5118 = vpop.f32.mrb[0].mxu0
    %v5119 = vadd.f32 %v5038, %v5118
    %v5120 = vpop.f32.mrb[0].mxu0
    %v5121 = vadd.f32 %v5040, %v5120
    %5122 = vmatprep.mubr.bf16.mxu0 %v4930
    %5123 = vmatmul.mubr.bf16.gmra.mrb[0].mxu0 %v4929
    %v5124 = vpop.f32.mrb[0].mxu0
    %v5125 = vadd.f32 %v5044, %v5124
    %v5126 = vpop.f32.mrb[0].mxu0
    %v5127 = vadd.f32 %v5046, %v5126
    %v5128 = vpop.f32.mrb[0].mxu0
    %v5129 = vadd.f32 %v5048, %v5128
    %v5130 = vpop.f32.mrb[0].mxu0
    %v5131 = vadd.f32 %v5050, %v5130
    %5132 = vmatprep.mubr.bf16.mxu0 %v4938
    %5133 = vmatmul.mubr.bf16.gmra.mrb[0].mxu0 %v4937
    %v5134 = vpop.f32.mrb[0].mxu0
    %v5135 = vadd.f32 %v5054, %v5134
    %v5136 = vpop.f32.mrb[0].mxu0
    %v5137 = vadd.f32 %v5056, %v5136
    %v5138 = vpop.f32.mrb[0].mxu0
    %v5139 = vadd.f32 %v5058, %v5138
    %v5140 = vpop.f32.mrb[0].mxu0
    %v5141 = vadd.f32 %v5060, %v5140
    %5142 = vmatprep.mubr.bf16.mxu0 %v4946
    %5143 = vmatmul.mubr.bf16.gmra.mrb[0].mxu0 %v4945
    %v5144 = vpop.f32.mrb[0].mxu0
    %v5145 = vadd.f32 %v5064, %v5144
    %v5146 = vpop.f32.mrb[0].mxu0
    %v5147 = vadd.f32 %v5066, %v5146
    %v5148 = vpop.f32.mrb[0].mxu0
    %v5149 = vadd.f32 %v5068, %v5148
    %v5150 = vpop.f32.mrb[0].mxu0
    %v5151 = vadd.f32 %v5070, %v5150
    %5152 = vmatprep.mubr.bf16.mxu0 %v4954
    %5153 = vmatmul.mubr.bf16.gmra.mrb[0].mxu0 %v4953
    %v5154 = vpop.f32.mrb[0].mxu0
    %v5155 = vadd.f32 %v5074, %v5154
    %v5156 = vpop.f32.mrb[0].mxu0
    %v5157 = vadd.f32 %v5076, %v5156
    %v5158 = vpop.f32.mrb[0].mxu0
    %v5159 = vpop.f32.mrb[0].mxu0
    %5160 = vdwg.mxu0
    %5161 = vmatprep.subr.bf16.mxu0 %v2712
    %5162 = vmatpush1.bf16.msra.mxu0 %v2711
    %5163 = vmatprep.subr.bf16.mxu0 %v2720
    %5164 = vmatpush1.bf16.msra.mxu0 %v2719
    %5165 = vmatprep.subr.bf16.mxu0 %v2728
    %5166 = vmatpush1.bf16.msra.mxu0 %v2727
    %5167 = vmatprep.subr.bf16.mxu0 %v2736
    %5168 = vmatpush1.bf16.msra.mxu0 %v2735
    %5169 = vmatprep.subr.bf16.mxu0 %v2744
    %5170 = vmatpush1.bf16.msra.mxu0 %v2743
    %5171 = vmatprep.subr.bf16.mxu0 %v2752
    %5172 = vmatpush1.bf16.msra.mxu0 %v2751
    %5173 = vmatprep.subr.bf16.mxu0 %v2760
    %5174 = vmatpush1.bf16.msra.mxu0 %v2759
    %5175 = vmatprep.subr.bf16.mxu0 %v2768
    %5176 = vmatpush1.bf16.msra.mxu0 %v2767
    %5177 = vmatprep.subr.bf16.mxu0 %v2776
    %5178 = vmatpush1.bf16.msra.mxu0 %v2775
    %5179 = vmatprep.subr.bf16.mxu0 %v2784
    %5180 = vmatpush1.bf16.msra.mxu0 %v2783
    %5181 = vmatprep.subr.bf16.mxu0 %v2792
    %5182 = vmatpush1.bf16.msra.mxu0 %v2791
    %5183 = vmatprep.subr.bf16.mxu0 %v2800
    %5184 = vmatpush1.bf16.msra.mxu0 %v2799
    %5185 = vmatprep.subr.bf16.mxu0 %v2808
    %5186 = vmatpush1.bf16.msra.mxu0 %v2807
    %5187 = vmatprep.subr.bf16.mxu0 %v2816
    %5188 = vmatpush1.bf16.msra.mxu0 %v2815
    %5189 = vmatprep.subr.bf16.mxu0 %v2824
    %5190 = vmatpush1.bf16.msra.mxu0 %v2823
    %5191 = vmatprep.subr.bf16.mxu0 %v2832
    %5192 = vmatpush1.bf16.msra.mxu0 %v2831
    %5193 = vmatprep.mubr.bf16.mxu0 %v4924
    %5194 = vmatmul.mubr.bf16.gmra.mrb[0].mxu0 %v4923
    %v5195 = vpop.f32.mrb[0].mxu0
    %v5196 = vadd.f32 %v5115, %v5195
    %v5197 = vpop.f32.mrb[0].mxu0
    %v5198 = vadd.f32 %v5117, %v5197
    %v5199 = vpop.f32.mrb[0].mxu0
    %v5200 = vadd.f32 %v5119, %v5199
    %v5201 = vpop.f32.mrb[0].mxu0
    %v5202 = vadd.f32 %v5121, %v5201
    %5203 = vmatprep.mubr.bf16.mxu0 %v4932
    %5204 = vmatmul.mubr.bf16.gmra.mrb[0].mxu0 %v4931
    %v5205 = vpop.f32.mrb[0].mxu0
    %v5206 = vadd.f32 %v5125, %v5205
    %v5207 = vpop.f32.mrb[0].mxu0
    %v5208 = vadd.f32 %v5127, %v5207
    %v5209 = vpop.f32.mrb[0].mxu0
    %v5210 = vadd.f32 %v5129, %v5209
    %v5211 = vpop.f32.mrb[0].mxu0
    %v5212 = vadd.f32 %v5131, %v5211
    %5213 = vmatprep.mubr.bf16.mxu0 %v4940
    %5214 = vmatmul.mubr.bf16.gmra.mrb[0].mxu0 %v4939
    %v5215 = vpop.f32.mrb[0].mxu0
    %v5216 = vadd.f32 %v5135, %v5215
    %v5217 = vpop.f32.mrb[0].mxu0
    %v5218 = vadd.f32 %v5137, %v5217
    %v5219 = vpop.f32.mrb[0].mxu0
    %v5220 = vadd.f32 %v5139, %v5219
    %v5221 = vpop.f32.mrb[0].mxu0
    %v5222 = vadd.f32 %v5141, %v5221
    %5223 = vmatprep.mubr.bf16.mxu0 %v4948
    %5224 = vmatmul.mubr.bf16.gmra.mrb[0].mxu0 %v4947
    %v5225 = vpop.f32.mrb[0].mxu0
    %v5226 = vadd.f32 %v5145, %v5225
    %v5227 = vpop.f32.mrb[0].mxu0
    %v5228 = vadd.f32 %v5147, %v5227
    %v5229 = vpop.f32.mrb[0].mxu0
    %v5230 = vadd.f32 %v5149, %v5229
    %v5231 = vpop.f32.mrb[0].mxu0
    %v5232 = vadd.f32 %v5151, %v5231
    %5233 = vmatprep.mubr.bf16.mxu0 %v4956
    %5234 = vmatmul.mubr.bf16.gmra.mrb[0].mxu0 %v4955
    %v5235 = vpop.f32.mrb[0].mxu0
    %v5236 = vadd.f32 %v5155, %v5235
    %v5237 = vpop.f32.mrb[0].mxu0
    %v5238 = vadd.f32 %v5157, %v5237
    %v5239 = vpop.f32.mrb[0].mxu0
    %v5240 = vpop.f32.mrb[0].mxu0
    %5241 = vdwg.mxu0
    %5242 = vmatprep.subr.bf16.mxu0 %v2840
    %5243 = vmatpush1.bf16.msra.mxu0 %v2839
    %5244 = vmatprep.subr.bf16.mxu0 %v2848
    %5245 = vmatpush1.bf16.msra.mxu0 %v2847
    %5246 = vmatprep.subr.bf16.mxu0 %v2856
    %5247 = vmatpush1.bf16.msra.mxu0 %v2855
    %5248 = vmatprep.subr.bf16.mxu0 %v2864
    %5249 = vmatpush1.bf16.msra.mxu0 %v2863
    %5250 = vmatprep.subr.bf16.mxu0 %v2872
    %5251 = vmatpush1.bf16.msra.mxu0 %v2871
    %5252 = vmatprep.subr.bf16.mxu0 %v2880
    %5253 = vmatpush1.bf16.msra.mxu0 %v2879
    %5254 = vmatprep.subr.bf16.mxu0 %v2888
    %5255 = vmatpush1.bf16.msra.mxu0 %v2887
    %5256 = vmatprep.subr.bf16.mxu0 %v2896
    %5257 = vmatpush1.bf16.msra.mxu0 %v2895
    %5258 = vmatprep.subr.bf16.mxu0 %v2904
    %5259 = vmatpush1.bf16.msra.mxu0 %v2903
    %5260 = vmatprep.subr.bf16.mxu0 %v2912
    %5261 = vmatpush1.bf16.msra.mxu0 %v2911
    %5262 = vmatprep.subr.bf16.mxu0 %v2920
    %5263 = vmatpush1.bf16.msra.mxu0 %v2919
    %5264 = vmatprep.subr.bf16.mxu0 %v2928
    %5265 = vmatpush1.bf16.msra.mxu0 %v2927
    %5266 = vmatprep.subr.bf16.mxu0 %v2936
    %5267 = vmatpush1.bf16.msra.mxu0 %v2935
    %5268 = vmatprep.subr.bf16.mxu0 %v2944
    %5269 = vmatpush1.bf16.msra.mxu0 %v2943
    %5270 = vmatprep.subr.bf16.mxu0 %v2952
    %5271 = vmatpush1.bf16.msra.mxu0 %v2951
    %5272 = vmatprep.subr.bf16.mxu0 %v2960
    %5273 = vmatpush1.bf16.msra.mxu0 %v2959
    %5274 = vmatprep.mubr.bf16.mxu0 %v4926
    %5275 = vmatmul.mubr.bf16.gmra.mrb[0].mxu0 %v4925
    %v5276 = vpop.f32.mrb[0].mxu0
    %v5277 = vadd.f32 %v5196, %v5276
    %v5278 = vpop.f32.mrb[0].mxu0
    %v5279 = vadd.f32 %v5198, %v5278
    %v5280 = vpop.f32.mrb[0].mxu0
    %v5281 = vadd.f32 %v5200, %v5280
    %v5282 = vpop.f32.mrb[0].mxu0
    %v5283 = vadd.f32 %v5202, %v5282
    %5284 = vmatprep.mubr.bf16.mxu0 %v4934
    %5285 = vmatmul.mubr.bf16.gmra.mrb[0].mxu0 %v4933
    %v5286 = vpop.f32.mrb[0].mxu0
    %v5287 = vadd.f32 %v5206, %v5286
    %v5288 = vpop.f32.mrb[0].mxu0
    %v5289 = vadd.f32 %v5208, %v5288
    %v5290 = vpop.f32.mrb[0].mxu0
    %v5291 = vadd.f32 %v5210, %v5290
    %v5292 = vpop.f32.mrb[0].mxu0
    %v5293 = vadd.f32 %v5212, %v5292
    %5294 = vmatprep.mubr.bf16.mxu0 %v4942
    %5295 = vmatmul.mubr.bf16.gmra.mrb[0].mxu0 %v4941
    %v5296 = vpop.f32.mrb[0].mxu0
    %v5297 = vadd.f32 %v5216, %v5296
    %v5298 = vpop.f32.mrb[0].mxu0
    %v5299 = vadd.f32 %v5218, %v5298
    %v5300 = vpop.f32.mrb[0].mxu0
    %v5301 = vadd.f32 %v5220, %v5300
    %v5302 = vpop.f32.mrb[0].mxu0
    %v5303 = vadd.f32 %v5222, %v5302
    %5304 = vmatprep.mubr.bf16.mxu0 %v4950
    %5305 = vmatmul.mubr.bf16.gmra.mrb[0].mxu0 %v4949
    %v5306 = vpop.f32.mrb[0].mxu0
    %v5307 = vadd.f32 %v5226, %v5306
    %v5308 = vpop.f32.mrb[0].mxu0
    %v5309 = vadd.f32 %v5228, %v5308
    %v5310 = vpop.f32.mrb[0].mxu0
    %v5311 = vadd.f32 %v5230, %v5310
    %v5312 = vpop.f32.mrb[0].mxu0
    %v5313 = vadd.f32 %v5232, %v5312
    %5314 = vmatprep.mubr.bf16.mxu0 %v4958
    %5315 = vmatmul.mubr.bf16.gmra.mrb[0].mxu0 %v4957
    %v5316 = vpop.f32.mrb[0].mxu0
    %v5317 = vadd.f32 %v5236, %v5316
    %v5318 = vpop.f32.mrb[0].mxu0
    %v5319 = vadd.f32 %v5238, %v5318
    %v5320 = vpop.f32.mrb[0].mxu0
    %v5321 = vpop.f32.mrb[0].mxu0
    %5322 = vdwg.mxu0
    %5323 = vmatprep.subr.bf16.mxu0 %v2458
    %5324 = vmatpush1.bf16.msra.mxu0 %v2457
    %5325 = vmatprep.subr.bf16.mxu0 %v2466
    %5326 = vmatpush1.bf16.msra.mxu0 %v2465
    %5327 = vmatprep.subr.bf16.mxu0 %v2474
    %5328 = vmatpush1.bf16.msra.mxu0 %v2473
    %5329 = vmatprep.subr.bf16.mxu0 %v2482
    %5330 = vmatpush1.bf16.msra.mxu0 %v2481
    %5331 = vmatprep.subr.bf16.mxu0 %v2490
    %5332 = vmatpush1.bf16.msra.mxu0 %v2489
    %5333 = vmatprep.subr.bf16.mxu0 %v2498
    %5334 = vmatpush1.bf16.msra.mxu0 %v2497
    %5335 = vmatprep.subr.bf16.mxu0 %v2506
    %5336 = vmatpush1.bf16.msra.mxu0 %v2505
    %5337 = vmatprep.subr.bf16.mxu0 %v2514
    %5338 = vmatpush1.bf16.msra.mxu0 %v2513
    %5339 = vmatprep.subr.bf16.mxu0 %v2522
    %5340 = vmatpush1.bf16.msra.mxu0 %v2521
    %5341 = vmatprep.subr.bf16.mxu0 %v2530
    %5342 = vmatpush1.bf16.msra.mxu0 %v2529
    %5343 = vmatprep.subr.bf16.mxu0 %v2538
    %5344 = vmatpush1.bf16.msra.mxu0 %v2537
    %5345 = vmatprep.subr.bf16.mxu0 %v2546
    %5346 = vmatpush1.bf16.msra.mxu0 %v2545
    %5347 = vmatprep.subr.bf16.mxu0 %v2554
    %5348 = vmatpush1.bf16.msra.mxu0 %v2553
    %5349 = vmatprep.subr.bf16.mxu0 %v2562
    %5350 = vmatpush1.bf16.msra.mxu0 %v2561
    %5351 = vmatprep.subr.bf16.mxu0 %v2570
    %5352 = vmatpush1.bf16.msra.mxu0 %v2569
    %5353 = vmatprep.subr.bf16.mxu0 %v2578
    %5354 = vmatpush1.bf16.msra.mxu0 %v2577
    %5355 = vmatprep.mubr.bf16.mxu0 %v4920
    %5356 = vmatmul.mubr.bf16.gmra.mrb[0].mxu0 %v4919
    %v5357 = vpop.f32.mrb[0].mxu0
    %v5358 = vadd.f32 0.0, %v5357
    %v5359 = vpop.f32.mrb[0].mxu0
    %v5360 = vadd.f32 0.0, %v5359
    %v5361 = vpop.f32.mrb[0].mxu0
    %v5362 = vadd.f32 0.0, %v5361
    %v5363 = vpop.f32.mrb[0].mxu0
    %v5364 = vadd.f32 0.0, %v5363
    %5365 = vmatprep.mubr.bf16.mxu0 %v4928
    %5366 = vmatmul.mubr.bf16.gmra.mrb[0].mxu0 %v4927
    %v5367 = vpop.f32.mrb[0].mxu0
    %v5368 = vadd.f32 0.0, %v5367
    %v5369 = vpop.f32.mrb[0].mxu0
    %v5370 = vadd.f32 0.0, %v5369
    %v5371 = vpop.f32.mrb[0].mxu0
    %v5372 = vadd.f32 0.0, %v5371
    %v5373 = vpop.f32.mrb[0].mxu0
    %v5374 = vadd.f32 0.0, %v5373
    %5375 = vmatprep.mubr.bf16.mxu0 %v4936
    %5376 = vmatmul.mubr.bf16.gmra.mrb[0].mxu0 %v4935
    %v5377 = vpop.f32.mrb[0].mxu0
    %v5378 = vadd.f32 0.0, %v5377
    %v5379 = vpop.f32.mrb[0].mxu0
    %v5380 = vadd.f32 0.0, %v5379
    %v5381 = vpop.f32.mrb[0].mxu0
    %v5382 = vadd.f32 0.0, %v5381
    %v5383 = vpop.f32.mrb[0].mxu0
    %v5384 = vadd.f32 0.0, %v5383
    %5385 = vmatprep.mubr.bf16.mxu0 %v4944
    %5386 = vmatmul.mubr.bf16.gmra.mrb[0].mxu0 %v4943
    %v5387 = vpop.f32.mrb[0].mxu0
    %v5388 = vadd.f32 0.0, %v5387
    %v5389 = vpop.f32.mrb[0].mxu0
    %v5390 = vadd.f32 0.0, %v5389
    %v5391 = vpop.f32.mrb[0].mxu0
    %v5392 = vadd.f32 0.0, %v5391
    %v5393 = vpop.f32.mrb[0].mxu0
    %v5394 = vadd.f32 0.0, %v5393
    %5395 = vmatprep.mubr.bf16.mxu0 %v4952
    %5396 = vmatmul.mubr.bf16.gmra.mrb[0].mxu0 %v4951
    %v5397 = vpop.f32.mrb[0].mxu0
    %v5398 = vadd.f32 0.0, %v5397
    %v5399 = vpop.f32.mrb[0].mxu0
    %v5400 = vadd.f32 0.0, %v5399
    %v5401 = vpop.f32.mrb[0].mxu0
    %v5402 = vpop.f32.mrb[0].mxu0
    %5403 = vdwg.mxu0
    %5404 = vmatprep.subr.bf16.mxu0 %v2586
    %5405 = vmatpush1.bf16.msra.mxu0 %v2585
    %5406 = vmatprep.subr.bf16.mxu0 %v2594
    %5407 = vmatpush1.bf16.msra.mxu0 %v2593
    %5408 = vmatprep.subr.bf16.mxu0 %v2602
    %5409 = vmatpush1.bf16.msra.mxu0 %v2601
    %5410 = vmatprep.subr.bf16.mxu0 %v2610
    %5411 = vmatpush1.bf16.msra.mxu0 %v2609
    %5412 = vmatprep.subr.bf16.mxu0 %v2618
    %5413 = vmatpush1.bf16.msra.mxu0 %v2617
    %5414 = vmatprep.subr.bf16.mxu0 %v2626
    %5415 = vmatpush1.bf16.msra.mxu0 %v2625
    %5416 = vmatprep.subr.bf16.mxu0 %v2634
    %5417 = vmatpush1.bf16.msra.mxu0 %v2633
    %5418 = vmatprep.subr.bf16.mxu0 %v2642
    %5419 = vmatpush1.bf16.msra.mxu0 %v2641
    %5420 = vmatprep.subr.bf16.mxu0 %v2650
    %5421 = vmatpush1.bf16.msra.mxu0 %v2649
    %5422 = vmatprep.subr.bf16.mxu0 %v2658
    %5423 = vmatpush1.bf16.msra.mxu0 %v2657
    %5424 = vmatprep.subr.bf16.mxu0 %v2666
    %5425 = vmatpush1.bf16.msra.mxu0 %v2665
    %5426 = vmatprep.subr.bf16.mxu0 %v2674
    %5427 = vmatpush1.bf16.msra.mxu0 %v2673
    %5428 = vmatprep.subr.bf16.mxu0 %v2682
    %5429 = vmatpush1.bf16.msra.mxu0 %v2681
    %5430 = vmatprep.subr.bf16.mxu0 %v2690
    %5431 = vmatpush1.bf16.msra.mxu0 %v2689
    %5432 = vmatprep.subr.bf16.mxu0 %v2698
    %5433 = vmatpush1.bf16.msra.mxu0 %v2697
    %5434 = vmatprep.subr.bf16.mxu0 %v2706
    %5435 = vmatpush1.bf16.msra.mxu0 %v2705
    %5436 = vmatprep.mubr.bf16.mxu0 %v4922
    %5437 = vmatmul.mubr.bf16.gmra.mrb[0].mxu0 %v4921
    %v5438 = vpop.f32.mrb[0].mxu0
    %v5439 = vadd.f32 %v5358, %v5438
    %v5440 = vpop.f32.mrb[0].mxu0
    %v5441 = vadd.f32 %v5360, %v5440
    %v5442 = vpop.f32.mrb[0].mxu0
    %v5443 = vadd.f32 %v5362, %v5442
    %v5444 = vpop.f32.mrb[0].mxu0
    %v5445 = vadd.f32 %v5364, %v5444
    %5446 = vmatprep.mubr.bf16.mxu0 %v4930
    %5447 = vmatmul.mubr.bf16.gmra.mrb[0].mxu0 %v4929
    %v5448 = vpop.f32.mrb[0].mxu0
    %v5449 = vadd.f32 %v5368, %v5448
    %v5450 = vpop.f32.mrb[0].mxu0
    %v5451 = vadd.f32 %v5370, %v5450
    %v5452 = vpop.f32.mrb[0].mxu0
    %v5453 = vadd.f32 %v5372, %v5452
    %v5454 = vpop.f32.mrb[0].mxu0
    %v5455 = vadd.f32 %v5374, %v5454
    %5456 = vmatprep.mubr.bf16.mxu0 %v4938
    %5457 = vmatmul.mubr.bf16.gmra.mrb[0].mxu0 %v4937
    %v5458 = vpop.f32.mrb[0].mxu0
    %v5459 = vadd.f32 %v5378, %v5458
    %v5460 = vpop.f32.mrb[0].mxu0
    %v5461 = vadd.f32 %v5380, %v5460
    %v5462 = vpop.f32.mrb[0].mxu0
    %v5463 = vadd.f32 %v5382, %v5462
    %v5464 = vpop.f32.mrb[0].mxu0
    %v5465 = vadd.f32 %v5384, %v5464
    %5466 = vmatprep.mubr.bf16.mxu0 %v4946
    %5467 = vmatmul.mubr.bf16.gmra.mrb[0].mxu0 %v4945
    %v5468 = vpop.f32.mrb[0].mxu0
    %v5469 = vadd.f32 %v5388, %v5468
    %v5470 = vpop.f32.mrb[0].mxu0
    %v5471 = vadd.f32 %v5390, %v5470
    %v5472 = vpop.f32.mrb[0].mxu0
    %v5473 = vadd.f32 %v5392, %v5472
    %v5474 = vpop.f32.mrb[0].mxu0
    %v5475 = vadd.f32 %v5394, %v5474
    %5476 = vmatprep.mubr.bf16.mxu0 %v4954
    %5477 = vmatmul.mubr.bf16.gmra.mrb[0].mxu0 %v4953
    %v5478 = vpop.f32.mrb[0].mxu0
    %v5479 = vadd.f32 %v5398, %v5478
    %v5480 = vpop.f32.mrb[0].mxu0
    %v5481 = vadd.f32 %v5400, %v5480
    %v5482 = vpop.f32.mrb[0].mxu0
    %v5483 = vpop.f32.mrb[0].mxu0
    %5484 = vdwg.mxu0
    %5485 = vmatprep.subr.bf16.mxu0 %v2714
    %5486 = vmatpush1.bf16.msra.mxu0 %v2713
    %5487 = vmatprep.subr.bf16.mxu0 %v2722
    %5488 = vmatpush1.bf16.msra.mxu0 %v2721
    %5489 = vmatprep.subr.bf16.mxu0 %v2730
    %5490 = vmatpush1.bf16.msra.mxu0 %v2729
    %5491 = vmatprep.subr.bf16.mxu0 %v2738
    %5492 = vmatpush1.bf16.msra.mxu0 %v2737
    %5493 = vmatprep.subr.bf16.mxu0 %v2746
    %5494 = vmatpush1.bf16.msra.mxu0 %v2745
    %5495 = vmatprep.subr.bf16.mxu0 %v2754
    %5496 = vmatpush1.bf16.msra.mxu0 %v2753
    %5497 = vmatprep.subr.bf16.mxu0 %v2762
    %5498 = vmatpush1.bf16.msra.mxu0 %v2761
    %5499 = vmatprep.subr.bf16.mxu0 %v2770
    %5500 = vmatpush1.bf16.msra.mxu0 %v2769
    %5501 = vmatprep.subr.bf16.mxu0 %v2778
    %5502 = vmatpush1.bf16.msra.mxu0 %v2777
    %5503 = vmatprep.subr.bf16.mxu0 %v2786
    %5504 = vmatpush1.bf16.msra.mxu0 %v2785
    %5505 = vmatprep.subr.bf16.mxu0 %v2794
    %5506 = vmatpush1.bf16.msra.mxu0 %v2793
    %5507 = vmatprep.subr.bf16.mxu0 %v2802
    %5508 = vmatpush1.bf16.msra.mxu0 %v2801
    %5509 = vmatprep.subr.bf16.mxu0 %v2810
    %5510 = vmatpush1.bf16.msra.mxu0 %v2809
    %5511 = vmatprep.subr.bf16.mxu0 %v2818
    %5512 = vmatpush1.bf16.msra.mxu0 %v2817
    %5513 = vmatprep.subr.bf16.mxu0 %v2826
    %5514 = vmatpush1.bf16.msra.mxu0 %v2825
    %5515 = vmatprep.subr.bf16.mxu0 %v2834
    %5516 = vmatpush1.bf16.msra.mxu0 %v2833
    %5517 = vmatprep.mubr.bf16.mxu0 %v4924
    %5518 = vmatmul.mubr.bf16.gmra.mrb[0].mxu0 %v4923
    %v5519 = vpop.f32.mrb[0].mxu0
    %v5520 = vadd.f32 %v5439, %v5519
    %v5521 = vpop.f32.mrb[0].mxu0
    %v5522 = vadd.f32 %v5441, %v5521
    %v5523 = vpop.f32.mrb[0].mxu0
    %v5524 = vadd.f32 %v5443, %v5523
    %v5525 = vpop.f32.mrb[0].mxu0
    %v5526 = vadd.f32 %v5445, %v5525
    %5527 = vmatprep.mubr.bf16.mxu0 %v4932
    %5528 = vmatmul.mubr.bf16.gmra.mrb[0].mxu0 %v4931
    %v5529 = vpop.f32.mrb[0].mxu0
    %v5530 = vadd.f32 %v5449, %v5529
    %v5531 = vpop.f32.mrb[0].mxu0
    %v5532 = vadd.f32 %v5451, %v5531
    %v5533 = vpop.f32.mrb[0].mxu0
    %v5534 = vadd.f32 %v5453, %v5533
    %v5535 = vpop.f32.mrb[0].mxu0
    %v5536 = vadd.f32 %v5455, %v5535
    %5537 = vmatprep.mubr.bf16.mxu0 %v4940
    %5538 = vmatmul.mubr.bf16.gmra.mrb[0].mxu0 %v4939
    %v5539 = vpop.f32.mrb[0].mxu0
    %v5540 = vadd.f32 %v5459, %v5539
    %v5541 = vpop.f32.mrb[0].mxu0
    %v5542 = vadd.f32 %v5461, %v5541
    %v5543 = vpop.f32.mrb[0].mxu0
    %v5544 = vadd.f32 %v5463, %v5543
    %v5545 = vpop.f32.mrb[0].mxu0
    %v5546 = vadd.f32 %v5465, %v5545
    %5547 = vmatprep.mubr.bf16.mxu0 %v4948
    %5548 = vmatmul.mubr.bf16.gmra.mrb[0].mxu0 %v4947
    %v5549 = vpop.f32.mrb[0].mxu0
    %v5550 = vadd.f32 %v5469, %v5549
    %v5551 = vpop.f32.mrb[0].mxu0
    %v5552 = vadd.f32 %v5471, %v5551
    %v5553 = vpop.f32.mrb[0].mxu0
    %v5554 = vadd.f32 %v5473, %v5553
    %v5555 = vpop.f32.mrb[0].mxu0
    %v5556 = vadd.f32 %v5475, %v5555
    %5557 = vmatprep.mubr.bf16.mxu0 %v4956
    %5558 = vmatmul.mubr.bf16.gmra.mrb[0].mxu0 %v4955
    %v5559 = vpop.f32.mrb[0].mxu0
    %v5560 = vadd.f32 %v5479, %v5559
    %v5561 = vpop.f32.mrb[0].mxu0
    %v5562 = vadd.f32 %v5481, %v5561
    %v5563 = vpop.f32.mrb[0].mxu0
    %v5564 = vpop.f32.mrb[0].mxu0
    %5565 = vdwg.mxu0
    %5566 = vmatprep.subr.bf16.mxu0 %v2842
    %5567 = vmatpush1.bf16.msra.mxu0 %v2841
    %5568 = vmatprep.subr.bf16.mxu0 %v2850
    %5569 = vmatpush1.bf16.msra.mxu0 %v2849
    %5570 = vmatprep.subr.bf16.mxu0 %v2858
    %5571 = vmatpush1.bf16.msra.mxu0 %v2857
    %5572 = vmatprep.subr.bf16.mxu0 %v2866
    %5573 = vmatpush1.bf16.msra.mxu0 %v2865
    %5574 = vmatprep.subr.bf16.mxu0 %v2874
    %5575 = vmatpush1.bf16.msra.mxu0 %v2873
    %5576 = vmatprep.subr.bf16.mxu0 %v2882
    %5577 = vmatpush1.bf16.msra.mxu0 %v2881
    %5578 = vmatprep.subr.bf16.mxu0 %v2890
    %5579 = vmatpush1.bf16.msra.mxu0 %v2889
    %5580 = vmatprep.subr.bf16.mxu0 %v2898
    %5581 = vmatpush1.bf16.msra.mxu0 %v2897
    %5582 = vmatprep.subr.bf16.mxu0 %v2906
    %5583 = vmatpush1.bf16.msra.mxu0 %v2905
    %5584 = vmatprep.subr.bf16.mxu0 %v2914
    %5585 = vmatpush1.bf16.msra.mxu0 %v2913
    %5586 = vmatprep.subr.bf16.mxu0 %v2922
    %5587 = vmatpush1.bf16.msra.mxu0 %v2921
    %5588 = vmatprep.subr.bf16.mxu0 %v2930
    %5589 = vmatpush1.bf16.msra.mxu0 %v2929
    %5590 = vmatprep.subr.bf16.mxu0 %v2938
    %5591 = vmatpush1.bf16.msra.mxu0 %v2937
    %5592 = vmatprep.subr.bf16.mxu0 %v2946
    %5593 = vmatpush1.bf16.msra.mxu0 %v2945
    %5594 = vmatprep.subr.bf16.mxu0 %v2954
    %5595 = vmatpush1.bf16.msra.mxu0 %v2953
    %5596 = vmatprep.subr.bf16.mxu0 %v2962
    %5597 = vmatpush1.bf16.msra.mxu0 %v2961
    %5598 = vmatprep.mubr.bf16.mxu0 %v4926
    %5599 = vmatmul.mubr.bf16.gmra.mrb[0].mxu0 %v4925
    %v5600 = vpop.f32.mrb[0].mxu0
    %v5601 = vadd.f32 %v5520, %v5600
    %v5602 = vpop.f32.mrb[0].mxu0
    %v5603 = vadd.f32 %v5522, %v5602
    %v5604 = vpop.f32.mrb[0].mxu0
    %v5605 = vadd.f32 %v5524, %v5604
    %v5606 = vpop.f32.mrb[0].mxu0
    %v5607 = vadd.f32 %v5526, %v5606
    %5608 = vmatprep.mubr.bf16.mxu0 %v4934
    %5609 = vmatmul.mubr.bf16.gmra.mrb[0].mxu0 %v4933
    %v5610 = vpop.f32.mrb[0].mxu0
    %v5611 = vadd.f32 %v5530, %v5610
    %v5612 = vpop.f32.mrb[0].mxu0
    %v5613 = vadd.f32 %v5532, %v5612
    %v5614 = vpop.f32.mrb[0].mxu0
    %v5615 = vadd.f32 %v5534, %v5614
    %v5616 = vpop.f32.mrb[0].mxu0
    %v5617 = vadd.f32 %v5536, %v5616
    %5618 = vmatprep.mubr.bf16.mxu0 %v4942
    %5619 = vmatmul.mubr.bf16.gmra.mrb[0].mxu0 %v4941
    %v5620 = vpop.f32.mrb[0].mxu0
    %v5621 = vadd.f32 %v5540, %v5620
    %v5622 = vpop.f32.mrb[0].mxu0
    %v5623 = vadd.f32 %v5542, %v5622
    %v5624 = vpop.f32.mrb[0].mxu0
    %v5625 = vadd.f32 %v5544, %v5624
    %v5626 = vpop.f32.mrb[0].mxu0
    %v5627 = vadd.f32 %v5546, %v5626
    %5628 = vmatprep.mubr.bf16.mxu0 %v4950
    %5629 = vmatmul.mubr.bf16.gmra.mrb[0].mxu0 %v4949
    %v5630 = vpop.f32.mrb[0].mxu0
    %v5631 = vadd.f32 %v5550, %v5630
    %v5632 = vpop.f32.mrb[0].mxu0
    %v5633 = vadd.f32 %v5552, %v5632
    %v5634 = vpop.f32.mrb[0].mxu0
    %v5635 = vadd.f32 %v5554, %v5634
    %v5636 = vpop.f32.mrb[0].mxu0
    %v5637 = vadd.f32 %v5556, %v5636
    %5638 = vmatprep.mubr.bf16.mxu0 %v4958
    %5639 = vmatmul.mubr.bf16.gmra.mrb[0].mxu0 %v4957
    %v5640 = vpop.f32.mrb[0].mxu0
    %v5641 = vadd.f32 %v5560, %v5640
    %v5642 = vpop.f32.mrb[0].mxu0
    %v5643 = vadd.f32 %v5562, %v5642
    %v5644 = vpop.f32.mrb[0].mxu0
    %v5645 = vpop.f32.mrb[0].mxu0
    %5646 = vdwg.mxu0
    %5647 = vmatprep.subr.bf16.mxu0 %v2460
    %5648 = vmatpush1.bf16.msra.mxu0 %v2459
    %5649 = vmatprep.subr.bf16.mxu0 %v2468
    %5650 = vmatpush1.bf16.msra.mxu0 %v2467
    %5651 = vmatprep.subr.bf16.mxu0 %v2476
    %5652 = vmatpush1.bf16.msra.mxu0 %v2475
    %5653 = vmatprep.subr.bf16.mxu0 %v2484
    %5654 = vmatpush1.bf16.msra.mxu0 %v2483
    %5655 = vmatprep.subr.bf16.mxu0 %v2492
    %5656 = vmatpush1.bf16.msra.mxu0 %v2491
    %5657 = vmatprep.subr.bf16.mxu0 %v2500
    %5658 = vmatpush1.bf16.msra.mxu0 %v2499
    %5659 = vmatprep.subr.bf16.mxu0 %v2508
    %5660 = vmatpush1.bf16.msra.mxu0 %v2507
    %5661 = vmatprep.subr.bf16.mxu0 %v2516
    %5662 = vmatpush1.bf16.msra.mxu0 %v2515
    %5663 = vmatprep.subr.bf16.mxu0 %v2524
    %5664 = vmatpush1.bf16.msra.mxu0 %v2523
    %5665 = vmatprep.subr.bf16.mxu0 %v2532
    %5666 = vmatpush1.bf16.msra.mxu0 %v2531
    %5667 = vmatprep.subr.bf16.mxu0 %v2540
    %5668 = vmatpush1.bf16.msra.mxu0 %v2539
    %5669 = vmatprep.subr.bf16.mxu0 %v2548
    %5670 = vmatpush1.bf16.msra.mxu0 %v2547
    %5671 = vmatprep.subr.bf16.mxu0 %v2556
    %5672 = vmatpush1.bf16.msra.mxu0 %v2555
    %5673 = vmatprep.subr.bf16.mxu0 %v2564
    %5674 = vmatpush1.bf16.msra.mxu0 %v2563
    %5675 = vmatprep.subr.bf16.mxu0 %v2572
    %5676 = vmatpush1.bf16.msra.mxu0 %v2571
    %5677 = vmatprep.subr.bf16.mxu0 %v2580
    %5678 = vmatpush1.bf16.msra.mxu0 %v2579
    %5679 = vmatprep.mubr.bf16.mxu0 %v4920
    %5680 = vmatmul.mubr.bf16.gmra.mrb[0].mxu0 %v4919
    %v5681 = vpop.f32.mrb[0].mxu0
    %v5682 = vadd.f32 0.0, %v5681
    %v5683 = vpop.f32.mrb[0].mxu0
    %v5684 = vadd.f32 0.0, %v5683
    %v5685 = vpop.f32.mrb[0].mxu0
    %v5686 = vadd.f32 0.0, %v5685
    %v5687 = vpop.f32.mrb[0].mxu0
    %v5688 = vadd.f32 0.0, %v5687
    %5689 = vmatprep.mubr.bf16.mxu0 %v4928
    %5690 = vmatmul.mubr.bf16.gmra.mrb[0].mxu0 %v4927
    %v5691 = vpop.f32.mrb[0].mxu0
    %v5692 = vadd.f32 0.0, %v5691
    %v5693 = vpop.f32.mrb[0].mxu0
    %v5694 = vadd.f32 0.0, %v5693
    %v5695 = vpop.f32.mrb[0].mxu0
    %v5696 = vadd.f32 0.0, %v5695
    %v5697 = vpop.f32.mrb[0].mxu0
    %v5698 = vadd.f32 0.0, %v5697
    %5699 = vmatprep.mubr.bf16.mxu0 %v4936
    %5700 = vmatmul.mubr.bf16.gmra.mrb[0].mxu0 %v4935
    %v5701 = vpop.f32.mrb[0].mxu0
    %v5702 = vadd.f32 0.0, %v5701
    %v5703 = vpop.f32.mrb[0].mxu0
    %v5704 = vadd.f32 0.0, %v5703
    %v5705 = vpop.f32.mrb[0].mxu0
    %v5706 = vadd.f32 0.0, %v5705
    %v5707 = vpop.f32.mrb[0].mxu0
    %v5708 = vadd.f32 0.0, %v5707
    %5709 = vmatprep.mubr.bf16.mxu0 %v4944
    %5710 = vmatmul.mubr.bf16.gmra.mrb[0].mxu0 %v4943
    %v5711 = vpop.f32.mrb[0].mxu0
    %v5712 = vadd.f32 0.0, %v5711
    %v5713 = vpop.f32.mrb[0].mxu0
    %v5714 = vadd.f32 0.0, %v5713
    %v5715 = vpop.f32.mrb[0].mxu0
    %v5716 = vadd.f32 0.0, %v5715
    %v5717 = vpop.f32.mrb[0].mxu0
    %v5718 = vadd.f32 0.0, %v5717
    %5719 = vmatprep.mubr.bf16.mxu0 %v4952
    %5720 = vmatmul.mubr.bf16.gmra.mrb[0].mxu0 %v4951
    %v5721 = vpop.f32.mrb[0].mxu0
    %v5722 = vadd.f32 0.0, %v5721
    %v5723 = vpop.f32.mrb[0].mxu0
    %v5724 = vadd.f32 0.0, %v5723
    %v5725 = vpop.f32.mrb[0].mxu0
    %v5726 = vpop.f32.mrb[0].mxu0
    %5727 = vdwg.mxu0
    %5728 = vmatprep.subr.bf16.mxu0 %v2588
    %5729 = vmatpush1.bf16.msra.mxu0 %v2587
    %5730 = vmatprep.subr.bf16.mxu0 %v2596
    %5731 = vmatpush1.bf16.msra.mxu0 %v2595
    %5732 = vmatprep.subr.bf16.mxu0 %v2604
    %5733 = vmatpush1.bf16.msra.mxu0 %v2603
    %5734 = vmatprep.subr.bf16.mxu0 %v2612
    %5735 = vmatpush1.bf16.msra.mxu0 %v2611
    %5736 = vmatprep.subr.bf16.mxu0 %v2620
    %5737 = vmatpush1.bf16.msra.mxu0 %v2619
    %5738 = vmatprep.subr.bf16.mxu0 %v2628
    %5739 = vmatpush1.bf16.msra.mxu0 %v2627
    %5740 = vmatprep.subr.bf16.mxu0 %v2636
    %5741 = vmatpush1.bf16.msra.mxu0 %v2635
    %5742 = vmatprep.subr.bf16.mxu0 %v2644
    %5743 = vmatpush1.bf16.msra.mxu0 %v2643
    %5744 = vmatprep.subr.bf16.mxu0 %v2652
    %5745 = vmatpush1.bf16.msra.mxu0 %v2651
    %5746 = vmatprep.subr.bf16.mxu0 %v2660
    %5747 = vmatpush1.bf16.msra.mxu0 %v2659
    %5748 = vmatprep.subr.bf16.mxu0 %v2668
    %5749 = vmatpush1.bf16.msra.mxu0 %v2667
    %5750 = vmatprep.subr.bf16.mxu0 %v2676
    %5751 = vmatpush1.bf16.msra.mxu0 %v2675
    %5752 = vmatprep.subr.bf16.mxu0 %v2684
    %5753 = vmatpush1.bf16.msra.mxu0 %v2683
    %5754 = vmatprep.subr.bf16.mxu0 %v2692
    %5755 = vmatpush1.bf16.msra.mxu0 %v2691
    %5756 = vmatprep.subr.bf16.mxu0 %v2700
    %5757 = vmatpush1.bf16.msra.mxu0 %v2699
    %5758 = vmatprep.subr.bf16.mxu0 %v2708
    %5759 = vmatpush1.bf16.msra.mxu0 %v2707
    %5760 = vmatprep.mubr.bf16.mxu0 %v4922
    %5761 = vmatmul.mubr.bf16.gmra.mrb[0].mxu0 %v4921
    %v5762 = vpop.f32.mrb[0].mxu0
    %v5763 = vadd.f32 %v5682, %v5762
    %v5764 = vpop.f32.mrb[0].mxu0
    %v5765 = vadd.f32 %v5684, %v5764
    %v5766 = vpop.f32.mrb[0].mxu0
    %v5767 = vadd.f32 %v5686, %v5766
    %v5768 = vpop.f32.mrb[0].mxu0
    %v5769 = vadd.f32 %v5688, %v5768
    %5770 = vmatprep.mubr.bf16.mxu0 %v4930
    %5771 = vmatmul.mubr.bf16.gmra.mrb[0].mxu0 %v4929
    %v5772 = vpop.f32.mrb[0].mxu0
    %v5773 = vadd.f32 %v5692, %v5772
    %v5774 = vpop.f32.mrb[0].mxu0
    %v5775 = vadd.f32 %v5694, %v5774
    %v5776 = vpop.f32.mrb[0].mxu0
    %v5777 = vadd.f32 %v5696, %v5776
    %v5778 = vpop.f32.mrb[0].mxu0
    %v5779 = vadd.f32 %v5698, %v5778
    %5780 = vmatprep.mubr.bf16.mxu0 %v4938
    %5781 = vmatmul.mubr.bf16.gmra.mrb[0].mxu0 %v4937
    %v5782 = vpop.f32.mrb[0].mxu0
    %v5783 = vadd.f32 %v5702, %v5782
    %v5784 = vpop.f32.mrb[0].mxu0
    %v5785 = vadd.f32 %v5704, %v5784
    %v5786 = vpop.f32.mrb[0].mxu0
    %v5787 = vadd.f32 %v5706, %v5786
    %v5788 = vpop.f32.mrb[0].mxu0
    %v5789 = vadd.f32 %v5708, %v5788
    %5790 = vmatprep.mubr.bf16.mxu0 %v4946
    %5791 = vmatmul.mubr.bf16.gmra.mrb[0].mxu0 %v4945
    %v5792 = vpop.f32.mrb[0].mxu0
    %v5793 = vadd.f32 %v5712, %v5792
    %v5794 = vpop.f32.mrb[0].mxu0
    %v5795 = vadd.f32 %v5714, %v5794
    %v5796 = vpop.f32.mrb[0].mxu0
    %v5797 = vadd.f32 %v5716, %v5796
    %v5798 = vpop.f32.mrb[0].mxu0
    %v5799 = vadd.f32 %v5718, %v5798
    %5800 = vmatprep.mubr.bf16.mxu0 %v4954
    %5801 = vmatmul.mubr.bf16.gmra.mrb[0].mxu0 %v4953
    %v5802 = vpop.f32.mrb[0].mxu0
    %v5803 = vadd.f32 %v5722, %v5802
    %v5804 = vpop.f32.mrb[0].mxu0
    %v5805 = vadd.f32 %v5724, %v5804
    %v5806 = vpop.f32.mrb[0].mxu0
    %v5807 = vpop.f32.mrb[0].mxu0
    %5808 = vdwg.mxu0
    %5809 = vmatprep.subr.bf16.mxu0 %v2716
    %5810 = vmatpush1.bf16.msra.mxu0 %v2715
    %5811 = vmatprep.subr.bf16.mxu0 %v2724
    %5812 = vmatpush1.bf16.msra.mxu0 %v2723
    %5813 = vmatprep.subr.bf16.mxu0 %v2732
    %5814 = vmatpush1.bf16.msra.mxu0 %v2731
    %5815 = vmatprep.subr.bf16.mxu0 %v2740
    %5816 = vmatpush1.bf16.msra.mxu0 %v2739
    %5817 = vmatprep.subr.bf16.mxu0 %v2748
    %5818 = vmatpush1.bf16.msra.mxu0 %v2747
    %5819 = vmatprep.subr.bf16.mxu0 %v2756
    %5820 = vmatpush1.bf16.msra.mxu0 %v2755
    %5821 = vmatprep.subr.bf16.mxu0 %v2764
    %5822 = vmatpush1.bf16.msra.mxu0 %v2763
    %5823 = vmatprep.subr.bf16.mxu0 %v2772
    %5824 = vmatpush1.bf16.msra.mxu0 %v2771
    %5825 = vmatprep.subr.bf16.mxu0 %v2780
    %5826 = vmatpush1.bf16.msra.mxu0 %v2779
    %5827 = vmatprep.subr.bf16.mxu0 %v2788
    %5828 = vmatpush1.bf16.msra.mxu0 %v2787
    %5829 = vmatprep.subr.bf16.mxu0 %v2796
    %5830 = vmatpush1.bf16.msra.mxu0 %v2795
    %5831 = vmatprep.subr.bf16.mxu0 %v2804
    %5832 = vmatpush1.bf16.msra.mxu0 %v2803
    %5833 = vmatprep.subr.bf16.mxu0 %v2812
    %5834 = vmatpush1.bf16.msra.mxu0 %v2811
    %5835 = vmatprep.subr.bf16.mxu0 %v2820
    %5836 = vmatpush1.bf16.msra.mxu0 %v2819
    %5837 = vmatprep.subr.bf16.mxu0 %v2828
    %5838 = vmatpush1.bf16.msra.mxu0 %v2827
    %5839 = vmatprep.subr.bf16.mxu0 %v2836
    %5840 = vmatpush1.bf16.msra.mxu0 %v2835
    %5841 = vmatprep.mubr.bf16.mxu0 %v4924
    %5842 = vmatmul.mubr.bf16.gmra.mrb[0].mxu0 %v4923
    %v5843 = vpop.f32.mrb[0].mxu0
    %v5844 = vadd.f32 %v5763, %v5843
    %v5845 = vpop.f32.mrb[0].mxu0
    %v5846 = vadd.f32 %v5765, %v5845
    %v5847 = vpop.f32.mrb[0].mxu0
    %v5848 = vadd.f32 %v5767, %v5847
    %v5849 = vpop.f32.mrb[0].mxu0
    %v5850 = vadd.f32 %v5769, %v5849
    %5851 = vmatprep.mubr.bf16.mxu0 %v4932
    %5852 = vmatmul.mubr.bf16.gmra.mrb[0].mxu0 %v4931
    %v5853 = vpop.f32.mrb[0].mxu0
    %v5854 = vadd.f32 %v5773, %v5853
    %v5855 = vpop.f32.mrb[0].mxu0
    %v5856 = vadd.f32 %v5775, %v5855
    %v5857 = vpop.f32.mrb[0].mxu0
    %v5858 = vadd.f32 %v5777, %v5857
    %v5859 = vpop.f32.mrb[0].mxu0
    %v5860 = vadd.f32 %v5779, %v5859
    %5861 = vmatprep.mubr.bf16.mxu0 %v4940
    %5862 = vmatmul.mubr.bf16.gmra.mrb[0].mxu0 %v4939
    %v5863 = vpop.f32.mrb[0].mxu0
    %v5864 = vadd.f32 %v5783, %v5863
    %v5865 = vpop.f32.mrb[0].mxu0
    %v5866 = vadd.f32 %v5785, %v5865
    %v5867 = vpop.f32.mrb[0].mxu0
    %v5868 = vadd.f32 %v5787, %v5867
    %v5869 = vpop.f32.mrb[0].mxu0
    %v5870 = vadd.f32 %v5789, %v5869
    %5871 = vmatprep.mubr.bf16.mxu0 %v4948
    %5872 = vmatmul.mubr.bf16.gmra.mrb[0].mxu0 %v4947
    %v5873 = vpop.f32.mrb[0].mxu0
    %v5874 = vadd.f32 %v5793, %v5873
    %v5875 = vpop.f32.mrb[0].mxu0
    %v5876 = vadd.f32 %v5795, %v5875
    %v5877 = vpop.f32.mrb[0].mxu0
    %v5878 = vadd.f32 %v5797, %v5877
    %v5879 = vpop.f32.mrb[0].mxu0
    %v5880 = vadd.f32 %v5799, %v5879
    %5881 = vmatprep.mubr.bf16.mxu0 %v4956
    %5882 = vmatmul.mubr.bf16.gmra.mrb[0].mxu0 %v4955
    %v5883 = vpop.f32.mrb[0].mxu0
    %v5884 = vadd.f32 %v5803, %v5883
    %v5885 = vpop.f32.mrb[0].mxu0
    %v5886 = vadd.f32 %v5805, %v5885
    %v5887 = vpop.f32.mrb[0].mxu0
    %v5888 = vpop.f32.mrb[0].mxu0
    %5889 = vdwg.mxu0
    %5890 = vmatprep.subr.bf16.mxu0 %v2844
    %5891 = vmatpush1.bf16.msra.mxu0 %v2843
    %5892 = vmatprep.subr.bf16.mxu0 %v2852
    %5893 = vmatpush1.bf16.msra.mxu0 %v2851
    %5894 = vmatprep.subr.bf16.mxu0 %v2860
    %5895 = vmatpush1.bf16.msra.mxu0 %v2859
    %5896 = vmatprep.subr.bf16.mxu0 %v2868
    %5897 = vmatpush1.bf16.msra.mxu0 %v2867
    %5898 = vmatprep.subr.bf16.mxu0 %v2876
    %5899 = vmatpush1.bf16.msra.mxu0 %v2875
    %5900 = vmatprep.subr.bf16.mxu0 %v2884
    %5901 = vmatpush1.bf16.msra.mxu0 %v2883
    %5902 = vmatprep.subr.bf16.mxu0 %v2892
    %5903 = vmatpush1.bf16.msra.mxu0 %v2891
    %5904 = vmatprep.subr.bf16.mxu0 %v2900
    %5905 = vmatpush1.bf16.msra.mxu0 %v2899
    %5906 = vmatprep.subr.bf16.mxu0 %v2908
    %5907 = vmatpush1.bf16.msra.mxu0 %v2907
    %5908 = vmatprep.subr.bf16.mxu0 %v2916
    %5909 = vmatpush1.bf16.msra.mxu0 %v2915
    %5910 = vmatprep.subr.bf16.mxu0 %v2924
    %5911 = vmatpush1.bf16.msra.mxu0 %v2923
    %5912 = vmatprep.subr.bf16.mxu0 %v2932
    %5913 = vmatpush1.bf16.msra.mxu0 %v2931
    %5914 = vmatprep.subr.bf16.mxu0 %v2940
    %5915 = vmatpush1.bf16.msra.mxu0 %v2939
    %5916 = vmatprep.subr.bf16.mxu0 %v2948
    %5917 = vmatpush1.bf16.msra.mxu0 %v2947
    %5918 = vmatprep.subr.bf16.mxu0 %v2956
    %5919 = vmatpush1.bf16.msra.mxu0 %v2955
    %5920 = vmatprep.subr.bf16.mxu0 %v2964
    %5921 = vmatpush1.bf16.msra.mxu0 %v2963
    %5922 = vmatprep.mubr.bf16.mxu0 %v4926
    %5923 = vmatmul.mubr.bf16.gmra.mrb[0].mxu0 %v4925
    %v5924 = vpop.f32.mrb[0].mxu0
    %v5925 = vadd.f32 %v5844, %v5924
    %v5926 = vpop.f32.mrb[0].mxu0
    %v5927 = vadd.f32 %v5846, %v5926
    %v5928 = vpop.f32.mrb[0].mxu0
    %v5929 = vadd.f32 %v5848, %v5928
    %v5930 = vpop.f32.mrb[0].mxu0
    %v5931 = vadd.f32 %v5850, %v5930
    %5932 = vmatprep.mubr.bf16.mxu0 %v4934
    %5933 = vmatmul.mubr.bf16.gmra.mrb[0].mxu0 %v4933
    %v5934 = vpop.f32.mrb[0].mxu0
    %v5935 = vadd.f32 %v5854, %v5934
    %v5936 = vpop.f32.mrb[0].mxu0
    %v5937 = vadd.f32 %v5856, %v5936
    %v5938 = vpop.f32.mrb[0].mxu0
    %v5939 = vadd.f32 %v5858, %v5938
    %v5940 = vpop.f32.mrb[0].mxu0
    %v5941 = vadd.f32 %v5860, %v5940
    %5942 = vmatprep.mubr.bf16.mxu0 %v4942
    %5943 = vmatmul.mubr.bf16.gmra.mrb[0].mxu0 %v4941
    %v5944 = vpop.f32.mrb[0].mxu0
    %v5945 = vadd.f32 %v5864, %v5944
    %v5946 = vpop.f32.mrb[0].mxu0
    %v5947 = vadd.f32 %v5866, %v5946
    %v5948 = vpop.f32.mrb[0].mxu0
    %v5949 = vadd.f32 %v5868, %v5948
    %v5950 = vpop.f32.mrb[0].mxu0
    %v5951 = vadd.f32 %v5870, %v5950
    %5952 = vmatprep.mubr.bf16.mxu0 %v4950
    %5953 = vmatmul.mubr.bf16.gmra.mrb[0].mxu0 %v4949
    %v5954 = vpop.f32.mrb[0].mxu0
    %v5955 = vadd.f32 %v5874, %v5954
    %v5956 = vpop.f32.mrb[0].mxu0
    %v5957 = vadd.f32 %v5876, %v5956
    %v5958 = vpop.f32.mrb[0].mxu0
    %v5959 = vadd.f32 %v5878, %v5958
    %v5960 = vpop.f32.mrb[0].mxu0
    %v5961 = vadd.f32 %v5880, %v5960
    %5962 = vmatprep.mubr.bf16.mxu0 %v4958
    %5963 = vmatmul.mubr.bf16.gmra.mrb[0].mxu0 %v4957
    %v5964 = vpop.f32.mrb[0].mxu0
    %v5965 = vadd.f32 %v5884, %v5964
    %v5966 = vpop.f32.mrb[0].mxu0
    %v5967 = vadd.f32 %v5886, %v5966
    %v5968 = vpop.f32.mrb[0].mxu0
    %v5969 = vpop.f32.mrb[0].mxu0
    %5970 = vdwg.mxu0
    %5971 = vmatprep.subr.bf16.mxu0 %v2462
    %5972 = vmatpush1.bf16.msra.mxu0 %v2461
    %5973 = vmatprep.subr.bf16.mxu0 %v2470
    %5974 = vmatpush1.bf16.msra.mxu0 %v2469
    %5975 = vmatprep.subr.bf16.mxu0 %v2478
    %5976 = vmatpush1.bf16.msra.mxu0 %v2477
    %5977 = vmatprep.subr.bf16.mxu0 %v2486
    %5978 = vmatpush1.bf16.msra.mxu0 %v2485
    %5979 = vmatprep.subr.bf16.mxu0 %v2494
    %5980 = vmatpush1.bf16.msra.mxu0 %v2493
    %5981 = vmatprep.subr.bf16.mxu0 %v2502
    %5982 = vmatpush1.bf16.msra.mxu0 %v2501
    %5983 = vmatprep.subr.bf16.mxu0 %v2510
    %5984 = vmatpush1.bf16.msra.mxu0 %v2509
    %5985 = vmatprep.subr.bf16.mxu0 %v2518
    %5986 = vmatpush1.bf16.msra.mxu0 %v2517
    %5987 = vmatprep.subr.bf16.mxu0 %v2526
    %5988 = vmatpush1.bf16.msra.mxu0 %v2525
    %5989 = vmatprep.subr.bf16.mxu0 %v2534
    %5990 = vmatpush1.bf16.msra.mxu0 %v2533
    %5991 = vmatprep.subr.bf16.mxu0 %v2542
    %5992 = vmatpush1.bf16.msra.mxu0 %v2541
    %5993 = vmatprep.subr.bf16.mxu0 %v2550
    %5994 = vmatpush1.bf16.msra.mxu0 %v2549
    %5995 = vmatprep.subr.bf16.mxu0 %v2558
    %5996 = vmatpush1.bf16.msra.mxu0 %v2557
    %5997 = vmatprep.subr.bf16.mxu0 %v2566
    %5998 = vmatpush1.bf16.msra.mxu0 %v2565
    %5999 = vmatprep.subr.bf16.mxu0 %v2574
    %6000 = vmatpush1.bf16.msra.mxu0 %v2573
    %6001 = vmatprep.subr.bf16.mxu0 %v2582
    %6002 = vmatpush1.bf16.msra.mxu0 %v2581
    %6003 = vmatprep.mubr.bf16.mxu0 %v4920
    %6004 = vmatmul.mubr.bf16.gmra.mrb[0].mxu0 %v4919
    %v6005 = vpop.f32.mrb[0].mxu0
    %v6006 = vadd.f32 0.0, %v6005
    %v6007 = vpop.f32.mrb[0].mxu0
    %v6008 = vadd.f32 0.0, %v6007
    %v6009 = vpop.f32.mrb[0].mxu0
    %v6010 = vadd.f32 0.0, %v6009
    %v6011 = vpop.f32.mrb[0].mxu0
    %v6012 = vadd.f32 0.0, %v6011
    %6013 = vmatprep.mubr.bf16.mxu0 %v4928
    %6014 = vmatmul.mubr.bf16.gmra.mrb[0].mxu0 %v4927
    %v6015 = vpop.f32.mrb[0].mxu0
    %v6016 = vadd.f32 0.0, %v6015
    %v6017 = vpop.f32.mrb[0].mxu0
    %v6018 = vadd.f32 0.0, %v6017
    %v6019 = vpop.f32.mrb[0].mxu0
    %v6020 = vadd.f32 0.0, %v6019
    %v6021 = vpop.f32.mrb[0].mxu0
    %v6022 = vadd.f32 0.0, %v6021
    %6023 = vmatprep.mubr.bf16.mxu0 %v4936
    %6024 = vmatmul.mubr.bf16.gmra.mrb[0].mxu0 %v4935
    %v6025 = vpop.f32.mrb[0].mxu0
    %v6026 = vadd.f32 0.0, %v6025
    %v6027 = vpop.f32.mrb[0].mxu0
    %v6028 = vadd.f32 0.0, %v6027
    %v6029 = vpop.f32.mrb[0].mxu0
    %v6030 = vadd.f32 0.0, %v6029
    %v6031 = vpop.f32.mrb[0].mxu0
    %v6032 = vadd.f32 0.0, %v6031
    %6033 = vmatprep.mubr.bf16.mxu0 %v4944
    %6034 = vmatmul.mubr.bf16.gmra.mrb[0].mxu0 %v4943
    %v6035 = vpop.f32.mrb[0].mxu0
    %v6036 = vadd.f32 0.0, %v6035
    %v6037 = vpop.f32.mrb[0].mxu0
    %v6038 = vadd.f32 0.0, %v6037
    %v6039 = vpop.f32.mrb[0].mxu0
    %v6040 = vadd.f32 0.0, %v6039
    %v6041 = vpop.f32.mrb[0].mxu0
    %v6042 = vadd.f32 0.0, %v6041
    %6043 = vmatprep.mubr.bf16.mxu0 %v4952
    %6044 = vmatmul.mubr.bf16.gmra.mrb[0].mxu0 %v4951
    %v6045 = vpop.f32.mrb[0].mxu0
    %v6046 = vadd.f32 0.0, %v6045
    %v6047 = vpop.f32.mrb[0].mxu0
    %v6048 = vadd.f32 0.0, %v6047
    %v6049 = vpop.f32.mrb[0].mxu0
    %v6050 = vpop.f32.mrb[0].mxu0
    %6051 = vdwg.mxu0
    %6052 = vmatprep.subr.bf16.mxu0 %v2590
    %6053 = vmatpush1.bf16.msra.mxu0 %v2589
    %6054 = vmatprep.subr.bf16.mxu0 %v2598
    %6055 = vmatpush1.bf16.msra.mxu0 %v2597
    %6056 = vmatprep.subr.bf16.mxu0 %v2606
    %6057 = vmatpush1.bf16.msra.mxu0 %v2605
    %6058 = vmatprep.subr.bf16.mxu0 %v2614
    %6059 = vmatpush1.bf16.msra.mxu0 %v2613
    %6060 = vmatprep.subr.bf16.mxu0 %v2622
    %6061 = vmatpush1.bf16.msra.mxu0 %v2621
    %6062 = vmatprep.subr.bf16.mxu0 %v2630
    %6063 = vmatpush1.bf16.msra.mxu0 %v2629
    %6064 = vmatprep.subr.bf16.mxu0 %v2638
    %6065 = vmatpush1.bf16.msra.mxu0 %v2637
    %6066 = vmatprep.subr.bf16.mxu0 %v2646
    %6067 = vmatpush1.bf16.msra.mxu0 %v2645
    %6068 = vmatprep.subr.bf16.mxu0 %v2654
    %6069 = vmatpush1.bf16.msra.mxu0 %v2653
    %6070 = vmatprep.subr.bf16.mxu0 %v2662
    %6071 = vmatpush1.bf16.msra.mxu0 %v2661
    %6072 = vmatprep.subr.bf16.mxu0 %v2670
    %6073 = vmatpush1.bf16.msra.mxu0 %v2669
    %6074 = vmatprep.subr.bf16.mxu0 %v2678
    %6075 = vmatpush1.bf16.msra.mxu0 %v2677
    %6076 = vmatprep.subr.bf16.mxu0 %v2686
    %6077 = vmatpush1.bf16.msra.mxu0 %v2685
    %6078 = vmatprep.subr.bf16.mxu0 %v2694
    %6079 = vmatpush1.bf16.msra.mxu0 %v2693
    %6080 = vmatprep.subr.bf16.mxu0 %v2702
    %6081 = vmatpush1.bf16.msra.mxu0 %v2701
    %6082 = vmatprep.subr.bf16.mxu0 %v2710
    %6083 = vmatpush1.bf16.msra.mxu0 %v2709
    %6084 = vmatprep.mubr.bf16.mxu0 %v4922
    %6085 = vmatmul.mubr.bf16.gmra.mrb[0].mxu0 %v4921
    %v6086 = vpop.f32.mrb[0].mxu0
    %v6087 = vadd.f32 %v6006, %v6086
    %v6088 = vpop.f32.mrb[0].mxu0
    %v6089 = vadd.f32 %v6008, %v6088
    %v6090 = vpop.f32.mrb[0].mxu0
    %v6091 = vadd.f32 %v6010, %v6090
    %v6092 = vpop.f32.mrb[0].mxu0
    %v6093 = vadd.f32 %v6012, %v6092
    %6094 = vmatprep.mubr.bf16.mxu0 %v4930
    %6095 = vmatmul.mubr.bf16.gmra.mrb[0].mxu0 %v4929
    %v6096 = vpop.f32.mrb[0].mxu0
    %v6097 = vadd.f32 %v6016, %v6096
    %v6098 = vpop.f32.mrb[0].mxu0
    %v6099 = vadd.f32 %v6018, %v6098
    %v6100 = vpop.f32.mrb[0].mxu0
    %v6101 = vadd.f32 %v6020, %v6100
    %v6102 = vpop.f32.mrb[0].mxu0
    %v6103 = vadd.f32 %v6022, %v6102
    %6104 = vmatprep.mubr.bf16.mxu0 %v4938
    %6105 = vmatmul.mubr.bf16.gmra.mrb[0].mxu0 %v4937
    %v6106 = vpop.f32.mrb[0].mxu0
    %v6107 = vadd.f32 %v6026, %v6106
    %v6108 = vpop.f32.mrb[0].mxu0
    %v6109 = vadd.f32 %v6028, %v6108
    %v6110 = vpop.f32.mrb[0].mxu0
    %v6111 = vadd.f32 %v6030, %v6110
    %v6112 = vpop.f32.mrb[0].mxu0
    %v6113 = vadd.f32 %v6032, %v6112
    %6114 = vmatprep.mubr.bf16.mxu0 %v4946
    %6115 = vmatmul.mubr.bf16.gmra.mrb[0].mxu0 %v4945
    %v6116 = vpop.f32.mrb[0].mxu0
    %v6117 = vadd.f32 %v6036, %v6116
    %v6118 = vpop.f32.mrb[0].mxu0
    %v6119 = vadd.f32 %v6038, %v6118
    %v6120 = vpop.f32.mrb[0].mxu0
    %v6121 = vadd.f32 %v6040, %v6120
    %v6122 = vpop.f32.mrb[0].mxu0
    %v6123 = vadd.f32 %v6042, %v6122
    %6124 = vmatprep.mubr.bf16.mxu0 %v4954
    %6125 = vmatmul.mubr.bf16.gmra.mrb[0].mxu0 %v4953
    %v6126 = vpop.f32.mrb[0].mxu0
    %v6127 = vadd.f32 %v6046, %v6126
    %v6128 = vpop.f32.mrb[0].mxu0
    %v6129 = vadd.f32 %v6048, %v6128
    %v6130 = vpop.f32.mrb[0].mxu0
    %v6131 = vpop.f32.mrb[0].mxu0
    %6132 = vdwg.mxu0
    %6133 = vmatprep.subr.bf16.mxu0 %v2718
    %6134 = vmatpush1.bf16.msra.mxu0 %v2717
    %6135 = vmatprep.subr.bf16.mxu0 %v2726
    %6136 = vmatpush1.bf16.msra.mxu0 %v2725
    %6137 = vmatprep.subr.bf16.mxu0 %v2734
    %6138 = vmatpush1.bf16.msra.mxu0 %v2733
    %6139 = vmatprep.subr.bf16.mxu0 %v2742
    %6140 = vmatpush1.bf16.msra.mxu0 %v2741
    %6141 = vmatprep.subr.bf16.mxu0 %v2750
    %6142 = vmatpush1.bf16.msra.mxu0 %v2749
    %6143 = vmatprep.subr.bf16.mxu0 %v2758
    %6144 = vmatpush1.bf16.msra.mxu0 %v2757
    %6145 = vmatprep.subr.bf16.mxu0 %v2766
    %6146 = vmatpush1.bf16.msra.mxu0 %v2765
    %6147 = vmatprep.subr.bf16.mxu0 %v2774
    %6148 = vmatpush1.bf16.msra.mxu0 %v2773
    %6149 = vmatprep.subr.bf16.mxu0 %v2782
    %6150 = vmatpush1.bf16.msra.mxu0 %v2781
    %6151 = vmatprep.subr.bf16.mxu0 %v2790
    %6152 = vmatpush1.bf16.msra.mxu0 %v2789
    %6153 = vmatprep.subr.bf16.mxu0 %v2798
    %6154 = vmatpush1.bf16.msra.mxu0 %v2797
    %6155 = vmatprep.subr.bf16.mxu0 %v2806
    %6156 = vmatpush1.bf16.msra.mxu0 %v2805
    %6157 = vmatprep.subr.bf16.mxu0 %v2814
    %6158 = vmatpush1.bf16.msra.mxu0 %v2813
    %6159 = vmatprep.subr.bf16.mxu0 %v2822
    %6160 = vmatpush1.bf16.msra.mxu0 %v2821
    %6161 = vmatprep.subr.bf16.mxu0 %v2830
    %6162 = vmatpush1.bf16.msra.mxu0 %v2829
    %6163 = vmatprep.subr.bf16.mxu0 %v2838
    %6164 = vmatpush1.bf16.msra.mxu0 %v2837
    %6165 = vmatprep.mubr.bf16.mxu0 %v4924
    %6166 = vmatmul.mubr.bf16.gmra.mrb[0].mxu0 %v4923
    %v6167 = vpop.f32.mrb[0].mxu0
    %v6168 = vadd.f32 %v6087, %v6167
    %v6169 = vpop.f32.mrb[0].mxu0
    %v6170 = vadd.f32 %v6089, %v6169
    %v6171 = vpop.f32.mrb[0].mxu0
    %v6172 = vadd.f32 %v6091, %v6171
    %v6173 = vpop.f32.mrb[0].mxu0
    %v6174 = vadd.f32 %v6093, %v6173
    %6175 = vmatprep.mubr.bf16.mxu0 %v4932
    %6176 = vmatmul.mubr.bf16.gmra.mrb[0].mxu0 %v4931
    %v6177 = vpop.f32.mrb[0].mxu0
    %v6178 = vadd.f32 %v6097, %v6177
    %v6179 = vpop.f32.mrb[0].mxu0
    %v6180 = vadd.f32 %v6099, %v6179
    %v6181 = vpop.f32.mrb[0].mxu0
    %v6182 = vadd.f32 %v6101, %v6181
    %v6183 = vpop.f32.mrb[0].mxu0
    %v6184 = vadd.f32 %v6103, %v6183
    %6185 = vmatprep.mubr.bf16.mxu0 %v4940
    %6186 = vmatmul.mubr.bf16.gmra.mrb[0].mxu0 %v4939
    %v6187 = vpop.f32.mrb[0].mxu0
    %v6188 = vadd.f32 %v6107, %v6187
    %v6189 = vpop.f32.mrb[0].mxu0
    %v6190 = vadd.f32 %v6109, %v6189
    %v6191 = vpop.f32.mrb[0].mxu0
    %v6192 = vadd.f32 %v6111, %v6191
    %v6193 = vpop.f32.mrb[0].mxu0
    %v6194 = vadd.f32 %v6113, %v6193
    %6195 = vmatprep.mubr.bf16.mxu0 %v4948
    %6196 = vmatmul.mubr.bf16.gmra.mrb[0].mxu0 %v4947
    %v6197 = vpop.f32.mrb[0].mxu0
    %v6198 = vadd.f32 %v6117, %v6197
    %v6199 = vpop.f32.mrb[0].mxu0
    %v6200 = vadd.f32 %v6119, %v6199
    %v6201 = vpop.f32.mrb[0].mxu0
    %v6202 = vadd.f32 %v6121, %v6201
    %v6203 = vpop.f32.mrb[0].mxu0
    %v6204 = vadd.f32 %v6123, %v6203
    %6205 = vmatprep.mubr.bf16.mxu0 %v4956
    %6206 = vmatmul.mubr.bf16.gmra.mrb[0].mxu0 %v4955
    %v6207 = vpop.f32.mrb[0].mxu0
    %v6208 = vadd.f32 %v6127, %v6207
    %v6209 = vpop.f32.mrb[0].mxu0
    %v6210 = vadd.f32 %v6129, %v6209
    %v6211 = vpop.f32.mrb[0].mxu0
    %v6212 = vpop.f32.mrb[0].mxu0
    %6213 = vdwg.mxu0
    %6214 = vmatprep.subr.bf16.mxu0 %v2846
    %6215 = vmatpush1.bf16.msra.mxu0 %v2845
    %6216 = vmatprep.subr.bf16.mxu0 %v2854
    %6217 = vmatpush1.bf16.msra.mxu0 %v2853
    %6218 = vmatprep.subr.bf16.mxu0 %v2862
    %6219 = vmatpush1.bf16.msra.mxu0 %v2861
    %6220 = vmatprep.subr.bf16.mxu0 %v2870
    %6221 = vmatpush1.bf16.msra.mxu0 %v2869
    %6222 = vmatprep.subr.bf16.mxu0 %v2878
    %6223 = vmatpush1.bf16.msra.mxu0 %v2877
    %6224 = vmatprep.subr.bf16.mxu0 %v2886
    %6225 = vmatpush1.bf16.msra.mxu0 %v2885
    %6226 = vmatprep.subr.bf16.mxu0 %v2894
    %6227 = vmatpush1.bf16.msra.mxu0 %v2893
    %6228 = vmatprep.subr.bf16.mxu0 %v2902
    %6229 = vmatpush1.bf16.msra.mxu0 %v2901
    %6230 = vmatprep.subr.bf16.mxu0 %v2910
    %6231 = vmatpush1.bf16.msra.mxu0 %v2909
    %6232 = vmatprep.subr.bf16.mxu0 %v2918
    %6233 = vmatpush1.bf16.msra.mxu0 %v2917
    %6234 = vmatprep.subr.bf16.mxu0 %v2926
    %6235 = vmatpush1.bf16.msra.mxu0 %v2925
    %6236 = vmatprep.subr.bf16.mxu0 %v2934
    %6237 = vmatpush1.bf16.msra.mxu0 %v2933
    %6238 = vmatprep.subr.bf16.mxu0 %v2942
    %6239 = vmatpush1.bf16.msra.mxu0 %v2941
    %6240 = vmatprep.subr.bf16.mxu0 %v2950
    %6241 = vmatpush1.bf16.msra.mxu0 %v2949
    %6242 = vmatprep.subr.bf16.mxu0 %v2958
    %6243 = vmatpush1.bf16.msra.mxu0 %v2957
    %6244 = vmatprep.subr.bf16.mxu0 %v2966
    %6245 = vmatpush1.bf16.msra.mxu0 %v2965
    %6246 = vmatprep.mubr.bf16.mxu0 %v4926
    %6247 = vmatmul.mubr.bf16.gmra.mrb[0].mxu0 %v4925
    %v6248 = vpop.f32.mrb[0].mxu0
    %v6249 = vadd.f32 %v6168, %v6248
    %v6250 = vpop.f32.mrb[0].mxu0
    %v6251 = vadd.f32 %v6170, %v6250
    %v6252 = vpop.f32.mrb[0].mxu0
    %v6253 = vadd.f32 %v6172, %v6252
    %v6254 = vpop.f32.mrb[0].mxu0
    %v6255 = vadd.f32 %v6174, %v6254
    %6256 = vmatprep.mubr.bf16.mxu0 %v4934
    %6257 = vmatmul.mubr.bf16.gmra.mrb[0].mxu0 %v4933
    %v6258 = vpop.f32.mrb[0].mxu0
    %v6259 = vadd.f32 %v6178, %v6258
    %v6260 = vpop.f32.mrb[0].mxu0
    %v6261 = vadd.f32 %v6180, %v6260
    %v6262 = vpop.f32.mrb[0].mxu0
    %v6263 = vadd.f32 %v6182, %v6262
    %v6264 = vpop.f32.mrb[0].mxu0
    %v6265 = vadd.f32 %v6184, %v6264
    %6266 = vmatprep.mubr.bf16.mxu0 %v4942
    %6267 = vmatmul.mubr.bf16.gmra.mrb[0].mxu0 %v4941
    %v6268 = vpop.f32.mrb[0].mxu0
    %v6269 = vadd.f32 %v6188, %v6268
    %v6270 = vpop.f32.mrb[0].mxu0
    %v6271 = vadd.f32 %v6190, %v6270
    %v6272 = vpop.f32.mrb[0].mxu0
    %v6273 = vadd.f32 %v6192, %v6272
    %v6274 = vpop.f32.mrb[0].mxu0
    %v6275 = vadd.f32 %v6194, %v6274
    %6276 = vmatprep.mubr.bf16.mxu0 %v4950
    %6277 = vmatmul.mubr.bf16.gmra.mrb[0].mxu0 %v4949
    %v6278 = vpop.f32.mrb[0].mxu0
    %v6279 = vadd.f32 %v6198, %v6278
    %v6280 = vpop.f32.mrb[0].mxu0
    %v6281 = vadd.f32 %v6200, %v6280
    %v6282 = vpop.f32.mrb[0].mxu0
    %v6283 = vadd.f32 %v6202, %v6282
    %v6284 = vpop.f32.mrb[0].mxu0
    %v6285 = vadd.f32 %v6204, %v6284
    %6286 = vmatprep.mubr.bf16.mxu0 %v4958
    %6287 = vmatmul.mubr.bf16.gmra.mrb[0].mxu0 %v4957
    %v6288 = vpop.f32.mrb[0].mxu0
    %v6289 = vadd.f32 %v6208, %v6288
    %v6290 = vpop.f32.mrb[0].mxu0
    %v6291 = vadd.f32 %v6210, %v6290
    %v6292 = vpop.f32.mrb[0].mxu0
    %v6293 = vpop.f32.mrb[0].mxu0
    %6294 = vdwg.mxu0
    %v6295 = vmul.f32 %v3757, %v3757
    %v6296 = vmul.f32 %v3759, %v3759
    %v6297 = vmul.f32 %v4081, %v4081
    %v6298 = vmul.f32 %v4083, %v4083
    %v6299 = vmul.f32 %v3761, %v3761
    %v6300 = vmul.f32 %v3763, %v3763
    %v6301 = vmul.f32 %v4085, %v4085
    %v6302 = vmul.f32 %v4087, %v4087
    %v6303 = vmul.f32 %v3767, %v3767
    %v6304 = vmul.f32 %v3769, %v3769
    %v6305 = vmul.f32 %v4091, %v4091
    %v6306 = vmul.f32 %v4093, %v4093
    %v6307 = vmul.f32 %v3771, %v3771
    %v6308 = vmul.f32 %v3773, %v3773
    %v6309 = vmul.f32 %v4095, %v4095
    %v6310 = vmul.f32 %v4097, %v4097
    %v6311 = vmul.f32 %v3777, %v3777
    %v6312 = vmul.f32 %v3779, %v3779
    %v6313 = vmul.f32 %v4101, %v4101
    %v6314 = vmul.f32 %v4103, %v4103
    %v6315 = vmul.f32 %v3781, %v3781
    %v6316 = vmul.f32 %v3783, %v3783
    %v6317 = vmul.f32 %v4105, %v4105
    %v6318 = vmul.f32 %v4107, %v4107
    %v6319 = vmul.f32 %v3787, %v3787
    %v6320 = vmul.f32 %v3789, %v3789
    %v6321 = vmul.f32 %v4111, %v4111
    %v6322 = vmul.f32 %v4113, %v4113
    %v6323 = vmul.f32 %v3791, %v3791
    %v6324 = vmul.f32 %v3793, %v3793
    %v6325 = vmul.f32 %v4115, %v4115
    %v6326 = vmul.f32 %v4117, %v4117
    %v6327 = vmul.f32 %v3797, %v3797
    %v6328 = vmul.f32 %v3799, %v3799
    %v6329 = vmul.f32 %v4121, %v4121
    %v6330 = vmul.f32 %v4123, %v4123
    %v6331 = vmul.f32 %v4405, %v4405
    %v6332 = vmul.f32 %v4407, %v4407
    %v6333 = vmul.f32 %v4729, %v4729
    %v6334 = vmul.f32 %v4731, %v4731
    %v6335 = vmul.f32 %v4409, %v4409
    %v6336 = vmul.f32 %v4411, %v4411
    %v6337 = vmul.f32 %v4733, %v4733
    %v6338 = vmul.f32 %v4735, %v4735
    %v6339 = vmul.f32 %v4415, %v4415
    %v6340 = vmul.f32 %v4417, %v4417
    %v6341 = vmul.f32 %v4739, %v4739
    %v6342 = vmul.f32 %v4741, %v4741
    %v6343 = vmul.f32 %v4419, %v4419
    %v6344 = vmul.f32 %v4421, %v4421
    %v6345 = vmul.f32 %v4743, %v4743
    %v6346 = vmul.f32 %v4745, %v4745
    %v6347 = vmul.f32 %v4425, %v4425
    %v6348 = vmul.f32 %v4427, %v4427
    %v6349 = vmul.f32 %v4749, %v4749
    %v6350 = vmul.f32 %v4751, %v4751
    %v6351 = vmul.f32 %v4429, %v4429
    %v6352 = vmul.f32 %v4431, %v4431
    %v6353 = vmul.f32 %v4753, %v4753
    %v6354 = vmul.f32 %v4755, %v4755
    %v6355 = vmul.f32 %v4435, %v4435
    %v6356 = vmul.f32 %v4437, %v4437
    %v6357 = vmul.f32 %v4759, %v4759
    %v6358 = vmul.f32 %v4761, %v4761
    %v6359 = vmul.f32 %v4439, %v4439
    %v6360 = vmul.f32 %v4441, %v4441
    %v6361 = vmul.f32 %v4763, %v4763
    %v6362 = vmul.f32 %v4765, %v4765
    %v6363 = vmul.f32 %v4445, %v4445
    %v6364 = vmul.f32 %v4447, %v4447
    %v6365 = vmul.f32 %v4769, %v4769
    %v6366 = vmul.f32 %v4771, %v4771
    %v6367 = vadd.f32 %v6295, %v6331
    %v6368 = vadd.f32 %v6296, %v6332
    %v6369 = vadd.f32 %v6297, %v6333
    %v6370 = vadd.f32 %v6298, %v6334
    %v6371 = vadd.f32 %v6299, %v6335
    %v6372 = vadd.f32 %v6300, %v6336
    %v6373 = vadd.f32 %v6301, %v6337
    %v6374 = vadd.f32 %v6302, %v6338
    %v6375 = vadd.f32 %v6303, %v6339
    %v6376 = vadd.f32 %v6304, %v6340
    %v6377 = vadd.f32 %v6305, %v6341
    %v6378 = vadd.f32 %v6306, %v6342
    %v6379 = vadd.f32 %v6307, %v6343
    %v6380 = vadd.f32 %v6308, %v6344
    %v6381 = vadd.f32 %v6309, %v6345
    %v6382 = vadd.f32 %v6310, %v6346
    %v6383 = vadd.f32 %v6311, %v6347
    %v6384 = vadd.f32 %v6312, %v6348
    %v6385 = vadd.f32 %v6313, %v6349
    %v6386 = vadd.f32 %v6314, %v6350
    %v6387 = vadd.f32 %v6315, %v6351
    %v6388 = vadd.f32 %v6316, %v6352
    %v6389 = vadd.f32 %v6317, %v6353
    %v6390 = vadd.f32 %v6318, %v6354
    %v6391 = vadd.f32 %v6319, %v6355
    %v6392 = vadd.f32 %v6320, %v6356
    %v6393 = vadd.f32 %v6321, %v6357
    %v6394 = vadd.f32 %v6322, %v6358
    %v6395 = vadd.f32 %v6323, %v6359
    %v6396 = vadd.f32 %v6324, %v6360
    %v6397 = vadd.f32 %v6325, %v6361
    %v6398 = vadd.f32 %v6326, %v6362
    %v6399 = vadd.f32 %v6327, %v6363
    %v6400 = vadd.f32 %v6328, %v6364
    %v6401 = vadd.f32 %v6329, %v6365
    %v6402 = vadd.f32 %v6330, %v6366
    %v6403 = vmax.f32 %v6367, 1e-07
    %v6404 = vmax.f32 %v6368, 1e-07
    %v6405 = vmax.f32 %v6369, 1e-07
    %v6406 = vmax.f32 %v6370, 1e-07
    %v6407 = vmax.f32 %v6371, 1e-07
    %v6408 = vmax.f32 %v6372, 1e-07
    %v6409 = vmax.f32 %v6373, 1e-07
    %v6410 = vmax.f32 %v6374, 1e-07
    %v6411 = vmax.f32 %v6375, 1e-07
    %v6412 = vmax.f32 %v6376, 1e-07
    %v6413 = vmax.f32 %v6377, 1e-07
    %v6414 = vmax.f32 %v6378, 1e-07
    %v6415 = vmax.f32 %v6379, 1e-07
    %v6416 = vmax.f32 %v6380, 1e-07
    %v6417 = vmax.f32 %v6381, 1e-07
    %v6418 = vmax.f32 %v6382, 1e-07
    %v6419 = vmax.f32 %v6383, 1e-07
    %v6420 = vmax.f32 %v6384, 1e-07
    %v6421 = vmax.f32 %v6385, 1e-07
    %v6422 = vmax.f32 %v6386, 1e-07
    %v6423 = vmax.f32 %v6387, 1e-07
    %v6424 = vmax.f32 %v6388, 1e-07
    %v6425 = vmax.f32 %v6389, 1e-07
    %v6426 = vmax.f32 %v6390, 1e-07
    %v6427 = vmax.f32 %v6391, 1e-07
    %v6428 = vmax.f32 %v6392, 1e-07
    %v6429 = vmax.f32 %v6393, 1e-07
    %v6430 = vmax.f32 %v6394, 1e-07
    %v6431 = vmax.f32 %v6395, 1e-07
    %v6432 = vmax.f32 %v6396, 1e-07
    %v6433 = vmax.f32 %v6397, 1e-07
    %v6434 = vmax.f32 %v6398, 1e-07
    %v6435 = vmax.f32 %v6399, 1e-07
    %v6436 = vmax.f32 %v6400, 1e-07
    %v6437 = vmax.f32 %v6401, 1e-07
    %v6438 = vmax.f32 %v6402, 1e-07
    %v6439 = vmin.f32 %v6403, 1000.0
    %v6440 = vmin.f32 %v6404, 1000.0
    %v6441 = vmin.f32 %v6405, 1000.0
    %v6442 = vmin.f32 %v6406, 1000.0
    %v6443 = vmin.f32 %v6407, 1000.0
    %v6444 = vmin.f32 %v6408, 1000.0
    %v6445 = vmin.f32 %v6409, 1000.0
    %v6446 = vmin.f32 %v6410, 1000.0
    %v6447 = vmin.f32 %v6411, 1000.0
    %v6448 = vmin.f32 %v6412, 1000.0
    %v6449 = vmin.f32 %v6413, 1000.0
    %v6450 = vmin.f32 %v6414, 1000.0
    %v6451 = vmin.f32 %v6415, 1000.0
    %v6452 = vmin.f32 %v6416, 1000.0
    %v6453 = vmin.f32 %v6417, 1000.0
    %v6454 = vmin.f32 %v6418, 1000.0
    %v6455 = vmin.f32 %v6419, 1000.0
    %v6456 = vmin.f32 %v6420, 1000.0
    %v6457 = vmin.f32 %v6421, 1000.0
    %v6458 = vmin.f32 %v6422, 1000.0
    %v6459 = vmin.f32 %v6423, 1000.0
    %v6460 = vmin.f32 %v6424, 1000.0
    %v6461 = vmin.f32 %v6425, 1000.0
    %v6462 = vmin.f32 %v6426, 1000.0
    %v6463 = vmin.f32 %v6427, 1000.0
    %v6464 = vmin.f32 %v6428, 1000.0
    %v6465 = vmin.f32 %v6429, 1000.0
    %v6466 = vmin.f32 %v6430, 1000.0
    %v6467 = vmin.f32 %v6431, 1000.0
    %v6468 = vmin.f32 %v6432, 1000.0
    %v6469 = vmin.f32 %v6433, 1000.0
    %v6470 = vmin.f32 %v6434, 1000.0
    %v6471 = vmin.f32 %v6435, 1000.0
    %v6472 = vmin.f32 %v6436, 1000.0
    %v6473 = vmin.f32 %v6437, 1000.0
    %v6474 = vmin.f32 %v6438, 1000.0
    %v6475 = vmul.f32 %v5277, %v5277
    %v6476 = vmul.f32 %v5279, %v5279
    %v6477 = vmul.f32 %v5601, %v5601
    %v6478 = vmul.f32 %v5603, %v5603
    %v6479 = vmul.f32 %v5281, %v5281
    %v6480 = vmul.f32 %v5283, %v5283
    %v6481 = vmul.f32 %v5605, %v5605
    %v6482 = vmul.f32 %v5607, %v5607
    %v6483 = vmul.f32 %v5287, %v5287
    %v6484 = vmul.f32 %v5289, %v5289
    %v6485 = vmul.f32 %v5611, %v5611
    %v6486 = vmul.f32 %v5613, %v5613
    %v6487 = vmul.f32 %v5291, %v5291
    %v6488 = vmul.f32 %v5293, %v5293
    %v6489 = vmul.f32 %v5615, %v5615
    %v6490 = vmul.f32 %v5617, %v5617
    %v6491 = vmul.f32 %v5297, %v5297
    %v6492 = vmul.f32 %v5299, %v5299
    %v6493 = vmul.f32 %v5621, %v5621
    %v6494 = vmul.f32 %v5623, %v5623
    %v6495 = vmul.f32 %v5301, %v5301
    %v6496 = vmul.f32 %v5303, %v5303
    %v6497 = vmul.f32 %v5625, %v5625
    %v6498 = vmul.f32 %v5627, %v5627
    %v6499 = vmul.f32 %v5307, %v5307
    %v6500 = vmul.f32 %v5309, %v5309
    %v6501 = vmul.f32 %v5631, %v5631
    %v6502 = vmul.f32 %v5633, %v5633
    %v6503 = vmul.f32 %v5311, %v5311
    %v6504 = vmul.f32 %v5313, %v5313
    %v6505 = vmul.f32 %v5635, %v5635
    %v6506 = vmul.f32 %v5637, %v5637
    %v6507 = vmul.f32 %v5317, %v5317
    %v6508 = vmul.f32 %v5319, %v5319
    %v6509 = vmul.f32 %v5641, %v5641
    %v6510 = vmul.f32 %v5643, %v5643
    %v6511 = vmul.f32 %v5925, %v5925
    %v6512 = vmul.f32 %v5927, %v5927
    %v6513 = vmul.f32 %v6249, %v6249
    %v6514 = vmul.f32 %v6251, %v6251
    %v6515 = vmul.f32 %v5929, %v5929
    %v6516 = vmul.f32 %v5931, %v5931
    %v6517 = vmul.f32 %v6253, %v6253
    %v6518 = vmul.f32 %v6255, %v6255
    %v6519 = vmul.f32 %v5935, %v5935
    %v6520 = vmul.f32 %v5937, %v5937
    %v6521 = vmul.f32 %v6259, %v6259
    %v6522 = vmul.f32 %v6261, %v6261
    %v6523 = vmul.f32 %v5939, %v5939
    %v6524 = vmul.f32 %v5941, %v5941
    %v6525 = vmul.f32 %v6263, %v6263
    %v6526 = vmul.f32 %v6265, %v6265
    %v6527 = vmul.f32 %v5945, %v5945
    %v6528 = vmul.f32 %v5947, %v5947
    %v6529 = vmul.f32 %v6269, %v6269
    %v6530 = vmul.f32 %v6271, %v6271
    %v6531 = vmul.f32 %v5949, %v5949
    %v6532 = vmul.f32 %v5951, %v5951
    %v6533 = vmul.f32 %v6273, %v6273
    %v6534 = vmul.f32 %v6275, %v6275
    %v6535 = vmul.f32 %v5955, %v5955
    %v6536 = vmul.f32 %v5957, %v5957
    %v6537 = vmul.f32 %v6279, %v6279
    %v6538 = vmul.f32 %v6281, %v6281
    %v6539 = vmul.f32 %v5959, %v5959
    %v6540 = vmul.f32 %v5961, %v5961
    %v6541 = vmul.f32 %v6283, %v6283
    %v6542 = vmul.f32 %v6285, %v6285
    %v6543 = vmul.f32 %v5965, %v5965
    %v6544 = vmul.f32 %v5967, %v5967
    %v6545 = vmul.f32 %v6289, %v6289
    %v6546 = vmul.f32 %v6291, %v6291
    %v6547 = vadd.f32 %v6475, %v6511
    %v6548 = vadd.f32 %v6476, %v6512
    %v6549 = vadd.f32 %v6477, %v6513
    %v6550 = vadd.f32 %v6478, %v6514
    %v6551 = vadd.f32 %v6479, %v6515
    %v6552 = vadd.f32 %v6480, %v6516
    %v6553 = vadd.f32 %v6481, %v6517
    %v6554 = vadd.f32 %v6482, %v6518
    %v6555 = vadd.f32 %v6483, %v6519
    %v6556 = vadd.f32 %v6484, %v6520
    %v6557 = vadd.f32 %v6485, %v6521
    %v6558 = vadd.f32 %v6486, %v6522
    %v6559 = vadd.f32 %v6487, %v6523
    %v6560 = vadd.f32 %v6488, %v6524
    %v6561 = vadd.f32 %v6489, %v6525
    %v6562 = vadd.f32 %v6490, %v6526
    %v6563 = vadd.f32 %v6491, %v6527
    %v6564 = vadd.f32 %v6492, %v6528
    %v6565 = vadd.f32 %v6493, %v6529
    %v6566 = vadd.f32 %v6494, %v6530
    %v6567 = vadd.f32 %v6495, %v6531
    %v6568 = vadd.f32 %v6496, %v6532
    %v6569 = vadd.f32 %v6497, %v6533
    %v6570 = vadd.f32 %v6498, %v6534
    %v6571 = vadd.f32 %v6499, %v6535
    %v6572 = vadd.f32 %v6500, %v6536
    %v6573 = vadd.f32 %v6501, %v6537
    %v6574 = vadd.f32 %v6502, %v6538
    %v6575 = vadd.f32 %v6503, %v6539
    %v6576 = vadd.f32 %v6504, %v6540
    %v6577 = vadd.f32 %v6505, %v6541
    %v6578 = vadd.f32 %v6506, %v6542
    %v6579 = vadd.f32 %v6507, %v6543
    %v6580 = vadd.f32 %v6508, %v6544
    %v6581 = vadd.f32 %v6509, %v6545
    %v6582 = vadd.f32 %v6510, %v6546
    %v6583 = vmax.f32 %v6547, 1e-07
    %v6584 = vmax.f32 %v6548, 1e-07
    %v6585 = vmax.f32 %v6549, 1e-07
    %v6586 = vmax.f32 %v6550, 1e-07
    %v6587 = vmax.f32 %v6551, 1e-07
    %v6588 = vmax.f32 %v6552, 1e-07
    %v6589 = vmax.f32 %v6553, 1e-07
    %v6590 = vmax.f32 %v6554, 1e-07
    %v6591 = vmax.f32 %v6555, 1e-07
    %v6592 = vmax.f32 %v6556, 1e-07
    %v6593 = vmax.f32 %v6557, 1e-07
    %v6594 = vmax.f32 %v6558, 1e-07
    %v6595 = vmax.f32 %v6559, 1e-07
    %v6596 = vmax.f32 %v6560, 1e-07
    %v6597 = vmax.f32 %v6561, 1e-07
    %v6598 = vmax.f32 %v6562, 1e-07
    %v6599 = vmax.f32 %v6563, 1e-07
    %v6600 = vmax.f32 %v6564, 1e-07
    %v6601 = vmax.f32 %v6565, 1e-07
    %v6602 = vmax.f32 %v6566, 1e-07
    %v6603 = vmax.f32 %v6567, 1e-07
    %v6604 = vmax.f32 %v6568, 1e-07
    %v6605 = vmax.f32 %v6569, 1e-07
    %v6606 = vmax.f32 %v6570, 1e-07
    %v6607 = vmax.f32 %v6571, 1e-07
    %v6608 = vmax.f32 %v6572, 1e-07
    %v6609 = vmax.f32 %v6573, 1e-07
    %v6610 = vmax.f32 %v6574, 1e-07
    %v6611 = vmax.f32 %v6575, 1e-07
    %v6612 = vmax.f32 %v6576, 1e-07
    %v6613 = vmax.f32 %v6577, 1e-07
    %v6614 = vmax.f32 %v6578, 1e-07
    %v6615 = vmax.f32 %v6579, 1e-07
    %v6616 = vmax.f32 %v6580, 1e-07
    %v6617 = vmax.f32 %v6581, 1e-07
    %v6618 = vmax.f32 %v6582, 1e-07
    %v6619 = vmin.f32 %v6583, 1000.0
    %v6620 = vmin.f32 %v6584, 1000.0
    %v6621 = vmin.f32 %v6585, 1000.0
    %v6622 = vmin.f32 %v6586, 1000.0
    %v6623 = vmin.f32 %v6587, 1000.0
    %v6624 = vmin.f32 %v6588, 1000.0
    %v6625 = vmin.f32 %v6589, 1000.0
    %v6626 = vmin.f32 %v6590, 1000.0
    %v6627 = vmin.f32 %v6591, 1000.0
    %v6628 = vmin.f32 %v6592, 1000.0
    %v6629 = vmin.f32 %v6593, 1000.0
    %v6630 = vmin.f32 %v6594, 1000.0
    %v6631 = vmin.f32 %v6595, 1000.0
    %v6632 = vmin.f32 %v6596, 1000.0
    %v6633 = vmin.f32 %v6597, 1000.0
    %v6634 = vmin.f32 %v6598, 1000.0
    %v6635 = vmin.f32 %v6599, 1000.0
    %v6636 = vmin.f32 %v6600, 1000.0
    %v6637 = vmin.f32 %v6601, 1000.0
    %v6638 = vmin.f32 %v6602, 1000.0
    %v6639 = vmin.f32 %v6603, 1000.0
    %v6640 = vmin.f32 %v6604, 1000.0
    %v6641 = vmin.f32 %v6605, 1000.0
    %v6642 = vmin.f32 %v6606, 1000.0
    %v6643 = vmin.f32 %v6607, 1000.0
    %v6644 = vmin.f32 %v6608, 1000.0
    %v6645 = vmin.f32 %v6609, 1000.0
    %v6646 = vmin.f32 %v6610, 1000.0
    %v6647 = vmin.f32 %v6611, 1000.0
    %v6648 = vmin.f32 %v6612, 1000.0
    %v6649 = vmin.f32 %v6613, 1000.0
    %v6650 = vmin.f32 %v6614, 1000.0
    %v6651 = vmin.f32 %v6615, 1000.0
    %v6652 = vmin.f32 %v6616, 1000.0
    %v6653 = vmin.f32 %v6617, 1000.0
    %v6654 = vmin.f32 %v6618, 1000.0
    %v6655 = vld [vmem:[#allocation11] sm:$0xf]
    %v6656 = vmul.f32 %v6439, %v6619
    %v6657 = vmul.f32 %v6440, %v6620
    %v6658 = vmul.f32 %v6441, %v6621
    %v6659 = vmul.f32 %v6442, %v6622
    %v6660 = vmul.f32 %v6443, %v6623
    %v6661 = vmul.f32 %v6444, %v6624
    %v6662 = vmul.f32 %v6445, %v6625
    %v6663 = vmul.f32 %v6446, %v6626
    %v6664 = vmul.f32 %v6447, %v6627
    %v6665 = vmul.f32 %v6448, %v6628
    %v6666 = vmul.f32 %v6449, %v6629
    %v6667 = vmul.f32 %v6450, %v6630
    %v6668 = vmul.f32 %v6451, %v6631
    %v6669 = vmul.f32 %v6452, %v6632
    %v6670 = vmul.f32 %v6453, %v6633
    %v6671 = vmul.f32 %v6454, %v6634
    %v6672 = vmul.f32 %v6455, %v6635
    %v6673 = vmul.f32 %v6456, %v6636
    %v6674 = vmul.f32 %v6457, %v6637
    %v6675 = vmul.f32 %v6458, %v6638
    %v6676 = vmul.f32 %v6459, %v6639
    %v6677 = vmul.f32 %v6460, %v6640
    %v6678 = vmul.f32 %v6461, %v6641
    %v6679 = vmul.f32 %v6462, %v6642
    %v6680 = vmul.f32 %v6463, %v6643
    %v6681 = vmul.f32 %v6464, %v6644
    %v6682 = vmul.f32 %v6465, %v6645
    %v6683 = vmul.f32 %v6466, %v6646
    %v6684 = vmul.f32 %v6467, %v6647
    %v6685 = vmul.f32 %v6468, %v6648
    %v6686 = vmul.f32 %v6469, %v6649
    %v6687 = vmul.f32 %v6470, %v6650
    %v6688 = vmul.f32 %v6471, %v6651
    %v6689 = vmul.f32 %v6472, %v6652
    %v6690 = vmul.f32 %v6473, %v6653
    %v6691 = vmul.f32 %v6474, %v6654
    %v6692 = vrsqrt.pop %v6656
    %v6693 = vmul.f32 %v6656, %v6692
    %vm6694 = vcmp.eq.f32.partialorder %v6656, inf
    %v6695 = vsel %vm6694, %v6656, %v6693
    %vm6696 = vcmp.eq.f32.partialorder %v6656, 0.0
    %v6697 = vand.u32 %v6656, 2147483648
    %v6698 = vsel %vm6696, %v6697, %v6695
    %v6699 = vrsqrt.pop %v6657
    %v6700 = vmul.f32 %v6657, %v6699
    %vm6701 = vcmp.eq.f32.partialorder %v6657, inf
    %v6702 = vsel %vm6701, %v6657, %v6700
    %vm6703 = vcmp.eq.f32.partialorder %v6657, 0.0
    %v6704 = vand.u32 %v6657, 2147483648
    %v6705 = vsel %vm6703, %v6704, %v6702
    %v6706 = vrsqrt.pop %v6658
    %v6707 = vmul.f32 %v6658, %v6706
    %vm6708 = vcmp.eq.f32.partialorder %v6658, inf
    %v6709 = vsel %vm6708, %v6658, %v6707
    %vm6710 = vcmp.eq.f32.partialorder %v6658, 0.0
    %v6711 = vand.u32 %v6658, 2147483648
    %v6712 = vsel %vm6710, %v6711, %v6709
    %v6713 = vrsqrt.pop %v6659
    %v6714 = vmul.f32 %v6659, %v6713
    %vm6715 = vcmp.eq.f32.partialorder %v6659, inf
    %v6716 = vsel %vm6715, %v6659, %v6714
    %vm6717 = vcmp.eq.f32.partialorder %v6659, 0.0
    %v6718 = vand.u32 %v6659, 2147483648
    %v6719 = vsel %vm6717, %v6718, %v6716
    %v6720 = vrsqrt.pop %v6660
    %v6721 = vmul.f32 %v6660, %v6720
    %vm6722 = vcmp.eq.f32.partialorder %v6660, inf
    %v6723 = vsel %vm6722, %v6660, %v6721
    %vm6724 = vcmp.eq.f32.partialorder %v6660, 0.0
    %v6725 = vand.u32 %v6660, 2147483648
    %v6726 = vsel %vm6724, %v6725, %v6723
    %v6727 = vrsqrt.pop %v6661
    %v6728 = vmul.f32 %v6661, %v6727
    %vm6729 = vcmp.eq.f32.partialorder %v6661, inf
    %v6730 = vsel %vm6729, %v6661, %v6728
    %vm6731 = vcmp.eq.f32.partialorder %v6661, 0.0
    %v6732 = vand.u32 %v6661, 2147483648
    %v6733 = vsel %vm6731, %v6732, %v6730
    %v6734 = vrsqrt.pop %v6662
    %v6735 = vmul.f32 %v6662, %v6734
    %vm6736 = vcmp.eq.f32.partialorder %v6662, inf
    %v6737 = vsel %vm6736, %v6662, %v6735
    %vm6738 = vcmp.eq.f32.partialorder %v6662, 0.0
    %v6739 = vand.u32 %v6662, 2147483648
    %v6740 = vsel %vm6738, %v6739, %v6737
    %v6741 = vrsqrt.pop %v6663
    %v6742 = vmul.f32 %v6663, %v6741
    %vm6743 = vcmp.eq.f32.partialorder %v6663, inf
    %v6744 = vsel %vm6743, %v6663, %v6742
    %vm6745 = vcmp.eq.f32.partialorder %v6663, 0.0
    %v6746 = vand.u32 %v6663, 2147483648
    %v6747 = vsel %vm6745, %v6746, %v6744
    %v6748 = vrsqrt.pop %v6664
    %v6749 = vmul.f32 %v6664, %v6748
    %vm6750 = vcmp.eq.f32.partialorder %v6664, inf
    %v6751 = vsel %vm6750, %v6664, %v6749
    %vm6752 = vcmp.eq.f32.partialorder %v6664, 0.0
    %v6753 = vand.u32 %v6664, 2147483648
    %v6754 = vsel %vm6752, %v6753, %v6751
    %v6755 = vrsqrt.pop %v6665
    %v6756 = vmul.f32 %v6665, %v6755
    %vm6757 = vcmp.eq.f32.partialorder %v6665, inf
    %v6758 = vsel %vm6757, %v6665, %v6756
    %vm6759 = vcmp.eq.f32.partialorder %v6665, 0.0
    %v6760 = vand.u32 %v6665, 2147483648
    %v6761 = vsel %vm6759, %v6760, %v6758
    %v6762 = vrsqrt.pop %v6666
    %v6763 = vmul.f32 %v6666, %v6762
    %vm6764 = vcmp.eq.f32.partialorder %v6666, inf
    %v6765 = vsel %vm6764, %v6666, %v6763
    %vm6766 = vcmp.eq.f32.partialorder %v6666, 0.0
    %v6767 = vand.u32 %v6666, 2147483648
    %v6768 = vsel %vm6766, %v6767, %v6765
    %v6769 = vrsqrt.pop %v6667
    %v6770 = vmul.f32 %v6667, %v6769
    %vm6771 = vcmp.eq.f32.partialorder %v6667, inf
    %v6772 = vsel %vm6771, %v6667, %v6770
    %vm6773 = vcmp.eq.f32.partialorder %v6667, 0.0
    %v6774 = vand.u32 %v6667, 2147483648
    %v6775 = vsel %vm6773, %v6774, %v6772
    %v6776 = vrsqrt.pop %v6668
    %v6777 = vmul.f32 %v6668, %v6776
    %vm6778 = vcmp.eq.f32.partialorder %v6668, inf
    %v6779 = vsel %vm6778, %v6668, %v6777
    %vm6780 = vcmp.eq.f32.partialorder %v6668, 0.0
    %v6781 = vand.u32 %v6668, 2147483648
    %v6782 = vsel %vm6780, %v6781, %v6779
    %v6783 = vrsqrt.pop %v6669
    %v6784 = vmul.f32 %v6669, %v6783
    %vm6785 = vcmp.eq.f32.partialorder %v6669, inf
    %v6786 = vsel %vm6785, %v6669, %v6784
    %vm6787 = vcmp.eq.f32.partialorder %v6669, 0.0
    %v6788 = vand.u32 %v6669, 2147483648
    %v6789 = vsel %vm6787, %v6788, %v6786
    %v6790 = vrsqrt.pop %v6670
    %v6791 = vmul.f32 %v6670, %v6790
    %vm6792 = vcmp.eq.f32.partialorder %v6670, inf
    %v6793 = vsel %vm6792, %v6670, %v6791
    %vm6794 = vcmp.eq.f32.partialorder %v6670, 0.0
    %v6795 = vand.u32 %v6670, 2147483648
    %v6796 = vsel %vm6794, %v6795, %v6793
    %v6797 = vrsqrt.pop %v6671
    %v6798 = vmul.f32 %v6671, %v6797
    %vm6799 = vcmp.eq.f32.partialorder %v6671, inf
    %v6800 = vsel %vm6799, %v6671, %v6798
    %vm6801 = vcmp.eq.f32.partialorder %v6671, 0.0
    %v6802 = vand.u32 %v6671, 2147483648
    %v6803 = vsel %vm6801, %v6802, %v6800
    %v6804 = vrsqrt.pop %v6672
    %v6805 = vmul.f32 %v6672, %v6804
    %vm6806 = vcmp.eq.f32.partialorder %v6672, inf
    %v6807 = vsel %vm6806, %v6672, %v6805
    %vm6808 = vcmp.eq.f32.partialorder %v6672, 0.0
    %v6809 = vand.u32 %v6672, 2147483648
    %v6810 = vsel %vm6808, %v6809, %v6807
    %v6811 = vrsqrt.pop %v6673
    %v6812 = vmul.f32 %v6673, %v6811
    %vm6813 = vcmp.eq.f32.partialorder %v6673, inf
    %v6814 = vsel %vm6813, %v6673, %v6812
    %vm6815 = vcmp.eq.f32.partialorder %v6673, 0.0
    %v6816 = vand.u32 %v6673, 2147483648
    %v6817 = vsel %vm6815, %v6816, %v6814
    %v6818 = vrsqrt.pop %v6674
    %v6819 = vmul.f32 %v6674, %v6818
    %vm6820 = vcmp.eq.f32.partialorder %v6674, inf
    %v6821 = vsel %vm6820, %v6674, %v6819
    %vm6822 = vcmp.eq.f32.partialorder %v6674, 0.0
    %v6823 = vand.u32 %v6674, 2147483648
    %v6824 = vsel %vm6822, %v6823, %v6821
    %v6825 = vrsqrt.pop %v6675
    %v6826 = vmul.f32 %v6675, %v6825
    %vm6827 = vcmp.eq.f32.partialorder %v6675, inf
    %v6828 = vsel %vm6827, %v6675, %v6826
    %vm6829 = vcmp.eq.f32.partialorder %v6675, 0.0
    %v6830 = vand.u32 %v6675, 2147483648
    %v6831 = vsel %vm6829, %v6830, %v6828
    %v6832 = vrsqrt.pop %v6676
    %v6833 = vmul.f32 %v6676, %v6832
    %vm6834 = vcmp.eq.f32.partialorder %v6676, inf
    %v6835 = vsel %vm6834, %v6676, %v6833
    %vm6836 = vcmp.eq.f32.partialorder %v6676, 0.0
    %v6837 = vand.u32 %v6676, 2147483648
    %v6838 = vsel %vm6836, %v6837, %v6835
    %v6839 = vrsqrt.pop %v6677
    %v6840 = vmul.f32 %v6677, %v6839
    %vm6841 = vcmp.eq.f32.partialorder %v6677, inf
    %v6842 = vsel %vm6841, %v6677, %v6840
    %vm6843 = vcmp.eq.f32.partialorder %v6677, 0.0
    %v6844 = vand.u32 %v6677, 2147483648
    %v6845 = vsel %vm6843, %v6844, %v6842
    %v6846 = vrsqrt.pop %v6678
    %v6847 = vmul.f32 %v6678, %v6846
    %vm6848 = vcmp.eq.f32.partialorder %v6678, inf
    %v6849 = vsel %vm6848, %v6678, %v6847
    %vm6850 = vcmp.eq.f32.partialorder %v6678, 0.0
    %v6851 = vand.u32 %v6678, 2147483648
    %v6852 = vsel %vm6850, %v6851, %v6849
    %v6853 = vrsqrt.pop %v6679
    %v6854 = vmul.f32 %v6679, %v6853
    %vm6855 = vcmp.eq.f32.partialorder %v6679, inf
    %v6856 = vsel %vm6855, %v6679, %v6854
    %vm6857 = vcmp.eq.f32.partialorder %v6679, 0.0
    %v6858 = vand.u32 %v6679, 2147483648
    %v6859 = vsel %vm6857, %v6858, %v6856
    %v6860 = vrsqrt.pop %v6680
    %v6861 = vmul.f32 %v6680, %v6860
    %vm6862 = vcmp.eq.f32.partialorder %v6680, inf
    %v6863 = vsel %vm6862, %v6680, %v6861
    %vm6864 = vcmp.eq.f32.partialorder %v6680, 0.0
    %v6865 = vand.u32 %v6680, 2147483648
    %v6866 = vsel %vm6864, %v6865, %v6863
    %v6867 = vrsqrt.pop %v6681
    %v6868 = vmul.f32 %v6681, %v6867
    %vm6869 = vcmp.eq.f32.partialorder %v6681, inf
    %v6870 = vsel %vm6869, %v6681, %v6868
    %vm6871 = vcmp.eq.f32.partialorder %v6681, 0.0
    %v6872 = vand.u32 %v6681, 2147483648
    %v6873 = vsel %vm6871, %v6872, %v6870
    %v6874 = vrsqrt.pop %v6682
    %v6875 = vmul.f32 %v6682, %v6874
    %vm6876 = vcmp.eq.f32.partialorder %v6682, inf
    %v6877 = vsel %vm6876, %v6682, %v6875
    %vm6878 = vcmp.eq.f32.partialorder %v6682, 0.0
    %v6879 = vand.u32 %v6682, 2147483648
    %v6880 = vsel %vm6878, %v6879, %v6877
    %v6881 = vrsqrt.pop %v6683
    %v6882 = vmul.f32 %v6683, %v6881
    %vm6883 = vcmp.eq.f32.partialorder %v6683, inf
    %v6884 = vsel %vm6883, %v6683, %v6882
    %vm6885 = vcmp.eq.f32.partialorder %v6683, 0.0
    %v6886 = vand.u32 %v6683, 2147483648
    %v6887 = vsel %vm6885, %v6886, %v6884
    %v6888 = vrsqrt.pop %v6684
    %v6889 = vmul.f32 %v6684, %v6888
    %vm6890 = vcmp.eq.f32.partialorder %v6684, inf
    %v6891 = vsel %vm6890, %v6684, %v6889
    %vm6892 = vcmp.eq.f32.partialorder %v6684, 0.0
    %v6893 = vand.u32 %v6684, 2147483648
    %v6894 = vsel %vm6892, %v6893, %v6891
    %v6895 = vrsqrt.pop %v6685
    %v6896 = vmul.f32 %v6685, %v6895
    %vm6897 = vcmp.eq.f32.partialorder %v6685, inf
    %v6898 = vsel %vm6897, %v6685, %v6896
    %vm6899 = vcmp.eq.f32.partialorder %v6685, 0.0
    %v6900 = vand.u32 %v6685, 2147483648
    %v6901 = vsel %vm6899, %v6900, %v6898
    %v6902 = vrsqrt.pop %v6686
    %v6903 = vmul.f32 %v6686, %v6902
    %vm6904 = vcmp.eq.f32.partialorder %v6686, inf
    %v6905 = vsel %vm6904, %v6686, %v6903
    %vm6906 = vcmp.eq.f32.partialorder %v6686, 0.0
    %v6907 = vand.u32 %v6686, 2147483648
    %v6908 = vsel %vm6906, %v6907, %v6905
    %v6909 = vrsqrt.pop %v6687
    %v6910 = vmul.f32 %v6687, %v6909
    %vm6911 = vcmp.eq.f32.partialorder %v6687, inf
    %v6912 = vsel %vm6911, %v6687, %v6910
    %vm6913 = vcmp.eq.f32.partialorder %v6687, 0.0
    %v6914 = vand.u32 %v6687, 2147483648
    %v6915 = vsel %vm6913, %v6914, %v6912
    %v6916 = vrsqrt.pop %v6688
    %v6917 = vmul.f32 %v6688, %v6916
    %vm6918 = vcmp.eq.f32.partialorder %v6688, inf
    %v6919 = vsel %vm6918, %v6688, %v6917
    %vm6920 = vcmp.eq.f32.partialorder %v6688, 0.0
    %v6921 = vand.u32 %v6688, 2147483648
    %v6922 = vsel %vm6920, %v6921, %v6919
    %v6923 = vrsqrt.pop %v6689
    %v6924 = vmul.f32 %v6689, %v6923
    %vm6925 = vcmp.eq.f32.partialorder %v6689, inf
    %v6926 = vsel %vm6925, %v6689, %v6924
    %vm6927 = vcmp.eq.f32.partialorder %v6689, 0.0
    %v6928 = vand.u32 %v6689, 2147483648
    %v6929 = vsel %vm6927, %v6928, %v6926
    %v6930 = vrsqrt.pop %v6690
    %v6931 = vmul.f32 %v6690, %v6930
    %vm6932 = vcmp.eq.f32.partialorder %v6690, inf
    %v6933 = vsel %vm6932, %v6690, %v6931
    %vm6934 = vcmp.eq.f32.partialorder %v6690, 0.0
    %v6935 = vand.u32 %v6690, 2147483648
    %v6936 = vsel %vm6934, %v6935, %v6933
    %v6937 = vrsqrt.pop %v6691
    %v6938 = vmul.f32 %v6691, %v6937
    %vm6939 = vcmp.eq.f32.partialorder %v6691, inf
    %v6940 = vsel %vm6939, %v6691, %v6938
    %vm6941 = vcmp.eq.f32.partialorder %v6691, 0.0
    %v6942 = vand.u32 %v6691, 2147483648
    %v6943 = vsel %vm6941, %v6942, %v6940
    %v6944 = vld [vmem:[#allocation2] sm:$0xff]
    %v6945 = vld [vmem:[#allocation2 + $0x8] sm:$0xff]
    %v6946 = vld [vmem:[#allocation2 + $0x10] sm:$0xff]
    %v6947 = vld [vmem:[#allocation2 + $0x18] sm:$0xff]
    %v6948 = vld [vmem:[#allocation2 + $0x20] sm:$0xff]
    %v6949 = vld [vmem:[#allocation2 + $0x28] sm:$0xff]
    %v6950 = vld [vmem:[#allocation2 + $0x30] sm:$0xff]
    %v6951 = vld [vmem:[#allocation2 + $0x38] sm:$0xff]
    %v6952 = vld [vmem:[#allocation2 + $0x40] sm:$0xff]
    %v6953 = vld [vmem:[#allocation2 + $0x48] sm:$0xff]
    %v6954 = vld [vmem:[#allocation2 + $0x50] sm:$0xff]
    %v6955 = vld [vmem:[#allocation2 + $0x58] sm:$0xff]
    %v6956 = vld [vmem:[#allocation2 + $0x60] sm:$0xff]
    %v6957 = vld [vmem:[#allocation2 + $0x68] sm:$0xff]
    %v6958 = vld [vmem:[#allocation2 + $0x70] sm:$0xff]
    %v6959 = vld [vmem:[#allocation2 + $0x78] sm:$0xff]
    %v6960 = vld [vmem:[#allocation2 + $0x80] sm:$0xff]
    %v6961 = vld [vmem:[#allocation2 + $0x88] sm:$0xff]
    %v6962 = vld [vmem:[#allocation2 + $0x90] sm:$0xff]
    %v6963 = vld [vmem:[#allocation2 + $0x98] sm:$0xff]
    %v6964 = vld [vmem:[#allocation2 + $0xa0] sm:$0xff]
    %v6965 = vld [vmem:[#allocation2 + $0xa8] sm:$0xff]
    %v6966 = vld [vmem:[#allocation2 + $0xb0] sm:$0xff]
    %v6967 = vld [vmem:[#allocation2 + $0xb8] sm:$0xff]
    %v6968 = vld [vmem:[#allocation2 + $0xc0] sm:$0xff]
    %v6969 = vld [vmem:[#allocation2 + $0xc8] sm:$0xff]
    %v6970 = vld [vmem:[#allocation2 + $0xd0] sm:$0xff]
    %v6971 = vld [vmem:[#allocation2 + $0xd8] sm:$0xff]
    %v6972 = vld [vmem:[#allocation2 + $0xe0] sm:$0xff]
    %v6973 = vld [vmem:[#allocation2 + $0xe8] sm:$0xff]
    %v6974 = vld [vmem:[#allocation2 + $0xf0] sm:$0xff]
    %v6975 = vld [vmem:[#allocation2 + $0xf8] sm:$0xff]
    %v6976 = vld [vmem:[#allocation2 + $0x100] sm:$0xff]
    %v6977 = vld [vmem:[#allocation2 + $0x108] sm:$0xff]
    %v6978 = vld [vmem:[#allocation2 + $0x110] sm:$0xff]
    %v6979 = vld [vmem:[#allocation2 + $0x118] sm:$0xff]
    %v6980 = vadd.f32 %v6439, %v6619
    %v6981 = vadd.f32 %v6440, %v6620
    %v6982 = vadd.f32 %v6441, %v6621
    %v6983 = vadd.f32 %v6442, %v6622
    %v6984 = vadd.f32 %v6443, %v6623
    %v6985 = vadd.f32 %v6444, %v6624
    %v6986 = vadd.f32 %v6445, %v6625
    %v6987 = vadd.f32 %v6446, %v6626
    %v6988 = vadd.f32 %v6447, %v6627
    %v6989 = vadd.f32 %v6448, %v6628
    %v6990 = vadd.f32 %v6449, %v6629
    %v6991 = vadd.f32 %v6450, %v6630
    %v6992 = vadd.f32 %v6451, %v6631
    %v6993 = vadd.f32 %v6452, %v6632
    %v6994 = vadd.f32 %v6453, %v6633
    %v6995 = vadd.f32 %v6454, %v6634
    %v6996 = vadd.f32 %v6455, %v6635
    %v6997 = vadd.f32 %v6456, %v6636
    %v6998 = vadd.f32 %v6457, %v6637
    %v6999 = vadd.f32 %v6458, %v6638
    %v7000 = vadd.f32 %v6459, %v6639
    %v7001 = vadd.f32 %v6460, %v6640
    %v7002 = vadd.f32 %v6461, %v6641
    %v7003 = vadd.f32 %v6462, %v6642
    %v7004 = vadd.f32 %v6463, %v6643
    %v7005 = vadd.f32 %v6464, %v6644
    %v7006 = vadd.f32 %v6465, %v6645
    %v7007 = vadd.f32 %v6466, %v6646
    %v7008 = vadd.f32 %v6467, %v6647
    %v7009 = vadd.f32 %v6468, %v6648
    %v7010 = vadd.f32 %v6469, %v6649
    %v7011 = vadd.f32 %v6470, %v6650
    %v7012 = vadd.f32 %v6471, %v6651
    %v7013 = vadd.f32 %v6472, %v6652
    %v7014 = vadd.f32 %v6473, %v6653
    %v7015 = vadd.f32 %v6474, %v6654
    %v7016 = vmul.f32 %v6698, 2.0
    %v7017 = vmul.f32 %v6705, 2.0
    %v7018 = vmul.f32 %v6712, 2.0
    %v7019 = vmul.f32 %v6719, 2.0
    %v7020 = vmul.f32 %v6726, 2.0
    %v7021 = vmul.f32 %v6733, 2.0
    %v7022 = vmul.f32 %v6740, 2.0
    %v7023 = vmul.f32 %v6747, 2.0
    %v7024 = vmul.f32 %v6754, 2.0
    %v7025 = vmul.f32 %v6761, 2.0
    %v7026 = vmul.f32 %v6768, 2.0
    %v7027 = vmul.f32 %v6775, 2.0
    %v7028 = vmul.f32 %v6782, 2.0
    %v7029 = vmul.f32 %v6789, 2.0
    %v7030 = vmul.f32 %v6796, 2.0
    %v7031 = vmul.f32 %v6803, 2.0
    %v7032 = vmul.f32 %v6810, 2.0
    %v7033 = vmul.f32 %v6817, 2.0
    %v7034 = vmul.f32 %v6824, 2.0
    %v7035 = vmul.f32 %v6831, 2.0
    %v7036 = vmul.f32 %v6838, 2.0
    %v7037 = vmul.f32 %v6845, 2.0
    %v7038 = vmul.f32 %v6852, 2.0
    %v7039 = vmul.f32 %v6859, 2.0
    %v7040 = vmul.f32 %v6866, 2.0
    %v7041 = vmul.f32 %v6873, 2.0
    %v7042 = vmul.f32 %v6880, 2.0
    %v7043 = vmul.f32 %v6887, 2.0
    %v7044 = vmul.f32 %v6894, 2.0
    %v7045 = vmul.f32 %v6901, 2.0
    %v7046 = vmul.f32 %v6908, 2.0
    %v7047 = vmul.f32 %v6915, 2.0
    %v7048 = vmul.f32 %v6922, 2.0
    %v7049 = vmul.f32 %v6929, 2.0
    %v7050 = vmul.f32 %v6936, 2.0
    %v7051 = vmul.f32 %v6943, 2.0
    %v7052 = vsub.f32 %v6980, %v7016
    %v7053 = vsub.f32 %v6981, %v7017
    %v7054 = vsub.f32 %v6982, %v7018
    %v7055 = vsub.f32 %v6983, %v7019
    %v7056 = vsub.f32 %v6984, %v7020
    %v7057 = vsub.f32 %v6985, %v7021
    %v7058 = vsub.f32 %v6986, %v7022
    %v7059 = vsub.f32 %v6987, %v7023
    %v7060 = vsub.f32 %v6988, %v7024
    %v7061 = vsub.f32 %v6989, %v7025
    %v7062 = vsub.f32 %v6990, %v7026
    %v7063 = vsub.f32 %v6991, %v7027
    %v7064 = vsub.f32 %v6992, %v7028
    %v7065 = vsub.f32 %v6993, %v7029
    %v7066 = vsub.f32 %v6994, %v7030
    %v7067 = vsub.f32 %v6995, %v7031
    %v7068 = vsub.f32 %v6996, %v7032
    %v7069 = vsub.f32 %v6997, %v7033
    %v7070 = vsub.f32 %v6998, %v7034
    %v7071 = vsub.f32 %v6999, %v7035
    %v7072 = vsub.f32 %v7000, %v7036
    %v7073 = vsub.f32 %v7001, %v7037
    %v7074 = vsub.f32 %v7002, %v7038
    %v7075 = vsub.f32 %v7003, %v7039
    %v7076 = vsub.f32 %v7004, %v7040
    %v7077 = vsub.f32 %v7005, %v7041
    %v7078 = vsub.f32 %v7006, %v7042
    %v7079 = vsub.f32 %v7007, %v7043
    %v7080 = vsub.f32 %v7008, %v7044
    %v7081 = vsub.f32 %v7009, %v7045
    %v7082 = vsub.f32 %v7010, %v7046
    %v7083 = vsub.f32 %v7011, %v7047
    %v7084 = vsub.f32 %v7012, %v7048
    %v7085 = vsub.f32 %v7013, %v7049
    %v7086 = vsub.f32 %v7014, %v7050
    %v7087 = vsub.f32 %v7015, %v7051
    %v7089 = vlaneseq
    %v7090 = vshrl.u32 %v7089, 7
    %v7091 = vsub.s32 0, %v7090
    %v7092 = vrot.slane %v6655, %v7091
    %v7093 = vlaneseq
    %v7094 = vshrl.u32 %v7093, 7
    %v7095 = vsub.s32 1, %v7094
    %v7096 = vrot.slane %v6655, %v7095
    %v7097 = vlaneseq
    %v7098 = vshrl.u32 %v7097, 7
    %v7099 = vsub.s32 2, %v7098
    %v7100 = vrot.slane %v6655, %v7099
    %v7101 = vlaneseq
    %v7102 = vshrl.u32 %v7101, 7
    %v7103 = vsub.s32 3, %v7102
    %v7104 = vrot.slane %v6655, %v7103
    %v7109 = vmul.f32 %v7092, %v7052
    %v7110 = vmul.f32 %v7096, %v7053
    %v7111 = vmul.f32 %v7100, %v7054
    %v7112 = vmul.f32 %v7104, %v7055
    %v7113 = vmul.f32 %v7092, %v7056
    %v7114 = vmul.f32 %v7096, %v7057
    %v7115 = vmul.f32 %v7100, %v7058
    %v7116 = vmul.f32 %v7104, %v7059
    %v7117 = vmul.f32 %v7092, %v7060
    %v7118 = vmul.f32 %v7096, %v7061
    %v7119 = vmul.f32 %v7100, %v7062
    %v7120 = vmul.f32 %v7104, %v7063
    %v7121 = vmul.f32 %v7092, %v7064
    %v7122 = vmul.f32 %v7096, %v7065
    %v7123 = vmul.f32 %v7100, %v7066
    %v7124 = vmul.f32 %v7104, %v7067
    %v7125 = vmul.f32 %v7092, %v7068
    %v7126 = vmul.f32 %v7096, %v7069
    %v7127 = vmul.f32 %v7100, %v7070
    %v7128 = vmul.f32 %v7104, %v7071
    %v7129 = vmul.f32 %v7092, %v7072
    %v7130 = vmul.f32 %v7096, %v7073
    %v7131 = vmul.f32 %v7100, %v7074
    %v7132 = vmul.f32 %v7104, %v7075
    %v7133 = vmul.f32 %v7092, %v7076
    %v7134 = vmul.f32 %v7096, %v7077
    %v7135 = vmul.f32 %v7100, %v7078
    %v7136 = vmul.f32 %v7104, %v7079
    %v7137 = vmul.f32 %v7092, %v7080
    %v7138 = vmul.f32 %v7096, %v7081
    %v7139 = vmul.f32 %v7100, %v7082
    %v7140 = vmul.f32 %v7104, %v7083
    %v7141 = vmul.f32 %v7092, %v7084
    %v7142 = vmul.f32 %v7096, %v7085
    %v7143 = vmul.f32 %v7100, %v7086
    %v7144 = vmul.f32 %v7104, %v7087
    %v7145 = vadd.f32 %v6944, %v7109
    %v7146 = vadd.f32 %v6945, %v7110
    %v7147 = vadd.f32 %v6946, %v7111
    %v7148 = vadd.f32 %v6947, %v7112
    %v7149 = vadd.f32 %v6948, %v7113
    %v7150 = vadd.f32 %v6949, %v7114
    %v7151 = vadd.f32 %v6950, %v7115
    %v7152 = vadd.f32 %v6951, %v7116
    %v7153 = vadd.f32 %v6952, %v7117
    %v7154 = vadd.f32 %v6953, %v7118
    %v7155 = vadd.f32 %v6954, %v7119
    %v7156 = vadd.f32 %v6955, %v7120
    %v7157 = vadd.f32 %v6956, %v7121
    %v7158 = vadd.f32 %v6957, %v7122
    %v7159 = vadd.f32 %v6958, %v7123
    %v7160 = vadd.f32 %v6959, %v7124
    %v7161 = vadd.f32 %v6960, %v7125
    %v7162 = vadd.f32 %v6961, %v7126
    %v7163 = vadd.f32 %v6962, %v7127
    %v7164 = vadd.f32 %v6963, %v7128
    %v7165 = vadd.f32 %v6964, %v7129
    %v7166 = vadd.f32 %v6965, %v7130
    %v7167 = vadd.f32 %v6966, %v7131
    %v7168 = vadd.f32 %v6967, %v7132
    %v7169 = vadd.f32 %v6968, %v7133
    %v7170 = vadd.f32 %v6969, %v7134
    %v7171 = vadd.f32 %v6970, %v7135
    %v7172 = vadd.f32 %v6971, %v7136
    %v7173 = vadd.f32 %v6972, %v7137
    %v7174 = vadd.f32 %v6973, %v7138
    %v7175 = vadd.f32 %v6974, %v7139
    %v7176 = vadd.f32 %v6975, %v7140
    %v7177 = vadd.f32 %v6976, %v7141
    %v7178 = vadd.f32 %v6977, %v7142
    %v7179 = vadd.f32 %v6978, %v7143
    %v7180 = vadd.f32 %v6979, %v7144
    %7181 = vst [vmem:[#allocation2] sm:$0xff] %v7145
    %7182 = vst [vmem:[#allocation2 + $0x8] sm:$0xff] %v7146
    %7183 = vst [vmem:[#allocation2 + $0x10] sm:$0xff] %v7147
    %7184 = vst [vmem:[#allocation2 + $0x18] sm:$0xff] %v7148
    %7185 = vst [vmem:[#allocation2 + $0x20] sm:$0xff] %v7149
    %7186 = vst [vmem:[#allocation2 + $0x28] sm:$0xff] %v7150
    %7187 = vst [vmem:[#allocation2 + $0x30] sm:$0xff] %v7151
    %7188 = vst [vmem:[#allocation2 + $0x38] sm:$0xff] %v7152
    %7189 = vst [vmem:[#allocation2 + $0x40] sm:$0xff] %v7153
    %7190 = vst [vmem:[#allocation2 + $0x48] sm:$0xff] %v7154
    %7191 = vst [vmem:[#allocation2 + $0x50] sm:$0xff] %v7155
    %7192 = vst [vmem:[#allocation2 + $0x58] sm:$0xff] %v7156
    %7193 = vst [vmem:[#allocation2 + $0x60] sm:$0xff] %v7157
    %7194 = vst [vmem:[#allocation2 + $0x68] sm:$0xff] %v7158
    %7195 = vst [vmem:[#allocation2 + $0x70] sm:$0xff] %v7159
    %7196 = vst [vmem:[#allocation2 + $0x78] sm:$0xff] %v7160
    %7197 = vst [vmem:[#allocation2 + $0x80] sm:$0xff] %v7161
    %7198 = vst [vmem:[#allocation2 + $0x88] sm:$0xff] %v7162
    %7199 = vst [vmem:[#allocation2 + $0x90] sm:$0xff] %v7163
    %7200 = vst [vmem:[#allocation2 + $0x98] sm:$0xff] %v7164
    %7201 = vst [vmem:[#allocation2 + $0xa0] sm:$0xff] %v7165
    %7202 = vst [vmem:[#allocation2 + $0xa8] sm:$0xff] %v7166
    %7203 = vst [vmem:[#allocation2 + $0xb0] sm:$0xff] %v7167
    %7204 = vst [vmem:[#allocation2 + $0xb8] sm:$0xff] %v7168
    %7205 = vst [vmem:[#allocation2 + $0xc0] sm:$0xff] %v7169
    %7206 = vst [vmem:[#allocation2 + $0xc8] sm:$0xff] %v7170
    %7207 = vst [vmem:[#allocation2 + $0xd0] sm:$0xff] %v7171
    %7208 = vst [vmem:[#allocation2 + $0xd8] sm:$0xff] %v7172
    %7209 = vst [vmem:[#allocation2 + $0xe0] sm:$0xff] %v7173
    %7210 = vst [vmem:[#allocation2 + $0xe8] sm:$0xff] %v7174
    %7211 = vst [vmem:[#allocation2 + $0xf0] sm:$0xff] %v7175
    %7212 = vst [vmem:[#allocation2 + $0xf8] sm:$0xff] %v7176
    %7213 = vst [vmem:[#allocation2 + $0x100] sm:$0xff] %v7177
    %7214 = vst [vmem:[#allocation2 + $0x108] sm:$0xff] %v7178
    %7215 = vst [vmem:[#allocation2 + $0x110] sm:$0xff] %v7179
    %7216 = vst [vmem:[#allocation2 + $0x118] sm:$0xff] %v7180
    %v7217 = vld [vmem:[#allocation3] sm:$0xff]
    %v7218 = vld [vmem:[#allocation3 + $0x8] sm:$0xff]
    %v7219 = vld [vmem:[#allocation3 + $0x10] sm:$0xff]
    %v7220 = vld [vmem:[#allocation3 + $0x18] sm:$0xff]
    %v7221 = vld [vmem:[#allocation3 + $0x20] sm:$0xff]
    %v7222 = vld [vmem:[#allocation3 + $0x28] sm:$0xff]
    %v7223 = vld [vmem:[#allocation3 + $0x30] sm:$0xff]
    %v7224 = vld [vmem:[#allocation3 + $0x38] sm:$0xff]
    %v7225 = vld [vmem:[#allocation3 + $0x40] sm:$0xff]
    %v7226 = vld [vmem:[#allocation3 + $0x48] sm:$0xff]
    %v7227 = vld [vmem:[#allocation3 + $0x50] sm:$0xff]
    %v7228 = vld [vmem:[#allocation3 + $0x58] sm:$0xff]
    %v7229 = vld [vmem:[#allocation3 + $0x60] sm:$0xff]
    %v7230 = vld [vmem:[#allocation3 + $0x68] sm:$0xff]
    %v7231 = vld [vmem:[#allocation3 + $0x70] sm:$0xff]
    %v7232 = vld [vmem:[#allocation3 + $0x78] sm:$0xff]
    %v7233 = vld [vmem:[#allocation3 + $0x80] sm:$0xff]
    %v7234 = vld [vmem:[#allocation3 + $0x88] sm:$0xff]
    %v7235 = vld [vmem:[#allocation3 + $0x90] sm:$0xff]
    %v7236 = vld [vmem:[#allocation3 + $0x98] sm:$0xff]
    %v7237 = vld [vmem:[#allocation3 + $0xa0] sm:$0xff]
    %v7238 = vld [vmem:[#allocation3 + $0xa8] sm:$0xff]
    %v7239 = vld [vmem:[#allocation3 + $0xb0] sm:$0xff]
    %v7240 = vld [vmem:[#allocation3 + $0xb8] sm:$0xff]
    %v7241 = vld [vmem:[#allocation3 + $0xc0] sm:$0xff]
    %v7242 = vld [vmem:[#allocation3 + $0xc8] sm:$0xff]
    %v7243 = vld [vmem:[#allocation3 + $0xd0] sm:$0xff]
    %v7244 = vld [vmem:[#allocation3 + $0xd8] sm:$0xff]
    %v7245 = vld [vmem:[#allocation3 + $0xe0] sm:$0xff]
    %v7246 = vld [vmem:[#allocation3 + $0xe8] sm:$0xff]
    %v7247 = vld [vmem:[#allocation3 + $0xf0] sm:$0xff]
    %v7248 = vld [vmem:[#allocation3 + $0xf8] sm:$0xff]
    %v7249 = vld [vmem:[#allocation3 + $0x100] sm:$0xff]
    %v7250 = vld [vmem:[#allocation3 + $0x108] sm:$0xff]
    %v7251 = vld [vmem:[#allocation3 + $0x110] sm:$0xff]
    %v7252 = vld [vmem:[#allocation3 + $0x118] sm:$0xff]
    %v7253 = vmul.f32 %v7092, %v6619
    %v7254 = vmul.f32 %v7096, %v6620
    %v7255 = vmul.f32 %v7100, %v6621
    %v7256 = vmul.f32 %v7104, %v6622
    %v7257 = vmul.f32 %v7092, %v6623
    %v7258 = vmul.f32 %v7096, %v6624
    %v7259 = vmul.f32 %v7100, %v6625
    %v7260 = vmul.f32 %v7104, %v6626
    %v7261 = vmul.f32 %v7092, %v6627
    %v7262 = vmul.f32 %v7096, %v6628
    %v7263 = vmul.f32 %v7100, %v6629
    %v7264 = vmul.f32 %v7104, %v6630
    %v7265 = vmul.f32 %v7092, %v6631
    %v7266 = vmul.f32 %v7096, %v6632
    %v7267 = vmul.f32 %v7100, %v6633
    %v7268 = vmul.f32 %v7104, %v6634
    %v7269 = vmul.f32 %v7092, %v6635
    %v7270 = vmul.f32 %v7096, %v6636
    %v7271 = vmul.f32 %v7100, %v6637
    %v7272 = vmul.f32 %v7104, %v6638
    %v7273 = vmul.f32 %v7092, %v6639
    %v7274 = vmul.f32 %v7096, %v6640
    %v7275 = vmul.f32 %v7100, %v6641
    %v7276 = vmul.f32 %v7104, %v6642
    %v7277 = vmul.f32 %v7092, %v6643
    %v7278 = vmul.f32 %v7096, %v6644
    %v7279 = vmul.f32 %v7100, %v6645
    %v7280 = vmul.f32 %v7104, %v6646
    %v7281 = vmul.f32 %v7092, %v6647
    %v7282 = vmul.f32 %v7096, %v6648
    %v7283 = vmul.f32 %v7100, %v6649
    %v7284 = vmul.f32 %v7104, %v6650
    %v7285 = vmul.f32 %v7092, %v6651
    %v7286 = vmul.f32 %v7096, %v6652
    %v7287 = vmul.f32 %v7100, %v6653
    %v7288 = vmul.f32 %v7104, %v6654
    %v7289 = vadd.f32 %v7217, %v7253
    %v7290 = vadd.f32 %v7218, %v7254
    %v7291 = vadd.f32 %v7219, %v7255
    %v7292 = vadd.f32 %v7220, %v7256
    %v7293 = vadd.f32 %v7221, %v7257
    %v7294 = vadd.f32 %v7222, %v7258
    %v7295 = vadd.f32 %v7223, %v7259
    %v7296 = vadd.f32 %v7224, %v7260
    %v7297 = vadd.f32 %v7225, %v7261
    %v7298 = vadd.f32 %v7226, %v7262
    %v7299 = vadd.f32 %v7227, %v7263
    %v7300 = vadd.f32 %v7228, %v7264
    %v7301 = vadd.f32 %v7229, %v7265
    %v7302 = vadd.f32 %v7230, %v7266
    %v7303 = vadd.f32 %v7231, %v7267
    %v7304 = vadd.f32 %v7232, %v7268
    %v7305 = vadd.f32 %v7233, %v7269
    %v7306 = vadd.f32 %v7234, %v7270
    %v7307 = vadd.f32 %v7235, %v7271
    %v7308 = vadd.f32 %v7236, %v7272
    %v7309 = vadd.f32 %v7237, %v7273
    %v7310 = vadd.f32 %v7238, %v7274
    %v7311 = vadd.f32 %v7239, %v7275
    %v7312 = vadd.f32 %v7240, %v7276
    %v7313 = vadd.f32 %v7241, %v7277
    %v7314 = vadd.f32 %v7242, %v7278
    %v7315 = vadd.f32 %v7243, %v7279
    %v7316 = vadd.f32 %v7244, %v7280
    %v7317 = vadd.f32 %v7245, %v7281
    %v7318 = vadd.f32 %v7246, %v7282
    %v7319 = vadd.f32 %v7247, %v7283
    %v7320 = vadd.f32 %v7248, %v7284
    %v7321 = vadd.f32 %v7249, %v7285
    %v7322 = vadd.f32 %v7250, %v7286
    %v7323 = vadd.f32 %v7251, %v7287
    %v7324 = vadd.f32 %v7252, %v7288
    %7325 = vst [vmem:[#allocation3] sm:$0xff] %v7289
    %7326 = vst [vmem:[#allocation3 + $0x8] sm:$0xff] %v7290
    %7327 = vst [vmem:[#allocation3 + $0x10] sm:$0xff] %v7291
    %7328 = vst [vmem:[#allocation3 + $0x18] sm:$0xff] %v7292
    %7329 = vst [vmem:[#allocation3 + $0x20] sm:$0xff] %v7293
    %7330 = vst [vmem:[#allocation3 + $0x28] sm:$0xff] %v7294
    %7331 = vst [vmem:[#allocation3 + $0x30] sm:$0xff] %v7295
    %7332 = vst [vmem:[#allocation3 + $0x38] sm:$0xff] %v7296
    %7333 = vst [vmem:[#allocation3 + $0x40] sm:$0xff] %v7297
    %7334 = vst [vmem:[#allocation3 + $0x48] sm:$0xff] %v7298
    %7335 = vst [vmem:[#allocation3 + $0x50] sm:$0xff] %v7299
    %7336 = vst [vmem:[#allocation3 + $0x58] sm:$0xff] %v7300
    %7337 = vst [vmem:[#allocation3 + $0x60] sm:$0xff] %v7301
    %7338 = vst [vmem:[#allocation3 + $0x68] sm:$0xff] %v7302
    %7339 = vst [vmem:[#allocation3 + $0x70] sm:$0xff] %v7303
    %7340 = vst [vmem:[#allocation3 + $0x78] sm:$0xff] %v7304
    %7341 = vst [vmem:[#allocation3 + $0x80] sm:$0xff] %v7305
    %7342 = vst [vmem:[#allocation3 + $0x88] sm:$0xff] %v7306
    %7343 = vst [vmem:[#allocation3 + $0x90] sm:$0xff] %v7307
    %7344 = vst [vmem:[#allocation3 + $0x98] sm:$0xff] %v7308
    %7345 = vst [vmem:[#allocation3 + $0xa0] sm:$0xff] %v7309
    %7346 = vst [vmem:[#allocation3 + $0xa8] sm:$0xff] %v7310
    %7347 = vst [vmem:[#allocation3 + $0xb0] sm:$0xff] %v7311
    %7348 = vst [vmem:[#allocation3 + $0xb8] sm:$0xff] %v7312
    %7349 = vst [vmem:[#allocation3 + $0xc0] sm:$0xff] %v7313
    %7350 = vst [vmem:[#allocation3 + $0xc8] sm:$0xff] %v7314
    %7351 = vst [vmem:[#allocation3 + $0xd0] sm:$0xff] %v7315
    %7352 = vst [vmem:[#allocation3 + $0xd8] sm:$0xff] %v7316
    %7353 = vst [vmem:[#allocation3 + $0xe0] sm:$0xff] %v7317
    %7354 = vst [vmem:[#allocation3 + $0xe8] sm:$0xff] %v7318
    %7355 = vst [vmem:[#allocation3 + $0xf0] sm:$0xff] %v7319
    %7356 = vst [vmem:[#allocation3 + $0xf8] sm:$0xff] %v7320
    %7357 = vst [vmem:[#allocation3 + $0x100] sm:$0xff] %v7321
    %7358 = vst [vmem:[#allocation3 + $0x108] sm:$0xff] %v7322
    %7359 = vst [vmem:[#allocation3 + $0x110] sm:$0xff] %v7323
    %7360 = vst [vmem:[#allocation3 + $0x118] sm:$0xff] %v7324
    %v7361 = vld [vmem:[#allocation4] sm:$0xff]
    %v7362 = vld [vmem:[#allocation4 + $0x8] sm:$0xff]
    %v7363 = vld [vmem:[#allocation4 + $0x10] sm:$0xff]
    %v7364 = vld [vmem:[#allocation4 + $0x18] sm:$0xff]
    %v7365 = vld [vmem:[#allocation4 + $0x20] sm:$0xff]
    %v7366 = vld [vmem:[#allocation4 + $0x28] sm:$0xff]
    %v7367 = vld [vmem:[#allocation4 + $0x30] sm:$0xff]
    %v7368 = vld [vmem:[#allocation4 + $0x38] sm:$0xff]
    %v7369 = vld [vmem:[#allocation4 + $0x40] sm:$0xff]
    %v7370 = vld [vmem:[#allocation4 + $0x48] sm:$0xff]
    %v7371 = vld [vmem:[#allocation4 + $0x50] sm:$0xff]
    %v7372 = vld [vmem:[#allocation4 + $0x58] sm:$0xff]
    %v7373 = vld [vmem:[#allocation4 + $0x60] sm:$0xff]
    %v7374 = vld [vmem:[#allocation4 + $0x68] sm:$0xff]
    %v7375 = vld [vmem:[#allocation4 + $0x70] sm:$0xff]
    %v7376 = vld [vmem:[#allocation4 + $0x78] sm:$0xff]
    %v7377 = vld [vmem:[#allocation4 + $0x80] sm:$0xff]
    %v7378 = vld [vmem:[#allocation4 + $0x88] sm:$0xff]
    %v7379 = vld [vmem:[#allocation4 + $0x90] sm:$0xff]
    %v7380 = vld [vmem:[#allocation4 + $0x98] sm:$0xff]
    %v7381 = vld [vmem:[#allocation4 + $0xa0] sm:$0xff]
    %v7382 = vld [vmem:[#allocation4 + $0xa8] sm:$0xff]
    %v7383 = vld [vmem:[#allocation4 + $0xb0] sm:$0xff]
    %v7384 = vld [vmem:[#allocation4 + $0xb8] sm:$0xff]
    %v7385 = vld [vmem:[#allocation4 + $0xc0] sm:$0xff]
    %v7386 = vld [vmem:[#allocation4 + $0xc8] sm:$0xff]
    %v7387 = vld [vmem:[#allocation4 + $0xd0] sm:$0xff]
    %v7388 = vld [vmem:[#allocation4 + $0xd8] sm:$0xff]
    %v7389 = vld [vmem:[#allocation4 + $0xe0] sm:$0xff]
    %v7390 = vld [vmem:[#allocation4 + $0xe8] sm:$0xff]
    %v7391 = vld [vmem:[#allocation4 + $0xf0] sm:$0xff]
    %v7392 = vld [vmem:[#allocation4 + $0xf8] sm:$0xff]
    %v7393 = vld [vmem:[#allocation4 + $0x100] sm:$0xff]
    %v7394 = vld [vmem:[#allocation4 + $0x108] sm:$0xff]
    %v7395 = vld [vmem:[#allocation4 + $0x110] sm:$0xff]
    %v7396 = vld [vmem:[#allocation4 + $0x118] sm:$0xff]
    %v7397 = vrcp.pop %v6439
    %v7398 = vrcp.pop %v6440
    %v7399 = vrcp.pop %v6441
    %v7400 = vrcp.pop %v6442
    %v7401 = vrcp.pop %v6443
    %v7402 = vrcp.pop %v6444
    %v7403 = vrcp.pop %v6445
    %v7404 = vrcp.pop %v6446
    %v7405 = vrcp.pop %v6447
    %v7406 = vrcp.pop %v6448
    %v7407 = vrcp.pop %v6449
    %v7408 = vrcp.pop %v6450
    %v7409 = vrcp.pop %v6451
    %v7410 = vrcp.pop %v6452
    %v7411 = vrcp.pop %v6453
    %v7412 = vrcp.pop %v6454
    %v7413 = vrcp.pop %v6455
    %v7414 = vrcp.pop %v6456
    %v7415 = vrcp.pop %v6457
    %v7416 = vrcp.pop %v6458
    %v7417 = vrcp.pop %v6459
    %v7418 = vrcp.pop %v6460
    %v7419 = vrcp.pop %v6461
    %v7420 = vrcp.pop %v6462
    %v7421 = vrcp.pop %v6463
    %v7422 = vrcp.pop %v6464
    %v7423 = vrcp.pop %v6465
    %v7424 = vrcp.pop %v6466
    %v7425 = vrcp.pop %v6467
    %v7426 = vrcp.pop %v6468
    %v7427 = vrcp.pop %v6469
    %v7428 = vrcp.pop %v6470
    %v7429 = vrcp.pop %v6471
    %v7430 = vrcp.pop %v6472
    %v7431 = vrcp.pop %v6473
    %v7432 = vrcp.pop %v6474
    %v7433 = vmul.f32 %v6619, %v7397
    %v7434 = vmul.f32 %v6620, %v7398
    %v7435 = vmul.f32 %v6621, %v7399
    %v7436 = vmul.f32 %v6622, %v7400
    %v7437 = vmul.f32 %v6623, %v7401
    %v7438 = vmul.f32 %v6624, %v7402
    %v7439 = vmul.f32 %v6625, %v7403
    %v7440 = vmul.f32 %v6626, %v7404
    %v7441 = vmul.f32 %v6627, %v7405
    %v7442 = vmul.f32 %v6628, %v7406
    %v7443 = vmul.f32 %v6629, %v7407
    %v7444 = vmul.f32 %v6630, %v7408
    %v7445 = vmul.f32 %v6631, %v7409
    %v7446 = vmul.f32 %v6632, %v7410
    %v7447 = vmul.f32 %v6633, %v7411
    %v7448 = vmul.f32 %v6634, %v7412
    %v7449 = vmul.f32 %v6635, %v7413
    %v7450 = vmul.f32 %v6636, %v7414
    %v7451 = vmul.f32 %v6637, %v7415
    %v7452 = vmul.f32 %v6638, %v7416
    %v7453 = vmul.f32 %v6639, %v7417
    %v7454 = vmul.f32 %v6640, %v7418
    %v7455 = vmul.f32 %v6641, %v7419
    %v7456 = vmul.f32 %v6642, %v7420
    %v7457 = vmul.f32 %v6643, %v7421
    %v7458 = vmul.f32 %v6644, %v7422
    %v7459 = vmul.f32 %v6645, %v7423
    %v7460 = vmul.f32 %v6646, %v7424
    %v7461 = vmul.f32 %v6647, %v7425
    %v7462 = vmul.f32 %v6648, %v7426
    %v7463 = vmul.f32 %v6649, %v7427
    %v7464 = vmul.f32 %v6650, %v7428
    %v7465 = vmul.f32 %v6651, %v7429
    %v7466 = vmul.f32 %v6652, %v7430
    %v7467 = vmul.f32 %v6653, %v7431
    %v7468 = vmul.f32 %v6654, %v7432
    %v7469 = vlog2.pop %v7433
    %v7470 = vmul.f32 %v7469, 0.6931472
    %v7471 = vlog2.pop %v7434
    %v7472 = vmul.f32 %v7471, 0.6931472
    %v7473 = vlog2.pop %v7435
    %v7474 = vmul.f32 %v7473, 0.6931472
    %v7475 = vlog2.pop %v7436
    %v7476 = vmul.f32 %v7475, 0.6931472
    %v7477 = vlog2.pop %v7437
    %v7478 = vmul.f32 %v7477, 0.6931472
    %v7479 = vlog2.pop %v7438
    %v7480 = vmul.f32 %v7479, 0.6931472
    %v7481 = vlog2.pop %v7439
    %v7482 = vmul.f32 %v7481, 0.6931472
    %v7483 = vlog2.pop %v7440
    %v7484 = vmul.f32 %v7483, 0.6931472
    %v7485 = vlog2.pop %v7441
    %v7486 = vmul.f32 %v7485, 0.6931472
    %v7487 = vlog2.pop %v7442
    %v7488 = vmul.f32 %v7487, 0.6931472
    %v7489 = vlog2.pop %v7443
    %v7490 = vmul.f32 %v7489, 0.6931472
    %v7491 = vlog2.pop %v7444
    %v7492 = vmul.f32 %v7491, 0.6931472
    %v7493 = vlog2.pop %v7445
    %v7494 = vmul.f32 %v7493, 0.6931472
    %v7495 = vlog2.pop %v7446
    %v7496 = vmul.f32 %v7495, 0.6931472
    %v7497 = vlog2.pop %v7447
    %v7498 = vmul.f32 %v7497, 0.6931472
    %v7499 = vlog2.pop %v7448
    %v7500 = vmul.f32 %v7499, 0.6931472
    %v7501 = vlog2.pop %v7449
    %v7502 = vmul.f32 %v7501, 0.6931472
    %v7503 = vlog2.pop %v7450
    %v7504 = vmul.f32 %v7503, 0.6931472
    %v7505 = vlog2.pop %v7451
    %v7506 = vmul.f32 %v7505, 0.6931472
    %v7507 = vlog2.pop %v7452
    %v7508 = vmul.f32 %v7507, 0.6931472
    %v7509 = vlog2.pop %v7453
    %v7510 = vmul.f32 %v7509, 0.6931472
    %v7511 = vlog2.pop %v7454
    %v7512 = vmul.f32 %v7511, 0.6931472
    %v7513 = vlog2.pop %v7455
    %v7514 = vmul.f32 %v7513, 0.6931472
    %v7515 = vlog2.pop %v7456
    %v7516 = vmul.f32 %v7515, 0.6931472
    %v7517 = vlog2.pop %v7457
    %v7518 = vmul.f32 %v7517, 0.6931472
    %v7519 = vlog2.pop %v7458
    %v7520 = vmul.f32 %v7519, 0.6931472
    %v7521 = vlog2.pop %v7459
    %v7522 = vmul.f32 %v7521, 0.6931472
    %v7523 = vlog2.pop %v7460
    %v7524 = vmul.f32 %v7523, 0.6931472
    %v7525 = vlog2.pop %v7461
    %v7526 = vmul.f32 %v7525, 0.6931472
    %v7527 = vlog2.pop %v7462
    %v7528 = vmul.f32 %v7527, 0.6931472
    %v7529 = vlog2.pop %v7463
    %v7530 = vmul.f32 %v7529, 0.6931472
    %v7531 = vlog2.pop %v7464
    %v7532 = vmul.f32 %v7531, 0.6931472
    %v7533 = vlog2.pop %v7465
    %v7534 = vmul.f32 %v7533, 0.6931472
    %v7535 = vlog2.pop %v7466
    %v7536 = vmul.f32 %v7535, 0.6931472
    %v7537 = vlog2.pop %v7467
    %v7538 = vmul.f32 %v7537, 0.6931472
    %v7539 = vlog2.pop %v7468
    %v7540 = vmul.f32 %v7539, 0.6931472
    %v7541 = vand.u32 2147483647, %v7470
    %v7542 = vand.u32 2147483647, %v7472
    %v7543 = vand.u32 2147483647, %v7474
    %v7544 = vand.u32 2147483647, %v7476
    %v7545 = vand.u32 2147483647, %v7478
    %v7546 = vand.u32 2147483647, %v7480
    %v7547 = vand.u32 2147483647, %v7482
    %v7548 = vand.u32 2147483647, %v7484
    %v7549 = vand.u32 2147483647, %v7486
    %v7550 = vand.u32 2147483647, %v7488
    %v7551 = vand.u32 2147483647, %v7490
    %v7552 = vand.u32 2147483647, %v7492
    %v7553 = vand.u32 2147483647, %v7494
    %v7554 = vand.u32 2147483647, %v7496
    %v7555 = vand.u32 2147483647, %v7498
    %v7556 = vand.u32 2147483647, %v7500
    %v7557 = vand.u32 2147483647, %v7502
    %v7558 = vand.u32 2147483647, %v7504
    %v7559 = vand.u32 2147483647, %v7506
    %v7560 = vand.u32 2147483647, %v7508
    %v7561 = vand.u32 2147483647, %v7510
    %v7562 = vand.u32 2147483647, %v7512
    %v7563 = vand.u32 2147483647, %v7514
    %v7564 = vand.u32 2147483647, %v7516
    %v7565 = vand.u32 2147483647, %v7518
    %v7566 = vand.u32 2147483647, %v7520
    %v7567 = vand.u32 2147483647, %v7522
    %v7568 = vand.u32 2147483647, %v7524
    %v7569 = vand.u32 2147483647, %v7526
    %v7570 = vand.u32 2147483647, %v7528
    %v7571 = vand.u32 2147483647, %v7530
    %v7572 = vand.u32 2147483647, %v7532
    %v7573 = vand.u32 2147483647, %v7534
    %v7574 = vand.u32 2147483647, %v7536
    %v7575 = vand.u32 2147483647, %v7538
    %v7576 = vand.u32 2147483647, %v7540
    %v7577 = vadd.f32 %v7361, %v7541
    %v7578 = vadd.f32 %v7362, %v7542
    %v7579 = vadd.f32 %v7363, %v7543
    %v7580 = vadd.f32 %v7364, %v7544
    %v7581 = vadd.f32 %v7365, %v7545
    %v7582 = vadd.f32 %v7366, %v7546
    %v7583 = vadd.f32 %v7367, %v7547
    %v7584 = vadd.f32 %v7368, %v7548
    %v7585 = vadd.f32 %v7369, %v7549
    %v7586 = vadd.f32 %v7370, %v7550
    %v7587 = vadd.f32 %v7371, %v7551
    %v7588 = vadd.f32 %v7372, %v7552
    %v7589 = vadd.f32 %v7373, %v7553
    %v7590 = vadd.f32 %v7374, %v7554
    %v7591 = vadd.f32 %v7375, %v7555
    %v7592 = vadd.f32 %v7376, %v7556
    %v7593 = vadd.f32 %v7377, %v7557
    %v7594 = vadd.f32 %v7378, %v7558
    %v7595 = vadd.f32 %v7379, %v7559
    %v7596 = vadd.f32 %v7380, %v7560
    %v7597 = vadd.f32 %v7381, %v7561
    %v7598 = vadd.f32 %v7382, %v7562
    %v7599 = vadd.f32 %v7383, %v7563
    %v7600 = vadd.f32 %v7384, %v7564
    %v7601 = vadd.f32 %v7385, %v7565
    %v7602 = vadd.f32 %v7386, %v7566
    %v7603 = vadd.f32 %v7387, %v7567
    %v7604 = vadd.f32 %v7388, %v7568
    %v7605 = vadd.f32 %v7389, %v7569
    %v7606 = vadd.f32 %v7390, %v7570
    %v7607 = vadd.f32 %v7391, %v7571
    %v7608 = vadd.f32 %v7392, %v7572
    %v7609 = vadd.f32 %v7393, %v7573
    %v7610 = vadd.f32 %v7394, %v7574
    %v7611 = vadd.f32 %v7395, %v7575
    %v7612 = vadd.f32 %v7396, %v7576
    %7613 = vst [vmem:[#allocation4] sm:$0xff] %v7577
    %7614 = vst [vmem:[#allocation4 + $0x8] sm:$0xff] %v7578
    %7615 = vst [vmem:[#allocation4 + $0x10] sm:$0xff] %v7579
    %7616 = vst [vmem:[#allocation4 + $0x18] sm:$0xff] %v7580
    %7617 = vst [vmem:[#allocation4 + $0x20] sm:$0xff] %v7581
    %7618 = vst [vmem:[#allocation4 + $0x28] sm:$0xff] %v7582
    %7619 = vst [vmem:[#allocation4 + $0x30] sm:$0xff] %v7583
    %7620 = vst [vmem:[#allocation4 + $0x38] sm:$0xff] %v7584
    %7621 = vst [vmem:[#allocation4 + $0x40] sm:$0xff] %v7585
    %7622 = vst [vmem:[#allocation4 + $0x48] sm:$0xff] %v7586
    %7623 = vst [vmem:[#allocation4 + $0x50] sm:$0xff] %v7587
    %7624 = vst [vmem:[#allocation4 + $0x58] sm:$0xff] %v7588
    %7625 = vst [vmem:[#allocation4 + $0x60] sm:$0xff] %v7589
    %7626 = vst [vmem:[#allocation4 + $0x68] sm:$0xff] %v7590
    %7627 = vst [vmem:[#allocation4 + $0x70] sm:$0xff] %v7591
    %7628 = vst [vmem:[#allocation4 + $0x78] sm:$0xff] %v7592
    %7629 = vst [vmem:[#allocation4 + $0x80] sm:$0xff] %v7593
    %7630 = vst [vmem:[#allocation4 + $0x88] sm:$0xff] %v7594
    %7631 = vst [vmem:[#allocation4 + $0x90] sm:$0xff] %v7595
    %7632 = vst [vmem:[#allocation4 + $0x98] sm:$0xff] %v7596
    %7633 = vst [vmem:[#allocation4 + $0xa0] sm:$0xff] %v7597
    %7634 = vst [vmem:[#allocation4 + $0xa8] sm:$0xff] %v7598
    %7635 = vst [vmem:[#allocation4 + $0xb0] sm:$0xff] %v7599
    %7636 = vst [vmem:[#allocation4 + $0xb8] sm:$0xff] %v7600
    %7637 = vst [vmem:[#allocation4 + $0xc0] sm:$0xff] %v7601
    %7638 = vst [vmem:[#allocation4 + $0xc8] sm:$0xff] %v7602
    %7639 = vst [vmem:[#allocation4 + $0xd0] sm:$0xff] %v7603
    %7640 = vst [vmem:[#allocation4 + $0xd8] sm:$0xff] %v7604
    %7641 = vst [vmem:[#allocation4 + $0xe0] sm:$0xff] %v7605
    %7642 = vst [vmem:[#allocation4 + $0xe8] sm:$0xff] %v7606
    %7643 = vst [vmem:[#allocation4 + $0xf0] sm:$0xff] %v7607
    %7644 = vst [vmem:[#allocation4 + $0xf8] sm:$0xff] %v7608
    %7645 = vst [vmem:[#allocation4 + $0x100] sm:$0xff] %v7609
    %7646 = vst [vmem:[#allocation4 + $0x108] sm:$0xff] %v7610
    %7647 = vst [vmem:[#allocation4 + $0x110] sm:$0xff] %v7611
    %7648 = vst [vmem:[#allocation4 + $0x118] sm:$0xff] %v7612
    // Predicated region
    $region38: #{tpu_custom_call.1} parent=1 // pred_check
      %p7649 = pneg %p71
    $region39: #{tpu_custom_call.1} parent=1 // pred_check_branch
      %7651 = sbr.rel (%p7649) target = $region41
    $region40: #{tpu_custom_call.1} parent=1 // pred_region
      %v7652 = vld [vmem:[#allocation2] sm:$0xff]
      %v7653 = vld [vmem:[#allocation2 + $0x8] sm:$0xff]
      %v7654 = vld [vmem:[#allocation2 + $0x10] sm:$0xff]
      %v7655 = vld [vmem:[#allocation2 + $0x18] sm:$0xff]
      %v7656 = vld [vmem:[#allocation2 + $0x20] sm:$0xff]
      %v7657 = vld [vmem:[#allocation2 + $0x28] sm:$0xff]
      %v7658 = vld [vmem:[#allocation2 + $0x30] sm:$0xff]
      %v7659 = vld [vmem:[#allocation2 + $0x38] sm:$0xff]
      %v7660 = vld [vmem:[#allocation2 + $0x40] sm:$0xff]
      %v7661 = vld [vmem:[#allocation2 + $0x48] sm:$0xff]
      %v7662 = vld [vmem:[#allocation2 + $0x50] sm:$0xff]
      %v7663 = vld [vmem:[#allocation2 + $0x58] sm:$0xff]
      %v7664 = vld [vmem:[#allocation2 + $0x60] sm:$0xff]
      %v7665 = vld [vmem:[#allocation2 + $0x68] sm:$0xff]
      %v7666 = vld [vmem:[#allocation2 + $0x70] sm:$0xff]
      %v7667 = vld [vmem:[#allocation2 + $0x78] sm:$0xff]
      %v7668 = vld [vmem:[#allocation2 + $0x80] sm:$0xff]
      %v7669 = vld [vmem:[#allocation2 + $0x88] sm:$0xff]
      %v7670 = vld [vmem:[#allocation2 + $0x90] sm:$0xff]
      %v7671 = vld [vmem:[#allocation2 + $0x98] sm:$0xff]
      %v7672 = vld [vmem:[#allocation2 + $0xa0] sm:$0xff]
      %v7673 = vld [vmem:[#allocation2 + $0xa8] sm:$0xff]
      %v7674 = vld [vmem:[#allocation2 + $0xb0] sm:$0xff]
      %v7675 = vld [vmem:[#allocation2 + $0xb8] sm:$0xff]
      %v7676 = vld [vmem:[#allocation2 + $0xc0] sm:$0xff]
      %v7677 = vld [vmem:[#allocation2 + $0xc8] sm:$0xff]
      %v7678 = vld [vmem:[#allocation2 + $0xd0] sm:$0xff]
      %v7679 = vld [vmem:[#allocation2 + $0xd8] sm:$0xff]
      %v7680 = vld [vmem:[#allocation2 + $0xe0] sm:$0xff]
      %v7681 = vld [vmem:[#allocation2 + $0xe8] sm:$0xff]
      %v7682 = vld [vmem:[#allocation2 + $0xf0] sm:$0xff]
      %v7683 = vld [vmem:[#allocation2 + $0xf8] sm:$0xff]
      %v7684 = vld [vmem:[#allocation2 + $0x100] sm:$0xff]
      %v7685 = vld [vmem:[#allocation2 + $0x108] sm:$0xff]
      %v7686 = vld [vmem:[#allocation2 + $0x110] sm:$0xff]
      %v7687 = vld [vmem:[#allocation2 + $0x118] sm:$0xff]
      %v7688 = vadd.f32 %v7652, %v7653
      %v7689 = vadd.f32 %v7688, %v7654
      %v7690 = vadd.f32 %v7689, %v7655
      %v7691 = vadd.f32 %v7690, %v7656
      %v7692 = vadd.f32 %v7691, %v7657
      %v7693 = vadd.f32 %v7692, %v7658
      %v7694 = vadd.f32 %v7693, %v7659
      %v7695 = vadd.f32 %v7694, %v7660
      %v7696 = vadd.f32 %v7695, %v7661
      %v7697 = vadd.f32 %v7696, %v7662
      %v7698 = vadd.f32 %v7697, %v7663
      %v7699 = vadd.f32 %v7698, %v7664
      %v7700 = vadd.f32 %v7699, %v7665
      %v7701 = vadd.f32 %v7700, %v7666
      %v7702 = vadd.f32 %v7701, %v7667
      %v7703 = vadd.f32 %v7702, %v7668
      %v7704 = vadd.f32 %v7703, %v7669
      %v7705 = vadd.f32 %v7704, %v7670
      %v7706 = vadd.f32 %v7705, %v7671
      %v7707 = vadd.f32 %v7706, %v7672
      %v7708 = vadd.f32 %v7707, %v7673
      %v7709 = vadd.f32 %v7708, %v7674
      %v7710 = vadd.f32 %v7709, %v7675
      %v7711 = vadd.f32 %v7710, %v7676
      %v7712 = vadd.f32 %v7711, %v7677
      %v7713 = vadd.f32 %v7712, %v7678
      %v7714 = vadd.f32 %v7713, %v7679
      %v7715 = vadd.f32 %v7714, %v7680
      %v7716 = vadd.f32 %v7715, %v7681
      %v7717 = vadd.f32 %v7716, %v7682
      %v7718 = vadd.f32 %v7717, %v7683
      %v7719 = vadd.f32 %v7718, %v7684
      %v7720 = vadd.f32 %v7719, %v7685
      %v7721 = vadd.f32 %v7720, %v7686
      %v7722 = vadd.f32 %v7721, %v7687
      %7723 = vadd.xlane.f32.xlu0 %v7722
      %v7724 = vpop.xlane.xlu0 %7723
      %v7725 = vrot.slane %v7724, 4
      %v7726 = vadd.f32 %v7724, %v7725
      %v7727 = vrot.slane %v7726, 2
      %v7728 = vadd.f32 %v7726, %v7727
      %v7729 = vrot.slane %v7728, 1
      %v7730 = vadd.f32 %v7728, %v7729
      %s7731 = vtos %v7730
      %s7732 = scalar_lea.smem [#allocation13], 0
      %7733 = sst [smem:[%s7732]] %s7731
      %v7734 = vld [vmem:[#allocation3] sm:$0xff]
      %v7735 = vld [vmem:[#allocation3 + $0x8] sm:$0xff]
      %v7736 = vld [vmem:[#allocation3 + $0x10] sm:$0xff]
      %v7737 = vld [vmem:[#allocation3 + $0x18] sm:$0xff]
      %v7738 = vld [vmem:[#allocation3 + $0x20] sm:$0xff]
      %v7739 = vld [vmem:[#allocation3 + $0x28] sm:$0xff]
      %v7740 = vld [vmem:[#allocation3 + $0x30] sm:$0xff]
      %v7741 = vld [vmem:[#allocation3 + $0x38] sm:$0xff]
      %v7742 = vld [vmem:[#allocation3 + $0x40] sm:$0xff]
      %v7743 = vld [vmem:[#allocation3 + $0x48] sm:$0xff]
      %v7744 = vld [vmem:[#allocation3 + $0x50] sm:$0xff]
      %v7745 = vld [vmem:[#allocation3 + $0x58] sm:$0xff]
      %v7746 = vld [vmem:[#allocation3 + $0x60] sm:$0xff]
      %v7747 = vld [vmem:[#allocation3 + $0x68] sm:$0xff]
      %v7748 = vld [vmem:[#allocation3 + $0x70] sm:$0xff]
      %v7749 = vld [vmem:[#allocation3 + $0x78] sm:$0xff]
      %v7750 = vld [vmem:[#allocation3 + $0x80] sm:$0xff]
      %v7751 = vld [vmem:[#allocation3 + $0x88] sm:$0xff]
      %v7752 = vld [vmem:[#allocation3 + $0x90] sm:$0xff]
      %v7753 = vld [vmem:[#allocation3 + $0x98] sm:$0xff]
      %v7754 = vld [vmem:[#allocation3 + $0xa0] sm:$0xff]
      %v7755 = vld [vmem:[#allocation3 + $0xa8] sm:$0xff]
      %v7756 = vld [vmem:[#allocation3 + $0xb0] sm:$0xff]
      %v7757 = vld [vmem:[#allocation3 + $0xb8] sm:$0xff]
      %v7758 = vld [vmem:[#allocation3 + $0xc0] sm:$0xff]
      %v7759 = vld [vmem:[#allocation3 + $0xc8] sm:$0xff]
      %v7760 = vld [vmem:[#allocation3 + $0xd0] sm:$0xff]
      %v7761 = vld [vmem:[#allocation3 + $0xd8] sm:$0xff]
      %v7762 = vld [vmem:[#allocation3 + $0xe0] sm:$0xff]
      %v7763 = vld [vmem:[#allocation3 + $0xe8] sm:$0xff]
      %v7764 = vld [vmem:[#allocation3 + $0xf0] sm:$0xff]
      %v7765 = vld [vmem:[#allocation3 + $0xf8] sm:$0xff]
      %v7766 = vld [vmem:[#allocation3 + $0x100] sm:$0xff]
      %v7767 = vld [vmem:[#allocation3 + $0x108] sm:$0xff]
      %v7768 = vld [vmem:[#allocation3 + $0x110] sm:$0xff]
      %v7769 = vld [vmem:[#allocation3 + $0x118] sm:$0xff]
      %v7770 = vadd.f32 %v7734, %v7735
      %v7771 = vadd.f32 %v7770, %v7736
      %v7772 = vadd.f32 %v7771, %v7737
      %v7773 = vadd.f32 %v7772, %v7738
      %v7774 = vadd.f32 %v7773, %v7739
      %v7775 = vadd.f32 %v7774, %v7740
      %v7776 = vadd.f32 %v7775, %v7741
      %v7777 = vadd.f32 %v7776, %v7742
      %v7778 = vadd.f32 %v7777, %v7743
      %v7779 = vadd.f32 %v7778, %v7744
      %v7780 = vadd.f32 %v7779, %v7745
      %v7781 = vadd.f32 %v7780, %v7746
      %v7782 = vadd.f32 %v7781, %v7747
      %v7783 = vadd.f32 %v7782, %v7748
      %v7784 = vadd.f32 %v7783, %v7749
      %v7785 = vadd.f32 %v7784, %v7750
      %v7786 = vadd.f32 %v7785, %v7751
      %v7787 = vadd.f32 %v7786, %v7752
      %v7788 = vadd.f32 %v7787, %v7753
      %v7789 = vadd.f32 %v7788, %v7754
      %v7790 = vadd.f32 %v7789, %v7755
      %v7791 = vadd.f32 %v7790, %v7756
      %v7792 = vadd.f32 %v7791, %v7757
      %v7793 = vadd.f32 %v7792, %v7758
      %v7794 = vadd.f32 %v7793, %v7759
      %v7795 = vadd.f32 %v7794, %v7760
      %v7796 = vadd.f32 %v7795, %v7761
      %v7797 = vadd.f32 %v7796, %v7762
      %v7798 = vadd.f32 %v7797, %v7763
      %v7799 = vadd.f32 %v7798, %v7764
      %v7800 = vadd.f32 %v7799, %v7765
      %v7801 = vadd.f32 %v7800, %v7766
      %v7802 = vadd.f32 %v7801, %v7767
      %v7803 = vadd.f32 %v7802, %v7768
      %v7804 = vadd.f32 %v7803, %v7769
      %7805 = vadd.xlane.f32.xlu0 %v7804
      %v7806 = vpop.xlane.xlu0 %7805
      %v7807 = vrot.slane %v7806, 4
      %v7808 = vadd.f32 %v7806, %v7807
      %v7809 = vrot.slane %v7808, 2
      %v7810 = vadd.f32 %v7808, %v7809
      %v7811 = vrot.slane %v7810, 1
      %v7812 = vadd.f32 %v7810, %v7811
      %s7813 = vtos %v7812
      %s7814 = scalar_lea.smem [#allocation13], 1
      %7815 = sst [smem:[%s7814]] %s7813
      %v7816 = vld [vmem:[#allocation4] sm:$0xff]
      %v7817 = vld [vmem:[#allocation4 + $0x8] sm:$0xff]
      %v7818 = vld [vmem:[#allocation4 + $0x10] sm:$0xff]
      %v7819 = vld [vmem:[#allocation4 + $0x18] sm:$0xff]
      %v7820 = vld [vmem:[#allocation4 + $0x20] sm:$0xff]
      %v7821 = vld [vmem:[#allocation4 + $0x28] sm:$0xff]
      %v7822 = vld [vmem:[#allocation4 + $0x30] sm:$0xff]
      %v7823 = vld [vmem:[#allocation4 + $0x38] sm:$0xff]
      %v7824 = vld [vmem:[#allocation4 + $0x40] sm:$0xff]
      %v7825 = vld [vmem:[#allocation4 + $0x48] sm:$0xff]
      %v7826 = vld [vmem:[#allocation4 + $0x50] sm:$0xff]
      %v7827 = vld [vmem:[#allocation4 + $0x58] sm:$0xff]
      %v7828 = vld [vmem:[#allocation4 + $0x60] sm:$0xff]
      %v7829 = vld [vmem:[#allocation4 + $0x68] sm:$0xff]
      %v7830 = vld [vmem:[#allocation4 + $0x70] sm:$0xff]
      %v7831 = vld [vmem:[#allocation4 + $0x78] sm:$0xff]
      %v7832 = vld [vmem:[#allocation4 + $0x80] sm:$0xff]
      %v7833 = vld [vmem:[#allocation4 + $0x88] sm:$0xff]
      %v7834 = vld [vmem:[#allocation4 + $0x90] sm:$0xff]
      %v7835 = vld [vmem:[#allocation4 + $0x98] sm:$0xff]
      %v7836 = vld [vmem:[#allocation4 + $0xa0] sm:$0xff]
      %v7837 = vld [vmem:[#allocation4 + $0xa8] sm:$0xff]
      %v7838 = vld [vmem:[#allocation4 + $0xb0] sm:$0xff]
      %v7839 = vld [vmem:[#allocation4 + $0xb8] sm:$0xff]
      %v7840 = vld [vmem:[#allocation4 + $0xc0] sm:$0xff]
      %v7841 = vld [vmem:[#allocation4 + $0xc8] sm:$0xff]
      %v7842 = vld [vmem:[#allocation4 + $0xd0] sm:$0xff]
      %v7843 = vld [vmem:[#allocation4 + $0xd8] sm:$0xff]
      %v7844 = vld [vmem:[#allocation4 + $0xe0] sm:$0xff]
      %v7845 = vld [vmem:[#allocation4 + $0xe8] sm:$0xff]
      %v7846 = vld [vmem:[#allocation4 + $0xf0] sm:$0xff]
      %v7847 = vld [vmem:[#allocation4 + $0xf8] sm:$0xff]
      %v7848 = vld [vmem:[#allocation4 + $0x100] sm:$0xff]
      %v7849 = vld [vmem:[#allocation4 + $0x108] sm:$0xff]
      %v7850 = vld [vmem:[#allocation4 + $0x110] sm:$0xff]
      %v7851 = vld [vmem:[#allocation4 + $0x118] sm:$0xff]
      %v7852 = vadd.f32 %v7816, %v7817
      %v7853 = vadd.f32 %v7852, %v7818
      %v7854 = vadd.f32 %v7853, %v7819
      %v7855 = vadd.f32 %v7854, %v7820
      %v7856 = vadd.f32 %v7855, %v7821
      %v7857 = vadd.f32 %v7856, %v7822
      %v7858 = vadd.f32 %v7857, %v7823
      %v7859 = vadd.f32 %v7858, %v7824
      %v7860 = vadd.f32 %v7859, %v7825
      %v7861 = vadd.f32 %v7860, %v7826
      %v7862 = vadd.f32 %v7861, %v7827
      %v7863 = vadd.f32 %v7862, %v7828
      %v7864 = vadd.f32 %v7863, %v7829
      %v7865 = vadd.f32 %v7864, %v7830
      %v7866 = vadd.f32 %v7865, %v7831
      %v7867 = vadd.f32 %v7866, %v7832
      %v7868 = vadd.f32 %v7867, %v7833
      %v7869 = vadd.f32 %v7868, %v7834
      %v7870 = vadd.f32 %v7869, %v7835
      %v7871 = vadd.f32 %v7870, %v7836
      %v7872 = vadd.f32 %v7871, %v7837
      %v7873 = vadd.f32 %v7872, %v7838
      %v7874 = vadd.f32 %v7873, %v7839
      %v7875 = vadd.f32 %v7874, %v7840
      %v7876 = vadd.f32 %v7875, %v7841
      %v7877 = vadd.f32 %v7876, %v7842
      %v7878 = vadd.f32 %v7877, %v7843
      %v7879 = vadd.f32 %v7878, %v7844
      %v7880 = vadd.f32 %v7879, %v7845
      %v7881 = vadd.f32 %v7880, %v7846
      %v7882 = vadd.f32 %v7881, %v7847
      %v7883 = vadd.f32 %v7882, %v7848
      %v7884 = vadd.f32 %v7883, %v7849
      %v7885 = vadd.f32 %v7884, %v7850
      %v7886 = vadd.f32 %v7885, %v7851
      %7887 = vadd.xlane.f32.xlu0 %v7886
      %v7888 = vpop.xlane.xlu0 %7887
      %v7889 = vrot.slane %v7888, 4
      %v7890 = vadd.f32 %v7888, %v7889
      %v7891 = vrot.slane %v7890, 2
      %v7892 = vadd.f32 %v7890, %v7891
      %v7893 = vrot.slane %v7892, 1
      %v7894 = vadd.f32 %v7892, %v7893
      %s7895 = vtos %v7894
      %s7896 = scalar_lea.smem [#allocation13], 2
      %7897 = sst [smem:[%s7896]] %s7895
    $region41: #{tpu_custom_call.1} parent=1 // pred_fallthru
      _
    // Predicated region
    $region42: #{tpu_custom_call.1} parent=1 // pred_check
      _
    $region43: #{tpu_custom_call.1} parent=1 // pred_check_branch
      %7899 = sbr.rel (0) target = $region45
    $region44: #{tpu_custom_call.1} parent=1 // pred_region
      %s7901 = ssub.s32 16, 16
      %7902 = vsyncadd [#allocation7], %s7901
      %7905 = dma.smem_to_hbm [#allocation13], 16, %s4, [#allocation7]
    $region45: #{tpu_custom_call.1} parent=1 // pred_fallthru
      _
    // Predicated region
    $region46: #{tpu_custom_call.1} parent=1 // pred_check
      _
    $region47: #{tpu_custom_call.1} parent=1 // pred_check_branch
      %7907 = sbr.rel (0) target = $region49
    $region48: #{tpu_custom_call.1} parent=1 // pred_region
      %7908 = dma.done [#allocation7], 16
    $region49: #{tpu_custom_call.1} parent=1 // pred_fallthru
      _
    %7909 = sfence
    %7910 = vsyncpa [#allocation6], 1
    %7911 = vsyncpa [#allocation9], 1
    %7912 = vsyncpa [#allocation12], 1
    %7913 = vsyncpa [#allocation7], 1

</llo_original>
